<compile_context>
chip_gen: v5e
topology: v5e:2x2
jax: 0.10.0
libtpu: 0.0.40
codegen_flags: <defaults>
</compile_context>

<pallas_src>
import functools

import jax
import jax.numpy as jnp
from jax.experimental import pallas as pl
from jax.experimental.pallas import tpu as pltpu


# ----------------------------------------------------------------------------
# Conv-stem matmul kernel: C = A @ B + bias  (bf16 operands, f32 accumulation)
# Full-K block => single accumulation step, no K grid, no scratch accumulator.
# ----------------------------------------------------------------------------
def _matmul_bias_kernel(a_ref, b_ref, bias_ref, o_ref):
    acc = jnp.dot(a_ref[...], b_ref[...], preferred_element_type=jnp.float32)
    o_ref[...] = (acc + bias_ref[...]).astype(o_ref.dtype)


def pallas_matmul(a, b, bias2d, *, out_dtype=jnp.float32):
    """A: (M, K) bf16, B: (K, N) bf16, bias2d: (1, N) f32.  No per-call padding."""
    M, K = a.shape
    K2, N = b.shape
    assert K == K2
    # M tile: divide M exactly (full-extent block is always legal).
    if M % 256 == 0:
        tm = 256
    elif M % 128 == 0:
        tm = 128
    else:
        tm = M
    # N tile: split lane-dense N so deep convs expose >=2 tiles (v7x megacore);
    # otherwise take the full (possibly lane-sparse) extent.
    if N % 128 == 0 and N >= 256:
        tn = 128
    else:
        tn = N
    grid = (M // tm, N // tn)
    return pl.pallas_call(
        _matmul_bias_kernel,
        out_shape=jax.ShapeDtypeStruct((M, N), out_dtype),
        grid=grid,
        in_specs=[
            pl.BlockSpec((tm, K), lambda i, j: (i, 0)),
            pl.BlockSpec((K, tn), lambda i, j: (0, j)),
            pl.BlockSpec((1, tn), lambda i, j: (0, j)),
        ],
        out_specs=pl.BlockSpec((tm, tn), lambda i, j: (i, j)),
        compiler_params=pltpu.CompilerParams(
            dimension_semantics=("parallel", "parallel"),
            vmem_limit_bytes=32 * 1024 * 1024,
        ),
    )(a, b, bias2d)


# ----------------------------------------------------------------------------
# Conv2d via im2col (plain-JAX gather, bf16 patches) + Pallas matmul
# ----------------------------------------------------------------------------
# TODO(synk): stream the 3x3 conv from a VMEM-resident input tile instead of
# materializing the 9x im2col patches in HBM (matters most on v5e bandwidth).
def _im2col(x_nhwc, ksize, stride, pad):
    B, H, W, C = x_nhwc.shape
    if ksize == 1 and stride == 1 and pad == 0:
        return x_nhwc.reshape(B * H * W, C), H, W
    xp = jnp.pad(x_nhwc, ((0, 0), (pad, pad), (pad, pad), (0, 0)))
    OH = (H + 2 * pad - ksize) // stride + 1
    OW = (W + 2 * pad - ksize) // stride + 1
    cols = []
    for kh in range(ksize):
        for kw in range(ksize):
            cols.append(xp[:, kh:kh + stride * OH:stride,
                           kw:kw + stride * OW:stride, :])
    patches = jnp.stack(cols, axis=3)              # (B, OH, OW, K*K, C)
    return patches.reshape(B * OH * OW, ksize * ksize * C), OH, OW


def conv2d(x_nhwc, w_mat, bias2d, *, ksize, stride, pad, out_dtype):
    """w_mat: pre-reordered (KH*KW*Cin, Cout) bf16 weight; bias2d: (1, Cout) f32."""
    B = x_nhwc.shape[0]
    Cout = w_mat.shape[1]
    patches, OH, OW = _im2col(x_nhwc.astype(jnp.bfloat16), ksize, stride, pad)
    out = pallas_matmul(patches, w_mat, bias2d, out_dtype=out_dtype)
    return out.reshape(B, OH, OW, Cout)


# ----------------------------------------------------------------------------
# Fused transformer (+ pooling + head) kernel — one grid step per batch element
# ----------------------------------------------------------------------------
def _layernorm(x, g, b, eps=1e-5):                 # eps matches nn.LayerNorm
    mu = jnp.mean(x, axis=-1, keepdims=True)
    var = jnp.mean(jnp.square(x - mu), axis=-1, keepdims=True)
    return (x - mu) * jax.lax.rsqrt(var + eps) * g + b


def _gelu_tanh(x):
    # TODO(synk): nn.GELU default is exact erf-GELU; tanh approximation used
    # here to guarantee clean Mosaic lowering (tanh runs on the EUP).
    return 0.5 * x * (1.0 + jnp.tanh(0.7978845608028654 *
                                     (x + 0.044715 * x * x * x)))


def _transformer_kernel(x_ref, ln1g_ref, ln1b_ref, wqkv_ref, wo_ref, bo_ref,
                        ln2g_ref, ln2b_ref, wff1_ref, bff1_ref, wff2_ref,
                        bff2_ref, hlng_ref, hlnb_ref, whead_ref, bhead_ref,
                        o_ref, *, depth, heads, dim_head, pool):
    inner = heads * dim_head
    x = x_ref[0]                                               # (Ntok, D) f32

    for d in range(depth):                                     # static layer loop
        # ---- PreNorm(Attention) + residual -------------------------------
        xn = _layernorm(x, ln1g_ref[d], ln1b_ref[d]).astype(jnp.bfloat16)
        # single lane-dense QKV matmul: (Ntok, D) x (D, 3*inner)
        qkv = jnp.dot(xn, wqkv_ref[d], preferred_element_type=jnp.float32)
        head_outs = []
        for h in range(heads):                                 # static head loop
            lo = h * dim_head
            qh = qkv[:, lo:lo + dim_head].astype(jnp.bfloat16)
            kh = qkv[:, inner + lo:inner + lo + dim_head].astype(jnp.bfloat16)
            vh = qkv[:, 2 * inner + lo:2 * inner + lo + dim_head].astype(jnp.bfloat16)
            # scores (scale already folded into W_q); contract on dh directly
            s = jax.lax.dot_general(qh, kh, (((1,), (1,)), ((), ())),
                                    preferred_element_type=jnp.float32)
            s = s - jnp.max(s, axis=-1, keepdims=True)         # stable softmax
            p = jnp.exp(s)
            p = p * pl.reciprocal(jnp.sum(p, axis=-1, keepdims=True), approx=True)
            head_outs.append(jnp.dot(p.astype(jnp.bfloat16), vh,
                                     preferred_element_type=jnp.float32))
        attn = jnp.concatenate(head_outs, axis=-1).astype(jnp.bfloat16)  # (Ntok, inner)
        # single lane-dense output projection + bias + residual
        x = x + jnp.dot(attn, wo_ref[d],
                        preferred_element_type=jnp.float32) + bo_ref[d]

        # ---- PreNorm(FeedForward) + residual -----------------------------
        xn = _layernorm(x, ln2g_ref[d], ln2b_ref[d]).astype(jnp.bfloat16)
        hid = jnp.dot(xn, wff1_ref[d],
                      preferred_element_type=jnp.float32) + bff1_ref[d]
        hid = _gelu_tanh(hid)
        x = x + jnp.dot(hid.astype(jnp.bfloat16), wff2_ref[d],
                        preferred_element_type=jnp.float32) + bff2_ref[d]

    # ---- pooling + LayerNorm + Linear head -------------------------------
    if pool == "mean":
        pooled = jnp.mean(x, axis=0, keepdims=True)            # (1, D)
    else:
        pooled = x[0:1, :]                                     # cls token
    pn = _layernorm(pooled, hlng_ref[...], hlnb_ref[...]).astype(jnp.bfloat16)
    logits = jnp.dot(pn, whead_ref[...],
                     preferred_element_type=jnp.float32) + bhead_ref[...]
    o_ref[0] = logits.astype(o_ref.dtype)                      # (1, C)


def transformer_head(x, params, *, heads, dim_head, pool):
    B, Ntok, D = x.shape
    depth = params["w_qkv"].shape[0]
    inner = heads * dim_head
    mlp = params["w_ff1"].shape[-1]
    C = params["w_head"].shape[-1]

    def full(shape):
        nd = len(shape)
        return pl.BlockSpec(shape, lambda b, _nd=nd: (0,) * _nd)

    kernel = functools.partial(_transformer_kernel, depth=depth, heads=heads,
                               dim_head=dim_head, pool=pool)
    out = pl.pallas_call(
        kernel,
        out_shape=jax.ShapeDtypeStruct((B, 1, C), jnp.float32),
        grid=(B,),
        in_specs=[
            pl.BlockSpec((1, Ntok, D), lambda b: (b, 0, 0)),
            full((depth, 1, D)), full((depth, 1, D)),
            full((depth, D, 3 * inner)),
            full((depth, inner, D)), full((depth, 1, D)),
            full((depth, 1, D)), full((depth, 1, D)),
            full((depth, D, mlp)), full((depth, 1, mlp)),
            full((depth, mlp, D)), full((depth, 1, D)),
            full((1, D)), full((1, D)),
            full((D, C)), full((1, C)),
        ],
        out_specs=pl.BlockSpec((1, 1, C), lambda b: (b, 0, 0)),
        compiler_params=pltpu.CompilerParams(
            dimension_semantics=("parallel",),
            vmem_limit_bytes=32 * 1024 * 1024,
        ),
    )(x, params["ln1_g"], params["ln1_b"], params["w_qkv"], params["w_o"],
      params["b_o"], params["ln2_g"], params["ln2_b"], params["w_ff1"],
      params["b_ff1"], params["w_ff2"], params["b_ff2"],
      params["head_ln_g"], params["head_ln_b"],
      params["w_head"], params["b_head"])
    return out[:, 0, :]


# ----------------------------------------------------------------------------
# Parameters (deterministic synthetic init — not a checkpoint load)
# ----------------------------------------------------------------------------
def init_params(key, *, channels, dim, depth, heads, dim_head, mlp_dim,
                num_classes):
    filters = (channels, 48, 96, 192, 384)
    keys = iter(jax.random.split(key, 256))

    def nrm(shape, scale=0.02):
        return scale * jax.random.normal(next(keys), shape, jnp.float32)

    def conv_param(cin, cout, k):
        w = nrm((cout, cin, k, k))                 # PyTorch OIHW layout
        # Reorder ONCE at init so matmul rows match (kh, kw, cin) patch order.
        w_mat = jnp.transpose(w, (2, 3, 1, 0)).reshape(k * k * cin, cout)
        return {"w_mat": w_mat.astype(jnp.bfloat16), "b": nrm((1, cout))}

    inner = heads * dim_head
    scale = dim_head ** (-0.5)

    params = {
        "convs": [conv_param(filters[i], filters[i + 1], 3)
                  for i in range(len(filters) - 1)],
        "conv1x1": conv_param(filters[-1], dim, 1),
        # sized (1, n_filter_list[-1] + 1, dim) as in the PyTorch spec;
        # the forward slices [:, :n+1] exactly like the reference.
        "pos_emb": nrm((1, filters[-1] + 1, dim), 1.0),
        "cls": nrm((1, 1, dim), 1.0),
    }

    w_qkv, w_o, b_o = [], [], []
    ln1_g, ln1_b, ln2_g, ln2_b = [], [], [], []
    w_ff1, b_ff1, w_ff2, b_ff2 = [], [], [], []
    for _ in range(depth):
        wq = nrm((dim, inner)) * scale             # attention scale folded in
        wk = nrm((dim, inner))
        wv = nrm((dim, inner))
        w_qkv.append(jnp.concatenate([wq, wk, wv], axis=1))   # (D, 3*inner)
        w_o.append(nrm((inner, dim)))
        b_o.append(nrm((1, dim)))
        ln1_g.append(jnp.ones((1, dim), jnp.float32))
        ln1_b.append(jnp.zeros((1, dim), jnp.float32))
        ln2_g.append(jnp.ones((1, dim), jnp.float32))
        ln2_b.append(jnp.zeros((1, dim), jnp.float32))
        w_ff1.append(nrm((dim, mlp_dim)))
        b_ff1.append(nrm((1, mlp_dim)))
        w_ff2.append(nrm((mlp_dim, dim)))
        b_ff2.append(nrm((1, dim)))

    params.update({
        "w_qkv": jnp.stack(w_qkv).astype(jnp.bfloat16),
        "w_o": jnp.stack(w_o).astype(jnp.bfloat16),
        "b_o": jnp.stack(b_o),
        "ln1_g": jnp.stack(ln1_g), "ln1_b": jnp.stack(ln1_b),
        "ln2_g": jnp.stack(ln2_g), "ln2_b": jnp.stack(ln2_b),
        "w_ff1": jnp.stack(w_ff1).astype(jnp.bfloat16),
        "b_ff1": jnp.stack(b_ff1),
        "w_ff2": jnp.stack(w_ff2).astype(jnp.bfloat16),
        "b_ff2": jnp.stack(b_ff2),
        "head_ln_g": jnp.ones((1, dim), jnp.float32),
        "head_ln_b": jnp.zeros((1, dim), jnp.float32),
        "w_head": nrm((dim, num_classes)).astype(jnp.bfloat16),
        "b_head": nrm((1, num_classes)),
    })
    return params


# ----------------------------------------------------------------------------
# Forward pass
# ----------------------------------------------------------------------------
def early_conv_vit_forward(img_nchw, params, *, heads, dim_head, pool="cls"):
    x = jnp.transpose(img_nchw, (0, 2, 3, 1))      # NCHW -> NHWC
    # conv stem: 4x (3x3, stride 2, pad 1) in bf16, then 1x1 emitting f32
    for c in params["convs"]:
        x = conv2d(x, c["w_mat"], c["b"], ksize=3, stride=2, pad=1,
                   out_dtype=jnp.bfloat16)
    c = params["conv1x1"]
    x = conv2d(x, c["w_mat"], c["b"], ksize=1, stride=1, pad=0,
               out_dtype=jnp.float32)

    B, H, W, D = x.shape
    n = H * W
    x = x.reshape(B, n, D)                         # 'b c h w -> b (h w) c'

    cls = jnp.broadcast_to(params["cls"], (B, 1, D))
    x = jnp.concatenate([cls, x], axis=1)
    x = x + params["pos_emb"][:, : n + 1]
    # emb dropout -> identity (inference)

    # all transformer layers + pooling + LayerNorm/Linear head in one kernel
    return transformer_head(x, params, heads=heads, dim_head=dim_head, pool=pool)


# ----------------------------------------------------------------------------
if __name__ == "__main__":
    B, C, HW = 2, 3, 32
    # lane-dense model dims (dim / inner / mlp_dim multiples of 128)
    dim, depth, heads, dim_head, mlp_dim, num_classes = 128, 2, 2, 64, 256, 10

    key = jax.random.PRNGKey(0)
    k_img, k_par = jax.random.split(key)
    img = jax.random.normal(k_img, (B, C, HW, HW), jnp.float32)
    params = init_params(k_par, channels=C, dim=dim, depth=depth, heads=heads,
                         dim_head=dim_head, mlp_dim=mlp_dim,
                         num_classes=num_classes)

    fwd = jax.jit(functools.partial(early_conv_vit_forward,
                                    heads=heads, dim_head=dim_head, pool="cls"))
    out = fwd(img, params)
    jax.block_until_ready(out)
    assert out.shape == (B, num_classes)
    assert bool(jnp.all(jnp.isfinite(out)))
    print("KERNEL_OK")
</pallas_src>

<mosaic_0001>
module attributes {stable_mosaic.version = 11 : i64} {
  func.func @_matmul_bias_kernel(%arg0: i32, %arg1: i32, %arg2: memref<256x27xbf16, #tpu.memory_space<vmem>>, %arg3: memref<27x48xbf16, #tpu.memory_space<vmem>>, %arg4: memref<1x48xf32, #tpu.memory_space<vmem>>, %arg5: memref<256x48xbf16, #tpu.memory_space<vmem>>) attributes {dimension_semantics = [#tpu.dimension_semantics<parallel>, #tpu.dimension_semantics<parallel>], iteration_bounds = array<i64: 2, 1>, scalar_prefetch = 0 : i64, scratch_operands = 0 : i64, tpu.core_type = #tpu.core_type<tc>, window_params = [{transform_indices = @transform_0, window_bounds = array<i64: 256, 27>}, {transform_indices = @transform_1, window_bounds = array<i64: 27, 48>}, {transform_indices = @transform_2, window_bounds = array<i64: 1, 48>}, {transform_indices = @transform_3, window_bounds = array<i64: 256, 48>}]} {
    %c0 = arith.constant 0 : index
    %c0_0 = arith.constant 0 : index
    %0 = vector.load %arg2[%c0, %c0_0] : memref<256x27xbf16, #tpu.memory_space<vmem>>, vector<256x27xbf16>
    %c0_1 = arith.constant 0 : index
    %c0_2 = arith.constant 0 : index
    %1 = vector.load %arg3[%c0_1, %c0_2] : memref<27x48xbf16, #tpu.memory_space<vmem>>, vector<27x48xbf16>
    %cst = arith.constant dense<0.000000e+00> : vector<256x48xf32>
    %2 = tpu.matmul %0, %1, %cst {dimension_numbers = #tpu.dot_dimension_numbers<[1], [0], [0], [1], [0, 0, 1, 1], [], []>} : vector<256x27xbf16>, vector<27x48xbf16>, vector<256x48xf32> -> vector<256x48xf32>
    %c0_3 = arith.constant 0 : index
    %c0_4 = arith.constant 0 : index
    %3 = vector.load %arg4[%c0_3, %c0_4] : memref<1x48xf32, #tpu.memory_space<vmem>>, vector<1x48xf32>
    %4 = vector.broadcast %3 : vector<1x48xf32> to vector<256x48xf32>
    %5 = arith.addf %2, %4 : vector<256x48xf32>
    %6 = arith.truncf %5 : vector<256x48xf32> to vector<256x48xbf16>
    %c0_5 = arith.constant 0 : index
    %c0_6 = arith.constant 0 : index
    %7 = vector.load %arg5[%c0_5, %c0_6] : memref<256x48xbf16, #tpu.memory_space<vmem>>, vector<256x48xbf16>
    tpu.vector_store %arg5[%c0_5, %c0_6], %6 {strides = array<i32>} : memref<256x48xbf16, #tpu.memory_space<vmem>>, vector<256x48xbf16>,
    return
  }
  func.func @transform_0(%arg0: i32, %arg1: i32) -> (i32, i32) {
    %c0_i32 = arith.constant 0 : i32
    %c0_i32_0 = arith.constant 0 : i32
    return %arg0, %c0_i32 : i32, i32
  }
  func.func @transform_1(%arg0: i32, %arg1: i32) -> (i32, i32) {
    %c0_i32 = arith.constant 0 : i32
    %c0_i32_0 = arith.constant 0 : i32
    return %c0_i32, %arg1 : i32, i32
  }
  func.func @transform_2(%arg0: i32, %arg1: i32) -> (i32, i32) {
    %c0_i32 = arith.constant 0 : i32
    %c0_i32_0 = arith.constant 0 : i32
    return %c0_i32, %arg1 : i32, i32
  }
  func.func @transform_3(%arg0: i32, %arg1: i32) -> (i32, i32) {
    %c0_i32 = arith.constant 0 : i32
    return %arg0, %arg1 : i32, i32
  }
}

module attributes {stable_mosaic.version = 11 : i64} {
  func.func @_matmul_bias_kernel(%arg0: i32, %arg1: i32, %arg2: memref<128x432xbf16, #tpu.memory_space<vmem>>, %arg3: memref<432x96xbf16, #tpu.memory_space<vmem>>, %arg4: memref<1x96xf32, #tpu.memory_space<vmem>>, %arg5: memref<128x96xbf16, #tpu.memory_space<vmem>>) attributes {dimension_semantics = [#tpu.dimension_semantics<parallel>, #tpu.dimension_semantics<parallel>], iteration_bounds = array<i64: 1, 1>, scalar_prefetch = 0 : i64, scratch_operands = 0 : i64, tpu.core_type = #tpu.core_type<tc>, window_params = [{transform_indices = @transform_0, window_bounds = array<i64: 128, 432>}, {transform_indices = @transform_1, window_bounds = array<i64: 432, 96>}, {transform_indices = @transform_2, window_bounds = array<i64: 1, 96>}, {transform_indices = @transform_3, window_bounds = array<i64: 128, 96>}]} {
    %c0 = arith.constant 0 : index
    %c0_0 = arith.constant 0 : index
    %0 = vector.load %arg2[%c0, %c0_0] : memref<128x432xbf16, #tpu.memory_space<vmem>>, vector<128x432xbf16>
    %c0_1 = arith.constant 0 : index
    %c0_2 = arith.constant 0 : index
    %1 = vector.load %arg3[%c0_1, %c0_2] : memref<432x96xbf16, #tpu.memory_space<vmem>>, vector<432x96xbf16>
    %cst = arith.constant dense<0.000000e+00> : vector<128x96xf32>
    %2 = tpu.matmul %0, %1, %cst {dimension_numbers = #tpu.dot_dimension_numbers<[1], [0], [0], [1], [0, 0, 1, 1], [], []>} : vector<128x432xbf16>, vector<432x96xbf16>, vector<128x96xf32> -> vector<128x96xf32>
    %c0_3 = arith.constant 0 : index
    %c0_4 = arith.constant 0 : index
    %3 = vector.load %arg4[%c0_3, %c0_4] : memref<1x96xf32, #tpu.memory_space<vmem>>, vector<1x96xf32>
    %4 = vector.broadcast %3 : vector<1x96xf32> to vector<128x96xf32>
    %5 = arith.addf %2, %4 : vector<128x96xf32>
    %6 = arith.truncf %5 : vector<128x96xf32> to vector<128x96xbf16>
    %c0_5 = arith.constant 0 : index
    %c0_6 = arith.constant 0 : index
    %7 = vector.load %arg5[%c0_5, %c0_6] : memref<128x96xbf16, #tpu.memory_space<vmem>>, vector<128x96xbf16>
    tpu.vector_store %arg5[%c0_5, %c0_6], %6 {strides = array<i32>} : memref<128x96xbf16, #tpu.memory_space<vmem>>, vector<128x96xbf16>,
    return
  }
  func.func @transform_0(%arg0: i32, %arg1: i32) -> (i32, i32) {
    %c0_i32 = arith.constant 0 : i32
    %c0_i32_0 = arith.constant 0 : i32
    return %arg0, %c0_i32 : i32, i32
  }
  func.func @transform_1(%arg0: i32, %arg1: i32) -> (i32, i32) {
    %c0_i32 = arith.constant 0 : i32
    %c0_i32_0 = arith.constant 0 : i32
    return %c0_i32, %arg1 : i32, i32
  }
  func.func @transform_2(%arg0: i32, %arg1: i32) -> (i32, i32) {
    %c0_i32 = arith.constant 0 : i32
    %c0_i32_0 = arith.constant 0 : i32
    return %c0_i32, %arg1 : i32, i32
  }
  func.func @transform_3(%arg0: i32, %arg1: i32) -> (i32, i32) {
    %c0_i32 = arith.constant 0 : i32
    return %arg0, %arg1 : i32, i32
  }
}

module attributes {stable_mosaic.version = 11 : i64} {
  func.func @_matmul_bias_kernel(%arg0: i32, %arg1: i32, %arg2: memref<32x864xbf16, #tpu.memory_space<vmem>>, %arg3: memref<864x192xbf16, #tpu.memory_space<vmem>>, %arg4: memref<1x192xf32, #tpu.memory_space<vmem>>, %arg5: memref<32x192xbf16, #tpu.memory_space<vmem>>) attributes {dimension_semantics = [#tpu.dimension_semantics<parallel>, #tpu.dimension_semantics<parallel>], iteration_bounds = array<i64: 1, 1>, scalar_prefetch = 0 : i64, scratch_operands = 0 : i64, tpu.core_type = #tpu.core_type<tc>, window_params = [{transform_indices = @transform_0, window_bounds = array<i64: 32, 864>}, {transform_indices = @transform_1, window_bounds = array<i64: 864, 192>}, {transform_indices = @transform_2, window_bounds = array<i64: 1, 192>}, {transform_indices = @transform_3, window_bounds = array<i64: 32, 192>}]} {
    %c0 = arith.constant 0 : index
    %c0_0 = arith.constant 0 : index
    %0 = vector.load %arg2[%c0, %c0_0] : memref<32x864xbf16, #tpu.memory_space<vmem>>, vector<32x864xbf16>
    %c0_1 = arith.constant 0 : index
    %c0_2 = arith.constant 0 : index
    %1 = vector.load %arg3[%c0_1, %c0_2] : memref<864x192xbf16, #tpu.memory_space<vmem>>, vector<864x192xbf16>
    %cst = arith.constant dense<0.000000e+00> : vector<32x192xf32>
    %2 = tpu.matmul %0, %1, %cst {dimension_numbers = #tpu.dot_dimension_numbers<[1], [0], [0], [1], [0, 0, 1, 1], [], []>} : vector<32x864xbf16>, vector<864x192xbf16>, vector<32x192xf32> -> vector<32x192xf32>
    %c0_3 = arith.constant 0 : index
    %c0_4 = arith.constant 0 : index
    %3 = vector.load %arg4[%c0_3, %c0_4] : memref<1x192xf32, #tpu.memory_space<vmem>>, vector<1x192xf32>
    %4 = vector.broadcast %3 : vector<1x192xf32> to vector<32x192xf32>
    %5 = arith.addf %2, %4 : vector<32x192xf32>
    %6 = arith.truncf %5 : vector<32x192xf32> to vector<32x192xbf16>
    %c0_5 = arith.constant 0 : index
    %c0_6 = arith.constant 0 : index
    %7 = vector.load %arg5[%c0_5, %c0_6] : memref<32x192xbf16, #tpu.memory_space<vmem>>, vector<32x192xbf16>
    tpu.vector_store %arg5[%c0_5, %c0_6], %6 {strides = array<i32>} : memref<32x192xbf16, #tpu.memory_space<vmem>>, vector<32x192xbf16>,
    return
  }
  func.func @transform_0(%arg0: i32, %arg1: i32) -> (i32, i32) {
    %c0_i32 = arith.constant 0 : i32
    %c0_i32_0 = arith.constant 0 : i32
    return %arg0, %c0_i32 : i32, i32
  }
  func.func @transform_1(%arg0: i32, %arg1: i32) -> (i32, i32) {
    %c0_i32 = arith.constant 0 : i32
    %c0_i32_0 = arith.constant 0 : i32
    return %c0_i32, %arg1 : i32, i32
  }
  func.func @transform_2(%arg0: i32, %arg1: i32) -> (i32, i32) {
    %c0_i32 = arith.constant 0 : i32
    %c0_i32_0 = arith.constant 0 : i32
    return %c0_i32, %arg1 : i32, i32
  }
  func.func @transform_3(%arg0: i32, %arg1: i32) -> (i32, i32) {
    %c0_i32 = arith.constant 0 : i32
    return %arg0, %arg1 : i32, i32
  }
}

module attributes {stable_mosaic.version = 11 : i64} {
  func.func @_matmul_bias_kernel(%arg0: i32, %arg1: i32, %arg2: memref<8x1728xbf16, #tpu.memory_space<vmem>>, %arg3: memref<1728x128xbf16, #tpu.memory_space<vmem>>, %arg4: memref<1x128xf32, #tpu.memory_space<vmem>>, %arg5: memref<8x128xbf16, #tpu.memory_space<vmem>>) attributes {dimension_semantics = [#tpu.dimension_semantics<parallel>, #tpu.dimension_semantics<parallel>], iteration_bounds = array<i64: 1, 3>, scalar_prefetch = 0 : i64, scratch_operands = 0 : i64, tpu.core_type = #tpu.core_type<tc>, window_params = [{transform_indices = @transform_0, window_bounds = array<i64: 8, 1728>}, {transform_indices = @transform_1, window_bounds = array<i64: 1728, 128>}, {transform_indices = @transform_2, window_bounds = array<i64: 1, 128>}, {transform_indices = @transform_3, window_bounds = array<i64: 8, 128>}]} {
    %c0 = arith.constant 0 : index
    %c0_0 = arith.constant 0 : index
    %0 = vector.load %arg2[%c0, %c0_0] : memref<8x1728xbf16, #tpu.memory_space<vmem>>, vector<8x1728xbf16>
    %c0_1 = arith.constant 0 : index
    %c0_2 = arith.constant 0 : index
    %1 = vector.load %arg3[%c0_1, %c0_2] : memref<1728x128xbf16, #tpu.memory_space<vmem>>, vector<1728x128xbf16>
    %cst = arith.constant dense<0.000000e+00> : vector<8x128xf32>
    %2 = tpu.matmul %0, %1, %cst {dimension_numbers = #tpu.dot_dimension_numbers<[1], [0], [0], [1], [0, 0, 1, 1], [], []>} : vector<8x1728xbf16>, vector<1728x128xbf16>, vector<8x128xf32> -> vector<8x128xf32>
    %c0_3 = arith.constant 0 : index
    %c0_4 = arith.constant 0 : index
    %3 = vector.load %arg4[%c0_3, %c0_4] : memref<1x128xf32, #tpu.memory_space<vmem>>, vector<1x128xf32>
    %4 = vector.broadcast %3 : vector<1x128xf32> to vector<8x128xf32>
    %5 = arith.addf %2, %4 : vector<8x128xf32>
    %6 = arith.truncf %5 : vector<8x128xf32> to vector<8x128xbf16>
    %c0_5 = arith.constant 0 : index
    %c0_6 = arith.constant 0 : index
    %7 = vector.load %arg5[%c0_5, %c0_6] : memref<8x128xbf16, #tpu.memory_space<vmem>>, vector<8x128xbf16>
    tpu.vector_store %arg5[%c0_5, %c0_6], %6 {strides = array<i32>} : memref<8x128xbf16, #tpu.memory_space<vmem>>, vector<8x128xbf16>,
    return
  }
  func.func @transform_0(%arg0: i32, %arg1: i32) -> (i32, i32) {
    %c0_i32 = arith.constant 0 : i32
    %c0_i32_0 = arith.constant 0 : i32
    return %arg0, %c0_i32 : i32, i32
  }
  func.func @transform_1(%arg0: i32, %arg1: i32) -> (i32, i32) {
    %c0_i32 = arith.constant 0 : i32
    %c0_i32_0 = arith.constant 0 : i32
    return %c0_i32, %arg1 : i32, i32
  }
  func.func @transform_2(%arg0: i32, %arg1: i32) -> (i32, i32) {
    %c0_i32 = arith.constant 0 : i32
    %c0_i32_0 = arith.constant 0 : i32
    return %c0_i32, %arg1 : i32, i32
  }
  func.func @transform_3(%arg0: i32, %arg1: i32) -> (i32, i32) {
    %c0_i32 = arith.constant 0 : i32
    return %arg0, %arg1 : i32, i32
  }
}

module attributes {stable_mosaic.version = 11 : i64} {
  func.func @_matmul_bias_kernel(%arg0: i32, %arg1: i32, %arg2: memref<8x384xbf16, #tpu.memory_space<vmem>>, %arg3: memref<384x128xbf16, #tpu.memory_space<vmem>>, %arg4: memref<1x128xf32, #tpu.memory_space<vmem>>, %arg5: memref<8x128xf32, #tpu.memory_space<vmem>>) attributes {dimension_semantics = [#tpu.dimension_semantics<parallel>, #tpu.dimension_semantics<parallel>], iteration_bounds = array<i64: 1, 1>, scalar_prefetch = 0 : i64, scratch_operands = 0 : i64, tpu.core_type = #tpu.core_type<tc>, window_params = [{transform_indices = @transform_0, window_bounds = array<i64: 8, 384>}, {transform_indices = @transform_1, window_bounds = array<i64: 384, 128>}, {transform_indices = @transform_2, window_bounds = array<i64: 1, 128>}, {transform_indices = @transform_3, window_bounds = array<i64: 8, 128>}]} {
    %c0 = arith.constant 0 : index
    %c0_0 = arith.constant 0 : index
    %0 = vector.load %arg2[%c0, %c0_0] : memref<8x384xbf16, #tpu.memory_space<vmem>>, vector<8x384xbf16>
    %c0_1 = arith.constant 0 : index
    %c0_2 = arith.constant 0 : index
    %1 = vector.load %arg3[%c0_1, %c0_2] : memref<384x128xbf16, #tpu.memory_space<vmem>>, vector<384x128xbf16>
    %cst = arith.constant dense<0.000000e+00> : vector<8x128xf32>
    %2 = tpu.matmul %0, %1, %cst {dimension_numbers = #tpu.dot_dimension_numbers<[1], [0], [0], [1], [0, 0, 1, 1], [], []>} : vector<8x384xbf16>, vector<384x128xbf16>, vector<8x128xf32> -> vector<8x128xf32>
    %c0_3 = arith.constant 0 : index
    %c0_4 = arith.constant 0 : index
    %3 = vector.load %arg4[%c0_3, %c0_4] : memref<1x128xf32, #tpu.memory_space<vmem>>, vector<1x128xf32>
    %4 = vector.broadcast %3 : vector<1x128xf32> to vector<8x128xf32>
    %5 = arith.addf %2, %4 : vector<8x128xf32>
    %c0_5 = arith.constant 0 : index
    %c0_6 = arith.constant 0 : index
    %6 = vector.load %arg5[%c0_5, %c0_6] : memref<8x128xf32, #tpu.memory_space<vmem>>, vector<8x128xf32>
    tpu.vector_store %arg5[%c0_5, %c0_6], %5 {strides = array<i32>} : memref<8x128xf32, #tpu.memory_space<vmem>>, vector<8x128xf32>,
    return
  }
  func.func @transform_0(%arg0: i32, %arg1: i32) -> (i32, i32) {
    %c0_i32 = arith.constant 0 : i32
    %c0_i32_0 = arith.constant 0 : i32
    return %arg0, %c0_i32 : i32, i32
  }
  func.func @transform_1(%arg0: i32, %arg1: i32) -> (i32, i32) {
    %c0_i32 = arith.constant 0 : i32
    %c0_i32_0 = arith.constant 0 : i32
    return %c0_i32, %arg1 : i32, i32
  }
  func.func @transform_2(%arg0: i32, %arg1: i32) -> (i32, i32) {
    %c0_i32 = arith.constant 0 : i32
    %c0_i32_0 = arith.constant 0 : i32
    return %c0_i32, %arg1 : i32, i32
  }
  func.func @transform_3(%arg0: i32, %arg1: i32) -> (i32, i32) {
    %c0_i32 = arith.constant 0 : i32
    return %arg0, %arg1 : i32, i32
  }
}

module attributes {stable_mosaic.version = 11 : i64} {
  func.func @_transformer_kernel(%arg0: i32, %arg1: memref<1x5x128xf32, #tpu.memory_space<vmem>>, %arg2: memref<2x1x128xf32, #tpu.memory_space<vmem>>, %arg3: memref<2x1x128xf32, #tpu.memory_space<vmem>>, %arg4: memref<2x128x384xbf16, #tpu.memory_space<vmem>>, %arg5: memref<2x128x128xbf16, #tpu.memory_space<vmem>>, %arg6: memref<2x1x128xf32, #tpu.memory_space<vmem>>, %arg7: memref<2x1x128xf32, #tpu.memory_space<vmem>>, %arg8: memref<2x1x128xf32, #tpu.memory_space<vmem>>, %arg9: memref<2x128x256xbf16, #tpu.memory_space<vmem>>, %arg10: memref<2x1x256xf32, #tpu.memory_space<vmem>>, %arg11: memref<2x256x128xbf16, #tpu.memory_space<vmem>>, %arg12: memref<2x1x128xf32, #tpu.memory_space<vmem>>, %arg13: memref<1x128xf32, #tpu.memory_space<vmem>>, %arg14: memref<1x128xf32, #tpu.memory_space<vmem>>, %arg15: memref<128x10xbf16, #tpu.memory_space<vmem>>, %arg16: memref<1x10xf32, #tpu.memory_space<vmem>>, %arg17: memref<1x1x10xf32, #tpu.memory_space<vmem>>) attributes {dimension_semantics = [#tpu.dimension_semantics<parallel>], iteration_bounds = array<i64: 2>, scalar_prefetch = 0 : i64, scratch_operands = 0 : i64, tpu.core_type = #tpu.core_type<tc>, window_params = [{transform_indices = @transform_0, window_bounds = array<i64: 1, 5, 128>}, {pipeline_mode = #tpu.pipeline_mode<synchronous>, transform_indices = @transform_1, window_bounds = array<i64: 2, 1, 128>}, {pipeline_mode = #tpu.pipeline_mode<synchronous>, transform_indices = @transform_2, window_bounds = array<i64: 2, 1, 128>}, {pipeline_mode = #tpu.pipeline_mode<synchronous>, transform_indices = @transform_3, window_bounds = array<i64: 2, 128, 384>}, {pipeline_mode = #tpu.pipeline_mode<synchronous>, transform_indices = @transform_4, window_bounds = array<i64: 2, 128, 128>}, {pipeline_mode = #tpu.pipeline_mode<synchronous>, transform_indices = @transform_5, window_bounds = array<i64: 2, 1, 128>}, {pipeline_mode = #tpu.pipeline_mode<synchronous>, transform_indices = @transform_6, window_bounds = array<i64: 2, 1, 128>}, {pipeline_mode = #tpu.pipeline_mode<synchronous>, transform_indices = @transform_7, window_bounds = array<i64: 2, 1, 128>}, {pipeline_mode = #tpu.pipeline_mode<synchronous>, transform_indices = @transform_8, window_bounds = array<i64: 2, 128, 256>}, {pipeline_mode = #tpu.pipeline_mode<synchronous>, transform_indices = @transform_9, window_bounds = array<i64: 2, 1, 256>}, {pipeline_mode = #tpu.pipeline_mode<synchronous>, transform_indices = @transform_10, window_bounds = array<i64: 2, 256, 128>}, {pipeline_mode = #tpu.pipeline_mode<synchronous>, transform_indices = @transform_11, window_bounds = array<i64: 2, 1, 128>}, {pipeline_mode = #tpu.pipeline_mode<synchronous>, transform_indices = @transform_12, window_bounds = array<i64: 1, 128>}, {pipeline_mode = #tpu.pipeline_mode<synchronous>, transform_indices = @transform_13, window_bounds = array<i64: 1, 128>}, {pipeline_mode = #tpu.pipeline_mode<synchronous>, transform_indices = @transform_14, window_bounds = array<i64: 128, 10>}, {pipeline_mode = #tpu.pipeline_mode<synchronous>, transform_indices = @transform_15, window_bounds = array<i64: 1, 10>}, {transform_indices = @transform_16, window_bounds = array<i64: 1, 1, 10>}]} {
    %c0 = arith.constant 0 : index
    %c0_0 = arith.constant 0 : index
    %c0_1 = arith.constant 0 : index
    %0 = vector.load %arg1[%c0, %c0_0, %c0_1] : memref<1x5x128xf32, #tpu.memory_space<vmem>>, vector<1x5x128xf32>
    %1 = vector.shape_cast %0 : vector<1x5x128xf32> to vector<5x128xf32>
    %c0_2 = arith.constant 0 : index
    %c0_3 = arith.constant 0 : index
    %c0_4 = arith.constant 0 : index
    %2 = vector.load %arg2[%c0_2, %c0_3, %c0_4] : memref<2x1x128xf32, #tpu.memory_space<vmem>>, vector<1x1x128xf32>
    %3 = vector.shape_cast %2 : vector<1x1x128xf32> to vector<1x128xf32>
    %c0_5 = arith.constant 0 : index
    %c0_6 = arith.constant 0 : index
    %c0_7 = arith.constant 0 : index
    %4 = vector.load %arg3[%c0_5, %c0_6, %c0_7] : memref<2x1x128xf32, #tpu.memory_space<vmem>>, vector<1x1x128xf32>
    %5 = vector.shape_cast %4 : vector<1x1x128xf32> to vector<1x128xf32>
    %cst = arith.constant dense<0.000000e+00> : vector<5xf32>
    %6 = vector.multi_reduction <add>, %1, %cst [1] : vector<5x128xf32> to vector<5xf32>
    %7 = vector.shape_cast %6 : vector<5xf32> to vector<5x1xf32>
    %cst_8 = arith.constant 1.280000e+02 : f32
    %8 = vector.broadcast %cst_8 : f32 to vector<5x1xf32>
    %9 = arith.divf %7, %8 : vector<5x1xf32>
    %10 = vector.broadcast %9 : vector<5x1xf32> to vector<5x128xf32>
    %11 = arith.subf %1, %10 : vector<5x128xf32>
    %12 = arith.mulf %11, %11 : vector<5x128xf32>
    %cst_9 = arith.constant dense<0.000000e+00> : vector<5xf32>
    %13 = vector.multi_reduction <add>, %12, %cst_9 [1] : vector<5x128xf32> to vector<5xf32>
    %14 = vector.shape_cast %13 : vector<5xf32> to vector<5x1xf32>
    %cst_10 = arith.constant 1.280000e+02 : f32
    %15 = vector.broadcast %cst_10 : f32 to vector<5x1xf32>
    %16 = arith.divf %14, %15 : vector<5x1xf32>
    %17 = vector.broadcast %9 : vector<5x1xf32> to vector<5x128xf32>
    %18 = arith.subf %1, %17 : vector<5x128xf32>
    %cst_11 = arith.constant 9.99999974E-6 : f32
    %19 = vector.broadcast %cst_11 : f32 to vector<5x1xf32>
    %20 = arith.addf %16, %19 : vector<5x1xf32>
    %21 = math.rsqrt %20 : vector<5x1xf32>
    %22 = vector.broadcast %21 : vector<5x1xf32> to vector<5x128xf32>
    %23 = arith.mulf %18, %22 : vector<5x128xf32>
    %24 = vector.broadcast %3 : vector<1x128xf32> to vector<5x128xf32>
    %25 = arith.mulf %23, %24 : vector<5x128xf32>
    %26 = vector.broadcast %5 : vector<1x128xf32> to vector<5x128xf32>
    %27 = arith.addf %25, %26 : vector<5x128xf32>
    %28 = arith.truncf %27 : vector<5x128xf32> to vector<5x128xbf16>
    %c0_12 = arith.constant 0 : index
    %c0_13 = arith.constant 0 : index
    %c0_14 = arith.constant 0 : index
    %29 = vector.load %arg4[%c0_12, %c0_13, %c0_14] : memref<2x128x384xbf16, #tpu.memory_space<vmem>>, vector<1x128x384xbf16>
    %30 = vector.shape_cast %29 : vector<1x128x384xbf16> to vector<128x384xbf16>
    %cst_15 = arith.constant dense<0.000000e+00> : vector<5x384xf32>
    %31 = tpu.matmul %28, %30, %cst_15 {dimension_numbers = #tpu.dot_dimension_numbers<[1], [0], [0], [1], [0, 0, 1, 1], [], []>} : vector<5x128xbf16>, vector<128x384xbf16>, vector<5x384xf32> -> vector<5x384xf32>
    %32 = vector.extract_strided_slice %31 {offsets = [0, 0], sizes = [5, 64], strides = [1, 1]} : vector<5x384xf32> to vector<5x64xf32>
    %33 = arith.truncf %32 : vector<5x64xf32> to vector<5x64xbf16>
    %34 = vector.extract_strided_slice %31 {offsets = [0, 128], sizes = [5, 64], strides = [1, 1]} : vector<5x384xf32> to vector<5x64xf32>
    %35 = arith.truncf %34 : vector<5x64xf32> to vector<5x64xbf16>
    %36 = vector.extract_strided_slice %31 {offsets = [0, 256], sizes = [5, 64], strides = [1, 1]} : vector<5x384xf32> to vector<5x64xf32>
    %37 = arith.truncf %36 : vector<5x64xf32> to vector<5x64xbf16>
    %cst_16 = arith.constant dense<0.000000e+00> : vector<5x5xf32>
    %38 = tpu.matmul %33, %35, %cst_16 {dimension_numbers = #tpu.dot_dimension_numbers<[1], [1], [0], [0], [0, 0, 1, 0], [], []>} : vector<5x64xbf16>, vector<5x64xbf16>, vector<5x5xf32> -> vector<5x5xf32>
    %cst_17 = arith.constant dense<0xFF800000> : vector<5xf32>
    %39 = vector.multi_reduction <maximumf>, %38, %cst_17 [1] : vector<5x5xf32> to vector<5xf32>
    %40 = vector.shape_cast %39 : vector<5xf32> to vector<5x1xf32>
    %41 = vector.broadcast %40 : vector<5x1xf32> to vector<5x5xf32>
    %42 = arith.subf %38, %41 : vector<5x5xf32>
    %43 = math.exp %42 : vector<5x5xf32>
    %cst_18 = arith.constant dense<0.000000e+00> : vector<5xf32>
    %44 = vector.multi_reduction <add>, %43, %cst_18 [1] : vector<5x5xf32> to vector<5xf32>
    %45 = vector.shape_cast %44 : vector<5xf32> to vector<5x1xf32>
    %46 = tpu.reciprocal %45 {approx = true} : vector<5x1xf32> -> vector<5x1xf32>
    %47 = vector.broadcast %46 : vector<5x1xf32> to vector<5x5xf32>
    %48 = arith.mulf %43, %47 : vector<5x5xf32>
    %49 = arith.truncf %48 : vector<5x5xf32> to vector<5x5xbf16>
    %cst_19 = arith.constant dense<0.000000e+00> : vector<5x64xf32>
    %50 = tpu.matmul %49, %37, %cst_19 {dimension_numbers = #tpu.dot_dimension_numbers<[1], [0], [0], [1], [0, 0, 1, 1], [], []>} : vector<5x5xbf16>, vector<5x64xbf16>, vector<5x64xf32> -> vector<5x64xf32>
    %51 = vector.extract_strided_slice %31 {offsets = [0, 64], sizes = [5, 64], strides = [1, 1]} : vector<5x384xf32> to vector<5x64xf32>
    %52 = arith.truncf %51 : vector<5x64xf32> to vector<5x64xbf16>
    %53 = vector.extract_strided_slice %31 {offsets = [0, 192], sizes = [5, 64], strides = [1, 1]} : vector<5x384xf32> to vector<5x64xf32>
    %54 = arith.truncf %53 : vector<5x64xf32> to vector<5x64xbf16>
    %55 = vector.extract_strided_slice %31 {offsets = [0, 320], sizes = [5, 64], strides = [1, 1]} : vector<5x384xf32> to vector<5x64xf32>
    %56 = arith.truncf %55 : vector<5x64xf32> to vector<5x64xbf16>
    %cst_20 = arith.constant dense<0.000000e+00> : vector<5x5xf32>
    %57 = tpu.matmul %52, %54, %cst_20 {dimension_numbers = #tpu.dot_dimension_numbers<[1], [1], [0], [0], [0, 0, 1, 0], [], []>} : vector<5x64xbf16>, vector<5x64xbf16>, vector<5x5xf32> -> vector<5x5xf32>
    %cst_21 = arith.constant dense<0xFF800000> : vector<5xf32>
    %58 = vector.multi_reduction <maximumf>, %57, %cst_21 [1] : vector<5x5xf32> to vector<5xf32>
    %59 = vector.shape_cast %58 : vector<5xf32> to vector<5x1xf32>
    %60 = vector.broadcast %59 : vector<5x1xf32> to vector<5x5xf32>
    %61 = arith.subf %57, %60 : vector<5x5xf32>
    %62 = math.exp %61 : vector<5x5xf32>
    %cst_22 = arith.constant dense<0.000000e+00> : vector<5xf32>
    %63 = vector.multi_reduction <add>, %62, %cst_22 [1] : vector<5x5xf32> to vector<5xf32>
    %64 = vector.shape_cast %63 : vector<5xf32> to vector<5x1xf32>
    %65 = tpu.reciprocal %64 {approx = true} : vector<5x1xf32> -> vector<5x1xf32>
    %66 = vector.broadcast %65 : vector<5x1xf32> to vector<5x5xf32>
    %67 = arith.mulf %62, %66 : vector<5x5xf32>
    %68 = arith.truncf %67 : vector<5x5xf32> to vector<5x5xbf16>
    %cst_23 = arith.constant dense<0.000000e+00> : vector<5x64xf32>
    %69 = tpu.matmul %68, %56, %cst_23 {dimension_numbers = #tpu.dot_dimension_numbers<[1], [0], [0], [1], [0, 0, 1, 1], [], []>} : vector<5x5xbf16>, vector<5x64xbf16>, vector<5x64xf32> -> vector<5x64xf32>
    %70 = tpu.concatenate %50, %69 in 1 : vector<5x64xf32>, vector<5x64xf32> -> vector<5x128xf32>
    %71 = arith.truncf %70 : vector<5x128xf32> to vector<5x128xbf16>
    %c0_24 = arith.constant 0 : index
    %c0_25 = arith.constant 0 : index
    %c0_26 = arith.constant 0 : index
    %72 = vector.load %arg5[%c0_24, %c0_25, %c0_26] : memref<2x128x128xbf16, #tpu.memory_space<vmem>>, vector<1x128x128xbf16>
    %73 = vector.shape_cast %72 : vector<1x128x128xbf16> to vector<128x128xbf16>
    %cst_27 = arith.constant dense<0.000000e+00> : vector<5x128xf32>
    %74 = tpu.matmul %71, %73, %cst_27 {dimension_numbers = #tpu.dot_dimension_numbers<[1], [0], [0], [1], [0, 0, 1, 1], [], []>} : vector<5x128xbf16>, vector<128x128xbf16>, vector<5x128xf32> -> vector<5x128xf32>
    %75 = arith.addf %1, %74 : vector<5x128xf32>
    %c0_28 = arith.constant 0 : index
    %c0_29 = arith.constant 0 : index
    %c0_30 = arith.constant 0 : index
    %76 = vector.load %arg6[%c0_28, %c0_29, %c0_30] : memref<2x1x128xf32, #tpu.memory_space<vmem>>, vector<1x1x128xf32>
    %77 = vector.shape_cast %76 : vector<1x1x128xf32> to vector<1x128xf32>
    %78 = vector.broadcast %77 : vector<1x128xf32> to vector<5x128xf32>
    %79 = arith.addf %75, %78 : vector<5x128xf32>
    %c0_31 = arith.constant 0 : index
    %c0_32 = arith.constant 0 : index
    %c0_33 = arith.constant 0 : index
    %80 = vector.load %arg7[%c0_31, %c0_32, %c0_33] : memref<2x1x128xf32, #tpu.memory_space<vmem>>, vector<1x1x128xf32>
    %81 = vector.shape_cast %80 : vector<1x1x128xf32> to vector<1x128xf32>
    %c0_34 = arith.constant 0 : index
    %c0_35 = arith.constant 0 : index
    %c0_36 = arith.constant 0 : index
    %82 = vector.load %arg8[%c0_34, %c0_35, %c0_36] : memref<2x1x128xf32, #tpu.memory_space<vmem>>, vector<1x1x128xf32>
    %83 = vector.shape_cast %82 : vector<1x1x128xf32> to vector<1x128xf32>
    %cst_37 = arith.constant dense<0.000000e+00> : vector<5xf32>
    %84 = vector.multi_reduction <add>, %79, %cst_37 [1] : vector<5x128xf32> to vector<5xf32>
    %85 = vector.shape_cast %84 : vector<5xf32> to vector<5x1xf32>
    %cst_38 = arith.constant 1.280000e+02 : f32
    %86 = vector.broadcast %cst_38 : f32 to vector<5x1xf32>
    %87 = arith.divf %85, %86 : vector<5x1xf32>
    %88 = vector.broadcast %87 : vector<5x1xf32> to vector<5x128xf32>
    %89 = arith.subf %79, %88 : vector<5x128xf32>
    %90 = arith.mulf %89, %89 : vector<5x128xf32>
    %cst_39 = arith.constant dense<0.000000e+00> : vector<5xf32>
    %91 = vector.multi_reduction <add>, %90, %cst_39 [1] : vector<5x128xf32> to vector<5xf32>
    %92 = vector.shape_cast %91 : vector<5xf32> to vector<5x1xf32>
    %cst_40 = arith.constant 1.280000e+02 : f32
    %93 = vector.broadcast %cst_40 : f32 to vector<5x1xf32>
    %94 = arith.divf %92, %93 : vector<5x1xf32>
    %95 = vector.broadcast %87 : vector<5x1xf32> to vector<5x128xf32>
    %96 = arith.subf %79, %95 : vector<5x128xf32>
    %cst_41 = arith.constant 9.99999974E-6 : f32
    %97 = vector.broadcast %cst_41 : f32 to vector<5x1xf32>
    %98 = arith.addf %94, %97 : vector<5x1xf32>
    %99 = math.rsqrt %98 : vector<5x1xf32>
    %100 = vector.broadcast %99 : vector<5x1xf32> to vector<5x128xf32>
    %101 = arith.mulf %96, %100 : vector<5x128xf32>
    %102 = vector.broadcast %81 : vector<1x128xf32> to vector<5x128xf32>
    %103 = arith.mulf %101, %102 : vector<5x128xf32>
    %104 = vector.broadcast %83 : vector<1x128xf32> to vector<5x128xf32>
    %105 = arith.addf %103, %104 : vector<5x128xf32>
    %106 = arith.truncf %105 : vector<5x128xf32> to vector<5x128xbf16>
    %c0_42 = arith.constant 0 : index
    %c0_43 = arith.constant 0 : index
    %c0_44 = arith.constant 0 : index
    %107 = vector.load %arg9[%c0_42, %c0_43, %c0_44] : memref<2x128x256xbf16, #tpu.memory_space<vmem>>, vector<1x128x256xbf16>
    %108 = vector.shape_cast %107 : vector<1x128x256xbf16> to vector<128x256xbf16>
    %cst_45 = arith.constant dense<0.000000e+00> : vector<5x256xf32>
    %109 = tpu.matmul %106, %108, %cst_45 {dimension_numbers = #tpu.dot_dimension_numbers<[1], [0], [0], [1], [0, 0, 1, 1], [], []>} : vector<5x128xbf16>, vector<128x256xbf16>, vector<5x256xf32> -> vector<5x256xf32>
    %c0_46 = arith.constant 0 : index
    %c0_47 = arith.constant 0 : index
    %c0_48 = arith.constant 0 : index
    %110 = vector.load %arg10[%c0_46, %c0_47, %c0_48] : memref<2x1x256xf32, #tpu.memory_space<vmem>>, vector<1x1x256xf32>
    %111 = vector.shape_cast %110 : vector<1x1x256xf32> to vector<1x256xf32>
    %112 = vector.broadcast %111 : vector<1x256xf32> to vector<5x256xf32>
    %113 = arith.addf %109, %112 : vector<5x256xf32>
    %cst_49 = arith.constant 5.000000e-01 : f32
    %114 = vector.broadcast %cst_49 : f32 to vector<5x256xf32>
    %115 = arith.mulf %114, %113 : vector<5x256xf32>
    %cst_50 = arith.constant 4.471500e-02 : f32
    %116 = vector.broadcast %cst_50 : f32 to vector<5x256xf32>
    %117 = arith.mulf %116, %113 : vector<5x256xf32>
    %118 = arith.mulf %117, %113 : vector<5x256xf32>
    %119 = arith.mulf %118, %113 : vector<5x256xf32>
    %120 = arith.addf %113, %119 : vector<5x256xf32>
    %cst_51 = arith.constant 0.797884583 : f32
    %121 = vector.broadcast %cst_51 : f32 to vector<5x256xf32>
    %122 = arith.mulf %121, %120 : vector<5x256xf32>
    %123 = math.tanh %122 : vector<5x256xf32>
    %cst_52 = arith.constant 1.000000e+00 : f32
    %124 = vector.broadcast %cst_52 : f32 to vector<5x256xf32>
    %125 = arith.addf %124, %123 : vector<5x256xf32>
    %126 = arith.mulf %115, %125 : vector<5x256xf32>
    %127 = arith.truncf %126 : vector<5x256xf32> to vector<5x256xbf16>
    %c0_53 = arith.constant 0 : index
    %c0_54 = arith.constant 0 : index
    %c0_55 = arith.constant 0 : index
    %128 = vector.load %arg11[%c0_53, %c0_54, %c0_55] : memref<2x256x128xbf16, #tpu.memory_space<vmem>>, vector<1x256x128xbf16>
    %129 = vector.shape_cast %128 : vector<1x256x128xbf16> to vector<256x128xbf16>
    %cst_56 = arith.constant dense<0.000000e+00> : vector<5x128xf32>
    %130 = tpu.matmul %127, %129, %cst_56 {dimension_numbers = #tpu.dot_dimension_numbers<[1], [0], [0], [1], [0, 0, 1, 1], [], []>} : vector<5x256xbf16>, vector<256x128xbf16>, vector<5x128xf32> -> vector<5x128xf32>
    %131 = arith.addf %79, %130 : vector<5x128xf32>
    %c0_57 = arith.constant 0 : index
    %c0_58 = arith.constant 0 : index
    %c0_59 = arith.constant 0 : index
    %132 = vector.load %arg12[%c0_57, %c0_58, %c0_59] : memref<2x1x128xf32, #tpu.memory_space<vmem>>, vector<1x1x128xf32>
    %133 = vector.shape_cast %132 : vector<1x1x128xf32> to vector<1x128xf32>
    %134 = vector.broadcast %133 : vector<1x128xf32> to vector<5x128xf32>
    %135 = arith.addf %131, %134 : vector<5x128xf32>
    %c1 = arith.constant 1 : index
    %c0_60 = arith.constant 0 : index
    %c0_61 = arith.constant 0 : index
    %136 = vector.load %arg2[%c1, %c0_60, %c0_61] : memref<2x1x128xf32, #tpu.memory_space<vmem>>, vector<1x1x128xf32>
    %137 = vector.shape_cast %136 : vector<1x1x128xf32> to vector<1x128xf32>
    %c1_62 = arith.constant 1 : index
    %c0_63 = arith.constant 0 : index
    %c0_64 = arith.constant 0 : index
    %138 = vector.load %arg3[%c1_62, %c0_63, %c0_64] : memref<2x1x128xf32, #tpu.memory_space<vmem>>, vector<1x1x128xf32>
    %139 = vector.shape_cast %138 : vector<1x1x128xf32> to vector<1x128xf32>
    %cst_65 = arith.constant dense<0.000000e+00> : vector<5xf32>
    %140 = vector.multi_reduction <add>, %135, %cst_65 [1] : vector<5x128xf32> to vector<5xf32>
    %141 = vector.shape_cast %140 : vector<5xf32> to vector<5x1xf32>
    %cst_66 = arith.constant 1.280000e+02 : f32
    %142 = vector.broadcast %cst_66 : f32 to vector<5x1xf32>
    %143 = arith.divf %141, %142 : vector<5x1xf32>
    %144 = vector.broadcast %143 : vector<5x1xf32> to vector<5x128xf32>
    %145 = arith.subf %135, %144 : vector<5x128xf32>
    %146 = arith.mulf %145, %145 : vector<5x128xf32>
    %cst_67 = arith.constant dense<0.000000e+00> : vector<5xf32>
    %147 = vector.multi_reduction <add>, %146, %cst_67 [1] : vector<5x128xf32> to vector<5xf32>
    %148 = vector.shape_cast %147 : vector<5xf32> to vector<5x1xf32>
    %cst_68 = arith.constant 1.280000e+02 : f32
    %149 = vector.broadcast %cst_68 : f32 to vector<5x1xf32>
    %150 = arith.divf %148, %149 : vector<5x1xf32>
    %151 = vector.broadcast %143 : vector<5x1xf32> to vector<5x128xf32>
    %152 = arith.subf %135, %151 : vector<5x128xf32>
    %cst_69 = arith.constant 9.99999974E-6 : f32
    %153 = vector.broadcast %cst_69 : f32 to vector<5x1xf32>
    %154 = arith.addf %150, %153 : vector<5x1xf32>
    %155 = math.rsqrt %154 : vector<5x1xf32>
    %156 = vector.broadcast %155 : vector<5x1xf32> to vector<5x128xf32>
    %157 = arith.mulf %152, %156 : vector<5x128xf32>
    %158 = vector.broadcast %137 : vector<1x128xf32> to vector<5x128xf32>
    %159 = arith.mulf %157, %158 : vector<5x128xf32>
    %160 = vector.broadcast %139 : vector<1x128xf32> to vector<5x128xf32>
    %161 = arith.addf %159, %160 : vector<5x128xf32>
    %162 = arith.truncf %161 : vector<5x128xf32> to vector<5x128xbf16>
    %c1_70 = arith.constant 1 : index
    %c0_71 = arith.constant 0 : index
    %c0_72 = arith.constant 0 : index
    %163 = vector.load %arg4[%c1_70, %c0_71, %c0_72] : memref<2x128x384xbf16, #tpu.memory_space<vmem>>, vector<1x128x384xbf16>
    %164 = vector.shape_cast %163 : vector<1x128x384xbf16> to vector<128x384xbf16>
    %cst_73 = arith.constant dense<0.000000e+00> : vector<5x384xf32>
    %165 = tpu.matmul %162, %164, %cst_73 {dimension_numbers = #tpu.dot_dimension_numbers<[1], [0], [0], [1], [0, 0, 1, 1], [], []>} : vector<5x128xbf16>, vector<128x384xbf16>, vector<5x384xf32> -> vector<5x384xf32>
    %166 = vector.extract_strided_slice %165 {offsets = [0, 0], sizes = [5, 64], strides = [1, 1]} : vector<5x384xf32> to vector<5x64xf32>
    %167 = arith.truncf %166 : vector<5x64xf32> to vector<5x64xbf16>
    %168 = vector.extract_strided_slice %165 {offsets = [0, 128], sizes = [5, 64], strides = [1, 1]} : vector<5x384xf32> to vector<5x64xf32>
    %169 = arith.truncf %168 : vector<5x64xf32> to vector<5x64xbf16>
    %170 = vector.extract_strided_slice %165 {offsets = [0, 256], sizes = [5, 64], strides = [1, 1]} : vector<5x384xf32> to vector<5x64xf32>
    %171 = arith.truncf %170 : vector<5x64xf32> to vector<5x64xbf16>
    %cst_74 = arith.constant dense<0.000000e+00> : vector<5x5xf32>
    %172 = tpu.matmul %167, %169, %cst_74 {dimension_numbers = #tpu.dot_dimension_numbers<[1], [1], [0], [0], [0, 0, 1, 0], [], []>} : vector<5x64xbf16>, vector<5x64xbf16>, vector<5x5xf32> -> vector<5x5xf32>
    %cst_75 = arith.constant dense<0xFF800000> : vector<5xf32>
    %173 = vector.multi_reduction <maximumf>, %172, %cst_75 [1] : vector<5x5xf32> to vector<5xf32>
    %174 = vector.shape_cast %173 : vector<5xf32> to vector<5x1xf32>
    %175 = vector.broadcast %174 : vector<5x1xf32> to vector<5x5xf32>
    %176 = arith.subf %172, %175 : vector<5x5xf32>
    %177 = math.exp %176 : vector<5x5xf32>
    %cst_76 = arith.constant dense<0.000000e+00> : vector<5xf32>
    %178 = vector.multi_reduction <add>, %177, %cst_76 [1] : vector<5x5xf32> to vector<5xf32>
    %179 = vector.shape_cast %178 : vector<5xf32> to vector<5x1xf32>
    %180 = tpu.reciprocal %179 {approx = true} : vector<5x1xf32> -> vector<5x1xf32>
    %181 = vector.broadcast %180 : vector<5x1xf32> to vector<5x5xf32>
    %182 = arith.mulf %177, %181 : vector<5x5xf32>
    %183 = arith.truncf %182 : vector<5x5xf32> to vector<5x5xbf16>
    %cst_77 = arith.constant dense<0.000000e+00> : vector<5x64xf32>
    %184 = tpu.matmul %183, %171, %cst_77 {dimension_numbers = #tpu.dot_dimension_numbers<[1], [0], [0], [1], [0, 0, 1, 1], [], []>} : vector<5x5xbf16>, vector<5x64xbf16>, vector<5x64xf32> -> vector<5x64xf32>
    %185 = vector.extract_strided_slice %165 {offsets = [0, 64], sizes = [5, 64], strides = [1, 1]} : vector<5x384xf32> to vector<5x64xf32>
    %186 = arith.truncf %185 : vector<5x64xf32> to vector<5x64xbf16>
    %187 = vector.extract_strided_slice %165 {offsets = [0, 192], sizes = [5, 64], strides = [1, 1]} : vector<5x384xf32> to vector<5x64xf32>
    %188 = arith.truncf %187 : vector<5x64xf32> to vector<5x64xbf16>
    %189 = vector.extract_strided_slice %165 {offsets = [0, 320], sizes = [5, 64], strides = [1, 1]} : vector<5x384xf32> to vector<5x64xf32>
    %190 = arith.truncf %189 : vector<5x64xf32> to vector<5x64xbf16>
    %cst_78 = arith.constant dense<0.000000e+00> : vector<5x5xf32>
    %191 = tpu.matmul %186, %188, %cst_78 {dimension_numbers = #tpu.dot_dimension_numbers<[1], [1], [0], [0], [0, 0, 1, 0], [], []>} : vector<5x64xbf16>, vector<5x64xbf16>, vector<5x5xf32> -> vector<5x5xf32>
    %cst_79 = arith.constant dense<0xFF800000> : vector<5xf32>
    %192 = vector.multi_reduction <maximumf>, %191, %cst_79 [1] : vector<5x5xf32> to vector<5xf32>
    %193 = vector.shape_cast %192 : vector<5xf32> to vector<5x1xf32>
    %194 = vector.broadcast %193 : vector<5x1xf32> to vector<5x5xf32>
    %195 = arith.subf %191, %194 : vector<5x5xf32>
    %196 = math.exp %195 : vector<5x5xf32>
    %cst_80 = arith.constant dense<0.000000e+00> : vector<5xf32>
    %197 = vector.multi_reduction <add>, %196, %cst_80 [1] : vector<5x5xf32> to vector<5xf32>
    %198 = vector.shape_cast %197 : vector<5xf32> to vector<5x1xf32>
    %199 = tpu.reciprocal %198 {approx = true} : vector<5x1xf32> -> vector<5x1xf32>
    %200 = vector.broadcast %199 : vector<5x1xf32> to vector<5x5xf32>
    %201 = arith.mulf %196, %200 : vector<5x5xf32>
    %202 = arith.truncf %201 : vector<5x5xf32> to vector<5x5xbf16>
    %cst_81 = arith.constant dense<0.000000e+00> : vector<5x64xf32>
    %203 = tpu.matmul %202, %190, %cst_81 {dimension_numbers = #tpu.dot_dimension_numbers<[1], [0], [0], [1], [0, 0, 1, 1], [], []>} : vector<5x5xbf16>, vector<5x64xbf16>, vector<5x64xf32> -> vector<5x64xf32>
    %204 = tpu.concatenate %184, %203 in 1 : vector<5x64xf32>, vector<5x64xf32> -> vector<5x128xf32>
    %205 = arith.truncf %204 : vector<5x128xf32> to vector<5x128xbf16>
    %c1_82 = arith.constant 1 : index
    %c0_83 = arith.constant 0 : index
    %c0_84 = arith.constant 0 : index
    %206 = vector.load %arg5[%c1_82, %c0_83, %c0_84] : memref<2x128x128xbf16, #tpu.memory_space<vmem>>, vector<1x128x128xbf16>
    %207 = vector.shape_cast %206 : vector<1x128x128xbf16> to vector<128x128xbf16>
    %cst_85 = arith.constant dense<0.000000e+00> : vector<5x128xf32>
    %208 = tpu.matmul %205, %207, %cst_85 {dimension_numbers = #tpu.dot_dimension_numbers<[1], [0], [0], [1], [0, 0, 1, 1], [], []>} : vector<5x128xbf16>, vector<128x128xbf16>, vector<5x128xf32> -> vector<5x128xf32>
    %209 = arith.addf %135, %208 : vector<5x128xf32>
    %c1_86 = arith.constant 1 : index
    %c0_87 = arith.constant 0 : index
    %c0_88 = arith.constant 0 : index
    %210 = vector.load %arg6[%c1_86, %c0_87, %c0_88] : memref<2x1x128xf32, #tpu.memory_space<vmem>>, vector<1x1x128xf32>
    %211 = vector.shape_cast %210 : vector<1x1x128xf32> to vector<1x128xf32>
    %212 = vector.broadcast %211 : vector<1x128xf32> to vector<5x128xf32>
    %213 = arith.addf %209, %212 : vector<5x128xf32>
    %c1_89 = arith.constant 1 : index
    %c0_90 = arith.constant 0 : index
    %c0_91 = arith.constant 0 : index
    %214 = vector.load %arg7[%c1_89, %c0_90, %c0_91] : memref<2x1x128xf32, #tpu.memory_space<vmem>>, vector<1x1x128xf32>
    %215 = vector.shape_cast %214 : vector<1x1x128xf32> to vector<1x128xf32>
    %c1_92 = arith.constant 1 : index
    %c0_93 = arith.constant 0 : index
    %c0_94 = arith.constant 0 : index
    %216 = vector.load %arg8[%c1_92, %c0_93, %c0_94] : memref<2x1x128xf32, #tpu.memory_space<vmem>>, vector<1x1x128xf32>
    %217 = vector.shape_cast %216 : vector<1x1x128xf32> to vector<1x128xf32>
    %cst_95 = arith.constant dense<0.000000e+00> : vector<5xf32>
    %218 = vector.multi_reduction <add>, %213, %cst_95 [1] : vector<5x128xf32> to vector<5xf32>
    %219 = vector.shape_cast %218 : vector<5xf32> to vector<5x1xf32>
    %cst_96 = arith.constant 1.280000e+02 : f32
    %220 = vector.broadcast %cst_96 : f32 to vector<5x1xf32>
    %221 = arith.divf %219, %220 : vector<5x1xf32>
    %222 = vector.broadcast %221 : vector<5x1xf32> to vector<5x128xf32>
    %223 = arith.subf %213, %222 : vector<5x128xf32>
    %224 = arith.mulf %223, %223 : vector<5x128xf32>
    %cst_97 = arith.constant dense<0.000000e+00> : vector<5xf32>
    %225 = vector.multi_reduction <add>, %224, %cst_97 [1] : vector<5x128xf32> to vector<5xf32>
    %226 = vector.shape_cast %225 : vector<5xf32> to vector<5x1xf32>
    %cst_98 = arith.constant 1.280000e+02 : f32
    %227 = vector.broadcast %cst_98 : f32 to vector<5x1xf32>
    %228 = arith.divf %226, %227 : vector<5x1xf32>
    %229 = vector.broadcast %221 : vector<5x1xf32> to vector<5x128xf32>
    %230 = arith.subf %213, %229 : vector<5x128xf32>
    %cst_99 = arith.constant 9.99999974E-6 : f32
    %231 = vector.broadcast %cst_99 : f32 to vector<5x1xf32>
    %232 = arith.addf %228, %231 : vector<5x1xf32>
    %233 = math.rsqrt %232 : vector<5x1xf32>
    %234 = vector.broadcast %233 : vector<5x1xf32> to vector<5x128xf32>
    %235 = arith.mulf %230, %234 : vector<5x128xf32>
    %236 = vector.broadcast %215 : vector<1x128xf32> to vector<5x128xf32>
    %237 = arith.mulf %235, %236 : vector<5x128xf32>
    %238 = vector.broadcast %217 : vector<1x128xf32> to vector<5x128xf32>
    %239 = arith.addf %237, %238 : vector<5x128xf32>
    %240 = arith.truncf %239 : vector<5x128xf32> to vector<5x128xbf16>
    %c1_100 = arith.constant 1 : index
    %c0_101 = arith.constant 0 : index
    %c0_102 = arith.constant 0 : index
    %241 = vector.load %arg9[%c1_100, %c0_101, %c0_102] : memref<2x128x256xbf16, #tpu.memory_space<vmem>>, vector<1x128x256xbf16>
    %242 = vector.shape_cast %241 : vector<1x128x256xbf16> to vector<128x256xbf16>
    %cst_103 = arith.constant dense<0.000000e+00> : vector<5x256xf32>
    %243 = tpu.matmul %240, %242, %cst_103 {dimension_numbers = #tpu.dot_dimension_numbers<[1], [0], [0], [1], [0, 0, 1, 1], [], []>} : vector<5x128xbf16>, vector<128x256xbf16>, vector<5x256xf32> -> vector<5x256xf32>
    %c1_104 = arith.constant 1 : index
    %c0_105 = arith.constant 0 : index
    %c0_106 = arith.constant 0 : index
    %244 = vector.load %arg10[%c1_104, %c0_105, %c0_106] : memref<2x1x256xf32, #tpu.memory_space<vmem>>, vector<1x1x256xf32>
    %245 = vector.shape_cast %244 : vector<1x1x256xf32> to vector<1x256xf32>
    %246 = vector.broadcast %245 : vector<1x256xf32> to vector<5x256xf32>
    %247 = arith.addf %243, %246 : vector<5x256xf32>
    %cst_107 = arith.constant 5.000000e-01 : f32
    %248 = vector.broadcast %cst_107 : f32 to vector<5x256xf32>
    %249 = arith.mulf %248, %247 : vector<5x256xf32>
    %cst_108 = arith.constant 4.471500e-02 : f32
    %250 = vector.broadcast %cst_108 : f32 to vector<5x256xf32>
    %251 = arith.mulf %250, %247 : vector<5x256xf32>
    %252 = arith.mulf %251, %247 : vector<5x256xf32>
    %253 = arith.mulf %252, %247 : vector<5x256xf32>
    %254 = arith.addf %247, %253 : vector<5x256xf32>
    %cst_109 = arith.constant 0.797884583 : f32
    %255 = vector.broadcast %cst_109 : f32 to vector<5x256xf32>
    %256 = arith.mulf %255, %254 : vector<5x256xf32>
    %257 = math.tanh %256 : vector<5x256xf32>
    %cst_110 = arith.constant 1.000000e+00 : f32
    %258 = vector.broadcast %cst_110 : f32 to vector<5x256xf32>
    %259 = arith.addf %258, %257 : vector<5x256xf32>
    %260 = arith.mulf %249, %259 : vector<5x256xf32>
    %261 = arith.truncf %260 : vector<5x256xf32> to vector<5x256xbf16>
    %c1_111 = arith.constant 1 : index
    %c0_112 = arith.constant 0 : index
    %c0_113 = arith.constant 0 : index
    %262 = vector.load %arg11[%c1_111, %c0_112, %c0_113] : memref<2x256x128xbf16, #tpu.memory_space<vmem>>, vector<1x256x128xbf16>
    %263 = vector.shape_cast %262 : vector<1x256x128xbf16> to vector<256x128xbf16>
    %cst_114 = arith.constant dense<0.000000e+00> : vector<5x128xf32>
    %264 = tpu.matmul %261, %263, %cst_114 {dimension_numbers = #tpu.dot_dimension_numbers<[1], [0], [0], [1], [0, 0, 1, 1], [], []>} : vector<5x256xbf16>, vector<256x128xbf16>, vector<5x128xf32> -> vector<5x128xf32>
    %265 = arith.addf %213, %264 : vector<5x128xf32>
    %c1_115 = arith.constant 1 : index
    %c0_116 = arith.constant 0 : index
    %c0_117 = arith.constant 0 : index
    %266 = vector.load %arg12[%c1_115, %c0_116, %c0_117] : memref<2x1x128xf32, #tpu.memory_space<vmem>>, vector<1x1x128xf32>
    %267 = vector.shape_cast %266 : vector<1x1x128xf32> to vector<1x128xf32>
    %268 = vector.broadcast %267 : vector<1x128xf32> to vector<5x128xf32>
    %269 = arith.addf %265, %268 : vector<5x128xf32>
    %270 = vector.extract_strided_slice %269 {offsets = [0, 0], sizes = [1, 128], strides = [1, 1]} : vector<5x128xf32> to vector<1x128xf32>
    %c0_118 = arith.constant 0 : index
    %c0_119 = arith.constant 0 : index
    %271 = vector.load %arg13[%c0_118, %c0_119] : memref<1x128xf32, #tpu.memory_space<vmem>>, vector<1x128xf32>
    %c0_120 = arith.constant 0 : index
    %c0_121 = arith.constant 0 : index
    %272 = vector.load %arg14[%c0_120, %c0_121] : memref<1x128xf32, #tpu.memory_space<vmem>>, vector<1x128xf32>
    %cst_122 = arith.constant dense<0.000000e+00> : vector<1xf32>
    %273 = vector.multi_reduction <add>, %270, %cst_122 [1] : vector<1x128xf32> to vector<1xf32>
    %274 = vector.shape_cast %273 : vector<1xf32> to vector<1x1xf32>
    %cst_123 = arith.constant 1.280000e+02 : f32
    %275 = vector.broadcast %cst_123 : f32 to vector<1x1xf32>
    %276 = arith.divf %274, %275 : vector<1x1xf32>
    %277 = vector.broadcast %276 : vector<1x1xf32> to vector<1x128xf32>
    %278 = arith.subf %270, %277 : vector<1x128xf32>
    %279 = arith.mulf %278, %278 : vector<1x128xf32>
    %cst_124 = arith.constant dense<0.000000e+00> : vector<1xf32>
    %280 = vector.multi_reduction <add>, %279, %cst_124 [1] : vector<1x128xf32> to vector<1xf32>
    %281 = vector.shape_cast %280 : vector<1xf32> to vector<1x1xf32>
    %cst_125 = arith.constant 1.280000e+02 : f32
    %282 = vector.broadcast %cst_125 : f32 to vector<1x1xf32>
    %283 = arith.divf %281, %282 : vector<1x1xf32>
    %284 = vector.broadcast %276 : vector<1x1xf32> to vector<1x128xf32>
    %285 = arith.subf %270, %284 : vector<1x128xf32>
    %cst_126 = arith.constant 9.99999974E-6 : f32
    %286 = vector.broadcast %cst_126 : f32 to vector<1x1xf32>
    %287 = arith.addf %283, %286 : vector<1x1xf32>
    %288 = math.rsqrt %287 : vector<1x1xf32>
    %289 = vector.broadcast %288 : vector<1x1xf32> to vector<1x128xf32>
    %290 = arith.mulf %285, %289 : vector<1x128xf32>
    %291 = arith.mulf %290, %271 : vector<1x128xf32>
    %292 = arith.addf %291, %272 : vector<1x128xf32>
    %293 = arith.truncf %292 : vector<1x128xf32> to vector<1x128xbf16>
    %c0_127 = arith.constant 0 : index
    %c0_128 = arith.constant 0 : index
    %294 = vector.load %arg15[%c0_127, %c0_128] : memref<128x10xbf16, #tpu.memory_space<vmem>>, vector<128x10xbf16>
    %cst_129 = arith.constant dense<0.000000e+00> : vector<1x10xf32>
    %295 = tpu.matmul %293, %294, %cst_129 {dimension_numbers = #tpu.dot_dimension_numbers<[1], [0], [0], [1], [0, 0, 1, 1], [], []>} : vector<1x128xbf16>, vector<128x10xbf16>, vector<1x10xf32> -> vector<1x10xf32>
    %c0_130 = arith.constant 0 : index
    %c0_131 = arith.constant 0 : index
    %296 = vector.load %arg16[%c0_130, %c0_131] : memref<1x10xf32, #tpu.memory_space<vmem>>, vector<1x10xf32>
    %297 = arith.addf %295, %296 : vector<1x10xf32>
    %c0_132 = arith.constant 0 : index
    %c0_133 = arith.constant 0 : index
    %c0_134 = arith.constant 0 : index
    %298 = vector.load %arg17[%c0_132, %c0_133, %c0_134] : memref<1x1x10xf32, #tpu.memory_space<vmem>>, vector<1x1x10xf32>
    %299 = vector.shape_cast %298 : vector<1x1x10xf32> to vector<1x10xf32>
    %300 = vector.shape_cast %297 : vector<1x10xf32> to vector<1x1x10xf32>
    tpu.vector_store %arg17[%c0_132, %c0_133, %c0_134], %300 {strides = array<i32>} : memref<1x1x10xf32, #tpu.memory_space<vmem>>, vector<1x1x10xf32>,
    return
  }
  func.func @transform_0(%arg0: i32) -> (i32, i32, i32) {
    %c0_i32 = arith.constant 0 : i32
    %c0_i32_0 = arith.constant 0 : i32
    %c0_i32_1 = arith.constant 0 : i32
    return %arg0, %c0_i32, %c0_i32_0 : i32, i32, i32
  }
  func.func @transform_1(%arg0: i32) -> (i32, i32, i32) {
    %c0_i32 = arith.constant 0 : i32
    %c0_i32_0 = arith.constant 0 : i32
    %c0_i32_1 = arith.constant 0 : i32
    %c0_i32_2 = arith.constant 0 : i32
    return %c0_i32, %c0_i32_0, %c0_i32_1 : i32, i32, i32
  }
  func.func @transform_2(%arg0: i32) -> (i32, i32, i32) {
    %c0_i32 = arith.constant 0 : i32
    %c0_i32_0 = arith.constant 0 : i32
    %c0_i32_1 = arith.constant 0 : i32
    %c0_i32_2 = arith.constant 0 : i32
    return %c0_i32, %c0_i32_0, %c0_i32_1 : i32, i32, i32
  }
  func.func @transform_3(%arg0: i32) -> (i32, i32, i32) {
    %c0_i32 = arith.constant 0 : i32
    %c0_i32_0 = arith.constant 0 : i32
    %c0_i32_1 = arith.constant 0 : i32
    %c0_i32_2 = arith.constant 0 : i32
    return %c0_i32, %c0_i32_0, %c0_i32_1 : i32, i32, i32
  }
  func.func @transform_4(%arg0: i32) -> (i32, i32, i32) {
    %c0_i32 = arith.constant 0 : i32
    %c0_i32_0 = arith.constant 0 : i32
    %c0_i32_1 = arith.constant 0 : i32
    %c0_i32_2 = arith.constant 0 : i32
    return %c0_i32, %c0_i32_0, %c0_i32_1 : i32, i32, i32
  }
  func.func @transform_5(%arg0: i32) -> (i32, i32, i32) {
    %c0_i32 = arith.constant 0 : i32
    %c0_i32_0 = arith.constant 0 : i32
    %c0_i32_1 = arith.constant 0 : i32
    %c0_i32_2 = arith.constant 0 : i32
    return %c0_i32, %c0_i32_0, %c0_i32_1 : i32, i32, i32
  }
  func.func @transform_6(%arg0: i32) -> (i32, i32, i32) {
    %c0_i32 = arith.constant 0 : i32
    %c0_i32_0 = arith.constant 0 : i32
    %c0_i32_1 = arith.constant 0 : i32
    %c0_i32_2 = arith.constant 0 : i32
    return %c0_i32, %c0_i32_0, %c0_i32_1 : i32, i32, i32
  }
  func.func @transform_7(%arg0: i32) -> (i32, i32, i32) {
    %c0_i32 = arith.constant 0 : i32
    %c0_i32_0 = arith.constant 0 : i32
    %c0_i32_1 = arith.constant 0 : i32
    %c0_i32_2 = arith.constant 0 : i32
    return %c0_i32, %c0_i32_0, %c0_i32_1 : i32, i32, i32
  }
  func.func @transform_8(%arg0: i32) -> (i32, i32, i32) {
    %c0_i32 = arith.constant 0 : i32
    %c0_i32_0 = arith.constant 0 : i32
    %c0_i32_1 = arith.constant 0 : i32
    %c0_i32_2 = arith.constant 0 : i32
    return %c0_i32, %c0_i32_0, %c0_i32_1 : i32, i32, i32
  }
  func.func @transform_9(%arg0: i32) -> (i32, i32, i32) {
    %c0_i32 = arith.constant 0 : i32
    %c0_i32_0 = arith.constant 0 : i32
    %c0_i32_1 = arith.constant 0 : i32
    %c0_i32_2 = arith.constant 0 : i32
    return %c0_i32, %c0_i32_0, %c0_i32_1 : i32, i32, i32
  }
  func.func @transform_10(%arg0: i32) -> (i32, i32, i32) {
    %c0_i32 = arith.constant 0 : i32
    %c0_i32_0 = arith.constant 0 : i32
    %c0_i32_1 = arith.constant 0 : i32
    %c0_i32_2 = arith.constant 0 : i32
    return %c0_i32, %c0_i32_0, %c0_i32_1 : i32, i32, i32
  }
  func.func @transform_11(%arg0: i32) -> (i32, i32, i32) {
    %c0_i32 = arith.constant 0 : i32
    %c0_i32_0 = arith.constant 0 : i32
    %c0_i32_1 = arith.constant 0 : i32
    %c0_i32_2 = arith.constant 0 : i32
    return %c0_i32, %c0_i32_0, %c0_i32_1 : i32, i32, i32
  }
  func.func @transform_12(%arg0: i32) -> (i32, i32) {
    %c0_i32 = arith.constant 0 : i32
    %c0_i32_0 = arith.constant 0 : i32
    %c0_i32_1 = arith.constant 0 : i32
    return %c0_i32, %c0_i32_0 : i32, i32
  }
  func.func @transform_13(%arg0: i32) -> (i32, i32) {
    %c0_i32 = arith.constant 0 : i32
    %c0_i32_0 = arith.constant 0 : i32
    %c0_i32_1 = arith.constant 0 : i32
    return %c0_i32, %c0_i32_0 : i32, i32
  }
  func.func @transform_14(%arg0: i32) -> (i32, i32) {
    %c0_i32 = arith.constant 0 : i32
    %c0_i32_0 = arith.constant 0 : i32
    %c0_i32_1 = arith.constant 0 : i32
    return %c0_i32, %c0_i32_0 : i32, i32
  }
  func.func @transform_15(%arg0: i32) -> (i32, i32) {
    %c0_i32 = arith.constant 0 : i32
    %c0_i32_0 = arith.constant 0 : i32
    %c0_i32_1 = arith.constant 0 : i32
    return %c0_i32, %c0_i32_0 : i32, i32
  }
  func.func @transform_16(%arg0: i32) -> (i32, i32, i32) {
    %c0_i32 = arith.constant 0 : i32
    %c0_i32_0 = arith.constant 0 : i32
    %c0_i32_1 = arith.constant 0 : i32
    return %arg0, %c0_i32, %c0_i32_0 : i32, i32, i32
  }
}

</mosaic_0001>

<llo_original>
// kernel: early_conv_vit_forward.6
$region0: #{early_conv_vit_forward.6}
  #allocation0 [shape = 'u32[]', space=smem, size = 0x4, offset = 0x4, fixed_abs, tag = 'smem constant byte address 0x4 - core index']
  #allocation1 [shape = 'u32[72,128]{1,0:T(1,128)}', space=vmem, size = 0x9000, scoped, tag = 'internal scratch']
  %s0 = inlined_call_operand.vmem [shape: bf16[512,27], index: 0, kind: input, shape index: {}]
  %s1 = inlined_call_operand.vmem [shape: bf16[27,48], index: 1, kind: input, shape index: {}]
  %s2 = inlined_call_operand.vmem [shape: f32[1,48], index: 2, kind: input, shape index: {}]
  %s3 = inlined_call_operand.vmem [shape: bf16[512,48], index: 3, kind: output, shape index: {}]
  %s4 = sld [smem:[#allocation0]]
  $region45: #{early_conv_vit_forward.6} parent=0
    _
  %s6 = ssub.s32 1, %s4
  %s7 = scalar_select 0, %s6, %s4
  loop: start=0, step=1, limit=4
  $region2: #{early_conv_vit_forward.6} parent=0 // loop_pre_header
    _
  $region3: #{early_conv_vit_forward.6} parent=0 // loop_header
    %s9 = sphi 0, %s13
    %p10 = scmp.ge.s32.totalorder %s9, 4
    %s16 = sphi 0, %s28
    %s17 = sphi 0, %s24
    %s18 = sphi 0, %s16
    %s19 = sphi 0, %s17
    %s20 = sphi 0, %s18
    %s21 = sphi 0, %s19
    %s31 = sphi 0, %s33
    %s34 = sphi 0, %s31
    %s35 = sphi 0, %s34
    %s51 = sphi 0, %s35
    %s57 = sphi 0, %s59
    %s60 = sphi 0, %s57
    %s61 = sphi 0, %s60
    %s77 = sphi 0, %s61
    %s83 = sphi 0, %s85
    %s86 = sphi 0, %s83
    %s87 = sphi 0, %s86
    %s103 = sphi 0, %s87
    %s111 = sphi 0, %s113
    %s114 = sphi 0, %s111
    %s115 = sphi 0, %s114
    %s131 = sphi 0, %s115
  $region4: #{early_conv_vit_forward.6} parent=0 // loop_header_branch
    %12 = sbr.rel (%p10) target = $region8
  $region5: #{early_conv_vit_forward.6} parent=0 // loop_body
    %s14 = ssub.s32 %s9, 1
    %s15 = ssub.s32 %s9, 2
    %s22 = sadd.s32 1, %s17
    %p23 = scmp.ge.s32.totalorder %s22, 1
    %s24 = scalar_select %p23, 0, %s22
    %s25 = sadd.s32 1, %s16
    %s26 = scalar_select %p23, %s25, %s16
    %p27 = scmp.ge.s32.totalorder %s26, 2
    %s28 = scalar_select %p27, 0, %s26
    %s29 = ssub.s32 %s16, %s28
    %p30 = scmp.eq.s32.totalorder %s29, 0
    %s32 = sadd.s32 %s31, 1
    %s33 = scalar_select %p30, %s31, %s32
    %p36 = pneg %p30
    %p37 = scmp.eq.s32.totalorder %s9, 1
    %p38 = por %p36, %p37
    %p39 = scmp.ne.s32.totalorder %s31, %s34
    %p40 = scmp.eq.s32.totalorder %s9, 0
    %p41 = por %p39, %p40
    %p42 = scmp.ne.s32.totalorder %s31, %s34
    %p43 = scmp.eq.s32.totalorder %s14, 1
    %p44 = por %p42, %p43
    %p45 = scmp.ne.s32.totalorder %s34, %s35
    %p46 = scmp.eq.s32.totalorder %s14, 0
    %p47 = por %p45, %p46
    %p48 = scmp.ne.s32.totalorder %s34, %s35
    %p49 = scmp.eq.s32.totalorder %s15, 1
    %p50 = por %p48, %p49
    %p52 = scmp.ne.s32.totalorder %s35, %s51
    %p53 = scmp.eq.s32.totalorder %s15, 0
    %p54 = por %p52, %p53
    %s55 = ssub.s32 %s17, %s24
    %p56 = scmp.eq.s32.totalorder %s55, 0
    %s58 = sadd.s32 %s57, 1
    %s59 = scalar_select %p56, %s57, %s58
    %p62 = pneg %p56
    %p63 = scmp.eq.s32.totalorder %s9, 1
    %p64 = por %p62, %p63
    %p65 = scmp.ne.s32.totalorder %s57, %s60
    %p66 = scmp.eq.s32.totalorder %s9, 0
    %p67 = por %p65, %p66
    %p68 = scmp.ne.s32.totalorder %s57, %s60
    %p69 = scmp.eq.s32.totalorder %s14, 1
    %p70 = por %p68, %p69
    %p71 = scmp.ne.s32.totalorder %s60, %s61
    %p72 = scmp.eq.s32.totalorder %s14, 0
    %p73 = por %p71, %p72
    %p74 = scmp.ne.s32.totalorder %s60, %s61
    %p75 = scmp.eq.s32.totalorder %s15, 1
    %p76 = por %p74, %p75
    %p78 = scmp.ne.s32.totalorder %s61, %s77
    %p79 = scmp.eq.s32.totalorder %s15, 0
    %p80 = por %p78, %p79
    %s81 = ssub.s32 %s17, %s24
    %p82 = scmp.eq.s32.totalorder %s81, 0
    %s84 = sadd.s32 %s83, 1
    %s85 = scalar_select %p82, %s83, %s84
    %p88 = pneg %p82
    %p89 = scmp.eq.s32.totalorder %s9, 1
    %p90 = por %p88, %p89
    %p91 = scmp.ne.s32.totalorder %s83, %s86
    %p92 = scmp.eq.s32.totalorder %s9, 0
    %p93 = por %p91, %p92
    %p94 = scmp.ne.s32.totalorder %s83, %s86
    %p95 = scmp.eq.s32.totalorder %s14, 1
    %p96 = por %p94, %p95
    %p97 = scmp.ne.s32.totalorder %s86, %s87
    %p98 = scmp.eq.s32.totalorder %s14, 0
    %p99 = por %p97, %p98
    %p100 = scmp.ne.s32.totalorder %s86, %s87
    %p101 = scmp.eq.s32.totalorder %s15, 1
    %p102 = por %p100, %p101
    %p104 = scmp.ne.s32.totalorder %s87, %s103
    %p105 = scmp.eq.s32.totalorder %s15, 0
    %p106 = por %p104, %p105
    %s107 = ssub.s32 %s16, %s28
    %s108 = ssub.s32 %s17, %s24
    %s109 = sor.u32 %s107, %s108
    %p110 = scmp.eq.s32.totalorder %s109, 0
    %s112 = sadd.s32 %s111, 1
    %s113 = scalar_select %p110, %s111, %s112
    %p116 = pneg %p110
    %p117 = scmp.eq.s32.totalorder %s9, 1
    %p118 = por %p116, %p117
    %p119 = scmp.ne.s32.totalorder %s111, %s114
    %p120 = scmp.eq.s32.totalorder %s9, 0
    %p121 = por %p119, %p120
    %p122 = scmp.ne.s32.totalorder %s111, %s114
    %p123 = scmp.eq.s32.totalorder %s14, 1
    %p124 = por %p122, %p123
    %p125 = scmp.ne.s32.totalorder %s114, %s115
    %p126 = scmp.eq.s32.totalorder %s14, 0
    %p127 = por %p125, %p126
    %p128 = scmp.ne.s32.totalorder %s114, %s115
    %p129 = scmp.eq.s32.totalorder %s15, 1
    %p130 = por %p128, %p129
    %p132 = scmp.ne.s32.totalorder %s115, %s131
    %p133 = scmp.eq.s32.totalorder %s15, 0
    %p134 = por %p132, %p133
    %p135 = scmp.le.s32.totalorder 1, %s9
    %p136 = scmp.lt.s32.totalorder %s9, 3
    %p137 = pnand %p135, %p136
    %p138 = pneg %p137
    // Predicated region
    $region9: #{early_conv_vit_forward.6} parent=5 // pred_check
      _
    $region10: #{early_conv_vit_forward.6} parent=5 // pred_check_branch
      %140 = sbr.rel (%p137) target = $region12
    $region11: #{early_conv_vit_forward.6} parent=5 // pred_region
      %s141 = ssub.s32 %s9, 1
      // Predicated region
      $region13: #{early_conv_vit_forward.6} parent=11 // pred_check
        %p142 = pneg %p73
      $region14: #{early_conv_vit_forward.6} parent=11 // pred_check_branch
        %144 = sbr.rel (%p142) target = $region16
      $region15: #{early_conv_vit_forward.6} parent=11 // pred_region
        %p145 = scmp.lt.s32.totalorder %s19, 0
        %s146 = scalar_select %p145, %s19, 0
        %s147 = smul.addr %s146, 4
        %s148 = scalar_lea.vmem %s1, %s147
      $region16: #{early_conv_vit_forward.6} parent=11 // pred_fallthru
        _
      // Predicated region
      $region17: #{early_conv_vit_forward.6} parent=11 // pred_check
        %p149 = pneg %p99
      $region18: #{early_conv_vit_forward.6} parent=11 // pred_check_branch
        %151 = sbr.rel (%p149) target = $region20
      $region19: #{early_conv_vit_forward.6} parent=11 // pred_region
        %p152 = scmp.lt.s32.totalorder %s19, 0
        %s153 = scalar_select %p152, %s19, 0
        %s154 = scalar_lea.vmem %s2, %s153
      $region20: #{early_conv_vit_forward.6} parent=11 // pred_fallthru
        _
    $region12: #{early_conv_vit_forward.6} parent=5 // pred_fallthru
      _
    %p155 = scmp.lt.s32.totalorder %s9, 2
    // Predicated region
    $region21: #{early_conv_vit_forward.6} parent=5 // pred_check
      %p156 = pneg %p155
    $region22: #{early_conv_vit_forward.6} parent=5 // pred_check_branch
      %158 = sbr.rel (%p156) target = $region24
    $region23: #{early_conv_vit_forward.6} parent=5 // pred_region
      // Predicated region
      $region25: #{early_conv_vit_forward.6} parent=23 // pred_check
        %p159 = pneg %p41
      $region26: #{early_conv_vit_forward.6} parent=23 // pred_check_branch
        %161 = sbr.rel (%p159) target = $region28
      $region27: #{early_conv_vit_forward.6} parent=23 // pred_region
        %s162 = smul.u32 32, %s16
        %p163 = scmp.lt.s32.totalorder %s162, 63
        %s164 = scalar_select %p163, %s162, 63
        %s165 = smul.addr %s164, 4
        %s166 = scalar_lea.vmem %s0, %s165
        %s167 = smul.u32 32, %s16
      $region28: #{early_conv_vit_forward.6} parent=23 // pred_fallthru
        _
    $region24: #{early_conv_vit_forward.6} parent=5 // pred_fallthru
      _
    %p168 = scmp.le.s32.totalorder 1, %s9
    %p169 = scmp.lt.s32.totalorder %s9, 3
    %p170 = pnand %p168, %p169
    %p171 = pneg %p170
    // Predicated region
    $region29: #{early_conv_vit_forward.6} parent=5 // pred_check
      _
    $region30: #{early_conv_vit_forward.6} parent=5 // pred_check_branch
      %173 = sbr.rel (%p170) target = $region32
    $region31: #{early_conv_vit_forward.6} parent=5 // pred_region
      %s174 = ssub.s32 %s9, 1
      %s175 = smul.u32 32, %s18
      %p176 = scmp.lt.s32.totalorder %s175, 63
      %s177 = scalar_select %p176, %s175, 63
      %s178 = smul.addr %s177, 4
      %s179 = scalar_lea.vmem %s0, %s178
      %p180 = pneg %p47
      %p181 = pneg %p44
      %p182 = scmp.lt.s32.totalorder %s19, 0
      %s183 = scalar_select %p182, %s19, 0
      %s184 = smul.addr %s183, 4
      %s185 = scalar_lea.vmem %s1, %s184
      %p186 = pneg %p73
      %p187 = pneg %p70
      %p188 = scmp.lt.s32.totalorder %s19, 0
      %s189 = scalar_select %p188, %s19, 0
      %s190 = scalar_lea.vmem %s2, %s189
      %p191 = pneg %p99
      %p192 = pneg %p96
      %p193 = pneg %p127
      %p194 = pneg %p124
      %s195 = smul.u32 32, %s18
      %p196 = scmp.lt.s32.totalorder %s195, 63
      %s197 = scalar_select %p196, %s195, 63
      %p198 = scmp.lt.s32.totalorder %s19, 0
      %s199 = scalar_select %p198, %s19, 0
      %s200 = sadd.s32 %s199, %s197
      %s201 = smul.addr %s200, 4
      %s202 = scalar_lea.vmem %s3, %s201
      %s203 = smul.u32 32, %s18
      %p204 = scmp.lt.s32.totalorder %s203, 63
      %s205 = scalar_select %p204, %s203, 63
      %s206 = smul.addr %s205, 4
      %s207 = scalar_lea.vmem %s0, %s206
      %s208 = smul.u32 32, %s18
      %p209 = scmp.lt.s32.totalorder %s19, 0
      %s210 = scalar_select %p209, %s19, 0
      %s211 = smul.addr %s210, 4
      %s212 = scalar_lea.vmem %s1, %s211
      %p213 = scmp.lt.s32.totalorder %s19, 0
      %s214 = scalar_select %p213, %s19, 0
      %s215 = scalar_lea.vmem %s2, %s214
      %s216 = smul.u32 32, %s18
      %p217 = scmp.lt.s32.totalorder %s216, 63
      %s218 = scalar_select %p217, %s216, 63
      %p219 = scmp.lt.s32.totalorder %s19, 0
      %s220 = scalar_select %p219, %s19, 0
      %s221 = sadd.s32 %s220, %s218
      %s222 = smul.addr %s221, 4
      %s223 = scalar_lea.vmem %s3, %s222
      %s224 = smul.u32 32, %s18
      %v226 = vld [vmem:[%s207] sm:$0xf]
      %v227 = vld [vmem:[%s207 + $0x4] sm:$0xf]
      %v228 = vld [vmem:[%s207 + $0x8] sm:$0xf]
      %v229 = vld [vmem:[%s207 + $0xc] sm:$0xf]
      %v230 = vld [vmem:[%s207 + $0x10] sm:$0xf]
      %v231 = vld [vmem:[%s207 + $0x14] sm:$0xf]
      %v232 = vld [vmem:[%s207 + $0x18] sm:$0xf]
      %v233 = vld [vmem:[%s207 + $0x1c] sm:$0xf]
      %v234 = vld [vmem:[%s207 + $0x20] sm:$0xf]
      %v235 = vld [vmem:[%s207 + $0x24] sm:$0xf]
      %v236 = vld [vmem:[%s207 + $0x28] sm:$0xf]
      %v237 = vld [vmem:[%s207 + $0x2c] sm:$0xf]
      %v238 = vld [vmem:[%s207 + $0x30] sm:$0xf]
      %v239 = vld [vmem:[%s207 + $0x34] sm:$0xf]
      %v240 = vld [vmem:[%s207 + $0x38] sm:$0xf]
      %v241 = vld [vmem:[%s207 + $0x3c] sm:$0xf]
      %v242 = vld [vmem:[%s207 + $0x40] sm:$0xf]
      %v243 = vld [vmem:[%s207 + $0x44] sm:$0xf]
      %v244 = vld [vmem:[%s207 + $0x48] sm:$0xf]
      %v245 = vld [vmem:[%s207 + $0x4c] sm:$0xf]
      %v246 = vld [vmem:[%s207 + $0x50] sm:$0xf]
      %v247 = vld [vmem:[%s207 + $0x54] sm:$0xf]
      %v248 = vld [vmem:[%s207 + $0x58] sm:$0xf]
      %v249 = vld [vmem:[%s207 + $0x5c] sm:$0xf]
      %v250 = vld [vmem:[%s207 + $0x60] sm:$0xf]
      %v251 = vld [vmem:[%s207 + $0x64] sm:$0xf]
      %v252 = vld [vmem:[%s207 + $0x68] sm:$0xf]
      %v253 = vld [vmem:[%s207 + $0x6c] sm:$0xf]
      %v254 = vld [vmem:[%s207 + $0x70] sm:$0xf]
      %v255 = vld [vmem:[%s207 + $0x74] sm:$0xf]
      %v256 = vld [vmem:[%s207 + $0x78] sm:$0xf]
      %v257 = vld [vmem:[%s207 + $0x7c] sm:$0xf]
      %v258 = vld [vmem:[%s212] sm:$0xf]
      %v259 = vld [vmem:[%s212 + $0x4] sm:$0xf]
      %v260 = vld [vmem:[%s212 + $0x8] sm:$0xf]
      %v261 = vld [vmem:[%s212 + $0xc] sm:$0x3]
      %v262 = vld [vmem:[%s215] sm:$0x1]
      %v264 = vperm.slane %v262, 0
      %v298 = vunpack.c.l.b16 %v226
      %v299 = vunpack.c.l.b16 %v227
      %v300 = vunpack.c.l.b16 %v228
      %v301 = vunpack.c.l.b16 %v229
      %v302 = vunpack.c.l.b16 %v230
      %v303 = vunpack.c.l.b16 %v231
      %v304 = vunpack.c.l.b16 %v232
      %v305 = vunpack.c.l.b16 %v233
      %v306 = vunpack.c.l.b16 %v234
      %v307 = vunpack.c.l.b16 %v235
      %v308 = vunpack.c.l.b16 %v236
      %v309 = vunpack.c.l.b16 %v237
      %v310 = vunpack.c.l.b16 %v238
      %v311 = vunpack.c.l.b16 %v239
      %v312 = vunpack.c.l.b16 %v240
      %v313 = vunpack.c.l.b16 %v241
      %v314 = vunpack.c.l.b16 %v242
      %v315 = vunpack.c.l.b16 %v243
      %v316 = vunpack.c.l.b16 %v244
      %v317 = vunpack.c.l.b16 %v245
      %v318 = vunpack.c.l.b16 %v246
      %v319 = vunpack.c.l.b16 %v247
      %v320 = vunpack.c.l.b16 %v248
      %v321 = vunpack.c.l.b16 %v249
      %v322 = vunpack.c.l.b16 %v250
      %v323 = vunpack.c.l.b16 %v251
      %v324 = vunpack.c.l.b16 %v252
      %v325 = vunpack.c.l.b16 %v253
      %v326 = vunpack.c.l.b16 %v254
      %v327 = vunpack.c.l.b16 %v255
      %v328 = vunpack.c.l.b16 %v256
      %v329 = vunpack.c.l.b16 %v257
      %v330 = vpack.c.b16 %v299, %v298
      %v331 = vpack.c.b16 %v301, %v300
      %v332 = vpack.c.b16 %v303, %v302
      %v333 = vpack.c.b16 %v305, %v304
      %v334 = vpack.c.b16 %v307, %v306
      %v335 = vpack.c.b16 %v309, %v308
      %v336 = vpack.c.b16 %v311, %v310
      %v337 = vpack.c.b16 %v313, %v312
      %v338 = vpack.c.b16 %v315, %v314
      %v339 = vpack.c.b16 %v317, %v316
      %v340 = vpack.c.b16 %v319, %v318
      %v341 = vpack.c.b16 %v321, %v320
      %v342 = vpack.c.b16 %v323, %v322
      %v343 = vpack.c.b16 %v325, %v324
      %v344 = vpack.c.b16 %v327, %v326
      %v345 = vpack.c.b16 %v329, %v328
      %v350 = vunpack.c.l.b16 %v258
      %v351 = vunpack.c.l.b16 %v259
      %v352 = vunpack.c.l.b16 %v260
      %v353 = vunpack.c.l.b16 %v261
      %v354 = vpack.c.b16 %v351, %v350
      %v355 = vpack.c.b16 %v353, %v352
      %vm357 = vcmask 220160
      %v359 = vsel %vm357, %v330, 0
      %v362 = vsel %vm357, %v331, 0
      %v365 = vsel %vm357, %v332, 0
      %v368 = vsel %vm357, %v333, 0
      %v371 = vsel %vm357, %v334, 0
      %v374 = vsel %vm357, %v335, 0
      %v377 = vsel %vm357, %v336, 0
      %v380 = vsel %vm357, %v337, 0
      %v383 = vsel %vm357, %v338, 0
      %v386 = vsel %vm357, %v339, 0
      %v389 = vsel %vm357, %v340, 0
      %v392 = vsel %vm357, %v341, 0
      %v395 = vsel %vm357, %v342, 0
      %v398 = vsel %vm357, %v343, 0
      %v401 = vsel %vm357, %v344, 0
      %v404 = vsel %vm357, %v345, 0
      %vm406 = vcmask 1044480
      %vm407 = vcmask 1045504
      %v408 = vsel %vm406, 4294967295, 65535
      %v409 = vsel %vm407, %v408, 0
      %v411 = vand.u32 %v355, %v409
      %413 = vmatpush.bf16.msra.mxu0 0
      %414 = vmatpush.bf16.msra.mxu0 0
      %415 = vmatpush.bf16.msra.mxu0 0
      %416 = vmatpush.bf16.msra.mxu0 0
      %417 = vmatpush.bf16.msra.mxu0 0
      %418 = vmatpush.bf16.msra.mxu0 0
      %419 = vmatpush.bf16.msra.mxu0 %v411
      %420 = vmatpush.bf16.msra.mxu0 %v354
      %421 = vmatmul.bf16.gmra.mxu0 %v359
      %v422 = vpop.f32.mrf.mxu0
      %v423 = vadd.f32 %v264, %v422
      %v424 = vpop.f32.mrf.mxu0
      %v425 = vadd.f32 %v264, %v424
      %426 = vmatmul.bf16.gmra.mxu0 %v362
      %v427 = vpop.f32.mrf.mxu0
      %v428 = vadd.f32 %v264, %v427
      %v429 = vpop.f32.mrf.mxu0
      %v430 = vadd.f32 %v264, %v429
      %431 = vmatmul.bf16.gmra.mxu0 %v365
      %v432 = vpop.f32.mrf.mxu0
      %v433 = vadd.f32 %v264, %v432
      %v434 = vpop.f32.mrf.mxu0
      %v435 = vadd.f32 %v264, %v434
      %436 = vmatmul.bf16.gmra.mxu0 %v368
      %v437 = vpop.f32.mrf.mxu0
      %v438 = vadd.f32 %v264, %v437
      %v439 = vpop.f32.mrf.mxu0
      %v440 = vadd.f32 %v264, %v439
      %441 = vmatmul.bf16.gmra.mxu0 %v371
      %v442 = vpop.f32.mrf.mxu0
      %v443 = vadd.f32 %v264, %v442
      %v444 = vpop.f32.mrf.mxu0
      %v445 = vadd.f32 %v264, %v444
      %446 = vmatmul.bf16.gmra.mxu0 %v374
      %v447 = vpop.f32.mrf.mxu0
      %v448 = vadd.f32 %v264, %v447
      %v449 = vpop.f32.mrf.mxu0
      %v450 = vadd.f32 %v264, %v449
      %451 = vmatmul.bf16.gmra.mxu0 %v377
      %v452 = vpop.f32.mrf.mxu0
      %v453 = vadd.f32 %v264, %v452
      %v454 = vpop.f32.mrf.mxu0
      %v455 = vadd.f32 %v264, %v454
      %456 = vmatmul.bf16.gmra.mxu0 %v380
      %v457 = vpop.f32.mrf.mxu0
      %v458 = vadd.f32 %v264, %v457
      %v459 = vpop.f32.mrf.mxu0
      %v460 = vadd.f32 %v264, %v459
      %461 = vmatmul.bf16.gmra.mxu0 %v383
      %v462 = vpop.f32.mrf.mxu0
      %v463 = vadd.f32 %v264, %v462
      %v464 = vpop.f32.mrf.mxu0
      %v465 = vadd.f32 %v264, %v464
      %466 = vmatmul.bf16.gmra.mxu0 %v386
      %v467 = vpop.f32.mrf.mxu0
      %v468 = vadd.f32 %v264, %v467
      %v469 = vpop.f32.mrf.mxu0
      %v470 = vadd.f32 %v264, %v469
      %471 = vmatmul.bf16.gmra.mxu0 %v389
      %v472 = vpop.f32.mrf.mxu0
      %v473 = vadd.f32 %v264, %v472
      %v474 = vpop.f32.mrf.mxu0
      %v475 = vadd.f32 %v264, %v474
      %476 = vmatmul.bf16.gmra.mxu0 %v392
      %v477 = vpop.f32.mrf.mxu0
      %v478 = vadd.f32 %v264, %v477
      %v479 = vpop.f32.mrf.mxu0
      %v480 = vadd.f32 %v264, %v479
      %481 = vmatmul.bf16.gmra.mxu0 %v395
      %v482 = vpop.f32.mrf.mxu0
      %v483 = vadd.f32 %v264, %v482
      %v484 = vpop.f32.mrf.mxu0
      %v485 = vadd.f32 %v264, %v484
      %486 = vmatmul.bf16.gmra.mxu0 %v398
      %v487 = vpop.f32.mrf.mxu0
      %v488 = vadd.f32 %v264, %v487
      %v489 = vpop.f32.mrf.mxu0
      %v490 = vadd.f32 %v264, %v489
      %491 = vmatmul.bf16.gmra.mxu0 %v401
      %v492 = vpop.f32.mrf.mxu0
      %v493 = vadd.f32 %v264, %v492
      %v494 = vpop.f32.mrf.mxu0
      %v495 = vadd.f32 %v264, %v494
      %496 = vmatmul.bf16.gmra.mxu0 %v404
      %v497 = vpop.f32.mrf.mxu0
      %v498 = vadd.f32 %v264, %v497
      %v499 = vpop.f32.mrf.mxu0
      %v500 = vadd.f32 %v264, %v499
      %501 = vdwg.mxu0
      %v502 = vpack.c.bf16 %v423, %v423
      %v503 = vpack.c.bf16 %v425, %v425
      %v504 = vpack.c.bf16 %v428, %v428
      %v505 = vpack.c.bf16 %v430, %v430
      %v506 = vpack.c.bf16 %v433, %v433
      %v507 = vpack.c.bf16 %v435, %v435
      %v508 = vpack.c.bf16 %v438, %v438
      %v509 = vpack.c.bf16 %v440, %v440
      %v510 = vpack.c.bf16 %v443, %v443
      %v511 = vpack.c.bf16 %v445, %v445
      %v512 = vpack.c.bf16 %v448, %v448
      %v513 = vpack.c.bf16 %v450, %v450
      %v514 = vpack.c.bf16 %v453, %v453
      %v515 = vpack.c.bf16 %v455, %v455
      %v516 = vpack.c.bf16 %v458, %v458
      %v517 = vpack.c.bf16 %v460, %v460
      %v518 = vpack.c.bf16 %v463, %v463
      %v519 = vpack.c.bf16 %v465, %v465
      %v520 = vpack.c.bf16 %v468, %v468
      %v521 = vpack.c.bf16 %v470, %v470
      %v522 = vpack.c.bf16 %v473, %v473
      %v523 = vpack.c.bf16 %v475, %v475
      %v524 = vpack.c.bf16 %v478, %v478
      %v525 = vpack.c.bf16 %v480, %v480
      %v526 = vpack.c.bf16 %v483, %v483
      %v527 = vpack.c.bf16 %v485, %v485
      %v528 = vpack.c.bf16 %v488, %v488
      %v529 = vpack.c.bf16 %v490, %v490
      %v530 = vpack.c.bf16 %v493, %v493
      %v531 = vpack.c.bf16 %v495, %v495
      %v532 = vpack.c.bf16 %v498, %v498
      %v533 = vpack.c.bf16 %v500, %v500
      %vm534 = vcmask 388096
      %535 = vst.msk [vmem:[%s223] sm:$0xf] %vm534, %v502
      %536 = vst.msk [vmem:[%s223 + $0x4] sm:$0xf] %vm534, %v503
      %537 = vst.msk [vmem:[%s223 + $0x8] sm:$0xf] %vm534, %v504
      %538 = vst.msk [vmem:[%s223 + $0xc] sm:$0xf] %vm534, %v505
      %539 = vst.msk [vmem:[%s223 + $0x10] sm:$0xf] %vm534, %v506
      %540 = vst.msk [vmem:[%s223 + $0x14] sm:$0xf] %vm534, %v507
      %541 = vst.msk [vmem:[%s223 + $0x18] sm:$0xf] %vm534, %v508
      %542 = vst.msk [vmem:[%s223 + $0x1c] sm:$0xf] %vm534, %v509
      %543 = vst.msk [vmem:[%s223 + $0x20] sm:$0xf] %vm534, %v510
      %544 = vst.msk [vmem:[%s223 + $0x24] sm:$0xf] %vm534, %v511
      %545 = vst.msk [vmem:[%s223 + $0x28] sm:$0xf] %vm534, %v512
      %546 = vst.msk [vmem:[%s223 + $0x2c] sm:$0xf] %vm534, %v513
      %547 = vst.msk [vmem:[%s223 + $0x30] sm:$0xf] %vm534, %v514
      %548 = vst.msk [vmem:[%s223 + $0x34] sm:$0xf] %vm534, %v515
      %549 = vst.msk [vmem:[%s223 + $0x38] sm:$0xf] %vm534, %v516
      %550 = vst.msk [vmem:[%s223 + $0x3c] sm:$0xf] %vm534, %v517
      %551 = vst.msk [vmem:[%s223 + $0x40] sm:$0xf] %vm534, %v518
      %552 = vst.msk [vmem:[%s223 + $0x44] sm:$0xf] %vm534, %v519
      %553 = vst.msk [vmem:[%s223 + $0x48] sm:$0xf] %vm534, %v520
      %554 = vst.msk [vmem:[%s223 + $0x4c] sm:$0xf] %vm534, %v521
      %555 = vst.msk [vmem:[%s223 + $0x50] sm:$0xf] %vm534, %v522
      %556 = vst.msk [vmem:[%s223 + $0x54] sm:$0xf] %vm534, %v523
      %557 = vst.msk [vmem:[%s223 + $0x58] sm:$0xf] %vm534, %v524
      %558 = vst.msk [vmem:[%s223 + $0x5c] sm:$0xf] %vm534, %v525
      %559 = vst.msk [vmem:[%s223 + $0x60] sm:$0xf] %vm534, %v526
      %560 = vst.msk [vmem:[%s223 + $0x64] sm:$0xf] %vm534, %v527
      %561 = vst.msk [vmem:[%s223 + $0x68] sm:$0xf] %vm534, %v528
      %562 = vst.msk [vmem:[%s223 + $0x6c] sm:$0xf] %vm534, %v529
      %563 = vst.msk [vmem:[%s223 + $0x70] sm:$0xf] %vm534, %v530
      %564 = vst.msk [vmem:[%s223 + $0x74] sm:$0xf] %vm534, %v531
      %565 = vst.msk [vmem:[%s223 + $0x78] sm:$0xf] %vm534, %v532
      %566 = vst.msk [vmem:[%s223 + $0x7c] sm:$0xf] %vm534, %v533
      %s567 = smul.u32 32, %s18
      %p568 = scmp.lt.s32.totalorder %s567, 63
      %s569 = scalar_select %p568, %s567, 63
      %p570 = scmp.lt.s32.totalorder %s19, 0
      %s571 = scalar_select %p570, %s19, 0
      %s572 = sadd.s32 %s571, %s569
      %s573 = smul.addr %s572, 4
      %s574 = scalar_lea.vmem %s3, %s573
      // Predicated region
      $region33: #{early_conv_vit_forward.6} parent=31 // pred_check
        %p575 = pneg %p124
      $region34: #{early_conv_vit_forward.6} parent=31 // pred_check_branch
        %577 = sbr.rel (%p575) target = $region36
      $region35: #{early_conv_vit_forward.6} parent=31 // pred_region
        %s578 = smul.u32 32, %s18
      $region36: #{early_conv_vit_forward.6} parent=31 // pred_fallthru
        _
    $region32: #{early_conv_vit_forward.6} parent=5 // pred_fallthru
      _
    %p579 = scmp.le.s32.totalorder 2, %s9
    // Predicated region
    $region37: #{early_conv_vit_forward.6} parent=5 // pred_check
      %p580 = pneg %p579
    $region38: #{early_conv_vit_forward.6} parent=5 // pred_check_branch
      %582 = sbr.rel (%p580) target = $region40
    $region39: #{early_conv_vit_forward.6} parent=5 // pred_region
      %s583 = ssub.s32 %s9, 2
      // Predicated region
      $region41: #{early_conv_vit_forward.6} parent=39 // pred_check
        %p584 = pneg %p130
      $region42: #{early_conv_vit_forward.6} parent=39 // pred_check_branch
        %586 = sbr.rel (%p584) target = $region44
      $region43: #{early_conv_vit_forward.6} parent=39 // pred_region
        %s587 = smul.u32 32, %s20
        %p588 = scmp.lt.s32.totalorder %s587, 63
        %s589 = scalar_select %p588, %s587, 63
        %p590 = scmp.lt.s32.totalorder %s21, 0
        %s591 = scalar_select %p590, %s21, 0
        %s592 = sadd.s32 %s591, %s589
        %s593 = smul.addr %s592, 4
        %s594 = scalar_lea.vmem %s3, %s593
      $region44: #{early_conv_vit_forward.6} parent=39 // pred_fallthru
        _
    $region40: #{early_conv_vit_forward.6} parent=5 // pred_fallthru
      _
  $region6: #{early_conv_vit_forward.6} parent=0 // loop_footer
    %s13 = sadd.s32 1, %s9
  $region7: #{early_conv_vit_forward.6} parent=0 // loop_footer_branch
    %8 = sbr.rel target = $region3
  $region8: #{early_conv_vit_forward.6} parent=0 // loop_exit
    _

// kernel: early_conv_vit_forward.7
$region0: #{early_conv_vit_forward.7}
  #allocation0 [shape = 'u32[]', space=smem, size = 0x4, offset = 0x4, fixed_abs, tag = 'smem constant byte address 0x4 - core index']
  #allocation1 [shape = 'u32[72,128]{1,0:T(1,128)}', space=vmem, size = 0x9000, scoped, tag = 'internal scratch']
  %s0 = inlined_call_operand.vmem [shape: bf16[128,432], index: 0, kind: input, shape index: {}]
  %s1 = inlined_call_operand.vmem [shape: bf16[432,96], index: 1, kind: input, shape index: {}]
  %s2 = inlined_call_operand.vmem [shape: f32[1,96], index: 2, kind: input, shape index: {}]
  %s3 = inlined_call_operand.vmem [shape: bf16[128,96], index: 3, kind: output, shape index: {}]
  %s4 = sld [smem:[#allocation0]]
  $region22: #{early_conv_vit_forward.7} parent=0
    _
  %s6 = ssub.s32 1, %s4
  %s7 = scalar_select 0, %s6, %s4
  // Predicated region
  $region2: #{early_conv_vit_forward.7} parent=0 // pred_check
    _
  $region3: #{early_conv_vit_forward.7} parent=0 // pred_check_branch
    %9 = sbr.rel (0) target = $region5
  $region4: #{early_conv_vit_forward.7} parent=0 // pred_region
    _
  $region5: #{early_conv_vit_forward.7} parent=0 // pred_fallthru
    _
  // Predicated region
  $region6: #{early_conv_vit_forward.7} parent=0 // pred_check
    _
  $region7: #{early_conv_vit_forward.7} parent=0 // pred_check_branch
    %11 = sbr.rel (0) target = $region9
  $region8: #{early_conv_vit_forward.7} parent=0 // pred_region
    _
  $region9: #{early_conv_vit_forward.7} parent=0 // pred_fallthru
    _
  // Predicated region
  $region10: #{early_conv_vit_forward.7} parent=0 // pred_check
    _
  $region11: #{early_conv_vit_forward.7} parent=0 // pred_check_branch
    %13 = sbr.rel (0) target = $region13
  $region12: #{early_conv_vit_forward.7} parent=0 // pred_region
    _
  $region13: #{early_conv_vit_forward.7} parent=0 // pred_fallthru
    _
  %v15 = vld [vmem:[%s0] sm:$0xff]
  %v16 = vld [vmem:[%s0 + $0x8] sm:$0xff]
  %v17 = vld [vmem:[%s0 + $0x10] sm:$0xff]
  %v18 = vld [vmem:[%s0 + $0x18] sm:$0xff]
  %v19 = vld [vmem:[%s0 + $0x20] sm:$0xff]
  %v20 = vld [vmem:[%s0 + $0x28] sm:$0xff]
  %v21 = vld [vmem:[%s0 + $0x30] sm:$0xff]
  %v22 = vld [vmem:[%s0 + $0x38] sm:$0xff]
  %v23 = vld [vmem:[%s0 + $0x40] sm:$0xff]
  %v24 = vld [vmem:[%s0 + $0x48] sm:$0xff]
  %v25 = vld [vmem:[%s0 + $0x50] sm:$0xff]
  %v26 = vld [vmem:[%s0 + $0x58] sm:$0xff]
  %v27 = vld [vmem:[%s0 + $0x60] sm:$0xff]
  %v28 = vld [vmem:[%s0 + $0x68] sm:$0xff]
  %v29 = vld [vmem:[%s0 + $0x70] sm:$0xff]
  %v30 = vld [vmem:[%s0 + $0x78] sm:$0xff]
  %v31 = vld [vmem:[%s0 + $0x80] sm:$0xff]
  %v32 = vld [vmem:[%s0 + $0x88] sm:$0xff]
  %v33 = vld [vmem:[%s0 + $0x90] sm:$0xff]
  %v34 = vld [vmem:[%s0 + $0x98] sm:$0xff]
  %v35 = vld [vmem:[%s0 + $0xa0] sm:$0xff]
  %v36 = vld [vmem:[%s0 + $0xa8] sm:$0xff]
  %v37 = vld [vmem:[%s0 + $0xb0] sm:$0xff]
  %v38 = vld [vmem:[%s0 + $0xb8] sm:$0xff]
  %v39 = vld [vmem:[%s0 + $0xc0] sm:$0xff]
  %v40 = vld [vmem:[%s0 + $0xc8] sm:$0xff]
  %v41 = vld [vmem:[%s0 + $0xd0] sm:$0xff]
  %v42 = vld [vmem:[%s0 + $0xd8] sm:$0xff]
  %v43 = vld [vmem:[%s0 + $0xe0] sm:$0xff]
  %v44 = vld [vmem:[%s0 + $0xe8] sm:$0xff]
  %v45 = vld [vmem:[%s0 + $0xf0] sm:$0xff]
  %v46 = vld [vmem:[%s0 + $0xf8] sm:$0xff]
  %v47 = vld [vmem:[%s1] sm:$0xf]
  %v48 = vld [vmem:[%s1 + $0x4] sm:$0xf]
  %v49 = vld [vmem:[%s1 + $0x8] sm:$0xf]
  %v50 = vld [vmem:[%s1 + $0xc] sm:$0xf]
  %v51 = vld [vmem:[%s1 + $0x10] sm:$0xf]
  %v52 = vld [vmem:[%s1 + $0x14] sm:$0xf]
  %v53 = vld [vmem:[%s1 + $0x18] sm:$0xf]
  %v54 = vld [vmem:[%s1 + $0x1c] sm:$0xf]
  %v55 = vld [vmem:[%s1 + $0x20] sm:$0xf]
  %v56 = vld [vmem:[%s1 + $0x24] sm:$0xf]
  %v57 = vld [vmem:[%s1 + $0x28] sm:$0xf]
  %v58 = vld [vmem:[%s1 + $0x2c] sm:$0xf]
  %v59 = vld [vmem:[%s1 + $0x30] sm:$0xf]
  %v60 = vld [vmem:[%s1 + $0x34] sm:$0xf]
  %v61 = vld [vmem:[%s1 + $0x38] sm:$0xf]
  %v62 = vld [vmem:[%s1 + $0x3c] sm:$0xf]
  %v63 = vld [vmem:[%s1 + $0x40] sm:$0xf]
  %v64 = vld [vmem:[%s1 + $0x44] sm:$0xf]
  %v65 = vld [vmem:[%s1 + $0x48] sm:$0xf]
  %v66 = vld [vmem:[%s1 + $0x4c] sm:$0xf]
  %v67 = vld [vmem:[%s1 + $0x50] sm:$0xf]
  %v68 = vld [vmem:[%s1 + $0x54] sm:$0xf]
  %v69 = vld [vmem:[%s1 + $0x58] sm:$0xf]
  %v70 = vld [vmem:[%s1 + $0x5c] sm:$0xf]
  %v71 = vld [vmem:[%s1 + $0x60] sm:$0xf]
  %v72 = vld [vmem:[%s1 + $0x64] sm:$0xf]
  %v73 = vld [vmem:[%s1 + $0x68] sm:$0xf]
  %v74 = vld [vmem:[%s1 + $0x6c] sm:$0xf]
  %v75 = vld [vmem:[%s1 + $0x70] sm:$0xf]
  %v76 = vld [vmem:[%s1 + $0x74] sm:$0xf]
  %v77 = vld [vmem:[%s1 + $0x78] sm:$0xf]
  %v78 = vld [vmem:[%s1 + $0x7c] sm:$0xf]
  %v79 = vld [vmem:[%s1 + $0x80] sm:$0xf]
  %v80 = vld [vmem:[%s1 + $0x84] sm:$0xf]
  %v81 = vld [vmem:[%s1 + $0x88] sm:$0xf]
  %v82 = vld [vmem:[%s1 + $0x8c] sm:$0xf]
  %v83 = vld [vmem:[%s1 + $0x90] sm:$0xf]
  %v84 = vld [vmem:[%s1 + $0x94] sm:$0xf]
  %v85 = vld [vmem:[%s1 + $0x98] sm:$0xf]
  %v86 = vld [vmem:[%s1 + $0x9c] sm:$0xf]
  %v87 = vld [vmem:[%s1 + $0xa0] sm:$0xf]
  %v88 = vld [vmem:[%s1 + $0xa4] sm:$0xf]
  %v89 = vld [vmem:[%s1 + $0xa8] sm:$0xf]
  %v90 = vld [vmem:[%s1 + $0xac] sm:$0xf]
  %v91 = vld [vmem:[%s1 + $0xb0] sm:$0xf]
  %v92 = vld [vmem:[%s1 + $0xb4] sm:$0xf]
  %v93 = vld [vmem:[%s1 + $0xb8] sm:$0xf]
  %v94 = vld [vmem:[%s1 + $0xbc] sm:$0xf]
  %v95 = vld [vmem:[%s1 + $0xc0] sm:$0xf]
  %v96 = vld [vmem:[%s1 + $0xc4] sm:$0xf]
  %v97 = vld [vmem:[%s1 + $0xc8] sm:$0xf]
  %v98 = vld [vmem:[%s1 + $0xcc] sm:$0xf]
  %v99 = vld [vmem:[%s1 + $0xd0] sm:$0xf]
  %v100 = vld [vmem:[%s1 + $0xd4] sm:$0xf]
  %v101 = vld [vmem:[%s2] sm:$0x1]
  %v103 = vperm.slane %v101, 0
  %v137 = vunpack.c.l.b16 %v15
  %v138 = vunpack.c.h.b16 %v15
  %v139 = vunpack.c.l.b16 %v16
  %v140 = vunpack.c.h.b16 %v16
  %v141 = vunpack.c.l.b16 %v17
  %v142 = vunpack.c.h.b16 %v17
  %v143 = vunpack.c.l.b16 %v18
  %v144 = vunpack.c.h.b16 %v18
  %v145 = vunpack.c.l.b16 %v19
  %v146 = vunpack.c.h.b16 %v19
  %v147 = vunpack.c.l.b16 %v20
  %v148 = vunpack.c.h.b16 %v20
  %v149 = vunpack.c.l.b16 %v21
  %v150 = vunpack.c.h.b16 %v21
  %v151 = vunpack.c.l.b16 %v22
  %v152 = vunpack.c.h.b16 %v22
  %v153 = vunpack.c.l.b16 %v23
  %v154 = vunpack.c.h.b16 %v23
  %v155 = vunpack.c.l.b16 %v24
  %v156 = vunpack.c.h.b16 %v24
  %v157 = vunpack.c.l.b16 %v25
  %v158 = vunpack.c.h.b16 %v25
  %v159 = vunpack.c.l.b16 %v26
  %v160 = vunpack.c.h.b16 %v26
  %v161 = vunpack.c.l.b16 %v27
  %v162 = vunpack.c.h.b16 %v27
  %v163 = vunpack.c.l.b16 %v28
  %v164 = vunpack.c.h.b16 %v28
  %v165 = vunpack.c.l.b16 %v29
  %v166 = vunpack.c.h.b16 %v29
  %v167 = vunpack.c.l.b16 %v30
  %v168 = vunpack.c.h.b16 %v30
  %v169 = vunpack.c.l.b16 %v31
  %v170 = vunpack.c.h.b16 %v31
  %v171 = vunpack.c.l.b16 %v32
  %v172 = vunpack.c.h.b16 %v32
  %v173 = vunpack.c.l.b16 %v33
  %v174 = vunpack.c.h.b16 %v33
  %v175 = vunpack.c.l.b16 %v34
  %v176 = vunpack.c.h.b16 %v34
  %v177 = vunpack.c.l.b16 %v35
  %v178 = vunpack.c.h.b16 %v35
  %v179 = vunpack.c.l.b16 %v36
  %v180 = vunpack.c.h.b16 %v36
  %v181 = vunpack.c.l.b16 %v37
  %v182 = vunpack.c.h.b16 %v37
  %v183 = vunpack.c.l.b16 %v38
  %v184 = vunpack.c.h.b16 %v38
  %v185 = vunpack.c.l.b16 %v39
  %v186 = vunpack.c.h.b16 %v39
  %v187 = vunpack.c.l.b16 %v40
  %v188 = vunpack.c.h.b16 %v40
  %v189 = vunpack.c.l.b16 %v41
  %v190 = vunpack.c.h.b16 %v41
  %v191 = vunpack.c.l.b16 %v42
  %v192 = vunpack.c.h.b16 %v42
  %v193 = vunpack.c.l.b16 %v43
  %v194 = vunpack.c.h.b16 %v43
  %v195 = vunpack.c.l.b16 %v44
  %v196 = vunpack.c.h.b16 %v44
  %v197 = vunpack.c.l.b16 %v45
  %v198 = vunpack.c.h.b16 %v45
  %v199 = vunpack.c.l.b16 %v46
  %v200 = vunpack.c.h.b16 %v46
  %v201 = vpack.c.b16 %v141, %v137
  %v202 = vpack.c.b16 %v142, %v138
  %v203 = vpack.c.b16 %v143, %v139
  %v204 = vpack.c.b16 %v144, %v140
  %v205 = vpack.c.b16 %v149, %v145
  %v206 = vpack.c.b16 %v150, %v146
  %v207 = vpack.c.b16 %v151, %v147
  %v208 = vpack.c.b16 %v152, %v148
  %v209 = vpack.c.b16 %v157, %v153
  %v210 = vpack.c.b16 %v158, %v154
  %v211 = vpack.c.b16 %v159, %v155
  %v212 = vpack.c.b16 %v160, %v156
  %v213 = vpack.c.b16 %v165, %v161
  %v214 = vpack.c.b16 %v166, %v162
  %v215 = vpack.c.b16 %v167, %v163
  %v216 = vpack.c.b16 %v168, %v164
  %v217 = vpack.c.b16 %v173, %v169
  %v218 = vpack.c.b16 %v174, %v170
  %v219 = vpack.c.b16 %v175, %v171
  %v220 = vpack.c.b16 %v176, %v172
  %v221 = vpack.c.b16 %v181, %v177
  %v222 = vpack.c.b16 %v182, %v178
  %v223 = vpack.c.b16 %v183, %v179
  %v224 = vpack.c.b16 %v184, %v180
  %v225 = vpack.c.b16 %v189, %v185
  %v226 = vpack.c.b16 %v190, %v186
  %v227 = vpack.c.b16 %v191, %v187
  %v228 = vpack.c.b16 %v192, %v188
  %v229 = vpack.c.b16 %v197, %v193
  %v230 = vpack.c.b16 %v198, %v194
  %v231 = vpack.c.b16 %v199, %v195
  %v232 = vpack.c.b16 %v200, %v196
  %v311 = vunpack.c.l.b16 %v47
  %v312 = vunpack.c.l.b16 %v48
  %v313 = vunpack.c.l.b16 %v49
  %v314 = vunpack.c.l.b16 %v50
  %v315 = vunpack.c.l.b16 %v51
  %v316 = vunpack.c.l.b16 %v52
  %v317 = vunpack.c.l.b16 %v53
  %v318 = vunpack.c.l.b16 %v54
  %v319 = vunpack.c.l.b16 %v55
  %v320 = vunpack.c.l.b16 %v56
  %v321 = vunpack.c.l.b16 %v57
  %v322 = vunpack.c.l.b16 %v58
  %v323 = vunpack.c.l.b16 %v59
  %v324 = vunpack.c.l.b16 %v60
  %v325 = vunpack.c.l.b16 %v61
  %v326 = vunpack.c.l.b16 %v62
  %v327 = vunpack.c.l.b16 %v63
  %v328 = vunpack.c.l.b16 %v64
  %v329 = vunpack.c.l.b16 %v65
  %v330 = vunpack.c.l.b16 %v66
  %v331 = vunpack.c.l.b16 %v67
  %v332 = vunpack.c.l.b16 %v68
  %v333 = vunpack.c.l.b16 %v69
  %v334 = vunpack.c.l.b16 %v70
  %v335 = vunpack.c.l.b16 %v71
  %v336 = vunpack.c.l.b16 %v72
  %v337 = vunpack.c.l.b16 %v73
  %v338 = vunpack.c.l.b16 %v74
  %v339 = vunpack.c.l.b16 %v75
  %v340 = vunpack.c.l.b16 %v76
  %v341 = vunpack.c.l.b16 %v77
  %v342 = vunpack.c.l.b16 %v78
  %v343 = vunpack.c.l.b16 %v79
  %v344 = vunpack.c.l.b16 %v80
  %v345 = vunpack.c.l.b16 %v81
  %v346 = vunpack.c.l.b16 %v82
  %v347 = vunpack.c.l.b16 %v83
  %v348 = vunpack.c.l.b16 %v84
  %v349 = vunpack.c.l.b16 %v85
  %v350 = vunpack.c.l.b16 %v86
  %v351 = vunpack.c.l.b16 %v87
  %v352 = vunpack.c.l.b16 %v88
  %v353 = vunpack.c.l.b16 %v89
  %v354 = vunpack.c.l.b16 %v90
  %v355 = vunpack.c.l.b16 %v91
  %v356 = vunpack.c.l.b16 %v92
  %v357 = vunpack.c.l.b16 %v93
  %v358 = vunpack.c.l.b16 %v94
  %v359 = vunpack.c.l.b16 %v95
  %v360 = vunpack.c.l.b16 %v96
  %v361 = vunpack.c.l.b16 %v97
  %v362 = vunpack.c.l.b16 %v98
  %v363 = vunpack.c.l.b16 %v99
  %v364 = vunpack.c.l.b16 %v100
  %v365 = vpack.c.b16 %v312, %v311
  %v366 = vpack.c.b16 %v314, %v313
  %v367 = vpack.c.b16 %v316, %v315
  %v368 = vpack.c.b16 %v318, %v317
  %v369 = vpack.c.b16 %v320, %v319
  %v370 = vpack.c.b16 %v322, %v321
  %v371 = vpack.c.b16 %v324, %v323
  %v372 = vpack.c.b16 %v326, %v325
  %v373 = vpack.c.b16 %v328, %v327
  %v374 = vpack.c.b16 %v330, %v329
  %v375 = vpack.c.b16 %v332, %v331
  %v376 = vpack.c.b16 %v334, %v333
  %v377 = vpack.c.b16 %v336, %v335
  %v378 = vpack.c.b16 %v338, %v337
  %v379 = vpack.c.b16 %v340, %v339
  %v380 = vpack.c.b16 %v342, %v341
  %v381 = vpack.c.b16 %v344, %v343
  %v382 = vpack.c.b16 %v346, %v345
  %v383 = vpack.c.b16 %v348, %v347
  %v384 = vpack.c.b16 %v350, %v349
  %v385 = vpack.c.b16 %v352, %v351
  %v386 = vpack.c.b16 %v354, %v353
  %v387 = vpack.c.b16 %v356, %v355
  %v388 = vpack.c.b16 %v358, %v357
  %v389 = vpack.c.b16 %v360, %v359
  %v390 = vpack.c.b16 %v362, %v361
  %v391 = vpack.c.b16 %v364, %v363
  %vm419 = vcmask 392192
  %v421 = vsel %vm419, %v204, 0
  %v424 = vsel %vm419, %v208, 0
  %v427 = vsel %vm419, %v212, 0
  %v430 = vsel %vm419, %v216, 0
  %v433 = vsel %vm419, %v220, 0
  %v436 = vsel %vm419, %v224, 0
  %v439 = vsel %vm419, %v228, 0
  %v442 = vsel %vm419, %v232, 0
  %444 = vmatpush.bf16.msra.mxu0 %v372
  %445 = vmatpush.bf16.msra.mxu0 %v371
  %446 = vmatpush.bf16.msra.mxu0 %v370
  %447 = vmatpush.bf16.msra.mxu0 %v369
  %448 = vmatpush.bf16.msra.mxu0 %v368
  %449 = vmatpush.bf16.msra.mxu0 %v367
  %450 = vmatpush.bf16.msra.mxu0 %v366
  %451 = vmatpush.bf16.msra.mxu0 %v365
  %452 = vmatmul.bf16.gmra.mxu0 %v201
  %v453 = vpop.f32.mrf.mxu0
  %v454 = vadd.f32 %v103, %v453
  %v455 = vpop.f32.mrf.mxu0
  %v456 = vadd.f32 %v103, %v455
  %457 = vmatmul.bf16.gmra.mxu0 %v205
  %v458 = vpop.f32.mrf.mxu0
  %v459 = vadd.f32 %v103, %v458
  %v460 = vpop.f32.mrf.mxu0
  %v461 = vadd.f32 %v103, %v460
  %462 = vmatmul.bf16.gmra.mxu0 %v209
  %v463 = vpop.f32.mrf.mxu0
  %v464 = vadd.f32 %v103, %v463
  %v465 = vpop.f32.mrf.mxu0
  %v466 = vadd.f32 %v103, %v465
  %467 = vmatmul.bf16.gmra.mxu0 %v213
  %v468 = vpop.f32.mrf.mxu0
  %v469 = vadd.f32 %v103, %v468
  %v470 = vpop.f32.mrf.mxu0
  %v471 = vadd.f32 %v103, %v470
  %472 = vmatmul.bf16.gmra.mxu0 %v217
  %v473 = vpop.f32.mrf.mxu0
  %v474 = vadd.f32 %v103, %v473
  %v475 = vpop.f32.mrf.mxu0
  %v476 = vadd.f32 %v103, %v475
  %477 = vmatmul.bf16.gmra.mxu0 %v221
  %v478 = vpop.f32.mrf.mxu0
  %v479 = vadd.f32 %v103, %v478
  %v480 = vpop.f32.mrf.mxu0
  %v481 = vadd.f32 %v103, %v480
  %482 = vmatmul.bf16.gmra.mxu0 %v225
  %v483 = vpop.f32.mrf.mxu0
  %v484 = vadd.f32 %v103, %v483
  %v485 = vpop.f32.mrf.mxu0
  %v486 = vadd.f32 %v103, %v485
  %487 = vmatmul.bf16.gmra.mxu0 %v229
  %v488 = vpop.f32.mrf.mxu0
  %v489 = vadd.f32 %v103, %v488
  %v490 = vpop.f32.mrf.mxu0
  %v491 = vadd.f32 %v103, %v490
  %492 = vdwg.mxu0
  %493 = vmatpush.bf16.msra.mxu0 %v380
  %494 = vmatpush.bf16.msra.mxu0 %v379
  %495 = vmatpush.bf16.msra.mxu0 %v378
  %496 = vmatpush.bf16.msra.mxu0 %v377
  %497 = vmatpush.bf16.msra.mxu0 %v376
  %498 = vmatpush.bf16.msra.mxu0 %v375
  %499 = vmatpush.bf16.msra.mxu0 %v374
  %500 = vmatpush.bf16.msra.mxu0 %v373
  %501 = vmatmul.bf16.gmra.mxu0 %v202
  %v502 = vpop.f32.mrf.mxu0
  %v503 = vadd.f32 %v454, %v502
  %v504 = vpop.f32.mrf.mxu0
  %v505 = vadd.f32 %v456, %v504
  %506 = vmatmul.bf16.gmra.mxu0 %v206
  %v507 = vpop.f32.mrf.mxu0
  %v508 = vadd.f32 %v459, %v507
  %v509 = vpop.f32.mrf.mxu0
  %v510 = vadd.f32 %v461, %v509
  %511 = vmatmul.bf16.gmra.mxu0 %v210
  %v512 = vpop.f32.mrf.mxu0
  %v513 = vadd.f32 %v464, %v512
  %v514 = vpop.f32.mrf.mxu0
  %v515 = vadd.f32 %v466, %v514
  %516 = vmatmul.bf16.gmra.mxu0 %v214
  %v517 = vpop.f32.mrf.mxu0
  %v518 = vadd.f32 %v469, %v517
  %v519 = vpop.f32.mrf.mxu0
  %v520 = vadd.f32 %v471, %v519
  %521 = vmatmul.bf16.gmra.mxu0 %v218
  %v522 = vpop.f32.mrf.mxu0
  %v523 = vadd.f32 %v474, %v522
  %v524 = vpop.f32.mrf.mxu0
  %v525 = vadd.f32 %v476, %v524
  %526 = vmatmul.bf16.gmra.mxu0 %v222
  %v527 = vpop.f32.mrf.mxu0
  %v528 = vadd.f32 %v479, %v527
  %v529 = vpop.f32.mrf.mxu0
  %v530 = vadd.f32 %v481, %v529
  %531 = vmatmul.bf16.gmra.mxu0 %v226
  %v532 = vpop.f32.mrf.mxu0
  %v533 = vadd.f32 %v484, %v532
  %v534 = vpop.f32.mrf.mxu0
  %v535 = vadd.f32 %v486, %v534
  %536 = vmatmul.bf16.gmra.mxu0 %v230
  %v537 = vpop.f32.mrf.mxu0
  %v538 = vadd.f32 %v489, %v537
  %v539 = vpop.f32.mrf.mxu0
  %v540 = vadd.f32 %v491, %v539
  %541 = vdwg.mxu0
  %542 = vmatpush.bf16.msra.mxu0 %v388
  %543 = vmatpush.bf16.msra.mxu0 %v387
  %544 = vmatpush.bf16.msra.mxu0 %v386
  %545 = vmatpush.bf16.msra.mxu0 %v385
  %546 = vmatpush.bf16.msra.mxu0 %v384
  %547 = vmatpush.bf16.msra.mxu0 %v383
  %548 = vmatpush.bf16.msra.mxu0 %v382
  %549 = vmatpush.bf16.msra.mxu0 %v381
  %550 = vmatmul.bf16.gmra.mxu0 %v203
  %v551 = vpop.f32.mrf.mxu0
  %v552 = vadd.f32 %v503, %v551
  %v553 = vpop.f32.mrf.mxu0
  %v554 = vadd.f32 %v505, %v553
  %555 = vmatmul.bf16.gmra.mxu0 %v207
  %v556 = vpop.f32.mrf.mxu0
  %v557 = vadd.f32 %v508, %v556
  %v558 = vpop.f32.mrf.mxu0
  %v559 = vadd.f32 %v510, %v558
  %560 = vmatmul.bf16.gmra.mxu0 %v211
  %v561 = vpop.f32.mrf.mxu0
  %v562 = vadd.f32 %v513, %v561
  %v563 = vpop.f32.mrf.mxu0
  %v564 = vadd.f32 %v515, %v563
  %565 = vmatmul.bf16.gmra.mxu0 %v215
  %v566 = vpop.f32.mrf.mxu0
  %v567 = vadd.f32 %v518, %v566
  %v568 = vpop.f32.mrf.mxu0
  %v569 = vadd.f32 %v520, %v568
  %570 = vmatmul.bf16.gmra.mxu0 %v219
  %v571 = vpop.f32.mrf.mxu0
  %v572 = vadd.f32 %v523, %v571
  %v573 = vpop.f32.mrf.mxu0
  %v574 = vadd.f32 %v525, %v573
  %575 = vmatmul.bf16.gmra.mxu0 %v223
  %v576 = vpop.f32.mrf.mxu0
  %v577 = vadd.f32 %v528, %v576
  %v578 = vpop.f32.mrf.mxu0
  %v579 = vadd.f32 %v530, %v578
  %580 = vmatmul.bf16.gmra.mxu0 %v227
  %v581 = vpop.f32.mrf.mxu0
  %v582 = vadd.f32 %v533, %v581
  %v583 = vpop.f32.mrf.mxu0
  %v584 = vadd.f32 %v535, %v583
  %585 = vmatmul.bf16.gmra.mxu0 %v231
  %v586 = vpop.f32.mrf.mxu0
  %v587 = vadd.f32 %v538, %v586
  %v588 = vpop.f32.mrf.mxu0
  %v589 = vadd.f32 %v540, %v588
  %590 = vdwg.mxu0
  %591 = vmatpush.bf16.msra.mxu0 0
  %592 = vmatpush.bf16.msra.mxu0 0
  %593 = vmatpush.bf16.msra.mxu0 0
  %594 = vmatpush.bf16.msra.mxu0 0
  %595 = vmatpush.bf16.msra.mxu0 0
  %596 = vmatpush.bf16.msra.mxu0 %v391
  %597 = vmatpush.bf16.msra.mxu0 %v390
  %598 = vmatpush.bf16.msra.mxu0 %v389
  %599 = vmatmul.bf16.gmra.mxu0 %v421
  %v600 = vpop.f32.mrf.mxu0
  %v601 = vadd.f32 %v552, %v600
  %v602 = vpop.f32.mrf.mxu0
  %v603 = vadd.f32 %v554, %v602
  %604 = vmatmul.bf16.gmra.mxu0 %v424
  %v605 = vpop.f32.mrf.mxu0
  %v606 = vadd.f32 %v557, %v605
  %v607 = vpop.f32.mrf.mxu0
  %v608 = vadd.f32 %v559, %v607
  %609 = vmatmul.bf16.gmra.mxu0 %v427
  %v610 = vpop.f32.mrf.mxu0
  %v611 = vadd.f32 %v562, %v610
  %v612 = vpop.f32.mrf.mxu0
  %v613 = vadd.f32 %v564, %v612
  %614 = vmatmul.bf16.gmra.mxu0 %v430
  %v615 = vpop.f32.mrf.mxu0
  %v616 = vadd.f32 %v567, %v615
  %v617 = vpop.f32.mrf.mxu0
  %v618 = vadd.f32 %v569, %v617
  %619 = vmatmul.bf16.gmra.mxu0 %v433
  %v620 = vpop.f32.mrf.mxu0
  %v621 = vadd.f32 %v572, %v620
  %v622 = vpop.f32.mrf.mxu0
  %v623 = vadd.f32 %v574, %v622
  %624 = vmatmul.bf16.gmra.mxu0 %v436
  %v625 = vpop.f32.mrf.mxu0
  %v626 = vadd.f32 %v577, %v625
  %v627 = vpop.f32.mrf.mxu0
  %v628 = vadd.f32 %v579, %v627
  %629 = vmatmul.bf16.gmra.mxu0 %v439
  %v630 = vpop.f32.mrf.mxu0
  %v631 = vadd.f32 %v582, %v630
  %v632 = vpop.f32.mrf.mxu0
  %v633 = vadd.f32 %v584, %v632
  %634 = vmatmul.bf16.gmra.mxu0 %v442
  %v635 = vpop.f32.mrf.mxu0
  %v636 = vadd.f32 %v587, %v635
  %v637 = vpop.f32.mrf.mxu0
  %v638 = vadd.f32 %v589, %v637
  %639 = vdwg.mxu0
  %v640 = vpack.c.bf16 %v601, %v601
  %v641 = vpack.c.bf16 %v603, %v603
  %v642 = vpack.c.bf16 %v606, %v606
  %v643 = vpack.c.bf16 %v608, %v608
  %v644 = vpack.c.bf16 %v611, %v611
  %v645 = vpack.c.bf16 %v613, %v613
  %v646 = vpack.c.bf16 %v616, %v616
  %v647 = vpack.c.bf16 %v618, %v618
  %v648 = vpack.c.bf16 %v621, %v621
  %v649 = vpack.c.bf16 %v623, %v623
  %v650 = vpack.c.bf16 %v626, %v626
  %v651 = vpack.c.bf16 %v628, %v628
  %v652 = vpack.c.bf16 %v631, %v631
  %v653 = vpack.c.bf16 %v633, %v633
  %v654 = vpack.c.bf16 %v636, %v636
  %v655 = vpack.c.bf16 %v638, %v638
  %vm656 = vcmask 781312
  %657 = vst.msk [vmem:[%s3] sm:$0xf] %vm656, %v640
  %658 = vst.msk [vmem:[%s3 + $0x4] sm:$0xf] %vm656, %v641
  %659 = vst.msk [vmem:[%s3 + $0x8] sm:$0xf] %vm656, %v642
  %660 = vst.msk [vmem:[%s3 + $0xc] sm:$0xf] %vm656, %v643
  %661 = vst.msk [vmem:[%s3 + $0x10] sm:$0xf] %vm656, %v644
  %662 = vst.msk [vmem:[%s3 + $0x14] sm:$0xf] %vm656, %v645
  %663 = vst.msk [vmem:[%s3 + $0x18] sm:$0xf] %vm656, %v646
  %664 = vst.msk [vmem:[%s3 + $0x1c] sm:$0xf] %vm656, %v647
  %665 = vst.msk [vmem:[%s3 + $0x20] sm:$0xf] %vm656, %v648
  %666 = vst.msk [vmem:[%s3 + $0x24] sm:$0xf] %vm656, %v649
  %667 = vst.msk [vmem:[%s3 + $0x28] sm:$0xf] %vm656, %v650
  %668 = vst.msk [vmem:[%s3 + $0x2c] sm:$0xf] %vm656, %v651
  %669 = vst.msk [vmem:[%s3 + $0x30] sm:$0xf] %vm656, %v652
  %670 = vst.msk [vmem:[%s3 + $0x34] sm:$0xf] %vm656, %v653
  %671 = vst.msk [vmem:[%s3 + $0x38] sm:$0xf] %vm656, %v654
  %672 = vst.msk [vmem:[%s3 + $0x3c] sm:$0xf] %vm656, %v655
  // Predicated region
  $region14: #{early_conv_vit_forward.7} parent=0 // pred_check
    _
  $region15: #{early_conv_vit_forward.7} parent=0 // pred_check_branch
    %674 = sbr.rel (0) target = $region17
  $region16: #{early_conv_vit_forward.7} parent=0 // pred_region
    _
  $region17: #{early_conv_vit_forward.7} parent=0 // pred_fallthru
    _
  // Predicated region
  $region18: #{early_conv_vit_forward.7} parent=0 // pred_check
    _
  $region19: #{early_conv_vit_forward.7} parent=0 // pred_check_branch
    %676 = sbr.rel (0) target = $region21
  $region20: #{early_conv_vit_forward.7} parent=0 // pred_region
    _
  $region21: #{early_conv_vit_forward.7} parent=0 // pred_fallthru
    _

// kernel: early_conv_vit_forward.8
$region0: #{early_conv_vit_forward.8}
  #allocation0 [shape = 'u32[]', space=smem, size = 0x4, offset = 0x4, fixed_abs, tag = 'smem constant byte address 0x4 - core index']
  #allocation1 [shape = 'u32[72,128]{1,0:T(1,128)}', space=vmem, size = 0x9000, scoped, tag = 'internal scratch']
  %s0 = inlined_call_operand.vmem [shape: bf16[32,864], index: 0, kind: input, shape index: {}]
  %s1 = inlined_call_operand.vmem [shape: bf16[864,192], index: 1, kind: input, shape index: {}]
  %s2 = inlined_call_operand.vmem [shape: f32[1,192], index: 2, kind: input, shape index: {}]
  %s3 = inlined_call_operand.vmem [shape: bf16[32,192], index: 3, kind: output, shape index: {}]
  %s4 = sld [smem:[#allocation0]]
  $region22: #{early_conv_vit_forward.8} parent=0
    _
  %s6 = ssub.s32 1, %s4
  %s7 = scalar_select 0, %s6, %s4
  // Predicated region
  $region2: #{early_conv_vit_forward.8} parent=0 // pred_check
    _
  $region3: #{early_conv_vit_forward.8} parent=0 // pred_check_branch
    %9 = sbr.rel (0) target = $region5
  $region4: #{early_conv_vit_forward.8} parent=0 // pred_region
    _
  $region5: #{early_conv_vit_forward.8} parent=0 // pred_fallthru
    _
  // Predicated region
  $region6: #{early_conv_vit_forward.8} parent=0 // pred_check
    _
  $region7: #{early_conv_vit_forward.8} parent=0 // pred_check_branch
    %11 = sbr.rel (0) target = $region9
  $region8: #{early_conv_vit_forward.8} parent=0 // pred_region
    _
  $region9: #{early_conv_vit_forward.8} parent=0 // pred_fallthru
    _
  // Predicated region
  $region10: #{early_conv_vit_forward.8} parent=0 // pred_check
    _
  $region11: #{early_conv_vit_forward.8} parent=0 // pred_check_branch
    %13 = sbr.rel (0) target = $region13
  $region12: #{early_conv_vit_forward.8} parent=0 // pred_region
    _
  $region13: #{early_conv_vit_forward.8} parent=0 // pred_fallthru
    _
  %v15 = vld [vmem:[%s0] sm:$0xff]
  %v16 = vld [vmem:[%s0 + $0x8] sm:$0xff]
  %v17 = vld [vmem:[%s0 + $0x10] sm:$0xff]
  %v18 = vld [vmem:[%s0 + $0x18] sm:$0xf]
  %v19 = vld [vmem:[%s0 + $0x1c] sm:$0xff]
  %v20 = vld [vmem:[%s0 + $0x24] sm:$0xff]
  %v21 = vld [vmem:[%s0 + $0x2c] sm:$0xff]
  %v22 = vld [vmem:[%s0 + $0x34] sm:$0xf]
  %v23 = vld [vmem:[%s0 + $0x38] sm:$0xff]
  %v24 = vld [vmem:[%s0 + $0x40] sm:$0xff]
  %v25 = vld [vmem:[%s0 + $0x48] sm:$0xff]
  %v26 = vld [vmem:[%s0 + $0x50] sm:$0xf]
  %v27 = vld [vmem:[%s0 + $0x54] sm:$0xff]
  %v28 = vld [vmem:[%s0 + $0x5c] sm:$0xff]
  %v29 = vld [vmem:[%s0 + $0x64] sm:$0xff]
  %v30 = vld [vmem:[%s0 + $0x6c] sm:$0xf]
  %v31 = vld [vmem:[%s1] sm:$0xff]
  %v32 = vld [vmem:[%s1 + $0x8] sm:$0xff]
  %v33 = vld [vmem:[%s1 + $0x10] sm:$0xff]
  %v34 = vld [vmem:[%s1 + $0x18] sm:$0xff]
  %v35 = vld [vmem:[%s1 + $0x20] sm:$0xff]
  %v36 = vld [vmem:[%s1 + $0x28] sm:$0xff]
  %v37 = vld [vmem:[%s1 + $0x30] sm:$0xff]
  %v38 = vld [vmem:[%s1 + $0x38] sm:$0xff]
  %v39 = vld [vmem:[%s1 + $0x40] sm:$0xff]
  %v40 = vld [vmem:[%s1 + $0x48] sm:$0xff]
  %v41 = vld [vmem:[%s1 + $0x50] sm:$0xff]
  %v42 = vld [vmem:[%s1 + $0x58] sm:$0xff]
  %v43 = vld [vmem:[%s1 + $0x60] sm:$0xff]
  %v44 = vld [vmem:[%s1 + $0x68] sm:$0xff]
  %v45 = vld [vmem:[%s1 + $0x70] sm:$0xff]
  %v46 = vld [vmem:[%s1 + $0x78] sm:$0xff]
  %v47 = vld [vmem:[%s1 + $0x80] sm:$0xff]
  %v48 = vld [vmem:[%s1 + $0x88] sm:$0xff]
  %v49 = vld [vmem:[%s1 + $0x90] sm:$0xff]
  %v50 = vld [vmem:[%s1 + $0x98] sm:$0xff]
  %v51 = vld [vmem:[%s1 + $0xa0] sm:$0xff]
  %v52 = vld [vmem:[%s1 + $0xa8] sm:$0xff]
  %v53 = vld [vmem:[%s1 + $0xb0] sm:$0xff]
  %v54 = vld [vmem:[%s1 + $0xb8] sm:$0xff]
  %v55 = vld [vmem:[%s1 + $0xc0] sm:$0xff]
  %v56 = vld [vmem:[%s1 + $0xc8] sm:$0xff]
  %v57 = vld [vmem:[%s1 + $0xd0] sm:$0xff]
  %v58 = vld [vmem:[%s1 + $0xd8] sm:$0xff]
  %v59 = vld [vmem:[%s1 + $0xe0] sm:$0xff]
  %v60 = vld [vmem:[%s1 + $0xe8] sm:$0xff]
  %v61 = vld [vmem:[%s1 + $0xf0] sm:$0xff]
  %v62 = vld [vmem:[%s1 + $0xf8] sm:$0xff]
  %v63 = vld [vmem:[%s1 + $0x100] sm:$0xff]
  %v64 = vld [vmem:[%s1 + $0x108] sm:$0xff]
  %v65 = vld [vmem:[%s1 + $0x110] sm:$0xff]
  %v66 = vld [vmem:[%s1 + $0x118] sm:$0xff]
  %v67 = vld [vmem:[%s1 + $0x120] sm:$0xff]
  %v68 = vld [vmem:[%s1 + $0x128] sm:$0xff]
  %v69 = vld [vmem:[%s1 + $0x130] sm:$0xff]
  %v70 = vld [vmem:[%s1 + $0x138] sm:$0xff]
  %v71 = vld [vmem:[%s1 + $0x140] sm:$0xff]
  %v72 = vld [vmem:[%s1 + $0x148] sm:$0xff]
  %v73 = vld [vmem:[%s1 + $0x150] sm:$0xff]
  %v74 = vld [vmem:[%s1 + $0x158] sm:$0xff]
  %v75 = vld [vmem:[%s1 + $0x160] sm:$0xff]
  %v76 = vld [vmem:[%s1 + $0x168] sm:$0xff]
  %v77 = vld [vmem:[%s1 + $0x170] sm:$0xff]
  %v78 = vld [vmem:[%s1 + $0x178] sm:$0xff]
  %v79 = vld [vmem:[%s1 + $0x180] sm:$0xff]
  %v80 = vld [vmem:[%s1 + $0x188] sm:$0xff]
  %v81 = vld [vmem:[%s1 + $0x190] sm:$0xff]
  %v82 = vld [vmem:[%s1 + $0x198] sm:$0xff]
  %v83 = vld [vmem:[%s1 + $0x1a0] sm:$0xff]
  %v84 = vld [vmem:[%s1 + $0x1a8] sm:$0xff]
  %v85 = vld [vmem:[%s1 + $0x1b0] sm:$0xff]
  %v86 = vld [vmem:[%s1 + $0x1b8] sm:$0xff]
  %v87 = vld [vmem:[%s1 + $0x1c0] sm:$0xff]
  %v88 = vld [vmem:[%s1 + $0x1c8] sm:$0xff]
  %v89 = vld [vmem:[%s1 + $0x1d0] sm:$0xff]
  %v90 = vld [vmem:[%s1 + $0x1d8] sm:$0xff]
  %v91 = vld [vmem:[%s1 + $0x1e0] sm:$0xff]
  %v92 = vld [vmem:[%s1 + $0x1e8] sm:$0xff]
  %v93 = vld [vmem:[%s1 + $0x1f0] sm:$0xff]
  %v94 = vld [vmem:[%s1 + $0x1f8] sm:$0xff]
  %v95 = vld [vmem:[%s1 + $0x200] sm:$0xff]
  %v96 = vld [vmem:[%s1 + $0x208] sm:$0xff]
  %v97 = vld [vmem:[%s1 + $0x210] sm:$0xff]
  %v98 = vld [vmem:[%s1 + $0x218] sm:$0xff]
  %v99 = vld [vmem:[%s1 + $0x220] sm:$0xff]
  %v100 = vld [vmem:[%s1 + $0x228] sm:$0xff]
  %v101 = vld [vmem:[%s1 + $0x230] sm:$0xff]
  %v102 = vld [vmem:[%s1 + $0x238] sm:$0xff]
  %v103 = vld [vmem:[%s1 + $0x240] sm:$0xff]
  %v104 = vld [vmem:[%s1 + $0x248] sm:$0xff]
  %v105 = vld [vmem:[%s1 + $0x250] sm:$0xff]
  %v106 = vld [vmem:[%s1 + $0x258] sm:$0xff]
  %v107 = vld [vmem:[%s1 + $0x260] sm:$0xff]
  %v108 = vld [vmem:[%s1 + $0x268] sm:$0xff]
  %v109 = vld [vmem:[%s1 + $0x270] sm:$0xff]
  %v110 = vld [vmem:[%s1 + $0x278] sm:$0xff]
  %v111 = vld [vmem:[%s1 + $0x280] sm:$0xff]
  %v112 = vld [vmem:[%s1 + $0x288] sm:$0xff]
  %v113 = vld [vmem:[%s1 + $0x290] sm:$0xff]
  %v114 = vld [vmem:[%s1 + $0x298] sm:$0xff]
  %v115 = vld [vmem:[%s1 + $0x2a0] sm:$0xff]
  %v116 = vld [vmem:[%s1 + $0x2a8] sm:$0xff]
  %v117 = vld [vmem:[%s1 + $0x2b0] sm:$0xff]
  %v118 = vld [vmem:[%s1 + $0x2b8] sm:$0xff]
  %v119 = vld [vmem:[%s1 + $0x2c0] sm:$0xff]
  %v120 = vld [vmem:[%s1 + $0x2c8] sm:$0xff]
  %v121 = vld [vmem:[%s1 + $0x2d0] sm:$0xff]
  %v122 = vld [vmem:[%s1 + $0x2d8] sm:$0xff]
  %v123 = vld [vmem:[%s1 + $0x2e0] sm:$0xff]
  %v124 = vld [vmem:[%s1 + $0x2e8] sm:$0xff]
  %v125 = vld [vmem:[%s1 + $0x2f0] sm:$0xff]
  %v126 = vld [vmem:[%s1 + $0x2f8] sm:$0xff]
  %v127 = vld [vmem:[%s1 + $0x300] sm:$0xff]
  %v128 = vld [vmem:[%s1 + $0x308] sm:$0xff]
  %v129 = vld [vmem:[%s1 + $0x310] sm:$0xff]
  %v130 = vld [vmem:[%s1 + $0x318] sm:$0xff]
  %v131 = vld [vmem:[%s1 + $0x320] sm:$0xff]
  %v132 = vld [vmem:[%s1 + $0x328] sm:$0xff]
  %v133 = vld [vmem:[%s1 + $0x330] sm:$0xff]
  %v134 = vld [vmem:[%s1 + $0x338] sm:$0xff]
  %v135 = vld [vmem:[%s1 + $0x340] sm:$0xff]
  %v136 = vld [vmem:[%s1 + $0x348] sm:$0xff]
  %v137 = vld [vmem:[%s1 + $0x350] sm:$0xff]
  %v138 = vld [vmem:[%s1 + $0x358] sm:$0xff]
  %v139 = vld [vmem:[%s2] sm:$0x3]
  %v141 = vperm.slane %v139, 0
  %v142 = vperm.slane %v139, 1
  %v161 = vunpack.c.l.b16 %v15
  %v162 = vunpack.c.h.b16 %v15
  %v163 = vunpack.c.l.b16 %v16
  %v164 = vunpack.c.h.b16 %v16
  %v165 = vunpack.c.l.b16 %v17
  %v166 = vunpack.c.h.b16 %v17
  %v167 = vunpack.c.l.b16 %v18
  %v168 = vunpack.c.l.b16 %v19
  %v169 = vunpack.c.h.b16 %v19
  %v170 = vunpack.c.l.b16 %v20
  %v171 = vunpack.c.h.b16 %v20
  %v172 = vunpack.c.l.b16 %v21
  %v173 = vunpack.c.h.b16 %v21
  %v174 = vunpack.c.l.b16 %v22
  %v175 = vunpack.c.l.b16 %v23
  %v176 = vunpack.c.h.b16 %v23
  %v177 = vunpack.c.l.b16 %v24
  %v178 = vunpack.c.h.b16 %v24
  %v179 = vunpack.c.l.b16 %v25
  %v180 = vunpack.c.h.b16 %v25
  %v181 = vunpack.c.l.b16 %v26
  %v182 = vunpack.c.l.b16 %v27
  %v183 = vunpack.c.h.b16 %v27
  %v184 = vunpack.c.l.b16 %v28
  %v185 = vunpack.c.h.b16 %v28
  %v186 = vunpack.c.l.b16 %v29
  %v187 = vunpack.c.h.b16 %v29
  %v188 = vunpack.c.l.b16 %v30
  %v189 = vpack.c.b16 %v168, %v161
  %v190 = vpack.c.b16 %v169, %v162
  %v191 = vpack.c.b16 %v170, %v163
  %v192 = vpack.c.b16 %v171, %v164
  %v193 = vpack.c.b16 %v172, %v165
  %v194 = vpack.c.b16 %v173, %v166
  %v195 = vpack.c.b16 %v174, %v167
  %v196 = vpack.c.b16 %v182, %v175
  %v197 = vpack.c.b16 %v183, %v176
  %v198 = vpack.c.b16 %v184, %v177
  %v199 = vpack.c.b16 %v185, %v178
  %v200 = vpack.c.b16 %v186, %v179
  %v201 = vpack.c.b16 %v187, %v180
  %v202 = vpack.c.b16 %v188, %v181
  %v323 = vunpack.c.l.b16 %v31
  %v324 = vunpack.c.h.b16 %v31
  %v325 = vunpack.c.l.b16 %v32
  %v326 = vunpack.c.h.b16 %v32
  %v327 = vunpack.c.l.b16 %v33
  %v328 = vunpack.c.h.b16 %v33
  %v329 = vunpack.c.l.b16 %v34
  %v330 = vunpack.c.h.b16 %v34
  %v331 = vunpack.c.l.b16 %v35
  %v332 = vunpack.c.h.b16 %v35
  %v333 = vunpack.c.l.b16 %v36
  %v334 = vunpack.c.h.b16 %v36
  %v335 = vunpack.c.l.b16 %v37
  %v336 = vunpack.c.h.b16 %v37
  %v337 = vunpack.c.l.b16 %v38
  %v338 = vunpack.c.h.b16 %v38
  %v339 = vunpack.c.l.b16 %v39
  %v340 = vunpack.c.h.b16 %v39
  %v341 = vunpack.c.l.b16 %v40
  %v342 = vunpack.c.h.b16 %v40
  %v343 = vunpack.c.l.b16 %v41
  %v344 = vunpack.c.h.b16 %v41
  %v345 = vunpack.c.l.b16 %v42
  %v346 = vunpack.c.h.b16 %v42
  %v347 = vunpack.c.l.b16 %v43
  %v348 = vunpack.c.h.b16 %v43
  %v349 = vunpack.c.l.b16 %v44
  %v350 = vunpack.c.h.b16 %v44
  %v351 = vunpack.c.l.b16 %v45
  %v352 = vunpack.c.h.b16 %v45
  %v353 = vunpack.c.l.b16 %v46
  %v354 = vunpack.c.h.b16 %v46
  %v355 = vunpack.c.l.b16 %v47
  %v356 = vunpack.c.h.b16 %v47
  %v357 = vunpack.c.l.b16 %v48
  %v358 = vunpack.c.h.b16 %v48
  %v359 = vunpack.c.l.b16 %v49
  %v360 = vunpack.c.h.b16 %v49
  %v361 = vunpack.c.l.b16 %v50
  %v362 = vunpack.c.h.b16 %v50
  %v363 = vunpack.c.l.b16 %v51
  %v364 = vunpack.c.h.b16 %v51
  %v365 = vunpack.c.l.b16 %v52
  %v366 = vunpack.c.h.b16 %v52
  %v367 = vunpack.c.l.b16 %v53
  %v368 = vunpack.c.h.b16 %v53
  %v369 = vunpack.c.l.b16 %v54
  %v370 = vunpack.c.h.b16 %v54
  %v371 = vunpack.c.l.b16 %v55
  %v372 = vunpack.c.h.b16 %v55
  %v373 = vunpack.c.l.b16 %v56
  %v374 = vunpack.c.h.b16 %v56
  %v375 = vunpack.c.l.b16 %v57
  %v376 = vunpack.c.h.b16 %v57
  %v377 = vunpack.c.l.b16 %v58
  %v378 = vunpack.c.h.b16 %v58
  %v379 = vunpack.c.l.b16 %v59
  %v380 = vunpack.c.h.b16 %v59
  %v381 = vunpack.c.l.b16 %v60
  %v382 = vunpack.c.h.b16 %v60
  %v383 = vunpack.c.l.b16 %v61
  %v384 = vunpack.c.h.b16 %v61
  %v385 = vunpack.c.l.b16 %v62
  %v386 = vunpack.c.h.b16 %v62
  %v387 = vunpack.c.l.b16 %v63
  %v388 = vunpack.c.h.b16 %v63
  %v389 = vunpack.c.l.b16 %v64
  %v390 = vunpack.c.h.b16 %v64
  %v391 = vunpack.c.l.b16 %v65
  %v392 = vunpack.c.h.b16 %v65
  %v393 = vunpack.c.l.b16 %v66
  %v394 = vunpack.c.h.b16 %v66
  %v395 = vunpack.c.l.b16 %v67
  %v396 = vunpack.c.h.b16 %v67
  %v397 = vunpack.c.l.b16 %v68
  %v398 = vunpack.c.h.b16 %v68
  %v399 = vunpack.c.l.b16 %v69
  %v400 = vunpack.c.h.b16 %v69
  %v401 = vunpack.c.l.b16 %v70
  %v402 = vunpack.c.h.b16 %v70
  %v403 = vunpack.c.l.b16 %v71
  %v404 = vunpack.c.h.b16 %v71
  %v405 = vunpack.c.l.b16 %v72
  %v406 = vunpack.c.h.b16 %v72
  %v407 = vunpack.c.l.b16 %v73
  %v408 = vunpack.c.h.b16 %v73
  %v409 = vunpack.c.l.b16 %v74
  %v410 = vunpack.c.h.b16 %v74
  %v411 = vunpack.c.l.b16 %v75
  %v412 = vunpack.c.h.b16 %v75
  %v413 = vunpack.c.l.b16 %v76
  %v414 = vunpack.c.h.b16 %v76
  %v415 = vunpack.c.l.b16 %v77
  %v416 = vunpack.c.h.b16 %v77
  %v417 = vunpack.c.l.b16 %v78
  %v418 = vunpack.c.h.b16 %v78
  %v419 = vunpack.c.l.b16 %v79
  %v420 = vunpack.c.h.b16 %v79
  %v421 = vunpack.c.l.b16 %v80
  %v422 = vunpack.c.h.b16 %v80
  %v423 = vunpack.c.l.b16 %v81
  %v424 = vunpack.c.h.b16 %v81
  %v425 = vunpack.c.l.b16 %v82
  %v426 = vunpack.c.h.b16 %v82
  %v427 = vunpack.c.l.b16 %v83
  %v428 = vunpack.c.h.b16 %v83
  %v429 = vunpack.c.l.b16 %v84
  %v430 = vunpack.c.h.b16 %v84
  %v431 = vunpack.c.l.b16 %v85
  %v432 = vunpack.c.h.b16 %v85
  %v433 = vunpack.c.l.b16 %v86
  %v434 = vunpack.c.h.b16 %v86
  %v435 = vunpack.c.l.b16 %v87
  %v436 = vunpack.c.h.b16 %v87
  %v437 = vunpack.c.l.b16 %v88
  %v438 = vunpack.c.h.b16 %v88
  %v439 = vunpack.c.l.b16 %v89
  %v440 = vunpack.c.h.b16 %v89
  %v441 = vunpack.c.l.b16 %v90
  %v442 = vunpack.c.h.b16 %v90
  %v443 = vunpack.c.l.b16 %v91
  %v444 = vunpack.c.h.b16 %v91
  %v445 = vunpack.c.l.b16 %v92
  %v446 = vunpack.c.h.b16 %v92
  %v447 = vunpack.c.l.b16 %v93
  %v448 = vunpack.c.h.b16 %v93
  %v449 = vunpack.c.l.b16 %v94
  %v450 = vunpack.c.h.b16 %v94
  %v451 = vunpack.c.l.b16 %v95
  %v452 = vunpack.c.h.b16 %v95
  %v453 = vunpack.c.l.b16 %v96
  %v454 = vunpack.c.h.b16 %v96
  %v455 = vunpack.c.l.b16 %v97
  %v456 = vunpack.c.h.b16 %v97
  %v457 = vunpack.c.l.b16 %v98
  %v458 = vunpack.c.h.b16 %v98
  %v459 = vunpack.c.l.b16 %v99
  %v460 = vunpack.c.h.b16 %v99
  %v461 = vunpack.c.l.b16 %v100
  %v462 = vunpack.c.h.b16 %v100
  %v463 = vunpack.c.l.b16 %v101
  %v464 = vunpack.c.h.b16 %v101
  %v465 = vunpack.c.l.b16 %v102
  %v466 = vunpack.c.h.b16 %v102
  %v467 = vunpack.c.l.b16 %v103
  %v468 = vunpack.c.h.b16 %v103
  %v469 = vunpack.c.l.b16 %v104
  %v470 = vunpack.c.h.b16 %v104
  %v471 = vunpack.c.l.b16 %v105
  %v472 = vunpack.c.h.b16 %v105
  %v473 = vunpack.c.l.b16 %v106
  %v474 = vunpack.c.h.b16 %v106
  %v475 = vunpack.c.l.b16 %v107
  %v476 = vunpack.c.h.b16 %v107
  %v477 = vunpack.c.l.b16 %v108
  %v478 = vunpack.c.h.b16 %v108
  %v479 = vunpack.c.l.b16 %v109
  %v480 = vunpack.c.h.b16 %v109
  %v481 = vunpack.c.l.b16 %v110
  %v482 = vunpack.c.h.b16 %v110
  %v483 = vunpack.c.l.b16 %v111
  %v484 = vunpack.c.h.b16 %v111
  %v485 = vunpack.c.l.b16 %v112
  %v486 = vunpack.c.h.b16 %v112
  %v487 = vunpack.c.l.b16 %v113
  %v488 = vunpack.c.h.b16 %v113
  %v489 = vunpack.c.l.b16 %v114
  %v490 = vunpack.c.h.b16 %v114
  %v491 = vunpack.c.l.b16 %v115
  %v492 = vunpack.c.h.b16 %v115
  %v493 = vunpack.c.l.b16 %v116
  %v494 = vunpack.c.h.b16 %v116
  %v495 = vunpack.c.l.b16 %v117
  %v496 = vunpack.c.h.b16 %v117
  %v497 = vunpack.c.l.b16 %v118
  %v498 = vunpack.c.h.b16 %v118
  %v499 = vunpack.c.l.b16 %v119
  %v500 = vunpack.c.h.b16 %v119
  %v501 = vunpack.c.l.b16 %v120
  %v502 = vunpack.c.h.b16 %v120
  %v503 = vunpack.c.l.b16 %v121
  %v504 = vunpack.c.h.b16 %v121
  %v505 = vunpack.c.l.b16 %v122
  %v506 = vunpack.c.h.b16 %v122
  %v507 = vunpack.c.l.b16 %v123
  %v508 = vunpack.c.h.b16 %v123
  %v509 = vunpack.c.l.b16 %v124
  %v510 = vunpack.c.h.b16 %v124
  %v511 = vunpack.c.l.b16 %v125
  %v512 = vunpack.c.h.b16 %v125
  %v513 = vunpack.c.l.b16 %v126
  %v514 = vunpack.c.h.b16 %v126
  %v515 = vunpack.c.l.b16 %v127
  %v516 = vunpack.c.h.b16 %v127
  %v517 = vunpack.c.l.b16 %v128
  %v518 = vunpack.c.h.b16 %v128
  %v519 = vunpack.c.l.b16 %v129
  %v520 = vunpack.c.h.b16 %v129
  %v521 = vunpack.c.l.b16 %v130
  %v522 = vunpack.c.h.b16 %v130
  %v523 = vunpack.c.l.b16 %v131
  %v524 = vunpack.c.h.b16 %v131
  %v525 = vunpack.c.l.b16 %v132
  %v526 = vunpack.c.h.b16 %v132
  %v527 = vunpack.c.l.b16 %v133
  %v528 = vunpack.c.h.b16 %v133
  %v529 = vunpack.c.l.b16 %v134
  %v530 = vunpack.c.h.b16 %v134
  %v531 = vunpack.c.l.b16 %v135
  %v532 = vunpack.c.h.b16 %v135
  %v533 = vunpack.c.l.b16 %v136
  %v534 = vunpack.c.h.b16 %v136
  %v535 = vunpack.c.l.b16 %v137
  %v536 = vunpack.c.h.b16 %v137
  %v537 = vunpack.c.l.b16 %v138
  %v538 = vunpack.c.h.b16 %v138
  %v539 = vpack.c.b16 %v325, %v323
  %v540 = vpack.c.b16 %v326, %v324
  %v541 = vpack.c.b16 %v329, %v327
  %v542 = vpack.c.b16 %v330, %v328
  %v543 = vpack.c.b16 %v333, %v331
  %v544 = vpack.c.b16 %v334, %v332
  %v545 = vpack.c.b16 %v337, %v335
  %v546 = vpack.c.b16 %v338, %v336
  %v547 = vpack.c.b16 %v341, %v339
  %v548 = vpack.c.b16 %v342, %v340
  %v549 = vpack.c.b16 %v345, %v343
  %v550 = vpack.c.b16 %v346, %v344
  %v551 = vpack.c.b16 %v349, %v347
  %v552 = vpack.c.b16 %v350, %v348
  %v553 = vpack.c.b16 %v353, %v351
  %v554 = vpack.c.b16 %v354, %v352
  %v555 = vpack.c.b16 %v357, %v355
  %v556 = vpack.c.b16 %v358, %v356
  %v557 = vpack.c.b16 %v361, %v359
  %v558 = vpack.c.b16 %v362, %v360
  %v559 = vpack.c.b16 %v365, %v363
  %v560 = vpack.c.b16 %v366, %v364
  %v561 = vpack.c.b16 %v369, %v367
  %v562 = vpack.c.b16 %v370, %v368
  %v563 = vpack.c.b16 %v373, %v371
  %v564 = vpack.c.b16 %v374, %v372
  %v565 = vpack.c.b16 %v377, %v375
  %v566 = vpack.c.b16 %v378, %v376
  %v567 = vpack.c.b16 %v381, %v379
  %v568 = vpack.c.b16 %v382, %v380
  %v569 = vpack.c.b16 %v385, %v383
  %v570 = vpack.c.b16 %v386, %v384
  %v571 = vpack.c.b16 %v389, %v387
  %v572 = vpack.c.b16 %v390, %v388
  %v573 = vpack.c.b16 %v393, %v391
  %v574 = vpack.c.b16 %v394, %v392
  %v575 = vpack.c.b16 %v397, %v395
  %v576 = vpack.c.b16 %v398, %v396
  %v577 = vpack.c.b16 %v401, %v399
  %v578 = vpack.c.b16 %v402, %v400
  %v579 = vpack.c.b16 %v405, %v403
  %v580 = vpack.c.b16 %v406, %v404
  %v581 = vpack.c.b16 %v409, %v407
  %v582 = vpack.c.b16 %v410, %v408
  %v583 = vpack.c.b16 %v413, %v411
  %v584 = vpack.c.b16 %v414, %v412
  %v585 = vpack.c.b16 %v417, %v415
  %v586 = vpack.c.b16 %v418, %v416
  %v587 = vpack.c.b16 %v421, %v419
  %v588 = vpack.c.b16 %v422, %v420
  %v589 = vpack.c.b16 %v425, %v423
  %v590 = vpack.c.b16 %v426, %v424
  %v591 = vpack.c.b16 %v429, %v427
  %v592 = vpack.c.b16 %v430, %v428
  %v593 = vpack.c.b16 %v433, %v431
  %v594 = vpack.c.b16 %v434, %v432
  %v595 = vpack.c.b16 %v437, %v435
  %v596 = vpack.c.b16 %v438, %v436
  %v597 = vpack.c.b16 %v441, %v439
  %v598 = vpack.c.b16 %v442, %v440
  %v599 = vpack.c.b16 %v445, %v443
  %v600 = vpack.c.b16 %v446, %v444
  %v601 = vpack.c.b16 %v449, %v447
  %v602 = vpack.c.b16 %v450, %v448
  %v603 = vpack.c.b16 %v453, %v451
  %v604 = vpack.c.b16 %v454, %v452
  %v605 = vpack.c.b16 %v457, %v455
  %v606 = vpack.c.b16 %v458, %v456
  %v607 = vpack.c.b16 %v461, %v459
  %v608 = vpack.c.b16 %v462, %v460
  %v609 = vpack.c.b16 %v465, %v463
  %v610 = vpack.c.b16 %v466, %v464
  %v611 = vpack.c.b16 %v469, %v467
  %v612 = vpack.c.b16 %v470, %v468
  %v613 = vpack.c.b16 %v473, %v471
  %v614 = vpack.c.b16 %v474, %v472
  %v615 = vpack.c.b16 %v477, %v475
  %v616 = vpack.c.b16 %v478, %v476
  %v617 = vpack.c.b16 %v481, %v479
  %v618 = vpack.c.b16 %v482, %v480
  %v619 = vpack.c.b16 %v485, %v483
  %v620 = vpack.c.b16 %v486, %v484
  %v621 = vpack.c.b16 %v489, %v487
  %v622 = vpack.c.b16 %v490, %v488
  %v623 = vpack.c.b16 %v493, %v491
  %v624 = vpack.c.b16 %v494, %v492
  %v625 = vpack.c.b16 %v497, %v495
  %v626 = vpack.c.b16 %v498, %v496
  %v627 = vpack.c.b16 %v501, %v499
  %v628 = vpack.c.b16 %v502, %v500
  %v629 = vpack.c.b16 %v505, %v503
  %v630 = vpack.c.b16 %v506, %v504
  %v631 = vpack.c.b16 %v509, %v507
  %v632 = vpack.c.b16 %v510, %v508
  %v633 = vpack.c.b16 %v513, %v511
  %v634 = vpack.c.b16 %v514, %v512
  %v635 = vpack.c.b16 %v517, %v515
  %v636 = vpack.c.b16 %v518, %v516
  %v637 = vpack.c.b16 %v521, %v519
  %v638 = vpack.c.b16 %v522, %v520
  %v639 = vpack.c.b16 %v525, %v523
  %v640 = vpack.c.b16 %v526, %v524
  %v641 = vpack.c.b16 %v529, %v527
  %v642 = vpack.c.b16 %v530, %v528
  %v643 = vpack.c.b16 %v533, %v531
  %v644 = vpack.c.b16 %v534, %v532
  %v645 = vpack.c.b16 %v537, %v535
  %v646 = vpack.c.b16 %v538, %v536
  %vm755 = vcmask 785408
  %v757 = vsel %vm755, %v195, 0
  %v760 = vsel %vm755, %v202, 0
  %762 = vmatpush.bf16.msra.mxu0 %v553
  %763 = vmatpush.bf16.msra.mxu0 %v551
  %764 = vmatpush.bf16.msra.mxu0 %v549
  %765 = vmatpush.bf16.msra.mxu0 %v547
  %766 = vmatpush.bf16.msra.mxu0 %v545
  %767 = vmatpush.bf16.msra.mxu0 %v543
  %768 = vmatpush.bf16.msra.mxu0 %v541
  %769 = vmatpush.bf16.msra.mxu0 %v539
  %770 = vmatmul.bf16.gmra.mxu0 %v189
  %v771 = vpop.f32.mrf.mxu0
  %v772 = vadd.f32 %v141, %v771
  %v773 = vpop.f32.mrf.mxu0
  %v774 = vadd.f32 %v141, %v773
  %775 = vmatmul.bf16.gmra.mxu0 %v196
  %v776 = vpop.f32.mrf.mxu0
  %v777 = vadd.f32 %v141, %v776
  %v778 = vpop.f32.mrf.mxu0
  %v779 = vadd.f32 %v141, %v778
  %780 = vdwg.mxu0
  %781 = vmatpush.bf16.msra.mxu0 %v569
  %782 = vmatpush.bf16.msra.mxu0 %v567
  %783 = vmatpush.bf16.msra.mxu0 %v565
  %784 = vmatpush.bf16.msra.mxu0 %v563
  %785 = vmatpush.bf16.msra.mxu0 %v561
  %786 = vmatpush.bf16.msra.mxu0 %v559
  %787 = vmatpush.bf16.msra.mxu0 %v557
  %788 = vmatpush.bf16.msra.mxu0 %v555
  %789 = vmatmul.bf16.gmra.mxu0 %v190
  %v790 = vpop.f32.mrf.mxu0
  %v791 = vadd.f32 %v772, %v790
  %v792 = vpop.f32.mrf.mxu0
  %v793 = vadd.f32 %v774, %v792
  %794 = vmatmul.bf16.gmra.mxu0 %v197
  %v795 = vpop.f32.mrf.mxu0
  %v796 = vadd.f32 %v777, %v795
  %v797 = vpop.f32.mrf.mxu0
  %v798 = vadd.f32 %v779, %v797
  %799 = vdwg.mxu0
  %800 = vmatpush.bf16.msra.mxu0 %v585
  %801 = vmatpush.bf16.msra.mxu0 %v583
  %802 = vmatpush.bf16.msra.mxu0 %v581
  %803 = vmatpush.bf16.msra.mxu0 %v579
  %804 = vmatpush.bf16.msra.mxu0 %v577
  %805 = vmatpush.bf16.msra.mxu0 %v575
  %806 = vmatpush.bf16.msra.mxu0 %v573
  %807 = vmatpush.bf16.msra.mxu0 %v571
  %808 = vmatmul.bf16.gmra.mxu0 %v191
  %v809 = vpop.f32.mrf.mxu0
  %v810 = vadd.f32 %v791, %v809
  %v811 = vpop.f32.mrf.mxu0
  %v812 = vadd.f32 %v793, %v811
  %813 = vmatmul.bf16.gmra.mxu0 %v198
  %v814 = vpop.f32.mrf.mxu0
  %v815 = vadd.f32 %v796, %v814
  %v816 = vpop.f32.mrf.mxu0
  %v817 = vadd.f32 %v798, %v816
  %818 = vdwg.mxu0
  %819 = vmatpush.bf16.msra.mxu0 %v601
  %820 = vmatpush.bf16.msra.mxu0 %v599
  %821 = vmatpush.bf16.msra.mxu0 %v597
  %822 = vmatpush.bf16.msra.mxu0 %v595
  %823 = vmatpush.bf16.msra.mxu0 %v593
  %824 = vmatpush.bf16.msra.mxu0 %v591
  %825 = vmatpush.bf16.msra.mxu0 %v589
  %826 = vmatpush.bf16.msra.mxu0 %v587
  %827 = vmatmul.bf16.gmra.mxu0 %v192
  %v828 = vpop.f32.mrf.mxu0
  %v829 = vadd.f32 %v810, %v828
  %v830 = vpop.f32.mrf.mxu0
  %v831 = vadd.f32 %v812, %v830
  %832 = vmatmul.bf16.gmra.mxu0 %v199
  %v833 = vpop.f32.mrf.mxu0
  %v834 = vadd.f32 %v815, %v833
  %v835 = vpop.f32.mrf.mxu0
  %v836 = vadd.f32 %v817, %v835
  %837 = vdwg.mxu0
  %838 = vmatpush.bf16.msra.mxu0 %v617
  %839 = vmatpush.bf16.msra.mxu0 %v615
  %840 = vmatpush.bf16.msra.mxu0 %v613
  %841 = vmatpush.bf16.msra.mxu0 %v611
  %842 = vmatpush.bf16.msra.mxu0 %v609
  %843 = vmatpush.bf16.msra.mxu0 %v607
  %844 = vmatpush.bf16.msra.mxu0 %v605
  %845 = vmatpush.bf16.msra.mxu0 %v603
  %846 = vmatmul.bf16.gmra.mxu0 %v193
  %v847 = vpop.f32.mrf.mxu0
  %v848 = vadd.f32 %v829, %v847
  %v849 = vpop.f32.mrf.mxu0
  %v850 = vadd.f32 %v831, %v849
  %851 = vmatmul.bf16.gmra.mxu0 %v200
  %v852 = vpop.f32.mrf.mxu0
  %v853 = vadd.f32 %v834, %v852
  %v854 = vpop.f32.mrf.mxu0
  %v855 = vadd.f32 %v836, %v854
  %856 = vdwg.mxu0
  %857 = vmatpush.bf16.msra.mxu0 %v633
  %858 = vmatpush.bf16.msra.mxu0 %v631
  %859 = vmatpush.bf16.msra.mxu0 %v629
  %860 = vmatpush.bf16.msra.mxu0 %v627
  %861 = vmatpush.bf16.msra.mxu0 %v625
  %862 = vmatpush.bf16.msra.mxu0 %v623
  %863 = vmatpush.bf16.msra.mxu0 %v621
  %864 = vmatpush.bf16.msra.mxu0 %v619
  %865 = vmatmul.bf16.gmra.mxu0 %v194
  %v866 = vpop.f32.mrf.mxu0
  %v867 = vadd.f32 %v848, %v866
  %v868 = vpop.f32.mrf.mxu0
  %v869 = vadd.f32 %v850, %v868
  %870 = vmatmul.bf16.gmra.mxu0 %v201
  %v871 = vpop.f32.mrf.mxu0
  %v872 = vadd.f32 %v853, %v871
  %v873 = vpop.f32.mrf.mxu0
  %v874 = vadd.f32 %v855, %v873
  %875 = vdwg.mxu0
  %876 = vmatpush.bf16.msra.mxu0 0
  %877 = vmatpush.bf16.msra.mxu0 0
  %878 = vmatpush.bf16.msra.mxu0 %v645
  %879 = vmatpush.bf16.msra.mxu0 %v643
  %880 = vmatpush.bf16.msra.mxu0 %v641
  %881 = vmatpush.bf16.msra.mxu0 %v639
  %882 = vmatpush.bf16.msra.mxu0 %v637
  %883 = vmatpush.bf16.msra.mxu0 %v635
  %884 = vmatmul.bf16.gmra.mxu0 %v757
  %v885 = vpop.f32.mrf.mxu0
  %v886 = vadd.f32 %v867, %v885
  %v887 = vpop.f32.mrf.mxu0
  %v888 = vadd.f32 %v869, %v887
  %889 = vmatmul.bf16.gmra.mxu0 %v760
  %v890 = vpop.f32.mrf.mxu0
  %v891 = vadd.f32 %v872, %v890
  %v892 = vpop.f32.mrf.mxu0
  %v893 = vadd.f32 %v874, %v892
  %894 = vdwg.mxu0
  %895 = vmatpush.bf16.msra.mxu0 %v554
  %896 = vmatpush.bf16.msra.mxu0 %v552
  %897 = vmatpush.bf16.msra.mxu0 %v550
  %898 = vmatpush.bf16.msra.mxu0 %v548
  %899 = vmatpush.bf16.msra.mxu0 %v546
  %900 = vmatpush.bf16.msra.mxu0 %v544
  %901 = vmatpush.bf16.msra.mxu0 %v542
  %902 = vmatpush.bf16.msra.mxu0 %v540
  %903 = vmatmul.bf16.gmra.mxu0 %v189
  %v904 = vpop.f32.mrf.mxu0
  %v905 = vadd.f32 %v142, %v904
  %v906 = vpop.f32.mrf.mxu0
  %v907 = vadd.f32 %v142, %v906
  %908 = vmatmul.bf16.gmra.mxu0 %v196
  %v909 = vpop.f32.mrf.mxu0
  %v910 = vadd.f32 %v142, %v909
  %v911 = vpop.f32.mrf.mxu0
  %v912 = vadd.f32 %v142, %v911
  %913 = vdwg.mxu0
  %914 = vmatpush.bf16.msra.mxu0 %v570
  %915 = vmatpush.bf16.msra.mxu0 %v568
  %916 = vmatpush.bf16.msra.mxu0 %v566
  %917 = vmatpush.bf16.msra.mxu0 %v564
  %918 = vmatpush.bf16.msra.mxu0 %v562
  %919 = vmatpush.bf16.msra.mxu0 %v560
  %920 = vmatpush.bf16.msra.mxu0 %v558
  %921 = vmatpush.bf16.msra.mxu0 %v556
  %922 = vmatmul.bf16.gmra.mxu0 %v190
  %v923 = vpop.f32.mrf.mxu0
  %v924 = vadd.f32 %v905, %v923
  %v925 = vpop.f32.mrf.mxu0
  %v926 = vadd.f32 %v907, %v925
  %927 = vmatmul.bf16.gmra.mxu0 %v197
  %v928 = vpop.f32.mrf.mxu0
  %v929 = vadd.f32 %v910, %v928
  %v930 = vpop.f32.mrf.mxu0
  %v931 = vadd.f32 %v912, %v930
  %932 = vdwg.mxu0
  %933 = vmatpush.bf16.msra.mxu0 %v586
  %934 = vmatpush.bf16.msra.mxu0 %v584
  %935 = vmatpush.bf16.msra.mxu0 %v582
  %936 = vmatpush.bf16.msra.mxu0 %v580
  %937 = vmatpush.bf16.msra.mxu0 %v578
  %938 = vmatpush.bf16.msra.mxu0 %v576
  %939 = vmatpush.bf16.msra.mxu0 %v574
  %940 = vmatpush.bf16.msra.mxu0 %v572
  %941 = vmatmul.bf16.gmra.mxu0 %v191
  %v942 = vpop.f32.mrf.mxu0
  %v943 = vadd.f32 %v924, %v942
  %v944 = vpop.f32.mrf.mxu0
  %v945 = vadd.f32 %v926, %v944
  %946 = vmatmul.bf16.gmra.mxu0 %v198
  %v947 = vpop.f32.mrf.mxu0
  %v948 = vadd.f32 %v929, %v947
  %v949 = vpop.f32.mrf.mxu0
  %v950 = vadd.f32 %v931, %v949
  %951 = vdwg.mxu0
  %952 = vmatpush.bf16.msra.mxu0 %v602
  %953 = vmatpush.bf16.msra.mxu0 %v600
  %954 = vmatpush.bf16.msra.mxu0 %v598
  %955 = vmatpush.bf16.msra.mxu0 %v596
  %956 = vmatpush.bf16.msra.mxu0 %v594
  %957 = vmatpush.bf16.msra.mxu0 %v592
  %958 = vmatpush.bf16.msra.mxu0 %v590
  %959 = vmatpush.bf16.msra.mxu0 %v588
  %960 = vmatmul.bf16.gmra.mxu0 %v192
  %v961 = vpop.f32.mrf.mxu0
  %v962 = vadd.f32 %v943, %v961
  %v963 = vpop.f32.mrf.mxu0
  %v964 = vadd.f32 %v945, %v963
  %965 = vmatmul.bf16.gmra.mxu0 %v199
  %v966 = vpop.f32.mrf.mxu0
  %v967 = vadd.f32 %v948, %v966
  %v968 = vpop.f32.mrf.mxu0
  %v969 = vadd.f32 %v950, %v968
  %970 = vdwg.mxu0
  %971 = vmatpush.bf16.msra.mxu0 %v618
  %972 = vmatpush.bf16.msra.mxu0 %v616
  %973 = vmatpush.bf16.msra.mxu0 %v614
  %974 = vmatpush.bf16.msra.mxu0 %v612
  %975 = vmatpush.bf16.msra.mxu0 %v610
  %976 = vmatpush.bf16.msra.mxu0 %v608
  %977 = vmatpush.bf16.msra.mxu0 %v606
  %978 = vmatpush.bf16.msra.mxu0 %v604
  %979 = vmatmul.bf16.gmra.mxu0 %v193
  %v980 = vpop.f32.mrf.mxu0
  %v981 = vadd.f32 %v962, %v980
  %v982 = vpop.f32.mrf.mxu0
  %v983 = vadd.f32 %v964, %v982
  %984 = vmatmul.bf16.gmra.mxu0 %v200
  %v985 = vpop.f32.mrf.mxu0
  %v986 = vadd.f32 %v967, %v985
  %v987 = vpop.f32.mrf.mxu0
  %v988 = vadd.f32 %v969, %v987
  %989 = vdwg.mxu0
  %990 = vmatpush.bf16.msra.mxu0 %v634
  %991 = vmatpush.bf16.msra.mxu0 %v632
  %992 = vmatpush.bf16.msra.mxu0 %v630
  %993 = vmatpush.bf16.msra.mxu0 %v628
  %994 = vmatpush.bf16.msra.mxu0 %v626
  %995 = vmatpush.bf16.msra.mxu0 %v624
  %996 = vmatpush.bf16.msra.mxu0 %v622
  %997 = vmatpush.bf16.msra.mxu0 %v620
  %998 = vmatmul.bf16.gmra.mxu0 %v194
  %v999 = vpop.f32.mrf.mxu0
  %v1000 = vadd.f32 %v981, %v999
  %v1001 = vpop.f32.mrf.mxu0
  %v1002 = vadd.f32 %v983, %v1001
  %1003 = vmatmul.bf16.gmra.mxu0 %v201
  %v1004 = vpop.f32.mrf.mxu0
  %v1005 = vadd.f32 %v986, %v1004
  %v1006 = vpop.f32.mrf.mxu0
  %v1007 = vadd.f32 %v988, %v1006
  %1008 = vdwg.mxu0
  %1009 = vmatpush.bf16.msra.mxu0 0
  %1010 = vmatpush.bf16.msra.mxu0 0
  %1011 = vmatpush.bf16.msra.mxu0 %v646
  %1012 = vmatpush.bf16.msra.mxu0 %v644
  %1013 = vmatpush.bf16.msra.mxu0 %v642
  %1014 = vmatpush.bf16.msra.mxu0 %v640
  %1015 = vmatpush.bf16.msra.mxu0 %v638
  %1016 = vmatpush.bf16.msra.mxu0 %v636
  %1017 = vmatmul.bf16.gmra.mxu0 %v757
  %v1018 = vpop.f32.mrf.mxu0
  %v1019 = vadd.f32 %v1000, %v1018
  %v1020 = vpop.f32.mrf.mxu0
  %v1021 = vadd.f32 %v1002, %v1020
  %1022 = vmatmul.bf16.gmra.mxu0 %v760
  %v1023 = vpop.f32.mrf.mxu0
  %v1024 = vadd.f32 %v1005, %v1023
  %v1025 = vpop.f32.mrf.mxu0
  %v1026 = vadd.f32 %v1007, %v1025
  %1027 = vdwg.mxu0
  %v1028 = vpack.c.bf16 %v1019, %v886
  %v1029 = vpack.c.bf16 %v1021, %v888
  %v1030 = vpack.c.bf16 %v1024, %v891
  %v1031 = vpack.c.bf16 %v1026, %v893
  %vm1032 = vcmask 1043456
  %vm1033 = vcmask 523268
  %vm1034 = vmor %vm1033, %vm1032
  %1035 = vst.msk [vmem:[%s3] sm:$0xff] %vm1034, %v1028
  %1036 = vst.msk [vmem:[%s3 + $0x8] sm:$0xff] %vm1034, %v1029
  %1037 = vst.msk [vmem:[%s3 + $0x10] sm:$0xff] %vm1034, %v1030
  %1038 = vst.msk [vmem:[%s3 + $0x18] sm:$0xff] %vm1034, %v1031
  // Predicated region
  $region14: #{early_conv_vit_forward.8} parent=0 // pred_check
    _
  $region15: #{early_conv_vit_forward.8} parent=0 // pred_check_branch
    %1040 = sbr.rel (0) target = $region17
  $region16: #{early_conv_vit_forward.8} parent=0 // pred_region
    _
  $region17: #{early_conv_vit_forward.8} parent=0 // pred_fallthru
    _
  // Predicated region
  $region18: #{early_conv_vit_forward.8} parent=0 // pred_check
    _
  $region19: #{early_conv_vit_forward.8} parent=0 // pred_check_branch
    %1042 = sbr.rel (0) target = $region21
  $region20: #{early_conv_vit_forward.8} parent=0 // pred_region
    _
  $region21: #{early_conv_vit_forward.8} parent=0 // pred_fallthru
    _

// kernel: early_conv_vit_forward.10
$region0: #{early_conv_vit_forward.10}
  #allocation0 [shape = 'u32[]', space=smem, size = 0x4, offset = 0x4, fixed_abs, tag = 'smem constant byte address 0x4 - core index']
  #allocation1 [shape = 'u32[72,128]{1,0:T(1,128)}', space=vmem, size = 0x9000, scoped, tag = 'internal scratch']
  %s0 = inlined_call_operand.vmem [shape: bf16[8,384], index: 0, kind: input, shape index: {}]
  %s1 = inlined_call_operand.vmem [shape: bf16[384,128], index: 1, kind: input, shape index: {}]
  %s2 = inlined_call_operand.vmem [shape: f32[1,128], index: 2, kind: input, shape index: {}]
  %s3 = inlined_call_operand.vmem [shape: f32[8,128], index: 3, kind: output, shape index: {}]
  %s4 = sld [smem:[#allocation0]]
  $region22: #{early_conv_vit_forward.10} parent=0
    _
  %s6 = ssub.s32 1, %s4
  %s7 = scalar_select 0, %s6, %s4
  // Predicated region
  $region2: #{early_conv_vit_forward.10} parent=0 // pred_check
    _
  $region3: #{early_conv_vit_forward.10} parent=0 // pred_check_branch
    %9 = sbr.rel (0) target = $region5
  $region4: #{early_conv_vit_forward.10} parent=0 // pred_region
    _
  $region5: #{early_conv_vit_forward.10} parent=0 // pred_fallthru
    _
  // Predicated region
  $region6: #{early_conv_vit_forward.10} parent=0 // pred_check
    _
  $region7: #{early_conv_vit_forward.10} parent=0 // pred_check_branch
    %11 = sbr.rel (0) target = $region9
  $region8: #{early_conv_vit_forward.10} parent=0 // pred_region
    _
  $region9: #{early_conv_vit_forward.10} parent=0 // pred_fallthru
    _
  // Predicated region
  $region10: #{early_conv_vit_forward.10} parent=0 // pred_check
    _
  $region11: #{early_conv_vit_forward.10} parent=0 // pred_check_branch
    %13 = sbr.rel (0) target = $region13
  $region12: #{early_conv_vit_forward.10} parent=0 // pred_region
    _
  $region13: #{early_conv_vit_forward.10} parent=0 // pred_fallthru
    _
  %v14 = vld [vmem:[%s0] sm:$0xff]
  %v15 = vld [vmem:[%s0 + $0x8] sm:$0xf]
  %v16 = vld [vmem:[%s1] sm:$0xf]
  %v17 = vld [vmem:[%s1 + $0x4] sm:$0xf]
  %v18 = vld [vmem:[%s1 + $0x8] sm:$0xf]
  %v19 = vld [vmem:[%s1 + $0xc] sm:$0xf]
  %v20 = vld [vmem:[%s1 + $0x10] sm:$0xf]
  %v21 = vld [vmem:[%s1 + $0x14] sm:$0xf]
  %v22 = vld [vmem:[%s1 + $0x18] sm:$0xf]
  %v23 = vld [vmem:[%s1 + $0x1c] sm:$0xf]
  %v24 = vld [vmem:[%s1 + $0x20] sm:$0xf]
  %v25 = vld [vmem:[%s1 + $0x24] sm:$0xf]
  %v26 = vld [vmem:[%s1 + $0x28] sm:$0xf]
  %v27 = vld [vmem:[%s1 + $0x2c] sm:$0xf]
  %v28 = vld [vmem:[%s1 + $0x30] sm:$0xf]
  %v29 = vld [vmem:[%s1 + $0x34] sm:$0xf]
  %v30 = vld [vmem:[%s1 + $0x38] sm:$0xf]
  %v31 = vld [vmem:[%s1 + $0x3c] sm:$0xf]
  %v32 = vld [vmem:[%s1 + $0x40] sm:$0xf]
  %v33 = vld [vmem:[%s1 + $0x44] sm:$0xf]
  %v34 = vld [vmem:[%s1 + $0x48] sm:$0xf]
  %v35 = vld [vmem:[%s1 + $0x4c] sm:$0xf]
  %v36 = vld [vmem:[%s1 + $0x50] sm:$0xf]
  %v37 = vld [vmem:[%s1 + $0x54] sm:$0xf]
  %v38 = vld [vmem:[%s1 + $0x58] sm:$0xf]
  %v39 = vld [vmem:[%s1 + $0x5c] sm:$0xf]
  %v40 = vld [vmem:[%s1 + $0x60] sm:$0xf]
  %v41 = vld [vmem:[%s1 + $0x64] sm:$0xf]
  %v42 = vld [vmem:[%s1 + $0x68] sm:$0xf]
  %v43 = vld [vmem:[%s1 + $0x6c] sm:$0xf]
  %v44 = vld [vmem:[%s1 + $0x70] sm:$0xf]
  %v45 = vld [vmem:[%s1 + $0x74] sm:$0xf]
  %v46 = vld [vmem:[%s1 + $0x78] sm:$0xf]
  %v47 = vld [vmem:[%s1 + $0x7c] sm:$0xf]
  %v48 = vld [vmem:[%s1 + $0x80] sm:$0xf]
  %v49 = vld [vmem:[%s1 + $0x84] sm:$0xf]
  %v50 = vld [vmem:[%s1 + $0x88] sm:$0xf]
  %v51 = vld [vmem:[%s1 + $0x8c] sm:$0xf]
  %v52 = vld [vmem:[%s1 + $0x90] sm:$0xf]
  %v53 = vld [vmem:[%s1 + $0x94] sm:$0xf]
  %v54 = vld [vmem:[%s1 + $0x98] sm:$0xf]
  %v55 = vld [vmem:[%s1 + $0x9c] sm:$0xf]
  %v56 = vld [vmem:[%s1 + $0xa0] sm:$0xf]
  %v57 = vld [vmem:[%s1 + $0xa4] sm:$0xf]
  %v58 = vld [vmem:[%s1 + $0xa8] sm:$0xf]
  %v59 = vld [vmem:[%s1 + $0xac] sm:$0xf]
  %v60 = vld [vmem:[%s1 + $0xb0] sm:$0xf]
  %v61 = vld [vmem:[%s1 + $0xb4] sm:$0xf]
  %v62 = vld [vmem:[%s1 + $0xb8] sm:$0xf]
  %v63 = vld [vmem:[%s1 + $0xbc] sm:$0xf]
  %v64 = vld [vmem:[%s2] sm:$0x1]
  %v66 = vperm.slane %v64, 0
  %v70 = vunpack.c.l.b16 %v14
  %v71 = vunpack.c.h.b16 %v14
  %v72 = vunpack.c.l.b16 %v15
  %v73 = vpack.c.b16 %v70, %v70
  %v74 = vpack.c.b16 %v71, %v71
  %v75 = vpack.c.b16 %v72, %v72
  %v127 = vunpack.c.l.b16 %v16
  %v128 = vunpack.c.l.b16 %v17
  %v129 = vunpack.c.l.b16 %v18
  %v130 = vunpack.c.l.b16 %v19
  %v131 = vunpack.c.l.b16 %v20
  %v132 = vunpack.c.l.b16 %v21
  %v133 = vunpack.c.l.b16 %v22
  %v134 = vunpack.c.l.b16 %v23
  %v135 = vunpack.c.l.b16 %v24
  %v136 = vunpack.c.l.b16 %v25
  %v137 = vunpack.c.l.b16 %v26
  %v138 = vunpack.c.l.b16 %v27
  %v139 = vunpack.c.l.b16 %v28
  %v140 = vunpack.c.l.b16 %v29
  %v141 = vunpack.c.l.b16 %v30
  %v142 = vunpack.c.l.b16 %v31
  %v143 = vunpack.c.l.b16 %v32
  %v144 = vunpack.c.l.b16 %v33
  %v145 = vunpack.c.l.b16 %v34
  %v146 = vunpack.c.l.b16 %v35
  %v147 = vunpack.c.l.b16 %v36
  %v148 = vunpack.c.l.b16 %v37
  %v149 = vunpack.c.l.b16 %v38
  %v150 = vunpack.c.l.b16 %v39
  %v151 = vunpack.c.l.b16 %v40
  %v152 = vunpack.c.l.b16 %v41
  %v153 = vunpack.c.l.b16 %v42
  %v154 = vunpack.c.l.b16 %v43
  %v155 = vunpack.c.l.b16 %v44
  %v156 = vunpack.c.l.b16 %v45
  %v157 = vunpack.c.l.b16 %v46
  %v158 = vunpack.c.l.b16 %v47
  %v159 = vunpack.c.l.b16 %v48
  %v160 = vunpack.c.l.b16 %v49
  %v161 = vunpack.c.l.b16 %v50
  %v162 = vunpack.c.l.b16 %v51
  %v163 = vunpack.c.l.b16 %v52
  %v164 = vunpack.c.l.b16 %v53
  %v165 = vunpack.c.l.b16 %v54
  %v166 = vunpack.c.l.b16 %v55
  %v167 = vunpack.c.l.b16 %v56
  %v168 = vunpack.c.l.b16 %v57
  %v169 = vunpack.c.l.b16 %v58
  %v170 = vunpack.c.l.b16 %v59
  %v171 = vunpack.c.l.b16 %v60
  %v172 = vunpack.c.l.b16 %v61
  %v173 = vunpack.c.l.b16 %v62
  %v174 = vunpack.c.l.b16 %v63
  %v175 = vpack.c.b16 %v128, %v127
  %v176 = vpack.c.b16 %v130, %v129
  %v177 = vpack.c.b16 %v132, %v131
  %v178 = vpack.c.b16 %v134, %v133
  %v179 = vpack.c.b16 %v136, %v135
  %v180 = vpack.c.b16 %v138, %v137
  %v181 = vpack.c.b16 %v140, %v139
  %v182 = vpack.c.b16 %v142, %v141
  %v183 = vpack.c.b16 %v144, %v143
  %v184 = vpack.c.b16 %v146, %v145
  %v185 = vpack.c.b16 %v148, %v147
  %v186 = vpack.c.b16 %v150, %v149
  %v187 = vpack.c.b16 %v152, %v151
  %v188 = vpack.c.b16 %v154, %v153
  %v189 = vpack.c.b16 %v156, %v155
  %v190 = vpack.c.b16 %v158, %v157
  %v191 = vpack.c.b16 %v160, %v159
  %v192 = vpack.c.b16 %v162, %v161
  %v193 = vpack.c.b16 %v164, %v163
  %v194 = vpack.c.b16 %v166, %v165
  %v195 = vpack.c.b16 %v168, %v167
  %v196 = vpack.c.b16 %v170, %v169
  %v197 = vpack.c.b16 %v172, %v171
  %v198 = vpack.c.b16 %v174, %v173
  %223 = vmatpush.bf16.msra.mxu0 %v182
  %224 = vmatpush.bf16.msra.mxu0 %v181
  %225 = vmatpush.bf16.msra.mxu0 %v180
  %226 = vmatpush.bf16.msra.mxu0 %v179
  %227 = vmatpush.bf16.msra.mxu0 %v178
  %228 = vmatpush.bf16.msra.mxu0 %v177
  %229 = vmatpush.bf16.msra.mxu0 %v176
  %230 = vmatpush.bf16.msra.mxu0 %v175
  %231 = vmatmul.bf16.gmra.mxu0 %v73
  %v232 = vpop.f32.mrf.mxu0
  %v233 = vadd.f32 %v66, %v232
  %v234 = vpop.f32.mrf.mxu0
  %235 = vdwg.mxu0
  %236 = vmatpush.bf16.msra.mxu0 %v190
  %237 = vmatpush.bf16.msra.mxu0 %v189
  %238 = vmatpush.bf16.msra.mxu0 %v188
  %239 = vmatpush.bf16.msra.mxu0 %v187
  %240 = vmatpush.bf16.msra.mxu0 %v186
  %241 = vmatpush.bf16.msra.mxu0 %v185
  %242 = vmatpush.bf16.msra.mxu0 %v184
  %243 = vmatpush.bf16.msra.mxu0 %v183
  %244 = vmatmul.bf16.gmra.mxu0 %v74
  %v245 = vpop.f32.mrf.mxu0
  %v246 = vadd.f32 %v233, %v245
  %v247 = vpop.f32.mrf.mxu0
  %248 = vdwg.mxu0
  %249 = vmatpush.bf16.msra.mxu0 %v198
  %250 = vmatpush.bf16.msra.mxu0 %v197
  %251 = vmatpush.bf16.msra.mxu0 %v196
  %252 = vmatpush.bf16.msra.mxu0 %v195
  %253 = vmatpush.bf16.msra.mxu0 %v194
  %254 = vmatpush.bf16.msra.mxu0 %v193
  %255 = vmatpush.bf16.msra.mxu0 %v192
  %256 = vmatpush.bf16.msra.mxu0 %v191
  %257 = vmatmul.bf16.gmra.mxu0 %v75
  %v258 = vpop.f32.mrf.mxu0
  %v259 = vadd.f32 %v246, %v258
  %v260 = vpop.f32.mrf.mxu0
  %261 = vdwg.mxu0
  %262 = vst [vmem:[%s3] sm:$0xff] %v259
  // Predicated region
  $region14: #{early_conv_vit_forward.10} parent=0 // pred_check
    _
  $region15: #{early_conv_vit_forward.10} parent=0 // pred_check_branch
    %264 = sbr.rel (0) target = $region17
  $region16: #{early_conv_vit_forward.10} parent=0 // pred_region
    _
  $region17: #{early_conv_vit_forward.10} parent=0 // pred_fallthru
    _
  // Predicated region
  $region18: #{early_conv_vit_forward.10} parent=0 // pred_check
    _
  $region19: #{early_conv_vit_forward.10} parent=0 // pred_check_branch
    %266 = sbr.rel (0) target = $region21
  $region20: #{early_conv_vit_forward.10} parent=0 // pred_region
    _
  $region21: #{early_conv_vit_forward.10} parent=0 // pred_fallthru
    _

// kernel: early_conv_vit_forward.9
$region0: #{early_conv_vit_forward.9}
  #allocation0 [shape = 'u32[]', space=smem, size = 0x4, offset = 0x4, fixed_abs, tag = 'smem constant byte address 0x4 - core index']
  #allocation1 [shape = 'u32[72,128]{1,0:T(1,128)}', space=vmem, size = 0x9000, scoped, tag = 'internal scratch']
  %s0 = inlined_call_operand.vmem [shape: bf16[8,1728], index: 0, kind: input, shape index: {}]
  %s1 = inlined_call_operand.vmem [shape: bf16[1728,384], index: 1, kind: input, shape index: {}]
  %s2 = inlined_call_operand.vmem [shape: f32[1,384], index: 2, kind: input, shape index: {}]
  %s3 = inlined_call_operand.vmem [shape: bf16[8,384], index: 3, kind: output, shape index: {}]
  %s4 = sld [smem:[#allocation0]]
  $region86: #{early_conv_vit_forward.9} parent=0
    _
  %s6 = ssub.s32 1, %s4
  %s7 = scalar_select 0, %s6, %s4
  $region1: #{early_conv_vit_forward.9} parent=0
    #allocation2 [shape = 'u8[884736]{0}', space=vmem, size = 0xd8000, scoped, tag = 'input window, operand 1']
    loop: start=0, step=1, limit=5
    $region2: #{early_conv_vit_forward.9} parent=1 // loop_pre_header
      _
    $region3: #{early_conv_vit_forward.9} parent=1 // loop_header
      %s9 = sphi 0, %s13
      %p10 = scmp.ge.s32.totalorder %s9, 5
      %s16 = sphi 0, %s28
      %s17 = sphi 0, %s24
      %s18 = sphi 0, %s16
      %s19 = sphi 0, %s17
      %s20 = sphi 0, %s18
      %s21 = sphi 0, %s19
      %s31 = sphi 0, %s33
      %s34 = sphi 0, %s31
      %s35 = sphi 0, %s34
      %s51 = sphi 0, %s35
      %s57 = sphi 0, %s59
      %s60 = sphi 0, %s57
      %s61 = sphi 0, %s60
      %s77 = sphi 0, %s61
      %s83 = sphi 0, %s85
      %s86 = sphi 0, %s83
      %s87 = sphi 0, %s86
      %s103 = sphi 0, %s87
      %s111 = sphi 0, %s113
      %s114 = sphi 0, %s111
      %s115 = sphi 0, %s114
      %s131 = sphi 0, %s115
    $region4: #{early_conv_vit_forward.9} parent=1 // loop_header_branch
      %12 = sbr.rel (%p10) target = $region8
    $region5: #{early_conv_vit_forward.9} parent=1 // loop_body
      %s14 = ssub.s32 %s9, 1
      %s15 = ssub.s32 %s9, 2
      %s22 = sadd.s32 1, %s17
      %p23 = scmp.ge.s32.totalorder %s22, 3
      %s24 = scalar_select %p23, 0, %s22
      %s25 = sadd.s32 1, %s16
      %s26 = scalar_select %p23, %s25, %s16
      %p27 = scmp.ge.s32.totalorder %s26, 1
      %s28 = scalar_select %p27, 0, %s26
      %s29 = ssub.s32 %s16, %s28
      %p30 = scmp.eq.s32.totalorder %s29, 0
      %s32 = sadd.s32 %s31, 1
      %s33 = scalar_select %p30, %s31, %s32
      %p36 = pneg %p30
      %p37 = scmp.eq.s32.totalorder %s9, 2
      %p38 = por %p36, %p37
      %p39 = scmp.ne.s32.totalorder %s31, %s34
      %p40 = scmp.eq.s32.totalorder %s9, 0
      %p41 = por %p39, %p40
      %p42 = scmp.ne.s32.totalorder %s31, %s34
      %p43 = scmp.eq.s32.totalorder %s14, 2
      %p44 = por %p42, %p43
      %p45 = scmp.ne.s32.totalorder %s34, %s35
      %p46 = scmp.eq.s32.totalorder %s14, 0
      %p47 = por %p45, %p46
      %p48 = scmp.ne.s32.totalorder %s34, %s35
      %p49 = scmp.eq.s32.totalorder %s15, 2
      %p50 = por %p48, %p49
      %p52 = scmp.ne.s32.totalorder %s35, %s51
      %p53 = scmp.eq.s32.totalorder %s15, 0
      %p54 = por %p52, %p53
      %s55 = ssub.s32 %s17, %s24
      %p56 = scmp.eq.s32.totalorder %s55, 0
      %s58 = sadd.s32 %s57, 1
      %s59 = scalar_select %p56, %s57, %s58
      %p62 = pneg %p56
      %p63 = scmp.eq.s32.totalorder %s9, 2
      %p64 = por %p62, %p63
      %p65 = scmp.ne.s32.totalorder %s57, %s60
      %p66 = scmp.eq.s32.totalorder %s9, 0
      %p67 = por %p65, %p66
      %p68 = scmp.ne.s32.totalorder %s57, %s60
      %p69 = scmp.eq.s32.totalorder %s14, 2
      %p70 = por %p68, %p69
      %p71 = scmp.ne.s32.totalorder %s60, %s61
      %p72 = scmp.eq.s32.totalorder %s14, 0
      %p73 = por %p71, %p72
      %p74 = scmp.ne.s32.totalorder %s60, %s61
      %p75 = scmp.eq.s32.totalorder %s15, 2
      %p76 = por %p74, %p75
      %p78 = scmp.ne.s32.totalorder %s61, %s77
      %p79 = scmp.eq.s32.totalorder %s15, 0
      %p80 = por %p78, %p79
      %s81 = ssub.s32 %s17, %s24
      %p82 = scmp.eq.s32.totalorder %s81, 0
      %s84 = sadd.s32 %s83, 1
      %s85 = scalar_select %p82, %s83, %s84
      %p88 = pneg %p82
      %p89 = scmp.eq.s32.totalorder %s9, 2
      %p90 = por %p88, %p89
      %p91 = scmp.ne.s32.totalorder %s83, %s86
      %p92 = scmp.eq.s32.totalorder %s9, 0
      %p93 = por %p91, %p92
      %p94 = scmp.ne.s32.totalorder %s83, %s86
      %p95 = scmp.eq.s32.totalorder %s14, 2
      %p96 = por %p94, %p95
      %p97 = scmp.ne.s32.totalorder %s86, %s87
      %p98 = scmp.eq.s32.totalorder %s14, 0
      %p99 = por %p97, %p98
      %p100 = scmp.ne.s32.totalorder %s86, %s87
      %p101 = scmp.eq.s32.totalorder %s15, 2
      %p102 = por %p100, %p101
      %p104 = scmp.ne.s32.totalorder %s87, %s103
      %p105 = scmp.eq.s32.totalorder %s15, 0
      %p106 = por %p104, %p105
      %s107 = ssub.s32 %s16, %s28
      %s108 = ssub.s32 %s17, %s24
      %s109 = sor.u32 %s107, %s108
      %p110 = scmp.eq.s32.totalorder %s109, 0
      %s112 = sadd.s32 %s111, 1
      %s113 = scalar_select %p110, %s111, %s112
      %p116 = pneg %p110
      %p117 = scmp.eq.s32.totalorder %s9, 2
      %p118 = por %p116, %p117
      %p119 = scmp.ne.s32.totalorder %s111, %s114
      %p120 = scmp.eq.s32.totalorder %s9, 0
      %p121 = por %p119, %p120
      %p122 = scmp.ne.s32.totalorder %s111, %s114
      %p123 = scmp.eq.s32.totalorder %s14, 2
      %p124 = por %p122, %p123
      %p125 = scmp.ne.s32.totalorder %s114, %s115
      %p126 = scmp.eq.s32.totalorder %s14, 0
      %p127 = por %p125, %p126
      %p128 = scmp.ne.s32.totalorder %s114, %s115
      %p129 = scmp.eq.s32.totalorder %s15, 2
      %p130 = por %p128, %p129
      %p132 = scmp.ne.s32.totalorder %s115, %s131
      %p133 = scmp.eq.s32.totalorder %s15, 0
      %p134 = por %p132, %p133
      %p135 = scmp.le.s32.totalorder 1, %s9
      %p136 = scmp.lt.s32.totalorder %s9, 4
      %p137 = pnand %p135, %p136
      %p138 = pneg %p137
      // Predicated region
      $region9: #{early_conv_vit_forward.9} parent=5 // pred_check
        _
      $region10: #{early_conv_vit_forward.9} parent=5 // pred_check_branch
        %140 = sbr.rel (%p137) target = $region12
      $region11: #{early_conv_vit_forward.9} parent=5 // pred_region
        %s141 = ssub.s32 %s9, 1
        // Predicated region
        $region13: #{early_conv_vit_forward.9} parent=11 // pred_check
          %p142 = pneg %p47
        $region14: #{early_conv_vit_forward.9} parent=11 // pred_check_branch
          %144 = sbr.rel (%p142) target = $region16
        $region15: #{early_conv_vit_forward.9} parent=11 // pred_region
          %p145 = scmp.lt.s32.totalorder %s18, 0
          %s146 = scalar_select %p145, %s18, 0
          %s147 = smul.addr %s146, 14
          %s148 = smul.addr %s147, 4
          %s149 = scalar_lea.vmem %s0, %s148
        $region16: #{early_conv_vit_forward.9} parent=11 // pred_fallthru
          _
      $region12: #{early_conv_vit_forward.9} parent=5 // pred_fallthru
        _
      %p150 = scmp.lt.s32.totalorder %s9, 3
      // Predicated region
      $region17: #{early_conv_vit_forward.9} parent=5 // pred_check
        %p151 = pneg %p150
      $region18: #{early_conv_vit_forward.9} parent=5 // pred_check_branch
        %153 = sbr.rel (%p151) target = $region20
      $region19: #{early_conv_vit_forward.9} parent=5 // pred_region
        // Predicated region
        $region21: #{early_conv_vit_forward.9} parent=19 // pred_check
          %p154 = pneg %p67
        $region22: #{early_conv_vit_forward.9} parent=19 // pred_check_branch
          %156 = sbr.rel (%p154) target = $region24
        $region23: #{early_conv_vit_forward.9} parent=19 // pred_region
          %s157 = sand.u32 %s57, 1
          %s158 = sand.u32 %s57, 1
          %s159 = smul.addr %s158, 864
          %s160 = scalar_lea.vmem [#allocation2], %s159
          %s161 = smul.addr %s17, 4
          %s162 = scalar_lea.vmem %s1, %s161
          // Predicated region
          $region25: #{early_conv_vit_forward.9} parent=23 // pred_check
            _
          $region26: #{early_conv_vit_forward.9} parent=23 // pred_check_branch
            %164 = sbr.rel (0) target = $region28
          $region27: #{early_conv_vit_forward.9} parent=23 // pred_region
            // Predicated region
            $region29: #{early_conv_vit_forward.9} parent=27 // pred_check
              _
            $region30: #{early_conv_vit_forward.9} parent=27 // pred_check_branch
              %166 = sbr.rel target = $region32
            $region31: #{early_conv_vit_forward.9} parent=27 // pred_region
              // Predicated region
              $region44: #{early_conv_vit_forward.9} parent=31 // pred_check
                _
              $region45: #{early_conv_vit_forward.9} parent=31 // pred_check_branch
                %612 = sbr.rel (0) target = $region47
              $region46: #{early_conv_vit_forward.9} parent=31 // pred_region
                loop: start=0, step=1, limit=1
                $region48: #{early_conv_vit_forward.9} parent=46 // loop_pre_header
                  _
                $region49: #{early_conv_vit_forward.9} parent=46 // loop_header
                  %s614 = sphi 0, %s618
                  %p615 = scmp.ge.s32.totalorder %s614, 1
                  %s619 = sphi %s162, %s162
                  %s620 = sphi %s160, %s160
                $region50: #{early_conv_vit_forward.9} parent=46 // loop_header_branch
                  %617 = sbr.rel (%p615) target = $region54
                $region51: #{early_conv_vit_forward.9} parent=46 // loop_body
                  _
                $region52: #{early_conv_vit_forward.9} parent=46 // loop_footer
                  %s618 = sadd.s32 1, %s614
                $region53: #{early_conv_vit_forward.9} parent=46 // loop_footer_branch
                  %613 = sbr.rel target = $region49
                $region54: #{early_conv_vit_forward.9} parent=46 // loop_exit
                  _
                %s622 = ssub.s32 16, 1
                loop: start=0, step=1, limit=1
                $region55: #{early_conv_vit_forward.9} parent=46 // loop_pre_header
                  _
                $region56: #{early_conv_vit_forward.9} parent=46 // loop_header
                  %s624 = sphi 0, %s628
                  %p625 = scmp.ge.s32.totalorder %s624, 1
                  %s629 = sphi %s162, %s162
                  %s630 = sphi %s160, %s160
                $region57: #{early_conv_vit_forward.9} parent=46 // loop_header_branch
                  %627 = sbr.rel (%p625) target = $region61
                $region58: #{early_conv_vit_forward.9} parent=46 // loop_body
                  %v631 = vld [vmem:[%s629] sm:%s622]
                  %632 = vst [vmem:[%s630] sm:%s622] %v631
                  %v633 = vld [vmem:[%s629 + $0xc] sm:%s622]
                  %634 = vst [vmem:[%s630 + $0x4] sm:%s622] %v633
                  %v635 = vld [vmem:[%s629 + $0x18] sm:%s622]
                  %636 = vst [vmem:[%s630 + $0x8] sm:%s622] %v635
                  %v637 = vld [vmem:[%s629 + $0x24] sm:%s622]
                  %638 = vst [vmem:[%s630 + $0xc] sm:%s622] %v637
                  %v639 = vld [vmem:[%s629 + $0x30] sm:%s622]
                  %640 = vst [vmem:[%s630 + $0x10] sm:%s622] %v639
                  %v641 = vld [vmem:[%s629 + $0x3c] sm:%s622]
                  %642 = vst [vmem:[%s630 + $0x14] sm:%s622] %v641
                  %v643 = vld [vmem:[%s629 + $0x48] sm:%s622]
                  %644 = vst [vmem:[%s630 + $0x18] sm:%s622] %v643
                  %v645 = vld [vmem:[%s629 + $0x54] sm:%s622]
                  %646 = vst [vmem:[%s630 + $0x1c] sm:%s622] %v645
                  %v647 = vld [vmem:[%s629 + $0x60] sm:%s622]
                  %648 = vst [vmem:[%s630 + $0x20] sm:%s622] %v647
                  %v649 = vld [vmem:[%s629 + $0x6c] sm:%s622]
                  %650 = vst [vmem:[%s630 + $0x24] sm:%s622] %v649
                  %v651 = vld [vmem:[%s629 + $0x78] sm:%s622]
                  %652 = vst [vmem:[%s630 + $0x28] sm:%s622] %v651
                  %v653 = vld [vmem:[%s629 + $0x84] sm:%s622]
                  %654 = vst [vmem:[%s630 + $0x2c] sm:%s622] %v653
                  %v655 = vld [vmem:[%s629 + $0x90] sm:%s622]
                  %656 = vst [vmem:[%s630 + $0x30] sm:%s622] %v655
                  %v657 = vld [vmem:[%s629 + $0x9c] sm:%s622]
                  %658 = vst [vmem:[%s630 + $0x34] sm:%s622] %v657
                  %v659 = vld [vmem:[%s629 + $0xa8] sm:%s622]
                  %660 = vst [vmem:[%s630 + $0x38] sm:%s622] %v659
                  %v661 = vld [vmem:[%s629 + $0xb4] sm:%s622]
                  %662 = vst [vmem:[%s630 + $0x3c] sm:%s622] %v661
                  %v663 = vld [vmem:[%s629 + $0xc0] sm:%s622]
                  %664 = vst [vmem:[%s630 + $0x40] sm:%s622] %v663
                  %v665 = vld [vmem:[%s629 + $0xcc] sm:%s622]
                  %666 = vst [vmem:[%s630 + $0x44] sm:%s622] %v665
                  %v667 = vld [vmem:[%s629 + $0xd8] sm:%s622]
                  %668 = vst [vmem:[%s630 + $0x48] sm:%s622] %v667
                  %v669 = vld [vmem:[%s629 + $0xe4] sm:%s622]
                  %670 = vst [vmem:[%s630 + $0x4c] sm:%s622] %v669
                  %v671 = vld [vmem:[%s629 + $0xf0] sm:%s622]
                  %672 = vst [vmem:[%s630 + $0x50] sm:%s622] %v671
                  %v673 = vld [vmem:[%s629 + $0xfc] sm:%s622]
                  %674 = vst [vmem:[%s630 + $0x54] sm:%s622] %v673
                  %v675 = vld [vmem:[%s629 + $0x108] sm:%s622]
                  %676 = vst [vmem:[%s630 + $0x58] sm:%s622] %v675
                  %v677 = vld [vmem:[%s629 + $0x114] sm:%s622]
                  %678 = vst [vmem:[%s630 + $0x5c] sm:%s622] %v677
                  %v679 = vld [vmem:[%s629 + $0x120] sm:%s622]
                  %680 = vst [vmem:[%s630 + $0x60] sm:%s622] %v679
                  %v681 = vld [vmem:[%s629 + $0x12c] sm:%s622]
                  %682 = vst [vmem:[%s630 + $0x64] sm:%s622] %v681
                  %v683 = vld [vmem:[%s629 + $0x138] sm:%s622]
                  %684 = vst [vmem:[%s630 + $0x68] sm:%s622] %v683
                  %v685 = vld [vmem:[%s629 + $0x144] sm:%s622]
                  %686 = vst [vmem:[%s630 + $0x6c] sm:%s622] %v685
                  %v687 = vld [vmem:[%s629 + $0x150] sm:%s622]
                  %688 = vst [vmem:[%s630 + $0x70] sm:%s622] %v687
                  %v689 = vld [vmem:[%s629 + $0x15c] sm:%s622]
                  %690 = vst [vmem:[%s630 + $0x74] sm:%s622] %v689
                  %v691 = vld [vmem:[%s629 + $0x168] sm:%s622]
                  %692 = vst [vmem:[%s630 + $0x78] sm:%s622] %v691
                  %v693 = vld [vmem:[%s629 + $0x174] sm:%s622]
                  %694 = vst [vmem:[%s630 + $0x7c] sm:%s622] %v693
                  %v695 = vld [vmem:[%s629 + $0x180] sm:%s622]
                  %696 = vst [vmem:[%s630 + $0x80] sm:%s622] %v695
                  %v697 = vld [vmem:[%s629 + $0x18c] sm:%s622]
                  %698 = vst [vmem:[%s630 + $0x84] sm:%s622] %v697
                  %v699 = vld [vmem:[%s629 + $0x198] sm:%s622]
                  %700 = vst [vmem:[%s630 + $0x88] sm:%s622] %v699
                  %v701 = vld [vmem:[%s629 + $0x1a4] sm:%s622]
                  %702 = vst [vmem:[%s630 + $0x8c] sm:%s622] %v701
                  %v703 = vld [vmem:[%s629 + $0x1b0] sm:%s622]
                  %704 = vst [vmem:[%s630 + $0x90] sm:%s622] %v703
                  %v705 = vld [vmem:[%s629 + $0x1bc] sm:%s622]
                  %706 = vst [vmem:[%s630 + $0x94] sm:%s622] %v705
                  %v707 = vld [vmem:[%s629 + $0x1c8] sm:%s622]
                  %708 = vst [vmem:[%s630 + $0x98] sm:%s622] %v707
                  %v709 = vld [vmem:[%s629 + $0x1d4] sm:%s622]
                  %710 = vst [vmem:[%s630 + $0x9c] sm:%s622] %v709
                  %v711 = vld [vmem:[%s629 + $0x1e0] sm:%s622]
                  %712 = vst [vmem:[%s630 + $0xa0] sm:%s622] %v711
                  %v713 = vld [vmem:[%s629 + $0x1ec] sm:%s622]
                  %714 = vst [vmem:[%s630 + $0xa4] sm:%s622] %v713
                  %v715 = vld [vmem:[%s629 + $0x1f8] sm:%s622]
                  %716 = vst [vmem:[%s630 + $0xa8] sm:%s622] %v715
                  %v717 = vld [vmem:[%s629 + $0x204] sm:%s622]
                  %718 = vst [vmem:[%s630 + $0xac] sm:%s622] %v717
                  %v719 = vld [vmem:[%s629 + $0x210] sm:%s622]
                  %720 = vst [vmem:[%s630 + $0xb0] sm:%s622] %v719
                  %v721 = vld [vmem:[%s629 + $0x21c] sm:%s622]
                  %722 = vst [vmem:[%s630 + $0xb4] sm:%s622] %v721
                  %v723 = vld [vmem:[%s629 + $0x228] sm:%s622]
                  %724 = vst [vmem:[%s630 + $0xb8] sm:%s622] %v723
                  %v725 = vld [vmem:[%s629 + $0x234] sm:%s622]
                  %726 = vst [vmem:[%s630 + $0xbc] sm:%s622] %v725
                  %v727 = vld [vmem:[%s629 + $0x240] sm:%s622]
                  %728 = vst [vmem:[%s630 + $0xc0] sm:%s622] %v727
                  %v729 = vld [vmem:[%s629 + $0x24c] sm:%s622]
                  %730 = vst [vmem:[%s630 + $0xc4] sm:%s622] %v729
                  %v731 = vld [vmem:[%s629 + $0x258] sm:%s622]
                  %732 = vst [vmem:[%s630 + $0xc8] sm:%s622] %v731
                  %v733 = vld [vmem:[%s629 + $0x264] sm:%s622]
                  %734 = vst [vmem:[%s630 + $0xcc] sm:%s622] %v733
                  %v735 = vld [vmem:[%s629 + $0x270] sm:%s622]
                  %736 = vst [vmem:[%s630 + $0xd0] sm:%s622] %v735
                  %v737 = vld [vmem:[%s629 + $0x27c] sm:%s622]
                  %738 = vst [vmem:[%s630 + $0xd4] sm:%s622] %v737
                  %v739 = vld [vmem:[%s629 + $0x288] sm:%s622]
                  %740 = vst [vmem:[%s630 + $0xd8] sm:%s622] %v739
                  %v741 = vld [vmem:[%s629 + $0x294] sm:%s622]
                  %742 = vst [vmem:[%s630 + $0xdc] sm:%s622] %v741
                  %v743 = vld [vmem:[%s629 + $0x2a0] sm:%s622]
                  %744 = vst [vmem:[%s630 + $0xe0] sm:%s622] %v743
                  %v745 = vld [vmem:[%s629 + $0x2ac] sm:%s622]
                  %746 = vst [vmem:[%s630 + $0xe4] sm:%s622] %v745
                  %v747 = vld [vmem:[%s629 + $0x2b8] sm:%s622]
                  %748 = vst [vmem:[%s630 + $0xe8] sm:%s622] %v747
                  %v749 = vld [vmem:[%s629 + $0x2c4] sm:%s622]
                  %750 = vst [vmem:[%s630 + $0xec] sm:%s622] %v749
                  %v751 = vld [vmem:[%s629 + $0x2d0] sm:%s622]
                  %752 = vst [vmem:[%s630 + $0xf0] sm:%s622] %v751
                  %v753 = vld [vmem:[%s629 + $0x2dc] sm:%s622]
                  %754 = vst [vmem:[%s630 + $0xf4] sm:%s622] %v753
                  %v755 = vld [vmem:[%s629 + $0x2e8] sm:%s622]
                  %756 = vst [vmem:[%s630 + $0xf8] sm:%s622] %v755
                  %v757 = vld [vmem:[%s629 + $0x2f4] sm:%s622]
                  %758 = vst [vmem:[%s630 + $0xfc] sm:%s622] %v757
                  %v759 = vld [vmem:[%s629 + $0x300] sm:%s622]
                  %760 = vst [vmem:[%s630 + $0x100] sm:%s622] %v759
                  %v761 = vld [vmem:[%s629 + $0x30c] sm:%s622]
                  %762 = vst [vmem:[%s630 + $0x104] sm:%s622] %v761
                  %v763 = vld [vmem:[%s629 + $0x318] sm:%s622]
                  %764 = vst [vmem:[%s630 + $0x108] sm:%s622] %v763
                  %v765 = vld [vmem:[%s629 + $0x324] sm:%s622]
                  %766 = vst [vmem:[%s630 + $0x10c] sm:%s622] %v765
                  %v767 = vld [vmem:[%s629 + $0x330] sm:%s622]
                  %768 = vst [vmem:[%s630 + $0x110] sm:%s622] %v767
                  %v769 = vld [vmem:[%s629 + $0x33c] sm:%s622]
                  %770 = vst [vmem:[%s630 + $0x114] sm:%s622] %v769
                  %v771 = vld [vmem:[%s629 + $0x348] sm:%s622]
                  %772 = vst [vmem:[%s630 + $0x118] sm:%s622] %v771
                  %v773 = vld [vmem:[%s629 + $0x354] sm:%s622]
                  %774 = vst [vmem:[%s630 + $0x11c] sm:%s622] %v773
                  %v775 = vld [vmem:[%s629 + $0x360] sm:%s622]
                  %776 = vst [vmem:[%s630 + $0x120] sm:%s622] %v775
                  %v777 = vld [vmem:[%s629 + $0x36c] sm:%s622]
                  %778 = vst [vmem:[%s630 + $0x124] sm:%s622] %v777
                  %v779 = vld [vmem:[%s629 + $0x378] sm:%s622]
                  %780 = vst [vmem:[%s630 + $0x128] sm:%s622] %v779
                  %v781 = vld [vmem:[%s629 + $0x384] sm:%s622]
                  %782 = vst [vmem:[%s630 + $0x12c] sm:%s622] %v781
                  %v783 = vld [vmem:[%s629 + $0x390] sm:%s622]
                  %784 = vst [vmem:[%s630 + $0x130] sm:%s622] %v783
                  %v785 = vld [vmem:[%s629 + $0x39c] sm:%s622]
                  %786 = vst [vmem:[%s630 + $0x134] sm:%s622] %v785
                  %v787 = vld [vmem:[%s629 + $0x3a8] sm:%s622]
                  %788 = vst [vmem:[%s630 + $0x138] sm:%s622] %v787
                  %v789 = vld [vmem:[%s629 + $0x3b4] sm:%s622]
                  %790 = vst [vmem:[%s630 + $0x13c] sm:%s622] %v789
                  %v791 = vld [vmem:[%s629 + $0x3c0] sm:%s622]
                  %792 = vst [vmem:[%s630 + $0x140] sm:%s622] %v791
                  %v793 = vld [vmem:[%s629 + $0x3cc] sm:%s622]
                  %794 = vst [vmem:[%s630 + $0x144] sm:%s622] %v793
                  %v795 = vld [vmem:[%s629 + $0x3d8] sm:%s622]
                  %796 = vst [vmem:[%s630 + $0x148] sm:%s622] %v795
                  %v797 = vld [vmem:[%s629 + $0x3e4] sm:%s622]
                  %798 = vst [vmem:[%s630 + $0x14c] sm:%s622] %v797
                  %v799 = vld [vmem:[%s629 + $0x3f0] sm:%s622]
                  %800 = vst [vmem:[%s630 + $0x150] sm:%s622] %v799
                  %v801 = vld [vmem:[%s629 + $0x3fc] sm:%s622]
                  %802 = vst [vmem:[%s630 + $0x154] sm:%s622] %v801
                  %v803 = vld [vmem:[%s629 + $0x408] sm:%s622]
                  %804 = vst [vmem:[%s630 + $0x158] sm:%s622] %v803
                  %v805 = vld [vmem:[%s629 + $0x414] sm:%s622]
                  %806 = vst [vmem:[%s630 + $0x15c] sm:%s622] %v805
                  %v807 = vld [vmem:[%s629 + $0x420] sm:%s622]
                  %808 = vst [vmem:[%s630 + $0x160] sm:%s622] %v807
                  %v809 = vld [vmem:[%s629 + $0x42c] sm:%s622]
                  %810 = vst [vmem:[%s630 + $0x164] sm:%s622] %v809
                  %v811 = vld [vmem:[%s629 + $0x438] sm:%s622]
                  %812 = vst [vmem:[%s630 + $0x168] sm:%s622] %v811
                  %v813 = vld [vmem:[%s629 + $0x444] sm:%s622]
                  %814 = vst [vmem:[%s630 + $0x16c] sm:%s622] %v813
                  %v815 = vld [vmem:[%s629 + $0x450] sm:%s622]
                  %816 = vst [vmem:[%s630 + $0x170] sm:%s622] %v815
                  %v817 = vld [vmem:[%s629 + $0x45c] sm:%s622]
                  %818 = vst [vmem:[%s630 + $0x174] sm:%s622] %v817
                  %v819 = vld [vmem:[%s629 + $0x468] sm:%s622]
                  %820 = vst [vmem:[%s630 + $0x178] sm:%s622] %v819
                  %v821 = vld [vmem:[%s629 + $0x474] sm:%s622]
                  %822 = vst [vmem:[%s630 + $0x17c] sm:%s622] %v821
                  %v823 = vld [vmem:[%s629 + $0x480] sm:%s622]
                  %824 = vst [vmem:[%s630 + $0x180] sm:%s622] %v823
                  %v825 = vld [vmem:[%s629 + $0x48c] sm:%s622]
                  %826 = vst [vmem:[%s630 + $0x184] sm:%s622] %v825
                  %v827 = vld [vmem:[%s629 + $0x498] sm:%s622]
                  %828 = vst [vmem:[%s630 + $0x188] sm:%s622] %v827
                  %v829 = vld [vmem:[%s629 + $0x4a4] sm:%s622]
                  %830 = vst [vmem:[%s630 + $0x18c] sm:%s622] %v829
                  %v831 = vld [vmem:[%s629 + $0x4b0] sm:%s622]
                  %832 = vst [vmem:[%s630 + $0x190] sm:%s622] %v831
                  %v833 = vld [vmem:[%s629 + $0x4bc] sm:%s622]
                  %834 = vst [vmem:[%s630 + $0x194] sm:%s622] %v833
                  %v835 = vld [vmem:[%s629 + $0x4c8] sm:%s622]
                  %836 = vst [vmem:[%s630 + $0x198] sm:%s622] %v835
                  %v837 = vld [vmem:[%s629 + $0x4d4] sm:%s622]
                  %838 = vst [vmem:[%s630 + $0x19c] sm:%s622] %v837
                  %v839 = vld [vmem:[%s629 + $0x4e0] sm:%s622]
                  %840 = vst [vmem:[%s630 + $0x1a0] sm:%s622] %v839
                  %v841 = vld [vmem:[%s629 + $0x4ec] sm:%s622]
                  %842 = vst [vmem:[%s630 + $0x1a4] sm:%s622] %v841
                  %v843 = vld [vmem:[%s629 + $0x4f8] sm:%s622]
                  %844 = vst [vmem:[%s630 + $0x1a8] sm:%s622] %v843
                  %v845 = vld [vmem:[%s629 + $0x504] sm:%s622]
                  %846 = vst [vmem:[%s630 + $0x1ac] sm:%s622] %v845
                  %v847 = vld [vmem:[%s629 + $0x510] sm:%s622]
                  %848 = vst [vmem:[%s630 + $0x1b0] sm:%s622] %v847
                  %v849 = vld [vmem:[%s629 + $0x51c] sm:%s622]
                  %850 = vst [vmem:[%s630 + $0x1b4] sm:%s622] %v849
                  %v851 = vld [vmem:[%s629 + $0x528] sm:%s622]
                  %852 = vst [vmem:[%s630 + $0x1b8] sm:%s622] %v851
                  %v853 = vld [vmem:[%s629 + $0x534] sm:%s622]
                  %854 = vst [vmem:[%s630 + $0x1bc] sm:%s622] %v853
                  %v855 = vld [vmem:[%s629 + $0x540] sm:%s622]
                  %856 = vst [vmem:[%s630 + $0x1c0] sm:%s622] %v855
                  %v857 = vld [vmem:[%s629 + $0x54c] sm:%s622]
                  %858 = vst [vmem:[%s630 + $0x1c4] sm:%s622] %v857
                  %v859 = vld [vmem:[%s629 + $0x558] sm:%s622]
                  %860 = vst [vmem:[%s630 + $0x1c8] sm:%s622] %v859
                  %v861 = vld [vmem:[%s629 + $0x564] sm:%s622]
                  %862 = vst [vmem:[%s630 + $0x1cc] sm:%s622] %v861
                  %v863 = vld [vmem:[%s629 + $0x570] sm:%s622]
                  %864 = vst [vmem:[%s630 + $0x1d0] sm:%s622] %v863
                  %v865 = vld [vmem:[%s629 + $0x57c] sm:%s622]
                  %866 = vst [vmem:[%s630 + $0x1d4] sm:%s622] %v865
                  %v867 = vld [vmem:[%s629 + $0x588] sm:%s622]
                  %868 = vst [vmem:[%s630 + $0x1d8] sm:%s622] %v867
                  %v869 = vld [vmem:[%s629 + $0x594] sm:%s622]
                  %870 = vst [vmem:[%s630 + $0x1dc] sm:%s622] %v869
                  %v871 = vld [vmem:[%s629 + $0x5a0] sm:%s622]
                  %872 = vst [vmem:[%s630 + $0x1e0] sm:%s622] %v871
                  %v873 = vld [vmem:[%s629 + $0x5ac] sm:%s622]
                  %874 = vst [vmem:[%s630 + $0x1e4] sm:%s622] %v873
                  %v875 = vld [vmem:[%s629 + $0x5b8] sm:%s622]
                  %876 = vst [vmem:[%s630 + $0x1e8] sm:%s622] %v875
                  %v877 = vld [vmem:[%s629 + $0x5c4] sm:%s622]
                  %878 = vst [vmem:[%s630 + $0x1ec] sm:%s622] %v877
                  %v879 = vld [vmem:[%s629 + $0x5d0] sm:%s622]
                  %880 = vst [vmem:[%s630 + $0x1f0] sm:%s622] %v879
                  %v881 = vld [vmem:[%s629 + $0x5dc] sm:%s622]
                  %882 = vst [vmem:[%s630 + $0x1f4] sm:%s622] %v881
                  %v883 = vld [vmem:[%s629 + $0x5e8] sm:%s622]
                  %884 = vst [vmem:[%s630 + $0x1f8] sm:%s622] %v883
                  %v885 = vld [vmem:[%s629 + $0x5f4] sm:%s622]
                  %886 = vst [vmem:[%s630 + $0x1fc] sm:%s622] %v885
                  %v887 = vld [vmem:[%s629 + $0x600] sm:%s622]
                  %888 = vst [vmem:[%s630 + $0x200] sm:%s622] %v887
                  %v889 = vld [vmem:[%s629 + $0x60c] sm:%s622]
                  %890 = vst [vmem:[%s630 + $0x204] sm:%s622] %v889
                  %v891 = vld [vmem:[%s629 + $0x618] sm:%s622]
                  %892 = vst [vmem:[%s630 + $0x208] sm:%s622] %v891
                  %v893 = vld [vmem:[%s629 + $0x624] sm:%s622]
                  %894 = vst [vmem:[%s630 + $0x20c] sm:%s622] %v893
                  %v895 = vld [vmem:[%s629 + $0x630] sm:%s622]
                  %896 = vst [vmem:[%s630 + $0x210] sm:%s622] %v895
                  %v897 = vld [vmem:[%s629 + $0x63c] sm:%s622]
                  %898 = vst [vmem:[%s630 + $0x214] sm:%s622] %v897
                  %v899 = vld [vmem:[%s629 + $0x648] sm:%s622]
                  %900 = vst [vmem:[%s630 + $0x218] sm:%s622] %v899
                  %v901 = vld [vmem:[%s629 + $0x654] sm:%s622]
                  %902 = vst [vmem:[%s630 + $0x21c] sm:%s622] %v901
                  %v903 = vld [vmem:[%s629 + $0x660] sm:%s622]
                  %904 = vst [vmem:[%s630 + $0x220] sm:%s622] %v903
                  %v905 = vld [vmem:[%s629 + $0x66c] sm:%s622]
                  %906 = vst [vmem:[%s630 + $0x224] sm:%s622] %v905
                  %v907 = vld [vmem:[%s629 + $0x678] sm:%s622]
                  %908 = vst [vmem:[%s630 + $0x228] sm:%s622] %v907
                  %v909 = vld [vmem:[%s629 + $0x684] sm:%s622]
                  %910 = vst [vmem:[%s630 + $0x22c] sm:%s622] %v909
                  %v911 = vld [vmem:[%s629 + $0x690] sm:%s622]
                  %912 = vst [vmem:[%s630 + $0x230] sm:%s622] %v911
                  %v913 = vld [vmem:[%s629 + $0x69c] sm:%s622]
                  %914 = vst [vmem:[%s630 + $0x234] sm:%s622] %v913
                  %v915 = vld [vmem:[%s629 + $0x6a8] sm:%s622]
                  %916 = vst [vmem:[%s630 + $0x238] sm:%s622] %v915
                  %v917 = vld [vmem:[%s629 + $0x6b4] sm:%s622]
                  %918 = vst [vmem:[%s630 + $0x23c] sm:%s622] %v917
                  %v919 = vld [vmem:[%s629 + $0x6c0] sm:%s622]
                  %920 = vst [vmem:[%s630 + $0x240] sm:%s622] %v919
                  %v921 = vld [vmem:[%s629 + $0x6cc] sm:%s622]
                  %922 = vst [vmem:[%s630 + $0x244] sm:%s622] %v921
                  %v923 = vld [vmem:[%s629 + $0x6d8] sm:%s622]
                  %924 = vst [vmem:[%s630 + $0x248] sm:%s622] %v923
                  %v925 = vld [vmem:[%s629 + $0x6e4] sm:%s622]
                  %926 = vst [vmem:[%s630 + $0x24c] sm:%s622] %v925
                  %v927 = vld [vmem:[%s629 + $0x6f0] sm:%s622]
                  %928 = vst [vmem:[%s630 + $0x250] sm:%s622] %v927
                  %v929 = vld [vmem:[%s629 + $0x6fc] sm:%s622]
                  %930 = vst [vmem:[%s630 + $0x254] sm:%s622] %v929
                  %v931 = vld [vmem:[%s629 + $0x708] sm:%s622]
                  %932 = vst [vmem:[%s630 + $0x258] sm:%s622] %v931
                  %v933 = vld [vmem:[%s629 + $0x714] sm:%s622]
                  %934 = vst [vmem:[%s630 + $0x25c] sm:%s622] %v933
                  %v935 = vld [vmem:[%s629 + $0x720] sm:%s622]
                  %936 = vst [vmem:[%s630 + $0x260] sm:%s622] %v935
                  %v937 = vld [vmem:[%s629 + $0x72c] sm:%s622]
                  %938 = vst [vmem:[%s630 + $0x264] sm:%s622] %v937
                  %v939 = vld [vmem:[%s629 + $0x738] sm:%s622]
                  %940 = vst [vmem:[%s630 + $0x268] sm:%s622] %v939
                  %v941 = vld [vmem:[%s629 + $0x744] sm:%s622]
                  %942 = vst [vmem:[%s630 + $0x26c] sm:%s622] %v941
                  %v943 = vld [vmem:[%s629 + $0x750] sm:%s622]
                  %944 = vst [vmem:[%s630 + $0x270] sm:%s622] %v943
                  %v945 = vld [vmem:[%s629 + $0x75c] sm:%s622]
                  %946 = vst [vmem:[%s630 + $0x274] sm:%s622] %v945
                  %v947 = vld [vmem:[%s629 + $0x768] sm:%s622]
                  %948 = vst [vmem:[%s630 + $0x278] sm:%s622] %v947
                  %v949 = vld [vmem:[%s629 + $0x774] sm:%s622]
                  %950 = vst [vmem:[%s630 + $0x27c] sm:%s622] %v949
                  %v951 = vld [vmem:[%s629 + $0x780] sm:%s622]
                  %952 = vst [vmem:[%s630 + $0x280] sm:%s622] %v951
                  %v953 = vld [vmem:[%s629 + $0x78c] sm:%s622]
                  %954 = vst [vmem:[%s630 + $0x284] sm:%s622] %v953
                  %v955 = vld [vmem:[%s629 + $0x798] sm:%s622]
                  %956 = vst [vmem:[%s630 + $0x288] sm:%s622] %v955
                  %v957 = vld [vmem:[%s629 + $0x7a4] sm:%s622]
                  %958 = vst [vmem:[%s630 + $0x28c] sm:%s622] %v957
                  %v959 = vld [vmem:[%s629 + $0x7b0] sm:%s622]
                  %960 = vst [vmem:[%s630 + $0x290] sm:%s622] %v959
                  %v961 = vld [vmem:[%s629 + $0x7bc] sm:%s622]
                  %962 = vst [vmem:[%s630 + $0x294] sm:%s622] %v961
                  %v963 = vld [vmem:[%s629 + $0x7c8] sm:%s622]
                  %964 = vst [vmem:[%s630 + $0x298] sm:%s622] %v963
                  %v965 = vld [vmem:[%s629 + $0x7d4] sm:%s622]
                  %966 = vst [vmem:[%s630 + $0x29c] sm:%s622] %v965
                  %v967 = vld [vmem:[%s629 + $0x7e0] sm:%s622]
                  %968 = vst [vmem:[%s630 + $0x2a0] sm:%s622] %v967
                  %v969 = vld [vmem:[%s629 + $0x7ec] sm:%s622]
                  %970 = vst [vmem:[%s630 + $0x2a4] sm:%s622] %v969
                  %v971 = vld [vmem:[%s629 + $0x7f8] sm:%s622]
                  %972 = vst [vmem:[%s630 + $0x2a8] sm:%s622] %v971
                  %v973 = vld [vmem:[%s629 + $0x804] sm:%s622]
                  %974 = vst [vmem:[%s630 + $0x2ac] sm:%s622] %v973
                  %v975 = vld [vmem:[%s629 + $0x810] sm:%s622]
                  %976 = vst [vmem:[%s630 + $0x2b0] sm:%s622] %v975
                  %v977 = vld [vmem:[%s629 + $0x81c] sm:%s622]
                  %978 = vst [vmem:[%s630 + $0x2b4] sm:%s622] %v977
                  %v979 = vld [vmem:[%s629 + $0x828] sm:%s622]
                  %980 = vst [vmem:[%s630 + $0x2b8] sm:%s622] %v979
                  %v981 = vld [vmem:[%s629 + $0x834] sm:%s622]
                  %982 = vst [vmem:[%s630 + $0x2bc] sm:%s622] %v981
                  %v983 = vld [vmem:[%s629 + $0x840] sm:%s622]
                  %984 = vst [vmem:[%s630 + $0x2c0] sm:%s622] %v983
                  %v985 = vld [vmem:[%s629 + $0x84c] sm:%s622]
                  %986 = vst [vmem:[%s630 + $0x2c4] sm:%s622] %v985
                  %v987 = vld [vmem:[%s629 + $0x858] sm:%s622]
                  %988 = vst [vmem:[%s630 + $0x2c8] sm:%s622] %v987
                  %v989 = vld [vmem:[%s629 + $0x864] sm:%s622]
                  %990 = vst [vmem:[%s630 + $0x2cc] sm:%s622] %v989
                  %v991 = vld [vmem:[%s629 + $0x870] sm:%s622]
                  %992 = vst [vmem:[%s630 + $0x2d0] sm:%s622] %v991
                  %v993 = vld [vmem:[%s629 + $0x87c] sm:%s622]
                  %994 = vst [vmem:[%s630 + $0x2d4] sm:%s622] %v993
                  %v995 = vld [vmem:[%s629 + $0x888] sm:%s622]
                  %996 = vst [vmem:[%s630 + $0x2d8] sm:%s622] %v995
                  %v997 = vld [vmem:[%s629 + $0x894] sm:%s622]
                  %998 = vst [vmem:[%s630 + $0x2dc] sm:%s622] %v997
                  %v999 = vld [vmem:[%s629 + $0x8a0] sm:%s622]
                  %1000 = vst [vmem:[%s630 + $0x2e0] sm:%s622] %v999
                  %v1001 = vld [vmem:[%s629 + $0x8ac] sm:%s622]
                  %1002 = vst [vmem:[%s630 + $0x2e4] sm:%s622] %v1001
                  %v1003 = vld [vmem:[%s629 + $0x8b8] sm:%s622]
                  %1004 = vst [vmem:[%s630 + $0x2e8] sm:%s622] %v1003
                  %v1005 = vld [vmem:[%s629 + $0x8c4] sm:%s622]
                  %1006 = vst [vmem:[%s630 + $0x2ec] sm:%s622] %v1005
                  %v1007 = vld [vmem:[%s629 + $0x8d0] sm:%s622]
                  %1008 = vst [vmem:[%s630 + $0x2f0] sm:%s622] %v1007
                  %v1009 = vld [vmem:[%s629 + $0x8dc] sm:%s622]
                  %1010 = vst [vmem:[%s630 + $0x2f4] sm:%s622] %v1009
                  %v1011 = vld [vmem:[%s629 + $0x8e8] sm:%s622]
                  %1012 = vst [vmem:[%s630 + $0x2f8] sm:%s622] %v1011
                  %v1013 = vld [vmem:[%s629 + $0x8f4] sm:%s622]
                  %1014 = vst [vmem:[%s630 + $0x2fc] sm:%s622] %v1013
                  %v1015 = vld [vmem:[%s629 + $0x900] sm:%s622]
                  %1016 = vst [vmem:[%s630 + $0x300] sm:%s622] %v1015
                  %v1017 = vld [vmem:[%s629 + $0x90c] sm:%s622]
                  %1018 = vst [vmem:[%s630 + $0x304] sm:%s622] %v1017
                  %v1019 = vld [vmem:[%s629 + $0x918] sm:%s622]
                  %1020 = vst [vmem:[%s630 + $0x308] sm:%s622] %v1019
                  %v1021 = vld [vmem:[%s629 + $0x924] sm:%s622]
                  %1022 = vst [vmem:[%s630 + $0x30c] sm:%s622] %v1021
                  %v1023 = vld [vmem:[%s629 + $0x930] sm:%s622]
                  %1024 = vst [vmem:[%s630 + $0x310] sm:%s622] %v1023
                  %v1025 = vld [vmem:[%s629 + $0x93c] sm:%s622]
                  %1026 = vst [vmem:[%s630 + $0x314] sm:%s622] %v1025
                  %v1027 = vld [vmem:[%s629 + $0x948] sm:%s622]
                  %1028 = vst [vmem:[%s630 + $0x318] sm:%s622] %v1027
                  %v1029 = vld [vmem:[%s629 + $0x954] sm:%s622]
                  %1030 = vst [vmem:[%s630 + $0x31c] sm:%s622] %v1029
                  %v1031 = vld [vmem:[%s629 + $0x960] sm:%s622]
                  %1032 = vst [vmem:[%s630 + $0x320] sm:%s622] %v1031
                  %v1033 = vld [vmem:[%s629 + $0x96c] sm:%s622]
                  %1034 = vst [vmem:[%s630 + $0x324] sm:%s622] %v1033
                  %v1035 = vld [vmem:[%s629 + $0x978] sm:%s622]
                  %1036 = vst [vmem:[%s630 + $0x328] sm:%s622] %v1035
                  %v1037 = vld [vmem:[%s629 + $0x984] sm:%s622]
                  %1038 = vst [vmem:[%s630 + $0x32c] sm:%s622] %v1037
                  %v1039 = vld [vmem:[%s629 + $0x990] sm:%s622]
                  %1040 = vst [vmem:[%s630 + $0x330] sm:%s622] %v1039
                  %v1041 = vld [vmem:[%s629 + $0x99c] sm:%s622]
                  %1042 = vst [vmem:[%s630 + $0x334] sm:%s622] %v1041
                  %v1043 = vld [vmem:[%s629 + $0x9a8] sm:%s622]
                  %1044 = vst [vmem:[%s630 + $0x338] sm:%s622] %v1043
                  %v1045 = vld [vmem:[%s629 + $0x9b4] sm:%s622]
                  %1046 = vst [vmem:[%s630 + $0x33c] sm:%s622] %v1045
                  %v1047 = vld [vmem:[%s629 + $0x9c0] sm:%s622]
                  %1048 = vst [vmem:[%s630 + $0x340] sm:%s622] %v1047
                  %v1049 = vld [vmem:[%s629 + $0x9cc] sm:%s622]
                  %1050 = vst [vmem:[%s630 + $0x344] sm:%s622] %v1049
                  %v1051 = vld [vmem:[%s629 + $0x9d8] sm:%s622]
                  %1052 = vst [vmem:[%s630 + $0x348] sm:%s622] %v1051
                  %v1053 = vld [vmem:[%s629 + $0x9e4] sm:%s622]
                  %1054 = vst [vmem:[%s630 + $0x34c] sm:%s622] %v1053
                  %v1055 = vld [vmem:[%s629 + $0x9f0] sm:%s622]
                  %1056 = vst [vmem:[%s630 + $0x350] sm:%s622] %v1055
                  %v1057 = vld [vmem:[%s629 + $0x9fc] sm:%s622]
                  %1058 = vst [vmem:[%s630 + $0x354] sm:%s622] %v1057
                  %v1059 = vld [vmem:[%s629 + $0xa08] sm:%s622]
                  %1060 = vst [vmem:[%s630 + $0x358] sm:%s622] %v1059
                  %v1061 = vld [vmem:[%s629 + $0xa14] sm:%s622]
                  %1062 = vst [vmem:[%s630 + $0x35c] sm:%s622] %v1061
                $region59: #{early_conv_vit_forward.9} parent=46 // loop_footer
                  %s628 = sadd.s32 1, %s624
                $region60: #{early_conv_vit_forward.9} parent=46 // loop_footer_branch
                  %623 = sbr.rel target = $region56
                $region61: #{early_conv_vit_forward.9} parent=46 // loop_exit
                  _
              $region47: #{early_conv_vit_forward.9} parent=31 // pred_fallthru
                _
            $region32: #{early_conv_vit_forward.9} parent=27 // pred_fallthru
              _
            // Predicated region
            $region33: #{early_conv_vit_forward.9} parent=27 // pred_check
              _
            $region34: #{early_conv_vit_forward.9} parent=27 // pred_check_branch
              %168 = sbr.rel (0) target = $region36
            $region35: #{early_conv_vit_forward.9} parent=27 // pred_region
              %s170 = ssub.s32 16, 1
              loop: start=0, step=1, limit=1
              $region37: #{early_conv_vit_forward.9} parent=35 // loop_pre_header
                _
              $region38: #{early_conv_vit_forward.9} parent=35 // loop_header
                %s172 = sphi 0, %s176
                %p173 = scmp.ge.s32.totalorder %s172, 1
                %s177 = sphi %s162, %s162
                %s178 = sphi %s160, %s160
              $region39: #{early_conv_vit_forward.9} parent=35 // loop_header_branch
                %175 = sbr.rel (%p173) target = $region43
              $region40: #{early_conv_vit_forward.9} parent=35 // loop_body
                %v179 = vld [vmem:[%s177] sm:%s170]
                %180 = vst [vmem:[%s178] sm:%s170] %v179
                %v181 = vld [vmem:[%s177 + $0xc] sm:%s170]
                %182 = vst [vmem:[%s178 + $0x4] sm:%s170] %v181
                %v183 = vld [vmem:[%s177 + $0x18] sm:%s170]
                %184 = vst [vmem:[%s178 + $0x8] sm:%s170] %v183
                %v185 = vld [vmem:[%s177 + $0x24] sm:%s170]
                %186 = vst [vmem:[%s178 + $0xc] sm:%s170] %v185
                %v187 = vld [vmem:[%s177 + $0x30] sm:%s170]
                %188 = vst [vmem:[%s178 + $0x10] sm:%s170] %v187
                %v189 = vld [vmem:[%s177 + $0x3c] sm:%s170]
                %190 = vst [vmem:[%s178 + $0x14] sm:%s170] %v189
                %v191 = vld [vmem:[%s177 + $0x48] sm:%s170]
                %192 = vst [vmem:[%s178 + $0x18] sm:%s170] %v191
                %v193 = vld [vmem:[%s177 + $0x54] sm:%s170]
                %194 = vst [vmem:[%s178 + $0x1c] sm:%s170] %v193
                %v195 = vld [vmem:[%s177 + $0x60] sm:%s170]
                %196 = vst [vmem:[%s178 + $0x20] sm:%s170] %v195
                %v197 = vld [vmem:[%s177 + $0x6c] sm:%s170]
                %198 = vst [vmem:[%s178 + $0x24] sm:%s170] %v197
                %v199 = vld [vmem:[%s177 + $0x78] sm:%s170]
                %200 = vst [vmem:[%s178 + $0x28] sm:%s170] %v199
                %v201 = vld [vmem:[%s177 + $0x84] sm:%s170]
                %202 = vst [vmem:[%s178 + $0x2c] sm:%s170] %v201
                %v203 = vld [vmem:[%s177 + $0x90] sm:%s170]
                %204 = vst [vmem:[%s178 + $0x30] sm:%s170] %v203
                %v205 = vld [vmem:[%s177 + $0x9c] sm:%s170]
                %206 = vst [vmem:[%s178 + $0x34] sm:%s170] %v205
                %v207 = vld [vmem:[%s177 + $0xa8] sm:%s170]
                %208 = vst [vmem:[%s178 + $0x38] sm:%s170] %v207
                %v209 = vld [vmem:[%s177 + $0xb4] sm:%s170]
                %210 = vst [vmem:[%s178 + $0x3c] sm:%s170] %v209
                %v211 = vld [vmem:[%s177 + $0xc0] sm:%s170]
                %212 = vst [vmem:[%s178 + $0x40] sm:%s170] %v211
                %v213 = vld [vmem:[%s177 + $0xcc] sm:%s170]
                %214 = vst [vmem:[%s178 + $0x44] sm:%s170] %v213
                %v215 = vld [vmem:[%s177 + $0xd8] sm:%s170]
                %216 = vst [vmem:[%s178 + $0x48] sm:%s170] %v215
                %v217 = vld [vmem:[%s177 + $0xe4] sm:%s170]
                %218 = vst [vmem:[%s178 + $0x4c] sm:%s170] %v217
                %v219 = vld [vmem:[%s177 + $0xf0] sm:%s170]
                %220 = vst [vmem:[%s178 + $0x50] sm:%s170] %v219
                %v221 = vld [vmem:[%s177 + $0xfc] sm:%s170]
                %222 = vst [vmem:[%s178 + $0x54] sm:%s170] %v221
                %v223 = vld [vmem:[%s177 + $0x108] sm:%s170]
                %224 = vst [vmem:[%s178 + $0x58] sm:%s170] %v223
                %v225 = vld [vmem:[%s177 + $0x114] sm:%s170]
                %226 = vst [vmem:[%s178 + $0x5c] sm:%s170] %v225
                %v227 = vld [vmem:[%s177 + $0x120] sm:%s170]
                %228 = vst [vmem:[%s178 + $0x60] sm:%s170] %v227
                %v229 = vld [vmem:[%s177 + $0x12c] sm:%s170]
                %230 = vst [vmem:[%s178 + $0x64] sm:%s170] %v229
                %v231 = vld [vmem:[%s177 + $0x138] sm:%s170]
                %232 = vst [vmem:[%s178 + $0x68] sm:%s170] %v231
                %v233 = vld [vmem:[%s177 + $0x144] sm:%s170]
                %234 = vst [vmem:[%s178 + $0x6c] sm:%s170] %v233
                %v235 = vld [vmem:[%s177 + $0x150] sm:%s170]
                %236 = vst [vmem:[%s178 + $0x70] sm:%s170] %v235
                %v237 = vld [vmem:[%s177 + $0x15c] sm:%s170]
                %238 = vst [vmem:[%s178 + $0x74] sm:%s170] %v237
                %v239 = vld [vmem:[%s177 + $0x168] sm:%s170]
                %240 = vst [vmem:[%s178 + $0x78] sm:%s170] %v239
                %v241 = vld [vmem:[%s177 + $0x174] sm:%s170]
                %242 = vst [vmem:[%s178 + $0x7c] sm:%s170] %v241
                %v243 = vld [vmem:[%s177 + $0x180] sm:%s170]
                %244 = vst [vmem:[%s178 + $0x80] sm:%s170] %v243
                %v245 = vld [vmem:[%s177 + $0x18c] sm:%s170]
                %246 = vst [vmem:[%s178 + $0x84] sm:%s170] %v245
                %v247 = vld [vmem:[%s177 + $0x198] sm:%s170]
                %248 = vst [vmem:[%s178 + $0x88] sm:%s170] %v247
                %v249 = vld [vmem:[%s177 + $0x1a4] sm:%s170]
                %250 = vst [vmem:[%s178 + $0x8c] sm:%s170] %v249
                %v251 = vld [vmem:[%s177 + $0x1b0] sm:%s170]
                %252 = vst [vmem:[%s178 + $0x90] sm:%s170] %v251
                %v253 = vld [vmem:[%s177 + $0x1bc] sm:%s170]
                %254 = vst [vmem:[%s178 + $0x94] sm:%s170] %v253
                %v255 = vld [vmem:[%s177 + $0x1c8] sm:%s170]
                %256 = vst [vmem:[%s178 + $0x98] sm:%s170] %v255
                %v257 = vld [vmem:[%s177 + $0x1d4] sm:%s170]
                %258 = vst [vmem:[%s178 + $0x9c] sm:%s170] %v257
                %v259 = vld [vmem:[%s177 + $0x1e0] sm:%s170]
                %260 = vst [vmem:[%s178 + $0xa0] sm:%s170] %v259
                %v261 = vld [vmem:[%s177 + $0x1ec] sm:%s170]
                %262 = vst [vmem:[%s178 + $0xa4] sm:%s170] %v261
                %v263 = vld [vmem:[%s177 + $0x1f8] sm:%s170]
                %264 = vst [vmem:[%s178 + $0xa8] sm:%s170] %v263
                %v265 = vld [vmem:[%s177 + $0x204] sm:%s170]
                %266 = vst [vmem:[%s178 + $0xac] sm:%s170] %v265
                %v267 = vld [vmem:[%s177 + $0x210] sm:%s170]
                %268 = vst [vmem:[%s178 + $0xb0] sm:%s170] %v267
                %v269 = vld [vmem:[%s177 + $0x21c] sm:%s170]
                %270 = vst [vmem:[%s178 + $0xb4] sm:%s170] %v269
                %v271 = vld [vmem:[%s177 + $0x228] sm:%s170]
                %272 = vst [vmem:[%s178 + $0xb8] sm:%s170] %v271
                %v273 = vld [vmem:[%s177 + $0x234] sm:%s170]
                %274 = vst [vmem:[%s178 + $0xbc] sm:%s170] %v273
                %v275 = vld [vmem:[%s177 + $0x240] sm:%s170]
                %276 = vst [vmem:[%s178 + $0xc0] sm:%s170] %v275
                %v277 = vld [vmem:[%s177 + $0x24c] sm:%s170]
                %278 = vst [vmem:[%s178 + $0xc4] sm:%s170] %v277
                %v279 = vld [vmem:[%s177 + $0x258] sm:%s170]
                %280 = vst [vmem:[%s178 + $0xc8] sm:%s170] %v279
                %v281 = vld [vmem:[%s177 + $0x264] sm:%s170]
                %282 = vst [vmem:[%s178 + $0xcc] sm:%s170] %v281
                %v283 = vld [vmem:[%s177 + $0x270] sm:%s170]
                %284 = vst [vmem:[%s178 + $0xd0] sm:%s170] %v283
                %v285 = vld [vmem:[%s177 + $0x27c] sm:%s170]
                %286 = vst [vmem:[%s178 + $0xd4] sm:%s170] %v285
                %v287 = vld [vmem:[%s177 + $0x288] sm:%s170]
                %288 = vst [vmem:[%s178 + $0xd8] sm:%s170] %v287
                %v289 = vld [vmem:[%s177 + $0x294] sm:%s170]
                %290 = vst [vmem:[%s178 + $0xdc] sm:%s170] %v289
                %v291 = vld [vmem:[%s177 + $0x2a0] sm:%s170]
                %292 = vst [vmem:[%s178 + $0xe0] sm:%s170] %v291
                %v293 = vld [vmem:[%s177 + $0x2ac] sm:%s170]
                %294 = vst [vmem:[%s178 + $0xe4] sm:%s170] %v293
                %v295 = vld [vmem:[%s177 + $0x2b8] sm:%s170]
                %296 = vst [vmem:[%s178 + $0xe8] sm:%s170] %v295
                %v297 = vld [vmem:[%s177 + $0x2c4] sm:%s170]
                %298 = vst [vmem:[%s178 + $0xec] sm:%s170] %v297
                %v299 = vld [vmem:[%s177 + $0x2d0] sm:%s170]
                %300 = vst [vmem:[%s178 + $0xf0] sm:%s170] %v299
                %v301 = vld [vmem:[%s177 + $0x2dc] sm:%s170]
                %302 = vst [vmem:[%s178 + $0xf4] sm:%s170] %v301
                %v303 = vld [vmem:[%s177 + $0x2e8] sm:%s170]
                %304 = vst [vmem:[%s178 + $0xf8] sm:%s170] %v303
                %v305 = vld [vmem:[%s177 + $0x2f4] sm:%s170]
                %306 = vst [vmem:[%s178 + $0xfc] sm:%s170] %v305
                %v307 = vld [vmem:[%s177 + $0x300] sm:%s170]
                %308 = vst [vmem:[%s178 + $0x100] sm:%s170] %v307
                %v309 = vld [vmem:[%s177 + $0x30c] sm:%s170]
                %310 = vst [vmem:[%s178 + $0x104] sm:%s170] %v309
                %v311 = vld [vmem:[%s177 + $0x318] sm:%s170]
                %312 = vst [vmem:[%s178 + $0x108] sm:%s170] %v311
                %v313 = vld [vmem:[%s177 + $0x324] sm:%s170]
                %314 = vst [vmem:[%s178 + $0x10c] sm:%s170] %v313
                %v315 = vld [vmem:[%s177 + $0x330] sm:%s170]
                %316 = vst [vmem:[%s178 + $0x110] sm:%s170] %v315
                %v317 = vld [vmem:[%s177 + $0x33c] sm:%s170]
                %318 = vst [vmem:[%s178 + $0x114] sm:%s170] %v317
                %v319 = vld [vmem:[%s177 + $0x348] sm:%s170]
                %320 = vst [vmem:[%s178 + $0x118] sm:%s170] %v319
                %v321 = vld [vmem:[%s177 + $0x354] sm:%s170]
                %322 = vst [vmem:[%s178 + $0x11c] sm:%s170] %v321
                %v323 = vld [vmem:[%s177 + $0x360] sm:%s170]
                %324 = vst [vmem:[%s178 + $0x120] sm:%s170] %v323
                %v325 = vld [vmem:[%s177 + $0x36c] sm:%s170]
                %326 = vst [vmem:[%s178 + $0x124] sm:%s170] %v325
                %v327 = vld [vmem:[%s177 + $0x378] sm:%s170]
                %328 = vst [vmem:[%s178 + $0x128] sm:%s170] %v327
                %v329 = vld [vmem:[%s177 + $0x384] sm:%s170]
                %330 = vst [vmem:[%s178 + $0x12c] sm:%s170] %v329
                %v331 = vld [vmem:[%s177 + $0x390] sm:%s170]
                %332 = vst [vmem:[%s178 + $0x130] sm:%s170] %v331
                %v333 = vld [vmem:[%s177 + $0x39c] sm:%s170]
                %334 = vst [vmem:[%s178 + $0x134] sm:%s170] %v333
                %v335 = vld [vmem:[%s177 + $0x3a8] sm:%s170]
                %336 = vst [vmem:[%s178 + $0x138] sm:%s170] %v335
                %v337 = vld [vmem:[%s177 + $0x3b4] sm:%s170]
                %338 = vst [vmem:[%s178 + $0x13c] sm:%s170] %v337
                %v339 = vld [vmem:[%s177 + $0x3c0] sm:%s170]
                %340 = vst [vmem:[%s178 + $0x140] sm:%s170] %v339
                %v341 = vld [vmem:[%s177 + $0x3cc] sm:%s170]
                %342 = vst [vmem:[%s178 + $0x144] sm:%s170] %v341
                %v343 = vld [vmem:[%s177 + $0x3d8] sm:%s170]
                %344 = vst [vmem:[%s178 + $0x148] sm:%s170] %v343
                %v345 = vld [vmem:[%s177 + $0x3e4] sm:%s170]
                %346 = vst [vmem:[%s178 + $0x14c] sm:%s170] %v345
                %v347 = vld [vmem:[%s177 + $0x3f0] sm:%s170]
                %348 = vst [vmem:[%s178 + $0x150] sm:%s170] %v347
                %v349 = vld [vmem:[%s177 + $0x3fc] sm:%s170]
                %350 = vst [vmem:[%s178 + $0x154] sm:%s170] %v349
                %v351 = vld [vmem:[%s177 + $0x408] sm:%s170]
                %352 = vst [vmem:[%s178 + $0x158] sm:%s170] %v351
                %v353 = vld [vmem:[%s177 + $0x414] sm:%s170]
                %354 = vst [vmem:[%s178 + $0x15c] sm:%s170] %v353
                %v355 = vld [vmem:[%s177 + $0x420] sm:%s170]
                %356 = vst [vmem:[%s178 + $0x160] sm:%s170] %v355
                %v357 = vld [vmem:[%s177 + $0x42c] sm:%s170]
                %358 = vst [vmem:[%s178 + $0x164] sm:%s170] %v357
                %v359 = vld [vmem:[%s177 + $0x438] sm:%s170]
                %360 = vst [vmem:[%s178 + $0x168] sm:%s170] %v359
                %v361 = vld [vmem:[%s177 + $0x444] sm:%s170]
                %362 = vst [vmem:[%s178 + $0x16c] sm:%s170] %v361
                %v363 = vld [vmem:[%s177 + $0x450] sm:%s170]
                %364 = vst [vmem:[%s178 + $0x170] sm:%s170] %v363
                %v365 = vld [vmem:[%s177 + $0x45c] sm:%s170]
                %366 = vst [vmem:[%s178 + $0x174] sm:%s170] %v365
                %v367 = vld [vmem:[%s177 + $0x468] sm:%s170]
                %368 = vst [vmem:[%s178 + $0x178] sm:%s170] %v367
                %v369 = vld [vmem:[%s177 + $0x474] sm:%s170]
                %370 = vst [vmem:[%s178 + $0x17c] sm:%s170] %v369
                %v371 = vld [vmem:[%s177 + $0x480] sm:%s170]
                %372 = vst [vmem:[%s178 + $0x180] sm:%s170] %v371
                %v373 = vld [vmem:[%s177 + $0x48c] sm:%s170]
                %374 = vst [vmem:[%s178 + $0x184] sm:%s170] %v373
                %v375 = vld [vmem:[%s177 + $0x498] sm:%s170]
                %376 = vst [vmem:[%s178 + $0x188] sm:%s170] %v375
                %v377 = vld [vmem:[%s177 + $0x4a4] sm:%s170]
                %378 = vst [vmem:[%s178 + $0x18c] sm:%s170] %v377
                %v379 = vld [vmem:[%s177 + $0x4b0] sm:%s170]
                %380 = vst [vmem:[%s178 + $0x190] sm:%s170] %v379
                %v381 = vld [vmem:[%s177 + $0x4bc] sm:%s170]
                %382 = vst [vmem:[%s178 + $0x194] sm:%s170] %v381
                %v383 = vld [vmem:[%s177 + $0x4c8] sm:%s170]
                %384 = vst [vmem:[%s178 + $0x198] sm:%s170] %v383
                %v385 = vld [vmem:[%s177 + $0x4d4] sm:%s170]
                %386 = vst [vmem:[%s178 + $0x19c] sm:%s170] %v385
                %v387 = vld [vmem:[%s177 + $0x4e0] sm:%s170]
                %388 = vst [vmem:[%s178 + $0x1a0] sm:%s170] %v387
                %v389 = vld [vmem:[%s177 + $0x4ec] sm:%s170]
                %390 = vst [vmem:[%s178 + $0x1a4] sm:%s170] %v389
                %v391 = vld [vmem:[%s177 + $0x4f8] sm:%s170]
                %392 = vst [vmem:[%s178 + $0x1a8] sm:%s170] %v391
                %v393 = vld [vmem:[%s177 + $0x504] sm:%s170]
                %394 = vst [vmem:[%s178 + $0x1ac] sm:%s170] %v393
                %v395 = vld [vmem:[%s177 + $0x510] sm:%s170]
                %396 = vst [vmem:[%s178 + $0x1b0] sm:%s170] %v395
                %v397 = vld [vmem:[%s177 + $0x51c] sm:%s170]
                %398 = vst [vmem:[%s178 + $0x1b4] sm:%s170] %v397
                %v399 = vld [vmem:[%s177 + $0x528] sm:%s170]
                %400 = vst [vmem:[%s178 + $0x1b8] sm:%s170] %v399
                %v401 = vld [vmem:[%s177 + $0x534] sm:%s170]
                %402 = vst [vmem:[%s178 + $0x1bc] sm:%s170] %v401
                %v403 = vld [vmem:[%s177 + $0x540] sm:%s170]
                %404 = vst [vmem:[%s178 + $0x1c0] sm:%s170] %v403
                %v405 = vld [vmem:[%s177 + $0x54c] sm:%s170]
                %406 = vst [vmem:[%s178 + $0x1c4] sm:%s170] %v405
                %v407 = vld [vmem:[%s177 + $0x558] sm:%s170]
                %408 = vst [vmem:[%s178 + $0x1c8] sm:%s170] %v407
                %v409 = vld [vmem:[%s177 + $0x564] sm:%s170]
                %410 = vst [vmem:[%s178 + $0x1cc] sm:%s170] %v409
                %v411 = vld [vmem:[%s177 + $0x570] sm:%s170]
                %412 = vst [vmem:[%s178 + $0x1d0] sm:%s170] %v411
                %v413 = vld [vmem:[%s177 + $0x57c] sm:%s170]
                %414 = vst [vmem:[%s178 + $0x1d4] sm:%s170] %v413
                %v415 = vld [vmem:[%s177 + $0x588] sm:%s170]
                %416 = vst [vmem:[%s178 + $0x1d8] sm:%s170] %v415
                %v417 = vld [vmem:[%s177 + $0x594] sm:%s170]
                %418 = vst [vmem:[%s178 + $0x1dc] sm:%s170] %v417
                %v419 = vld [vmem:[%s177 + $0x5a0] sm:%s170]
                %420 = vst [vmem:[%s178 + $0x1e0] sm:%s170] %v419
                %v421 = vld [vmem:[%s177 + $0x5ac] sm:%s170]
                %422 = vst [vmem:[%s178 + $0x1e4] sm:%s170] %v421
                %v423 = vld [vmem:[%s177 + $0x5b8] sm:%s170]
                %424 = vst [vmem:[%s178 + $0x1e8] sm:%s170] %v423
                %v425 = vld [vmem:[%s177 + $0x5c4] sm:%s170]
                %426 = vst [vmem:[%s178 + $0x1ec] sm:%s170] %v425
                %v427 = vld [vmem:[%s177 + $0x5d0] sm:%s170]
                %428 = vst [vmem:[%s178 + $0x1f0] sm:%s170] %v427
                %v429 = vld [vmem:[%s177 + $0x5dc] sm:%s170]
                %430 = vst [vmem:[%s178 + $0x1f4] sm:%s170] %v429
                %v431 = vld [vmem:[%s177 + $0x5e8] sm:%s170]
                %432 = vst [vmem:[%s178 + $0x1f8] sm:%s170] %v431
                %v433 = vld [vmem:[%s177 + $0x5f4] sm:%s170]
                %434 = vst [vmem:[%s178 + $0x1fc] sm:%s170] %v433
                %v435 = vld [vmem:[%s177 + $0x600] sm:%s170]
                %436 = vst [vmem:[%s178 + $0x200] sm:%s170] %v435
                %v437 = vld [vmem:[%s177 + $0x60c] sm:%s170]
                %438 = vst [vmem:[%s178 + $0x204] sm:%s170] %v437
                %v439 = vld [vmem:[%s177 + $0x618] sm:%s170]
                %440 = vst [vmem:[%s178 + $0x208] sm:%s170] %v439
                %v441 = vld [vmem:[%s177 + $0x624] sm:%s170]
                %442 = vst [vmem:[%s178 + $0x20c] sm:%s170] %v441
                %v443 = vld [vmem:[%s177 + $0x630] sm:%s170]
                %444 = vst [vmem:[%s178 + $0x210] sm:%s170] %v443
                %v445 = vld [vmem:[%s177 + $0x63c] sm:%s170]
                %446 = vst [vmem:[%s178 + $0x214] sm:%s170] %v445
                %v447 = vld [vmem:[%s177 + $0x648] sm:%s170]
                %448 = vst [vmem:[%s178 + $0x218] sm:%s170] %v447
                %v449 = vld [vmem:[%s177 + $0x654] sm:%s170]
                %450 = vst [vmem:[%s178 + $0x21c] sm:%s170] %v449
                %v451 = vld [vmem:[%s177 + $0x660] sm:%s170]
                %452 = vst [vmem:[%s178 + $0x220] sm:%s170] %v451
                %v453 = vld [vmem:[%s177 + $0x66c] sm:%s170]
                %454 = vst [vmem:[%s178 + $0x224] sm:%s170] %v453
                %v455 = vld [vmem:[%s177 + $0x678] sm:%s170]
                %456 = vst [vmem:[%s178 + $0x228] sm:%s170] %v455
                %v457 = vld [vmem:[%s177 + $0x684] sm:%s170]
                %458 = vst [vmem:[%s178 + $0x22c] sm:%s170] %v457
                %v459 = vld [vmem:[%s177 + $0x690] sm:%s170]
                %460 = vst [vmem:[%s178 + $0x230] sm:%s170] %v459
                %v461 = vld [vmem:[%s177 + $0x69c] sm:%s170]
                %462 = vst [vmem:[%s178 + $0x234] sm:%s170] %v461
                %v463 = vld [vmem:[%s177 + $0x6a8] sm:%s170]
                %464 = vst [vmem:[%s178 + $0x238] sm:%s170] %v463
                %v465 = vld [vmem:[%s177 + $0x6b4] sm:%s170]
                %466 = vst [vmem:[%s178 + $0x23c] sm:%s170] %v465
                %v467 = vld [vmem:[%s177 + $0x6c0] sm:%s170]
                %468 = vst [vmem:[%s178 + $0x240] sm:%s170] %v467
                %v469 = vld [vmem:[%s177 + $0x6cc] sm:%s170]
                %470 = vst [vmem:[%s178 + $0x244] sm:%s170] %v469
                %v471 = vld [vmem:[%s177 + $0x6d8] sm:%s170]
                %472 = vst [vmem:[%s178 + $0x248] sm:%s170] %v471
                %v473 = vld [vmem:[%s177 + $0x6e4] sm:%s170]
                %474 = vst [vmem:[%s178 + $0x24c] sm:%s170] %v473
                %v475 = vld [vmem:[%s177 + $0x6f0] sm:%s170]
                %476 = vst [vmem:[%s178 + $0x250] sm:%s170] %v475
                %v477 = vld [vmem:[%s177 + $0x6fc] sm:%s170]
                %478 = vst [vmem:[%s178 + $0x254] sm:%s170] %v477
                %v479 = vld [vmem:[%s177 + $0x708] sm:%s170]
                %480 = vst [vmem:[%s178 + $0x258] sm:%s170] %v479
                %v481 = vld [vmem:[%s177 + $0x714] sm:%s170]
                %482 = vst [vmem:[%s178 + $0x25c] sm:%s170] %v481
                %v483 = vld [vmem:[%s177 + $0x720] sm:%s170]
                %484 = vst [vmem:[%s178 + $0x260] sm:%s170] %v483
                %v485 = vld [vmem:[%s177 + $0x72c] sm:%s170]
                %486 = vst [vmem:[%s178 + $0x264] sm:%s170] %v485
                %v487 = vld [vmem:[%s177 + $0x738] sm:%s170]
                %488 = vst [vmem:[%s178 + $0x268] sm:%s170] %v487
                %v489 = vld [vmem:[%s177 + $0x744] sm:%s170]
                %490 = vst [vmem:[%s178 + $0x26c] sm:%s170] %v489
                %v491 = vld [vmem:[%s177 + $0x750] sm:%s170]
                %492 = vst [vmem:[%s178 + $0x270] sm:%s170] %v491
                %v493 = vld [vmem:[%s177 + $0x75c] sm:%s170]
                %494 = vst [vmem:[%s178 + $0x274] sm:%s170] %v493
                %v495 = vld [vmem:[%s177 + $0x768] sm:%s170]
                %496 = vst [vmem:[%s178 + $0x278] sm:%s170] %v495
                %v497 = vld [vmem:[%s177 + $0x774] sm:%s170]
                %498 = vst [vmem:[%s178 + $0x27c] sm:%s170] %v497
                %v499 = vld [vmem:[%s177 + $0x780] sm:%s170]
                %500 = vst [vmem:[%s178 + $0x280] sm:%s170] %v499
                %v501 = vld [vmem:[%s177 + $0x78c] sm:%s170]
                %502 = vst [vmem:[%s178 + $0x284] sm:%s170] %v501
                %v503 = vld [vmem:[%s177 + $0x798] sm:%s170]
                %504 = vst [vmem:[%s178 + $0x288] sm:%s170] %v503
                %v505 = vld [vmem:[%s177 + $0x7a4] sm:%s170]
                %506 = vst [vmem:[%s178 + $0x28c] sm:%s170] %v505
                %v507 = vld [vmem:[%s177 + $0x7b0] sm:%s170]
                %508 = vst [vmem:[%s178 + $0x290] sm:%s170] %v507
                %v509 = vld [vmem:[%s177 + $0x7bc] sm:%s170]
                %510 = vst [vmem:[%s178 + $0x294] sm:%s170] %v509
                %v511 = vld [vmem:[%s177 + $0x7c8] sm:%s170]
                %512 = vst [vmem:[%s178 + $0x298] sm:%s170] %v511
                %v513 = vld [vmem:[%s177 + $0x7d4] sm:%s170]
                %514 = vst [vmem:[%s178 + $0x29c] sm:%s170] %v513
                %v515 = vld [vmem:[%s177 + $0x7e0] sm:%s170]
                %516 = vst [vmem:[%s178 + $0x2a0] sm:%s170] %v515
                %v517 = vld [vmem:[%s177 + $0x7ec] sm:%s170]
                %518 = vst [vmem:[%s178 + $0x2a4] sm:%s170] %v517
                %v519 = vld [vmem:[%s177 + $0x7f8] sm:%s170]
                %520 = vst [vmem:[%s178 + $0x2a8] sm:%s170] %v519
                %v521 = vld [vmem:[%s177 + $0x804] sm:%s170]
                %522 = vst [vmem:[%s178 + $0x2ac] sm:%s170] %v521
                %v523 = vld [vmem:[%s177 + $0x810] sm:%s170]
                %524 = vst [vmem:[%s178 + $0x2b0] sm:%s170] %v523
                %v525 = vld [vmem:[%s177 + $0x81c] sm:%s170]
                %526 = vst [vmem:[%s178 + $0x2b4] sm:%s170] %v525
                %v527 = vld [vmem:[%s177 + $0x828] sm:%s170]
                %528 = vst [vmem:[%s178 + $0x2b8] sm:%s170] %v527
                %v529 = vld [vmem:[%s177 + $0x834] sm:%s170]
                %530 = vst [vmem:[%s178 + $0x2bc] sm:%s170] %v529
                %v531 = vld [vmem:[%s177 + $0x840] sm:%s170]
                %532 = vst [vmem:[%s178 + $0x2c0] sm:%s170] %v531
                %v533 = vld [vmem:[%s177 + $0x84c] sm:%s170]
                %534 = vst [vmem:[%s178 + $0x2c4] sm:%s170] %v533
                %v535 = vld [vmem:[%s177 + $0x858] sm:%s170]
                %536 = vst [vmem:[%s178 + $0x2c8] sm:%s170] %v535
                %v537 = vld [vmem:[%s177 + $0x864] sm:%s170]
                %538 = vst [vmem:[%s178 + $0x2cc] sm:%s170] %v537
                %v539 = vld [vmem:[%s177 + $0x870] sm:%s170]
                %540 = vst [vmem:[%s178 + $0x2d0] sm:%s170] %v539
                %v541 = vld [vmem:[%s177 + $0x87c] sm:%s170]
                %542 = vst [vmem:[%s178 + $0x2d4] sm:%s170] %v541
                %v543 = vld [vmem:[%s177 + $0x888] sm:%s170]
                %544 = vst [vmem:[%s178 + $0x2d8] sm:%s170] %v543
                %v545 = vld [vmem:[%s177 + $0x894] sm:%s170]
                %546 = vst [vmem:[%s178 + $0x2dc] sm:%s170] %v545
                %v547 = vld [vmem:[%s177 + $0x8a0] sm:%s170]
                %548 = vst [vmem:[%s178 + $0x2e0] sm:%s170] %v547
                %v549 = vld [vmem:[%s177 + $0x8ac] sm:%s170]
                %550 = vst [vmem:[%s178 + $0x2e4] sm:%s170] %v549
                %v551 = vld [vmem:[%s177 + $0x8b8] sm:%s170]
                %552 = vst [vmem:[%s178 + $0x2e8] sm:%s170] %v551
                %v553 = vld [vmem:[%s177 + $0x8c4] sm:%s170]
                %554 = vst [vmem:[%s178 + $0x2ec] sm:%s170] %v553
                %v555 = vld [vmem:[%s177 + $0x8d0] sm:%s170]
                %556 = vst [vmem:[%s178 + $0x2f0] sm:%s170] %v555
                %v557 = vld [vmem:[%s177 + $0x8dc] sm:%s170]
                %558 = vst [vmem:[%s178 + $0x2f4] sm:%s170] %v557
                %v559 = vld [vmem:[%s177 + $0x8e8] sm:%s170]
                %560 = vst [vmem:[%s178 + $0x2f8] sm:%s170] %v559
                %v561 = vld [vmem:[%s177 + $0x8f4] sm:%s170]
                %562 = vst [vmem:[%s178 + $0x2fc] sm:%s170] %v561
                %v563 = vld [vmem:[%s177 + $0x900] sm:%s170]
                %564 = vst [vmem:[%s178 + $0x300] sm:%s170] %v563
                %v565 = vld [vmem:[%s177 + $0x90c] sm:%s170]
                %566 = vst [vmem:[%s178 + $0x304] sm:%s170] %v565
                %v567 = vld [vmem:[%s177 + $0x918] sm:%s170]
                %568 = vst [vmem:[%s178 + $0x308] sm:%s170] %v567
                %v569 = vld [vmem:[%s177 + $0x924] sm:%s170]
                %570 = vst [vmem:[%s178 + $0x30c] sm:%s170] %v569
                %v571 = vld [vmem:[%s177 + $0x930] sm:%s170]
                %572 = vst [vmem:[%s178 + $0x310] sm:%s170] %v571
                %v573 = vld [vmem:[%s177 + $0x93c] sm:%s170]
                %574 = vst [vmem:[%s178 + $0x314] sm:%s170] %v573
                %v575 = vld [vmem:[%s177 + $0x948] sm:%s170]
                %576 = vst [vmem:[%s178 + $0x318] sm:%s170] %v575
                %v577 = vld [vmem:[%s177 + $0x954] sm:%s170]
                %578 = vst [vmem:[%s178 + $0x31c] sm:%s170] %v577
                %v579 = vld [vmem:[%s177 + $0x960] sm:%s170]
                %580 = vst [vmem:[%s178 + $0x320] sm:%s170] %v579
                %v581 = vld [vmem:[%s177 + $0x96c] sm:%s170]
                %582 = vst [vmem:[%s178 + $0x324] sm:%s170] %v581
                %v583 = vld [vmem:[%s177 + $0x978] sm:%s170]
                %584 = vst [vmem:[%s178 + $0x328] sm:%s170] %v583
                %v585 = vld [vmem:[%s177 + $0x984] sm:%s170]
                %586 = vst [vmem:[%s178 + $0x32c] sm:%s170] %v585
                %v587 = vld [vmem:[%s177 + $0x990] sm:%s170]
                %588 = vst [vmem:[%s178 + $0x330] sm:%s170] %v587
                %v589 = vld [vmem:[%s177 + $0x99c] sm:%s170]
                %590 = vst [vmem:[%s178 + $0x334] sm:%s170] %v589
                %v591 = vld [vmem:[%s177 + $0x9a8] sm:%s170]
                %592 = vst [vmem:[%s178 + $0x338] sm:%s170] %v591
                %v593 = vld [vmem:[%s177 + $0x9b4] sm:%s170]
                %594 = vst [vmem:[%s178 + $0x33c] sm:%s170] %v593
                %v595 = vld [vmem:[%s177 + $0x9c0] sm:%s170]
                %596 = vst [vmem:[%s178 + $0x340] sm:%s170] %v595
                %v597 = vld [vmem:[%s177 + $0x9cc] sm:%s170]
                %598 = vst [vmem:[%s178 + $0x344] sm:%s170] %v597
                %v599 = vld [vmem:[%s177 + $0x9d8] sm:%s170]
                %600 = vst [vmem:[%s178 + $0x348] sm:%s170] %v599
                %v601 = vld [vmem:[%s177 + $0x9e4] sm:%s170]
                %602 = vst [vmem:[%s178 + $0x34c] sm:%s170] %v601
                %v603 = vld [vmem:[%s177 + $0x9f0] sm:%s170]
                %604 = vst [vmem:[%s178 + $0x350] sm:%s170] %v603
                %v605 = vld [vmem:[%s177 + $0x9fc] sm:%s170]
                %606 = vst [vmem:[%s178 + $0x354] sm:%s170] %v605
                %v607 = vld [vmem:[%s177 + $0xa08] sm:%s170]
                %608 = vst [vmem:[%s178 + $0x358] sm:%s170] %v607
                %v609 = vld [vmem:[%s177 + $0xa14] sm:%s170]
                %610 = vst [vmem:[%s178 + $0x35c] sm:%s170] %v609
              $region41: #{early_conv_vit_forward.9} parent=35 // loop_footer
                %s176 = sadd.s32 1, %s172
              $region42: #{early_conv_vit_forward.9} parent=35 // loop_footer_branch
                %171 = sbr.rel target = $region38
              $region43: #{early_conv_vit_forward.9} parent=35 // loop_exit
                _
            $region36: #{early_conv_vit_forward.9} parent=27 // pred_fallthru
              _
          $region28: #{early_conv_vit_forward.9} parent=23 // pred_fallthru
            _
          %1063 = vnop
        $region24: #{early_conv_vit_forward.9} parent=19 // pred_fallthru
          _
        // Predicated region
        $region62: #{early_conv_vit_forward.9} parent=19 // pred_check
          %p1064 = pneg %p93
        $region63: #{early_conv_vit_forward.9} parent=19 // pred_check_branch
          %1066 = sbr.rel (%p1064) target = $region65
        $region64: #{early_conv_vit_forward.9} parent=19 // pred_region
          %p1067 = scmp.lt.s32.totalorder %s17, 2
          %s1068 = scalar_select %p1067, %s17, 2
          %s1069 = scalar_lea.vmem %s2, %s1068
        $region65: #{early_conv_vit_forward.9} parent=19 // pred_fallthru
          _
      $region20: #{early_conv_vit_forward.9} parent=5 // pred_fallthru
        _
      %p1070 = scmp.le.s32.totalorder 1, %s9
      %p1071 = scmp.lt.s32.totalorder %s9, 4
      %p1072 = pnand %p1070, %p1071
      %p1073 = pneg %p1072
      // Predicated region
      $region66: #{early_conv_vit_forward.9} parent=5 // pred_check
        _
      $region67: #{early_conv_vit_forward.9} parent=5 // pred_check_branch
        %1075 = sbr.rel (%p1072) target = $region69
      $region68: #{early_conv_vit_forward.9} parent=5 // pred_region
        %s1076 = ssub.s32 %s9, 1
        %s1077 = sand.u32 %s60, 1
        %s1078 = sand.u32 %s60, 1
        %s1079 = smul.addr %s1078, 864
        %s1080 = scalar_lea.vmem [#allocation2], %s1079
        // Predicated region
        $region70: #{early_conv_vit_forward.9} parent=68 // pred_check
          %p1081 = pneg %p73
        $region71: #{early_conv_vit_forward.9} parent=68 // pred_check_branch
          %1083 = sbr.rel (%p1081) target = $region73
        $region72: #{early_conv_vit_forward.9} parent=68 // pred_region
          _
        $region73: #{early_conv_vit_forward.9} parent=68 // pred_fallthru
          _
        %p1084 = scmp.lt.s32.totalorder %s18, 0
        %s1085 = scalar_select %p1084, %s18, 0
        %s1086 = smul.addr %s1085, 14
        %s1087 = smul.addr %s1086, 4
        %s1088 = scalar_lea.vmem %s0, %s1087
        %p1089 = pneg %p47
        %p1090 = pneg %p44
        %s1091 = sand.u32 %s60, 1
        %s1092 = sand.u32 %s60, 1
        %s1093 = smul.addr %s1092, 864
        %s1094 = scalar_lea.vmem [#allocation2], %s1093
        %p1095 = pneg %p73
        %p1096 = pneg %p70
        %p1097 = scmp.lt.s32.totalorder %s19, 2
        %s1098 = scalar_select %p1097, %s19, 2
        %s1099 = scalar_lea.vmem %s2, %s1098
        %p1100 = pneg %p99
        %p1101 = pneg %p96
        %p1102 = pneg %p127
        %p1103 = pneg %p124
        %p1104 = scmp.lt.s32.totalorder %s18, 0
        %s1105 = scalar_select %p1104, %s18, 0
        %p1106 = scmp.lt.s32.totalorder %s19, 2
        %s1107 = scalar_select %p1106, %s19, 2
        %s1108 = smul.addr %s1105, 3
        %s1109 = sadd.s32 %s1107, %s1108
        %s1110 = smul.addr %s1109, 4
        %s1111 = scalar_lea.vmem %s3, %s1110
        %p1112 = scmp.lt.s32.totalorder %s18, 0
        %s1113 = scalar_select %p1112, %s18, 0
        %s1114 = smul.addr %s1113, 14
        %s1115 = smul.addr %s1114, 4
        %s1116 = scalar_lea.vmem %s0, %s1115
        %p1117 = scmp.lt.s32.totalorder %s19, 2
        %s1118 = scalar_select %p1117, %s19, 2
        %s1119 = scalar_lea.vmem %s2, %s1118
        %p1120 = scmp.lt.s32.totalorder %s18, 0
        %s1121 = scalar_select %p1120, %s18, 0
        %p1122 = scmp.lt.s32.totalorder %s19, 2
        %s1123 = scalar_select %p1122, %s19, 2
        %s1124 = smul.addr %s1121, 3
        %s1125 = sadd.s32 %s1123, %s1124
        %s1126 = smul.addr %s1125, 4
        %s1127 = scalar_lea.vmem %s3, %s1126
        %v1129 = vld [vmem:[%s1116] sm:$0xff]
        %v1130 = vld [vmem:[%s1116 + $0x8] sm:$0xff]
        %v1131 = vld [vmem:[%s1116 + $0x10] sm:$0xff]
        %v1132 = vld [vmem:[%s1116 + $0x18] sm:$0xff]
        %v1133 = vld [vmem:[%s1116 + $0x20] sm:$0xff]
        %v1134 = vld [vmem:[%s1116 + $0x28] sm:$0xff]
        %v1135 = vld [vmem:[%s1116 + $0x30] sm:$0xff]
        %v1136 = vld [vmem:[%s1080] sm:$0xf]
        %v1137 = vld [vmem:[%s1080 + $0x4] sm:$0xf]
        %v1138 = vld [vmem:[%s1080 + $0x8] sm:$0xf]
        %v1139 = vld [vmem:[%s1080 + $0xc] sm:$0xf]
        %v1140 = vld [vmem:[%s1080 + $0x10] sm:$0xf]
        %v1141 = vld [vmem:[%s1080 + $0x14] sm:$0xf]
        %v1142 = vld [vmem:[%s1080 + $0x18] sm:$0xf]
        %v1143 = vld [vmem:[%s1080 + $0x1c] sm:$0xf]
        %v1144 = vld [vmem:[%s1080 + $0x20] sm:$0xf]
        %v1145 = vld [vmem:[%s1080 + $0x24] sm:$0xf]
        %v1146 = vld [vmem:[%s1080 + $0x28] sm:$0xf]
        %v1147 = vld [vmem:[%s1080 + $0x2c] sm:$0xf]
        %v1148 = vld [vmem:[%s1080 + $0x30] sm:$0xf]
        %v1149 = vld [vmem:[%s1080 + $0x34] sm:$0xf]
        %v1150 = vld [vmem:[%s1080 + $0x38] sm:$0xf]
        %v1151 = vld [vmem:[%s1080 + $0x3c] sm:$0xf]
        %v1152 = vld [vmem:[%s1080 + $0x40] sm:$0xf]
        %v1153 = vld [vmem:[%s1080 + $0x44] sm:$0xf]
        %v1154 = vld [vmem:[%s1080 + $0x48] sm:$0xf]
        %v1155 = vld [vmem:[%s1080 + $0x4c] sm:$0xf]
        %v1156 = vld [vmem:[%s1080 + $0x50] sm:$0xf]
        %v1157 = vld [vmem:[%s1080 + $0x54] sm:$0xf]
        %v1158 = vld [vmem:[%s1080 + $0x58] sm:$0xf]
        %v1159 = vld [vmem:[%s1080 + $0x5c] sm:$0xf]
        %v1160 = vld [vmem:[%s1080 + $0x60] sm:$0xf]
        %v1161 = vld [vmem:[%s1080 + $0x64] sm:$0xf]
        %v1162 = vld [vmem:[%s1080 + $0x68] sm:$0xf]
        %v1163 = vld [vmem:[%s1080 + $0x6c] sm:$0xf]
        %v1164 = vld [vmem:[%s1080 + $0x70] sm:$0xf]
        %v1165 = vld [vmem:[%s1080 + $0x74] sm:$0xf]
        %v1166 = vld [vmem:[%s1080 + $0x78] sm:$0xf]
        %v1167 = vld [vmem:[%s1080 + $0x7c] sm:$0xf]
        %v1168 = vld [vmem:[%s1080 + $0x80] sm:$0xf]
        %v1169 = vld [vmem:[%s1080 + $0x84] sm:$0xf]
        %v1170 = vld [vmem:[%s1080 + $0x88] sm:$0xf]
        %v1171 = vld [vmem:[%s1080 + $0x8c] sm:$0xf]
        %v1172 = vld [vmem:[%s1080 + $0x90] sm:$0xf]
        %v1173 = vld [vmem:[%s1080 + $0x94] sm:$0xf]
        %v1174 = vld [vmem:[%s1080 + $0x98] sm:$0xf]
        %v1175 = vld [vmem:[%s1080 + $0x9c] sm:$0xf]
        %v1176 = vld [vmem:[%s1080 + $0xa0] sm:$0xf]
        %v1177 = vld [vmem:[%s1080 + $0xa4] sm:$0xf]
        %v1178 = vld [vmem:[%s1080 + $0xa8] sm:$0xf]
        %v1179 = vld [vmem:[%s1080 + $0xac] sm:$0xf]
        %v1180 = vld [vmem:[%s1080 + $0xb0] sm:$0xf]
        %v1181 = vld [vmem:[%s1080 + $0xb4] sm:$0xf]
        %v1182 = vld [vmem:[%s1080 + $0xb8] sm:$0xf]
        %v1183 = vld [vmem:[%s1080 + $0xbc] sm:$0xf]
        %v1184 = vld [vmem:[%s1080 + $0xc0] sm:$0xf]
        %v1185 = vld [vmem:[%s1080 + $0xc4] sm:$0xf]
        %v1186 = vld [vmem:[%s1080 + $0xc8] sm:$0xf]
        %v1187 = vld [vmem:[%s1080 + $0xcc] sm:$0xf]
        %v1188 = vld [vmem:[%s1080 + $0xd0] sm:$0xf]
        %v1189 = vld [vmem:[%s1080 + $0xd4] sm:$0xf]
        %v1190 = vld [vmem:[%s1080 + $0xd8] sm:$0xf]
        %v1191 = vld [vmem:[%s1080 + $0xdc] sm:$0xf]
        %v1192 = vld [vmem:[%s1080 + $0xe0] sm:$0xf]
        %v1193 = vld [vmem:[%s1080 + $0xe4] sm:$0xf]
        %v1194 = vld [vmem:[%s1080 + $0xe8] sm:$0xf]
        %v1195 = vld [vmem:[%s1080 + $0xec] sm:$0xf]
        %v1196 = vld [vmem:[%s1080 + $0xf0] sm:$0xf]
        %v1197 = vld [vmem:[%s1080 + $0xf4] sm:$0xf]
        %v1198 = vld [vmem:[%s1080 + $0xf8] sm:$0xf]
        %v1199 = vld [vmem:[%s1080 + $0xfc] sm:$0xf]
        %v1200 = vld [vmem:[%s1080 + $0x100] sm:$0xf]
        %v1201 = vld [vmem:[%s1080 + $0x104] sm:$0xf]
        %v1202 = vld [vmem:[%s1080 + $0x108] sm:$0xf]
        %v1203 = vld [vmem:[%s1080 + $0x10c] sm:$0xf]
        %v1204 = vld [vmem:[%s1080 + $0x110] sm:$0xf]
        %v1205 = vld [vmem:[%s1080 + $0x114] sm:$0xf]
        %v1206 = vld [vmem:[%s1080 + $0x118] sm:$0xf]
        %v1207 = vld [vmem:[%s1080 + $0x11c] sm:$0xf]
        %v1208 = vld [vmem:[%s1080 + $0x120] sm:$0xf]
        %v1209 = vld [vmem:[%s1080 + $0x124] sm:$0xf]
        %v1210 = vld [vmem:[%s1080 + $0x128] sm:$0xf]
        %v1211 = vld [vmem:[%s1080 + $0x12c] sm:$0xf]
        %v1212 = vld [vmem:[%s1080 + $0x130] sm:$0xf]
        %v1213 = vld [vmem:[%s1080 + $0x134] sm:$0xf]
        %v1214 = vld [vmem:[%s1080 + $0x138] sm:$0xf]
        %v1215 = vld [vmem:[%s1080 + $0x13c] sm:$0xf]
        %v1216 = vld [vmem:[%s1080 + $0x140] sm:$0xf]
        %v1217 = vld [vmem:[%s1080 + $0x144] sm:$0xf]
        %v1218 = vld [vmem:[%s1080 + $0x148] sm:$0xf]
        %v1219 = vld [vmem:[%s1080 + $0x14c] sm:$0xf]
        %v1220 = vld [vmem:[%s1080 + $0x150] sm:$0xf]
        %v1221 = vld [vmem:[%s1080 + $0x154] sm:$0xf]
        %v1222 = vld [vmem:[%s1080 + $0x158] sm:$0xf]
        %v1223 = vld [vmem:[%s1080 + $0x15c] sm:$0xf]
        %v1224 = vld [vmem:[%s1080 + $0x160] sm:$0xf]
        %v1225 = vld [vmem:[%s1080 + $0x164] sm:$0xf]
        %v1226 = vld [vmem:[%s1080 + $0x168] sm:$0xf]
        %v1227 = vld [vmem:[%s1080 + $0x16c] sm:$0xf]
        %v1228 = vld [vmem:[%s1080 + $0x170] sm:$0xf]
        %v1229 = vld [vmem:[%s1080 + $0x174] sm:$0xf]
        %v1230 = vld [vmem:[%s1080 + $0x178] sm:$0xf]
        %v1231 = vld [vmem:[%s1080 + $0x17c] sm:$0xf]
        %v1232 = vld [vmem:[%s1080 + $0x180] sm:$0xf]
        %v1233 = vld [vmem:[%s1080 + $0x184] sm:$0xf]
        %v1234 = vld [vmem:[%s1080 + $0x188] sm:$0xf]
        %v1235 = vld [vmem:[%s1080 + $0x18c] sm:$0xf]
        %v1236 = vld [vmem:[%s1080 + $0x190] sm:$0xf]
        %v1237 = vld [vmem:[%s1080 + $0x194] sm:$0xf]
        %v1238 = vld [vmem:[%s1080 + $0x198] sm:$0xf]
        %v1239 = vld [vmem:[%s1080 + $0x19c] sm:$0xf]
        %v1240 = vld [vmem:[%s1080 + $0x1a0] sm:$0xf]
        %v1241 = vld [vmem:[%s1080 + $0x1a4] sm:$0xf]
        %v1242 = vld [vmem:[%s1080 + $0x1a8] sm:$0xf]
        %v1243 = vld [vmem:[%s1080 + $0x1ac] sm:$0xf]
        %v1244 = vld [vmem:[%s1080 + $0x1b0] sm:$0xf]
        %v1245 = vld [vmem:[%s1080 + $0x1b4] sm:$0xf]
        %v1246 = vld [vmem:[%s1080 + $0x1b8] sm:$0xf]
        %v1247 = vld [vmem:[%s1080 + $0x1bc] sm:$0xf]
        %v1248 = vld [vmem:[%s1080 + $0x1c0] sm:$0xf]
        %v1249 = vld [vmem:[%s1080 + $0x1c4] sm:$0xf]
        %v1250 = vld [vmem:[%s1080 + $0x1c8] sm:$0xf]
        %v1251 = vld [vmem:[%s1080 + $0x1cc] sm:$0xf]
        %v1252 = vld [vmem:[%s1080 + $0x1d0] sm:$0xf]
        %v1253 = vld [vmem:[%s1080 + $0x1d4] sm:$0xf]
        %v1254 = vld [vmem:[%s1080 + $0x1d8] sm:$0xf]
        %v1255 = vld [vmem:[%s1080 + $0x1dc] sm:$0xf]
        %v1256 = vld [vmem:[%s1080 + $0x1e0] sm:$0xf]
        %v1257 = vld [vmem:[%s1080 + $0x1e4] sm:$0xf]
        %v1258 = vld [vmem:[%s1080 + $0x1e8] sm:$0xf]
        %v1259 = vld [vmem:[%s1080 + $0x1ec] sm:$0xf]
        %v1260 = vld [vmem:[%s1080 + $0x1f0] sm:$0xf]
        %v1261 = vld [vmem:[%s1080 + $0x1f4] sm:$0xf]
        %v1262 = vld [vmem:[%s1080 + $0x1f8] sm:$0xf]
        %v1263 = vld [vmem:[%s1080 + $0x1fc] sm:$0xf]
        %v1264 = vld [vmem:[%s1080 + $0x200] sm:$0xf]
        %v1265 = vld [vmem:[%s1080 + $0x204] sm:$0xf]
        %v1266 = vld [vmem:[%s1080 + $0x208] sm:$0xf]
        %v1267 = vld [vmem:[%s1080 + $0x20c] sm:$0xf]
        %v1268 = vld [vmem:[%s1080 + $0x210] sm:$0xf]
        %v1269 = vld [vmem:[%s1080 + $0x214] sm:$0xf]
        %v1270 = vld [vmem:[%s1080 + $0x218] sm:$0xf]
        %v1271 = vld [vmem:[%s1080 + $0x21c] sm:$0xf]
        %v1272 = vld [vmem:[%s1080 + $0x220] sm:$0xf]
        %v1273 = vld [vmem:[%s1080 + $0x224] sm:$0xf]
        %v1274 = vld [vmem:[%s1080 + $0x228] sm:$0xf]
        %v1275 = vld [vmem:[%s1080 + $0x22c] sm:$0xf]
        %v1276 = vld [vmem:[%s1080 + $0x230] sm:$0xf]
        %v1277 = vld [vmem:[%s1080 + $0x234] sm:$0xf]
        %v1278 = vld [vmem:[%s1080 + $0x238] sm:$0xf]
        %v1279 = vld [vmem:[%s1080 + $0x23c] sm:$0xf]
        %v1280 = vld [vmem:[%s1080 + $0x240] sm:$0xf]
        %v1281 = vld [vmem:[%s1080 + $0x244] sm:$0xf]
        %v1282 = vld [vmem:[%s1080 + $0x248] sm:$0xf]
        %v1283 = vld [vmem:[%s1080 + $0x24c] sm:$0xf]
        %v1284 = vld [vmem:[%s1080 + $0x250] sm:$0xf]
        %v1285 = vld [vmem:[%s1080 + $0x254] sm:$0xf]
        %v1286 = vld [vmem:[%s1080 + $0x258] sm:$0xf]
        %v1287 = vld [vmem:[%s1080 + $0x25c] sm:$0xf]
        %v1288 = vld [vmem:[%s1080 + $0x260] sm:$0xf]
        %v1289 = vld [vmem:[%s1080 + $0x264] sm:$0xf]
        %v1290 = vld [vmem:[%s1080 + $0x268] sm:$0xf]
        %v1291 = vld [vmem:[%s1080 + $0x26c] sm:$0xf]
        %v1292 = vld [vmem:[%s1080 + $0x270] sm:$0xf]
        %v1293 = vld [vmem:[%s1080 + $0x274] sm:$0xf]
        %v1294 = vld [vmem:[%s1080 + $0x278] sm:$0xf]
        %v1295 = vld [vmem:[%s1080 + $0x27c] sm:$0xf]
        %v1296 = vld [vmem:[%s1080 + $0x280] sm:$0xf]
        %v1297 = vld [vmem:[%s1080 + $0x284] sm:$0xf]
        %v1298 = vld [vmem:[%s1080 + $0x288] sm:$0xf]
        %v1299 = vld [vmem:[%s1080 + $0x28c] sm:$0xf]
        %v1300 = vld [vmem:[%s1080 + $0x290] sm:$0xf]
        %v1301 = vld [vmem:[%s1080 + $0x294] sm:$0xf]
        %v1302 = vld [vmem:[%s1080 + $0x298] sm:$0xf]
        %v1303 = vld [vmem:[%s1080 + $0x29c] sm:$0xf]
        %v1304 = vld [vmem:[%s1080 + $0x2a0] sm:$0xf]
        %v1305 = vld [vmem:[%s1080 + $0x2a4] sm:$0xf]
        %v1306 = vld [vmem:[%s1080 + $0x2a8] sm:$0xf]
        %v1307 = vld [vmem:[%s1080 + $0x2ac] sm:$0xf]
        %v1308 = vld [vmem:[%s1080 + $0x2b0] sm:$0xf]
        %v1309 = vld [vmem:[%s1080 + $0x2b4] sm:$0xf]
        %v1310 = vld [vmem:[%s1080 + $0x2b8] sm:$0xf]
        %v1311 = vld [vmem:[%s1080 + $0x2bc] sm:$0xf]
        %v1312 = vld [vmem:[%s1080 + $0x2c0] sm:$0xf]
        %v1313 = vld [vmem:[%s1080 + $0x2c4] sm:$0xf]
        %v1314 = vld [vmem:[%s1080 + $0x2c8] sm:$0xf]
        %v1315 = vld [vmem:[%s1080 + $0x2cc] sm:$0xf]
        %v1316 = vld [vmem:[%s1080 + $0x2d0] sm:$0xf]
        %v1317 = vld [vmem:[%s1080 + $0x2d4] sm:$0xf]
        %v1318 = vld [vmem:[%s1080 + $0x2d8] sm:$0xf]
        %v1319 = vld [vmem:[%s1080 + $0x2dc] sm:$0xf]
        %v1320 = vld [vmem:[%s1080 + $0x2e0] sm:$0xf]
        %v1321 = vld [vmem:[%s1080 + $0x2e4] sm:$0xf]
        %v1322 = vld [vmem:[%s1080 + $0x2e8] sm:$0xf]
        %v1323 = vld [vmem:[%s1080 + $0x2ec] sm:$0xf]
        %v1324 = vld [vmem:[%s1080 + $0x2f0] sm:$0xf]
        %v1325 = vld [vmem:[%s1080 + $0x2f4] sm:$0xf]
        %v1326 = vld [vmem:[%s1080 + $0x2f8] sm:$0xf]
        %v1327 = vld [vmem:[%s1080 + $0x2fc] sm:$0xf]
        %v1328 = vld [vmem:[%s1080 + $0x300] sm:$0xf]
        %v1329 = vld [vmem:[%s1080 + $0x304] sm:$0xf]
        %v1330 = vld [vmem:[%s1080 + $0x308] sm:$0xf]
        %v1331 = vld [vmem:[%s1080 + $0x30c] sm:$0xf]
        %v1332 = vld [vmem:[%s1080 + $0x310] sm:$0xf]
        %v1333 = vld [vmem:[%s1080 + $0x314] sm:$0xf]
        %v1334 = vld [vmem:[%s1080 + $0x318] sm:$0xf]
        %v1335 = vld [vmem:[%s1080 + $0x31c] sm:$0xf]
        %v1336 = vld [vmem:[%s1080 + $0x320] sm:$0xf]
        %v1337 = vld [vmem:[%s1080 + $0x324] sm:$0xf]
        %v1338 = vld [vmem:[%s1080 + $0x328] sm:$0xf]
        %v1339 = vld [vmem:[%s1080 + $0x32c] sm:$0xf]
        %v1340 = vld [vmem:[%s1080 + $0x330] sm:$0xf]
        %v1341 = vld [vmem:[%s1080 + $0x334] sm:$0xf]
        %v1342 = vld [vmem:[%s1080 + $0x338] sm:$0xf]
        %v1343 = vld [vmem:[%s1080 + $0x33c] sm:$0xf]
        %v1344 = vld [vmem:[%s1080 + $0x340] sm:$0xf]
        %v1345 = vld [vmem:[%s1080 + $0x344] sm:$0xf]
        %v1346 = vld [vmem:[%s1080 + $0x348] sm:$0xf]
        %v1347 = vld [vmem:[%s1080 + $0x34c] sm:$0xf]
        %v1348 = vld [vmem:[%s1080 + $0x350] sm:$0xf]
        %v1349 = vld [vmem:[%s1080 + $0x354] sm:$0xf]
        %v1350 = vld [vmem:[%s1080 + $0x358] sm:$0xf]
        %v1351 = vld [vmem:[%s1080 + $0x35c] sm:$0xf]
        %v1352 = vld [vmem:[%s1119] sm:$0x1]
        %v1354 = vperm.slane %v1352, 0
        %v1363 = vunpack.c.l.b16 %v1129
        %v1364 = vunpack.c.h.b16 %v1129
        %v1365 = vunpack.c.l.b16 %v1130
        %v1366 = vunpack.c.h.b16 %v1130
        %v1367 = vunpack.c.l.b16 %v1131
        %v1368 = vunpack.c.h.b16 %v1131
        %v1369 = vunpack.c.l.b16 %v1132
        %v1370 = vunpack.c.h.b16 %v1132
        %v1371 = vunpack.c.l.b16 %v1133
        %v1372 = vunpack.c.h.b16 %v1133
        %v1373 = vunpack.c.l.b16 %v1134
        %v1374 = vunpack.c.h.b16 %v1134
        %v1375 = vunpack.c.l.b16 %v1135
        %v1376 = vunpack.c.h.b16 %v1135
        %v1377 = vpack.c.b16 %v1363, %v1363
        %v1378 = vpack.c.b16 %v1364, %v1364
        %v1379 = vpack.c.b16 %v1365, %v1365
        %v1380 = vpack.c.b16 %v1366, %v1366
        %v1381 = vpack.c.b16 %v1367, %v1367
        %v1382 = vpack.c.b16 %v1368, %v1368
        %v1383 = vpack.c.b16 %v1369, %v1369
        %v1384 = vpack.c.b16 %v1370, %v1370
        %v1385 = vpack.c.b16 %v1371, %v1371
        %v1386 = vpack.c.b16 %v1372, %v1372
        %v1387 = vpack.c.b16 %v1373, %v1373
        %v1388 = vpack.c.b16 %v1374, %v1374
        %v1389 = vpack.c.b16 %v1375, %v1375
        %v1390 = vpack.c.b16 %v1376, %v1376
        %v1620 = vunpack.c.l.b16 %v1136
        %v1621 = vunpack.c.l.b16 %v1137
        %v1622 = vunpack.c.l.b16 %v1138
        %v1623 = vunpack.c.l.b16 %v1139
        %v1624 = vunpack.c.l.b16 %v1140
        %v1625 = vunpack.c.l.b16 %v1141
        %v1626 = vunpack.c.l.b16 %v1142
        %v1627 = vunpack.c.l.b16 %v1143
        %v1628 = vunpack.c.l.b16 %v1144
        %v1629 = vunpack.c.l.b16 %v1145
        %v1630 = vunpack.c.l.b16 %v1146
        %v1631 = vunpack.c.l.b16 %v1147
        %v1632 = vunpack.c.l.b16 %v1148
        %v1633 = vunpack.c.l.b16 %v1149
        %v1634 = vunpack.c.l.b16 %v1150
        %v1635 = vunpack.c.l.b16 %v1151
        %v1636 = vunpack.c.l.b16 %v1152
        %v1637 = vunpack.c.l.b16 %v1153
        %v1638 = vunpack.c.l.b16 %v1154
        %v1639 = vunpack.c.l.b16 %v1155
        %v1640 = vunpack.c.l.b16 %v1156
        %v1641 = vunpack.c.l.b16 %v1157
        %v1642 = vunpack.c.l.b16 %v1158
        %v1643 = vunpack.c.l.b16 %v1159
        %v1644 = vunpack.c.l.b16 %v1160
        %v1645 = vunpack.c.l.b16 %v1161
        %v1646 = vunpack.c.l.b16 %v1162
        %v1647 = vunpack.c.l.b16 %v1163
        %v1648 = vunpack.c.l.b16 %v1164
        %v1649 = vunpack.c.l.b16 %v1165
        %v1650 = vunpack.c.l.b16 %v1166
        %v1651 = vunpack.c.l.b16 %v1167
        %v1652 = vunpack.c.l.b16 %v1168
        %v1653 = vunpack.c.l.b16 %v1169
        %v1654 = vunpack.c.l.b16 %v1170
        %v1655 = vunpack.c.l.b16 %v1171
        %v1656 = vunpack.c.l.b16 %v1172
        %v1657 = vunpack.c.l.b16 %v1173
        %v1658 = vunpack.c.l.b16 %v1174
        %v1659 = vunpack.c.l.b16 %v1175
        %v1660 = vunpack.c.l.b16 %v1176
        %v1661 = vunpack.c.l.b16 %v1177
        %v1662 = vunpack.c.l.b16 %v1178
        %v1663 = vunpack.c.l.b16 %v1179
        %v1664 = vunpack.c.l.b16 %v1180
        %v1665 = vunpack.c.l.b16 %v1181
        %v1666 = vunpack.c.l.b16 %v1182
        %v1667 = vunpack.c.l.b16 %v1183
        %v1668 = vunpack.c.l.b16 %v1184
        %v1669 = vunpack.c.l.b16 %v1185
        %v1670 = vunpack.c.l.b16 %v1186
        %v1671 = vunpack.c.l.b16 %v1187
        %v1672 = vunpack.c.l.b16 %v1188
        %v1673 = vunpack.c.l.b16 %v1189
        %v1674 = vunpack.c.l.b16 %v1190
        %v1675 = vunpack.c.l.b16 %v1191
        %v1676 = vunpack.c.l.b16 %v1192
        %v1677 = vunpack.c.l.b16 %v1193
        %v1678 = vunpack.c.l.b16 %v1194
        %v1679 = vunpack.c.l.b16 %v1195
        %v1680 = vunpack.c.l.b16 %v1196
        %v1681 = vunpack.c.l.b16 %v1197
        %v1682 = vunpack.c.l.b16 %v1198
        %v1683 = vunpack.c.l.b16 %v1199
        %v1684 = vunpack.c.l.b16 %v1200
        %v1685 = vunpack.c.l.b16 %v1201
        %v1686 = vunpack.c.l.b16 %v1202
        %v1687 = vunpack.c.l.b16 %v1203
        %v1688 = vunpack.c.l.b16 %v1204
        %v1689 = vunpack.c.l.b16 %v1205
        %v1690 = vunpack.c.l.b16 %v1206
        %v1691 = vunpack.c.l.b16 %v1207
        %v1692 = vunpack.c.l.b16 %v1208
        %v1693 = vunpack.c.l.b16 %v1209
        %v1694 = vunpack.c.l.b16 %v1210
        %v1695 = vunpack.c.l.b16 %v1211
        %v1696 = vunpack.c.l.b16 %v1212
        %v1697 = vunpack.c.l.b16 %v1213
        %v1698 = vunpack.c.l.b16 %v1214
        %v1699 = vunpack.c.l.b16 %v1215
        %v1700 = vunpack.c.l.b16 %v1216
        %v1701 = vunpack.c.l.b16 %v1217
        %v1702 = vunpack.c.l.b16 %v1218
        %v1703 = vunpack.c.l.b16 %v1219
        %v1704 = vunpack.c.l.b16 %v1220
        %v1705 = vunpack.c.l.b16 %v1221
        %v1706 = vunpack.c.l.b16 %v1222
        %v1707 = vunpack.c.l.b16 %v1223
        %v1708 = vunpack.c.l.b16 %v1224
        %v1709 = vunpack.c.l.b16 %v1225
        %v1710 = vunpack.c.l.b16 %v1226
        %v1711 = vunpack.c.l.b16 %v1227
        %v1712 = vunpack.c.l.b16 %v1228
        %v1713 = vunpack.c.l.b16 %v1229
        %v1714 = vunpack.c.l.b16 %v1230
        %v1715 = vunpack.c.l.b16 %v1231
        %v1716 = vunpack.c.l.b16 %v1232
        %v1717 = vunpack.c.l.b16 %v1233
        %v1718 = vunpack.c.l.b16 %v1234
        %v1719 = vunpack.c.l.b16 %v1235
        %v1720 = vunpack.c.l.b16 %v1236
        %v1721 = vunpack.c.l.b16 %v1237
        %v1722 = vunpack.c.l.b16 %v1238
        %v1723 = vunpack.c.l.b16 %v1239
        %v1724 = vunpack.c.l.b16 %v1240
        %v1725 = vunpack.c.l.b16 %v1241
        %v1726 = vunpack.c.l.b16 %v1242
        %v1727 = vunpack.c.l.b16 %v1243
        %v1728 = vunpack.c.l.b16 %v1244
        %v1729 = vunpack.c.l.b16 %v1245
        %v1730 = vunpack.c.l.b16 %v1246
        %v1731 = vunpack.c.l.b16 %v1247
        %v1732 = vunpack.c.l.b16 %v1248
        %v1733 = vunpack.c.l.b16 %v1249
        %v1734 = vunpack.c.l.b16 %v1250
        %v1735 = vunpack.c.l.b16 %v1251
        %v1736 = vunpack.c.l.b16 %v1252
        %v1737 = vunpack.c.l.b16 %v1253
        %v1738 = vunpack.c.l.b16 %v1254
        %v1739 = vunpack.c.l.b16 %v1255
        %v1740 = vunpack.c.l.b16 %v1256
        %v1741 = vunpack.c.l.b16 %v1257
        %v1742 = vunpack.c.l.b16 %v1258
        %v1743 = vunpack.c.l.b16 %v1259
        %v1744 = vunpack.c.l.b16 %v1260
        %v1745 = vunpack.c.l.b16 %v1261
        %v1746 = vunpack.c.l.b16 %v1262
        %v1747 = vunpack.c.l.b16 %v1263
        %v1748 = vunpack.c.l.b16 %v1264
        %v1749 = vunpack.c.l.b16 %v1265
        %v1750 = vunpack.c.l.b16 %v1266
        %v1751 = vunpack.c.l.b16 %v1267
        %v1752 = vunpack.c.l.b16 %v1268
        %v1753 = vunpack.c.l.b16 %v1269
        %v1754 = vunpack.c.l.b16 %v1270
        %v1755 = vunpack.c.l.b16 %v1271
        %v1756 = vunpack.c.l.b16 %v1272
        %v1757 = vunpack.c.l.b16 %v1273
        %v1758 = vunpack.c.l.b16 %v1274
        %v1759 = vunpack.c.l.b16 %v1275
        %v1760 = vunpack.c.l.b16 %v1276
        %v1761 = vunpack.c.l.b16 %v1277
        %v1762 = vunpack.c.l.b16 %v1278
        %v1763 = vunpack.c.l.b16 %v1279
        %v1764 = vunpack.c.l.b16 %v1280
        %v1765 = vunpack.c.l.b16 %v1281
        %v1766 = vunpack.c.l.b16 %v1282
        %v1767 = vunpack.c.l.b16 %v1283
        %v1768 = vunpack.c.l.b16 %v1284
        %v1769 = vunpack.c.l.b16 %v1285
        %v1770 = vunpack.c.l.b16 %v1286
        %v1771 = vunpack.c.l.b16 %v1287
        %v1772 = vunpack.c.l.b16 %v1288
        %v1773 = vunpack.c.l.b16 %v1289
        %v1774 = vunpack.c.l.b16 %v1290
        %v1775 = vunpack.c.l.b16 %v1291
        %v1776 = vunpack.c.l.b16 %v1292
        %v1777 = vunpack.c.l.b16 %v1293
        %v1778 = vunpack.c.l.b16 %v1294
        %v1779 = vunpack.c.l.b16 %v1295
        %v1780 = vunpack.c.l.b16 %v1296
        %v1781 = vunpack.c.l.b16 %v1297
        %v1782 = vunpack.c.l.b16 %v1298
        %v1783 = vunpack.c.l.b16 %v1299
        %v1784 = vunpack.c.l.b16 %v1300
        %v1785 = vunpack.c.l.b16 %v1301
        %v1786 = vunpack.c.l.b16 %v1302
        %v1787 = vunpack.c.l.b16 %v1303
        %v1788 = vunpack.c.l.b16 %v1304
        %v1789 = vunpack.c.l.b16 %v1305
        %v1790 = vunpack.c.l.b16 %v1306
        %v1791 = vunpack.c.l.b16 %v1307
        %v1792 = vunpack.c.l.b16 %v1308
        %v1793 = vunpack.c.l.b16 %v1309
        %v1794 = vunpack.c.l.b16 %v1310
        %v1795 = vunpack.c.l.b16 %v1311
        %v1796 = vunpack.c.l.b16 %v1312
        %v1797 = vunpack.c.l.b16 %v1313
        %v1798 = vunpack.c.l.b16 %v1314
        %v1799 = vunpack.c.l.b16 %v1315
        %v1800 = vunpack.c.l.b16 %v1316
        %v1801 = vunpack.c.l.b16 %v1317
        %v1802 = vunpack.c.l.b16 %v1318
        %v1803 = vunpack.c.l.b16 %v1319
        %v1804 = vunpack.c.l.b16 %v1320
        %v1805 = vunpack.c.l.b16 %v1321
        %v1806 = vunpack.c.l.b16 %v1322
        %v1807 = vunpack.c.l.b16 %v1323
        %v1808 = vunpack.c.l.b16 %v1324
        %v1809 = vunpack.c.l.b16 %v1325
        %v1810 = vunpack.c.l.b16 %v1326
        %v1811 = vunpack.c.l.b16 %v1327
        %v1812 = vunpack.c.l.b16 %v1328
        %v1813 = vunpack.c.l.b16 %v1329
        %v1814 = vunpack.c.l.b16 %v1330
        %v1815 = vunpack.c.l.b16 %v1331
        %v1816 = vunpack.c.l.b16 %v1332
        %v1817 = vunpack.c.l.b16 %v1333
        %v1818 = vunpack.c.l.b16 %v1334
        %v1819 = vunpack.c.l.b16 %v1335
        %v1820 = vunpack.c.l.b16 %v1336
        %v1821 = vunpack.c.l.b16 %v1337
        %v1822 = vunpack.c.l.b16 %v1338
        %v1823 = vunpack.c.l.b16 %v1339
        %v1824 = vunpack.c.l.b16 %v1340
        %v1825 = vunpack.c.l.b16 %v1341
        %v1826 = vunpack.c.l.b16 %v1342
        %v1827 = vunpack.c.l.b16 %v1343
        %v1828 = vunpack.c.l.b16 %v1344
        %v1829 = vunpack.c.l.b16 %v1345
        %v1830 = vunpack.c.l.b16 %v1346
        %v1831 = vunpack.c.l.b16 %v1347
        %v1832 = vunpack.c.l.b16 %v1348
        %v1833 = vunpack.c.l.b16 %v1349
        %v1834 = vunpack.c.l.b16 %v1350
        %v1835 = vunpack.c.l.b16 %v1351
        %v1836 = vpack.c.b16 %v1621, %v1620
        %v1837 = vpack.c.b16 %v1623, %v1622
        %v1838 = vpack.c.b16 %v1625, %v1624
        %v1839 = vpack.c.b16 %v1627, %v1626
        %v1840 = vpack.c.b16 %v1629, %v1628
        %v1841 = vpack.c.b16 %v1631, %v1630
        %v1842 = vpack.c.b16 %v1633, %v1632
        %v1843 = vpack.c.b16 %v1635, %v1634
        %v1844 = vpack.c.b16 %v1637, %v1636
        %v1845 = vpack.c.b16 %v1639, %v1638
        %v1846 = vpack.c.b16 %v1641, %v1640
        %v1847 = vpack.c.b16 %v1643, %v1642
        %v1848 = vpack.c.b16 %v1645, %v1644
        %v1849 = vpack.c.b16 %v1647, %v1646
        %v1850 = vpack.c.b16 %v1649, %v1648
        %v1851 = vpack.c.b16 %v1651, %v1650
        %v1852 = vpack.c.b16 %v1653, %v1652
        %v1853 = vpack.c.b16 %v1655, %v1654
        %v1854 = vpack.c.b16 %v1657, %v1656
        %v1855 = vpack.c.b16 %v1659, %v1658
        %v1856 = vpack.c.b16 %v1661, %v1660
        %v1857 = vpack.c.b16 %v1663, %v1662
        %v1858 = vpack.c.b16 %v1665, %v1664
        %v1859 = vpack.c.b16 %v1667, %v1666
        %v1860 = vpack.c.b16 %v1669, %v1668
        %v1861 = vpack.c.b16 %v1671, %v1670
        %v1862 = vpack.c.b16 %v1673, %v1672
        %v1863 = vpack.c.b16 %v1675, %v1674
        %v1864 = vpack.c.b16 %v1677, %v1676
        %v1865 = vpack.c.b16 %v1679, %v1678
        %v1866 = vpack.c.b16 %v1681, %v1680
        %v1867 = vpack.c.b16 %v1683, %v1682
        %v1868 = vpack.c.b16 %v1685, %v1684
        %v1869 = vpack.c.b16 %v1687, %v1686
        %v1870 = vpack.c.b16 %v1689, %v1688
        %v1871 = vpack.c.b16 %v1691, %v1690
        %v1872 = vpack.c.b16 %v1693, %v1692
        %v1873 = vpack.c.b16 %v1695, %v1694
        %v1874 = vpack.c.b16 %v1697, %v1696
        %v1875 = vpack.c.b16 %v1699, %v1698
        %v1876 = vpack.c.b16 %v1701, %v1700
        %v1877 = vpack.c.b16 %v1703, %v1702
        %v1878 = vpack.c.b16 %v1705, %v1704
        %v1879 = vpack.c.b16 %v1707, %v1706
        %v1880 = vpack.c.b16 %v1709, %v1708
        %v1881 = vpack.c.b16 %v1711, %v1710
        %v1882 = vpack.c.b16 %v1713, %v1712
        %v1883 = vpack.c.b16 %v1715, %v1714
        %v1884 = vpack.c.b16 %v1717, %v1716
        %v1885 = vpack.c.b16 %v1719, %v1718
        %v1886 = vpack.c.b16 %v1721, %v1720
        %v1887 = vpack.c.b16 %v1723, %v1722
        %v1888 = vpack.c.b16 %v1725, %v1724
        %v1889 = vpack.c.b16 %v1727, %v1726
        %v1890 = vpack.c.b16 %v1729, %v1728
        %v1891 = vpack.c.b16 %v1731, %v1730
        %v1892 = vpack.c.b16 %v1733, %v1732
        %v1893 = vpack.c.b16 %v1735, %v1734
        %v1894 = vpack.c.b16 %v1737, %v1736
        %v1895 = vpack.c.b16 %v1739, %v1738
        %v1896 = vpack.c.b16 %v1741, %v1740
        %v1897 = vpack.c.b16 %v1743, %v1742
        %v1898 = vpack.c.b16 %v1745, %v1744
        %v1899 = vpack.c.b16 %v1747, %v1746
        %v1900 = vpack.c.b16 %v1749, %v1748
        %v1901 = vpack.c.b16 %v1751, %v1750
        %v1902 = vpack.c.b16 %v1753, %v1752
        %v1903 = vpack.c.b16 %v1755, %v1754
        %v1904 = vpack.c.b16 %v1757, %v1756
        %v1905 = vpack.c.b16 %v1759, %v1758
        %v1906 = vpack.c.b16 %v1761, %v1760
        %v1907 = vpack.c.b16 %v1763, %v1762
        %v1908 = vpack.c.b16 %v1765, %v1764
        %v1909 = vpack.c.b16 %v1767, %v1766
        %v1910 = vpack.c.b16 %v1769, %v1768
        %v1911 = vpack.c.b16 %v1771, %v1770
        %v1912 = vpack.c.b16 %v1773, %v1772
        %v1913 = vpack.c.b16 %v1775, %v1774
        %v1914 = vpack.c.b16 %v1777, %v1776
        %v1915 = vpack.c.b16 %v1779, %v1778
        %v1916 = vpack.c.b16 %v1781, %v1780
        %v1917 = vpack.c.b16 %v1783, %v1782
        %v1918 = vpack.c.b16 %v1785, %v1784
        %v1919 = vpack.c.b16 %v1787, %v1786
        %v1920 = vpack.c.b16 %v1789, %v1788
        %v1921 = vpack.c.b16 %v1791, %v1790
        %v1922 = vpack.c.b16 %v1793, %v1792
        %v1923 = vpack.c.b16 %v1795, %v1794
        %v1924 = vpack.c.b16 %v1797, %v1796
        %v1925 = vpack.c.b16 %v1799, %v1798
        %v1926 = vpack.c.b16 %v1801, %v1800
        %v1927 = vpack.c.b16 %v1803, %v1802
        %v1928 = vpack.c.b16 %v1805, %v1804
        %v1929 = vpack.c.b16 %v1807, %v1806
        %v1930 = vpack.c.b16 %v1809, %v1808
        %v1931 = vpack.c.b16 %v1811, %v1810
        %v1932 = vpack.c.b16 %v1813, %v1812
        %v1933 = vpack.c.b16 %v1815, %v1814
        %v1934 = vpack.c.b16 %v1817, %v1816
        %v1935 = vpack.c.b16 %v1819, %v1818
        %v1936 = vpack.c.b16 %v1821, %v1820
        %v1937 = vpack.c.b16 %v1823, %v1822
        %v1938 = vpack.c.b16 %v1825, %v1824
        %v1939 = vpack.c.b16 %v1827, %v1826
        %v1940 = vpack.c.b16 %v1829, %v1828
        %v1941 = vpack.c.b16 %v1831, %v1830
        %v1942 = vpack.c.b16 %v1833, %v1832
        %v1943 = vpack.c.b16 %v1835, %v1834
        %vm2052 = vcmask 523264
        %v2054 = vsel %vm2052, %v1390, 0
        %2056 = vmatpush.bf16.msra.mxu0 %v1843
        %2057 = vmatpush.bf16.msra.mxu0 %v1842
        %2058 = vmatpush.bf16.msra.mxu0 %v1841
        %2059 = vmatpush.bf16.msra.mxu0 %v1840
        %2060 = vmatpush.bf16.msra.mxu0 %v1839
        %2061 = vmatpush.bf16.msra.mxu0 %v1838
        %2062 = vmatpush.bf16.msra.mxu0 %v1837
        %2063 = vmatpush.bf16.msra.mxu0 %v1836
        %2064 = vmatmul.bf16.gmra.mxu0 %v1377
        %v2065 = vpop.f32.mrf.mxu0
        %v2066 = vadd.f32 %v1354, %v2065
        %v2067 = vpop.f32.mrf.mxu0
        %2068 = vdwg.mxu0
        %2069 = vmatpush.bf16.msra.mxu0 %v1851
        %2070 = vmatpush.bf16.msra.mxu0 %v1850
        %2071 = vmatpush.bf16.msra.mxu0 %v1849
        %2072 = vmatpush.bf16.msra.mxu0 %v1848
        %2073 = vmatpush.bf16.msra.mxu0 %v1847
        %2074 = vmatpush.bf16.msra.mxu0 %v1846
        %2075 = vmatpush.bf16.msra.mxu0 %v1845
        %2076 = vmatpush.bf16.msra.mxu0 %v1844
        %2077 = vmatmul.bf16.gmra.mxu0 %v1378
        %v2078 = vpop.f32.mrf.mxu0
        %v2079 = vadd.f32 %v2066, %v2078
        %v2080 = vpop.f32.mrf.mxu0
        %2081 = vdwg.mxu0
        %2082 = vmatpush.bf16.msra.mxu0 %v1859
        %2083 = vmatpush.bf16.msra.mxu0 %v1858
        %2084 = vmatpush.bf16.msra.mxu0 %v1857
        %2085 = vmatpush.bf16.msra.mxu0 %v1856
        %2086 = vmatpush.bf16.msra.mxu0 %v1855
        %2087 = vmatpush.bf16.msra.mxu0 %v1854
        %2088 = vmatpush.bf16.msra.mxu0 %v1853
        %2089 = vmatpush.bf16.msra.mxu0 %v1852
        %2090 = vmatmul.bf16.gmra.mxu0 %v1379
        %v2091 = vpop.f32.mrf.mxu0
        %v2092 = vadd.f32 %v2079, %v2091
        %v2093 = vpop.f32.mrf.mxu0
        %2094 = vdwg.mxu0
        %2095 = vmatpush.bf16.msra.mxu0 %v1867
        %2096 = vmatpush.bf16.msra.mxu0 %v1866
        %2097 = vmatpush.bf16.msra.mxu0 %v1865
        %2098 = vmatpush.bf16.msra.mxu0 %v1864
        %2099 = vmatpush.bf16.msra.mxu0 %v1863
        %2100 = vmatpush.bf16.msra.mxu0 %v1862
        %2101 = vmatpush.bf16.msra.mxu0 %v1861
        %2102 = vmatpush.bf16.msra.mxu0 %v1860
        %2103 = vmatmul.bf16.gmra.mxu0 %v1380
        %v2104 = vpop.f32.mrf.mxu0
        %v2105 = vadd.f32 %v2092, %v2104
        %v2106 = vpop.f32.mrf.mxu0
        %2107 = vdwg.mxu0
        %2108 = vmatpush.bf16.msra.mxu0 %v1875
        %2109 = vmatpush.bf16.msra.mxu0 %v1874
        %2110 = vmatpush.bf16.msra.mxu0 %v1873
        %2111 = vmatpush.bf16.msra.mxu0 %v1872
        %2112 = vmatpush.bf16.msra.mxu0 %v1871
        %2113 = vmatpush.bf16.msra.mxu0 %v1870
        %2114 = vmatpush.bf16.msra.mxu0 %v1869
        %2115 = vmatpush.bf16.msra.mxu0 %v1868
        %2116 = vmatmul.bf16.gmra.mxu0 %v1381
        %v2117 = vpop.f32.mrf.mxu0
        %v2118 = vadd.f32 %v2105, %v2117
        %v2119 = vpop.f32.mrf.mxu0
        %2120 = vdwg.mxu0
        %2121 = vmatpush.bf16.msra.mxu0 %v1883
        %2122 = vmatpush.bf16.msra.mxu0 %v1882
        %2123 = vmatpush.bf16.msra.mxu0 %v1881
        %2124 = vmatpush.bf16.msra.mxu0 %v1880
        %2125 = vmatpush.bf16.msra.mxu0 %v1879
        %2126 = vmatpush.bf16.msra.mxu0 %v1878
        %2127 = vmatpush.bf16.msra.mxu0 %v1877
        %2128 = vmatpush.bf16.msra.mxu0 %v1876
        %2129 = vmatmul.bf16.gmra.mxu0 %v1382
        %v2130 = vpop.f32.mrf.mxu0
        %v2131 = vadd.f32 %v2118, %v2130
        %v2132 = vpop.f32.mrf.mxu0
        %2133 = vdwg.mxu0
        %2134 = vmatpush.bf16.msra.mxu0 %v1891
        %2135 = vmatpush.bf16.msra.mxu0 %v1890
        %2136 = vmatpush.bf16.msra.mxu0 %v1889
        %2137 = vmatpush.bf16.msra.mxu0 %v1888
        %2138 = vmatpush.bf16.msra.mxu0 %v1887
        %2139 = vmatpush.bf16.msra.mxu0 %v1886
        %2140 = vmatpush.bf16.msra.mxu0 %v1885
        %2141 = vmatpush.bf16.msra.mxu0 %v1884
        %2142 = vmatmul.bf16.gmra.mxu0 %v1383
        %v2143 = vpop.f32.mrf.mxu0
        %v2144 = vadd.f32 %v2131, %v2143
        %v2145 = vpop.f32.mrf.mxu0
        %2146 = vdwg.mxu0
        %2147 = vmatpush.bf16.msra.mxu0 %v1899
        %2148 = vmatpush.bf16.msra.mxu0 %v1898
        %2149 = vmatpush.bf16.msra.mxu0 %v1897
        %2150 = vmatpush.bf16.msra.mxu0 %v1896
        %2151 = vmatpush.bf16.msra.mxu0 %v1895
        %2152 = vmatpush.bf16.msra.mxu0 %v1894
        %2153 = vmatpush.bf16.msra.mxu0 %v1893
        %2154 = vmatpush.bf16.msra.mxu0 %v1892
        %2155 = vmatmul.bf16.gmra.mxu0 %v1384
        %v2156 = vpop.f32.mrf.mxu0
        %v2157 = vadd.f32 %v2144, %v2156
        %v2158 = vpop.f32.mrf.mxu0
        %2159 = vdwg.mxu0
        %2160 = vmatpush.bf16.msra.mxu0 %v1907
        %2161 = vmatpush.bf16.msra.mxu0 %v1906
        %2162 = vmatpush.bf16.msra.mxu0 %v1905
        %2163 = vmatpush.bf16.msra.mxu0 %v1904
        %2164 = vmatpush.bf16.msra.mxu0 %v1903
        %2165 = vmatpush.bf16.msra.mxu0 %v1902
        %2166 = vmatpush.bf16.msra.mxu0 %v1901
        %2167 = vmatpush.bf16.msra.mxu0 %v1900
        %2168 = vmatmul.bf16.gmra.mxu0 %v1385
        %v2169 = vpop.f32.mrf.mxu0
        %v2170 = vadd.f32 %v2157, %v2169
        %v2171 = vpop.f32.mrf.mxu0
        %2172 = vdwg.mxu0
        %2173 = vmatpush.bf16.msra.mxu0 %v1915
        %2174 = vmatpush.bf16.msra.mxu0 %v1914
        %2175 = vmatpush.bf16.msra.mxu0 %v1913
        %2176 = vmatpush.bf16.msra.mxu0 %v1912
        %2177 = vmatpush.bf16.msra.mxu0 %v1911
        %2178 = vmatpush.bf16.msra.mxu0 %v1910
        %2179 = vmatpush.bf16.msra.mxu0 %v1909
        %2180 = vmatpush.bf16.msra.mxu0 %v1908
        %2181 = vmatmul.bf16.gmra.mxu0 %v1386
        %v2182 = vpop.f32.mrf.mxu0
        %v2183 = vadd.f32 %v2170, %v2182
        %v2184 = vpop.f32.mrf.mxu0
        %2185 = vdwg.mxu0
        %2186 = vmatpush.bf16.msra.mxu0 %v1923
        %2187 = vmatpush.bf16.msra.mxu0 %v1922
        %2188 = vmatpush.bf16.msra.mxu0 %v1921
        %2189 = vmatpush.bf16.msra.mxu0 %v1920
        %2190 = vmatpush.bf16.msra.mxu0 %v1919
        %2191 = vmatpush.bf16.msra.mxu0 %v1918
        %2192 = vmatpush.bf16.msra.mxu0 %v1917
        %2193 = vmatpush.bf16.msra.mxu0 %v1916
        %2194 = vmatmul.bf16.gmra.mxu0 %v1387
        %v2195 = vpop.f32.mrf.mxu0
        %v2196 = vadd.f32 %v2183, %v2195
        %v2197 = vpop.f32.mrf.mxu0
        %2198 = vdwg.mxu0
        %2199 = vmatpush.bf16.msra.mxu0 %v1931
        %2200 = vmatpush.bf16.msra.mxu0 %v1930
        %2201 = vmatpush.bf16.msra.mxu0 %v1929
        %2202 = vmatpush.bf16.msra.mxu0 %v1928
        %2203 = vmatpush.bf16.msra.mxu0 %v1927
        %2204 = vmatpush.bf16.msra.mxu0 %v1926
        %2205 = vmatpush.bf16.msra.mxu0 %v1925
        %2206 = vmatpush.bf16.msra.mxu0 %v1924
        %2207 = vmatmul.bf16.gmra.mxu0 %v1388
        %v2208 = vpop.f32.mrf.mxu0
        %v2209 = vadd.f32 %v2196, %v2208
        %v2210 = vpop.f32.mrf.mxu0
        %2211 = vdwg.mxu0
        %2212 = vmatpush.bf16.msra.mxu0 %v1939
        %2213 = vmatpush.bf16.msra.mxu0 %v1938
        %2214 = vmatpush.bf16.msra.mxu0 %v1937
        %2215 = vmatpush.bf16.msra.mxu0 %v1936
        %2216 = vmatpush.bf16.msra.mxu0 %v1935
        %2217 = vmatpush.bf16.msra.mxu0 %v1934
        %2218 = vmatpush.bf16.msra.mxu0 %v1933
        %2219 = vmatpush.bf16.msra.mxu0 %v1932
        %2220 = vmatmul.bf16.gmra.mxu0 %v1389
        %v2221 = vpop.f32.mrf.mxu0
        %v2222 = vadd.f32 %v2209, %v2221
        %v2223 = vpop.f32.mrf.mxu0
        %2224 = vdwg.mxu0
        %2225 = vmatpush.bf16.msra.mxu0 0
        %2226 = vmatpush.bf16.msra.mxu0 0
        %2227 = vmatpush.bf16.msra.mxu0 0
        %2228 = vmatpush.bf16.msra.mxu0 0
        %2229 = vmatpush.bf16.msra.mxu0 %v1943
        %2230 = vmatpush.bf16.msra.mxu0 %v1942
        %2231 = vmatpush.bf16.msra.mxu0 %v1941
        %2232 = vmatpush.bf16.msra.mxu0 %v1940
        %2233 = vmatmul.bf16.gmra.mxu0 %v2054
        %v2234 = vpop.f32.mrf.mxu0
        %v2235 = vadd.f32 %v2222, %v2234
        %v2236 = vpop.f32.mrf.mxu0
        %2237 = vdwg.mxu0
        %v2238 = vpack.c.bf16 %v2235, %v2235
        %2239 = vst [vmem:[%s1127] sm:$0xf] %v2238
        %p2240 = scmp.lt.s32.totalorder %s18, 0
        %s2241 = scalar_select %p2240, %s18, 0
        %p2242 = scmp.lt.s32.totalorder %s19, 2
        %s2243 = scalar_select %p2242, %s19, 2
        %s2244 = smul.addr %s2241, 3
        %s2245 = sadd.s32 %s2243, %s2244
        %s2246 = smul.addr %s2245, 4
        %s2247 = scalar_lea.vmem %s3, %s2246
        // Predicated region
        $region74: #{early_conv_vit_forward.9} parent=68 // pred_check
          %p2248 = pneg %p124
        $region75: #{early_conv_vit_forward.9} parent=68 // pred_check_branch
          %2250 = sbr.rel (%p2248) target = $region77
        $region76: #{early_conv_vit_forward.9} parent=68 // pred_region
          _
        $region77: #{early_conv_vit_forward.9} parent=68 // pred_fallthru
          _
      $region69: #{early_conv_vit_forward.9} parent=5 // pred_fallthru
        _
      %p2251 = scmp.le.s32.totalorder 2, %s9
      // Predicated region
      $region78: #{early_conv_vit_forward.9} parent=5 // pred_check
        %p2252 = pneg %p2251
      $region79: #{early_conv_vit_forward.9} parent=5 // pred_check_branch
        %2254 = sbr.rel (%p2252) target = $region81
      $region80: #{early_conv_vit_forward.9} parent=5 // pred_region
        %s2255 = ssub.s32 %s9, 2
        // Predicated region
        $region82: #{early_conv_vit_forward.9} parent=80 // pred_check
          %p2256 = pneg %p130
        $region83: #{early_conv_vit_forward.9} parent=80 // pred_check_branch
          %2258 = sbr.rel (%p2256) target = $region85
        $region84: #{early_conv_vit_forward.9} parent=80 // pred_region
          %p2259 = scmp.lt.s32.totalorder %s20, 0
          %s2260 = scalar_select %p2259, %s20, 0
          %p2261 = scmp.lt.s32.totalorder %s21, 2
          %s2262 = scalar_select %p2261, %s21, 2
          %s2263 = smul.addr %s2260, 3
          %s2264 = sadd.s32 %s2262, %s2263
          %s2265 = smul.addr %s2264, 4
          %s2266 = scalar_lea.vmem %s3, %s2265
        $region85: #{early_conv_vit_forward.9} parent=80 // pred_fallthru
          _
      $region81: #{early_conv_vit_forward.9} parent=5 // pred_fallthru
        _
    $region6: #{early_conv_vit_forward.9} parent=1 // loop_footer
      %s13 = sadd.s32 1, %s9
    $region7: #{early_conv_vit_forward.9} parent=1 // loop_footer_branch
      %8 = sbr.rel target = $region3
    $region8: #{early_conv_vit_forward.9} parent=1 // loop_exit
      _

// kernel: early_conv_vit_forward.11
$region0: #{early_conv_vit_forward.11}
  #allocation0 [shape = 'u32[]', space=smem, size = 0x4, offset = 0x4, fixed_abs, tag = 'smem constant byte address 0x4 - core index']
  #allocation1 [shape = 'u32[72,128]{1,0:T(1,128)}', space=vmem, size = 0x9000, scoped, tag = 'internal scratch']
  %s0 = inlined_call_operand.vmem [shape: f32[2,5,128], index: 0, kind: input, shape index: {}]
  %s1 = inlined_call_operand.vmem [shape: f32[2,1,128], index: 1, kind: input, shape index: {}]
  %s2 = inlined_call_operand.vmem [shape: f32[2,1,128], index: 2, kind: input, shape index: {}]
  %s3 = inlined_call_operand.vmem [shape: bf16[2,128,384], index: 3, kind: input, shape index: {}]
  %s4 = inlined_call_operand.vmem [shape: bf16[2,128,128], index: 4, kind: input, shape index: {}]
  %s5 = inlined_call_operand.vmem [shape: f32[2,1,128], index: 5, kind: input, shape index: {}]
  %s6 = inlined_call_operand.vmem [shape: f32[2,1,128], index: 6, kind: input, shape index: {}]
  %s7 = inlined_call_operand.vmem [shape: f32[2,1,128], index: 7, kind: input, shape index: {}]
  %s8 = inlined_call_operand.vmem [shape: bf16[2,128,256], index: 8, kind: input, shape index: {}]
  %s9 = inlined_call_operand.vmem [shape: f32[2,1,256], index: 9, kind: input, shape index: {}]
  %s10 = inlined_call_operand.vmem [shape: bf16[2,256,128], index: 10, kind: input, shape index: {}]
  %s11 = inlined_call_operand.vmem [shape: f32[2,1,128], index: 11, kind: input, shape index: {}]
  %s12 = inlined_call_operand.vmem [shape: f32[1,128], index: 12, kind: input, shape index: {}]
  %s13 = inlined_call_operand.vmem [shape: f32[1,128], index: 13, kind: input, shape index: {}]
  %s14 = inlined_call_operand.vmem [shape: bf16[128,10], index: 14, kind: input, shape index: {}]
  %s15 = inlined_call_operand.vmem [shape: f32[1,10], index: 15, kind: input, shape index: {}]
  %s16 = inlined_call_operand.hbm [shape: f32[2,1,10], index: 16, kind: output, shape index: {}]
  %s17 = sld [smem:[#allocation0]]
  $region97: #{early_conv_vit_forward.11} parent=0
    _
  %s19 = ssub.s32 1, %s17
  %s20 = scalar_select 0, %s19, %s17
  $region1: #{early_conv_vit_forward.11} parent=0
    #allocation2 [shape = 'u8[1024]{0}', space=vmem, size = 0x400, scoped, tag = 'output window, operand 0']
    #allocation3 [shape = 's32[2]{0}', space=sflag, size = 0x8, scoped, tag = 'scoped memory for early_conv_vit_forward.11']
    %21 = vsyncpa [#allocation3], 0
    %s22 = scalar_lea.sflag [#allocation3], 1
    %23 = vsyncpa %s22, 0
    loop: start=0, step=1, limit=4
    $region2: #{early_conv_vit_forward.11} parent=1 // loop_pre_header
      _
    $region3: #{early_conv_vit_forward.11} parent=1 // loop_header
      %s25 = sphi 0, %s29
      %p26 = scmp.ge.s32.totalorder %s25, 4
      %s35 = sphi 0, %s37
      %s38 = sphi 0, %s35
      %s39 = sphi 0, %s38
      %s55 = sphi 0, %s39
      %s59 = sphi 0, %s59
      %s61 = sphi 0, %s59
      %s62 = sphi 0, %s61
      %s76 = sphi 0, %s62
      %s80 = sphi 0, %s80
      %s82 = sphi 0, %s80
      %s83 = sphi 0, %s82
      %s97 = sphi 0, %s83
      %s101 = sphi 0, %s101
      %s103 = sphi 0, %s101
      %s104 = sphi 0, %s103
      %s118 = sphi 0, %s104
      %s122 = sphi 0, %s122
      %s124 = sphi 0, %s122
      %s125 = sphi 0, %s124
      %s139 = sphi 0, %s125
      %s143 = sphi 0, %s143
      %s145 = sphi 0, %s143
      %s146 = sphi 0, %s145
      %s160 = sphi 0, %s146
      %s164 = sphi 0, %s164
      %s166 = sphi 0, %s164
      %s167 = sphi 0, %s166
      %s181 = sphi 0, %s167
      %s185 = sphi 0, %s185
      %s187 = sphi 0, %s185
      %s188 = sphi 0, %s187
      %s202 = sphi 0, %s188
      %s206 = sphi 0, %s206
      %s208 = sphi 0, %s206
      %s209 = sphi 0, %s208
      %s223 = sphi 0, %s209
      %s227 = sphi 0, %s227
      %s229 = sphi 0, %s227
      %s230 = sphi 0, %s229
      %s244 = sphi 0, %s230
      %s248 = sphi 0, %s248
      %s250 = sphi 0, %s248
      %s251 = sphi 0, %s250
      %s265 = sphi 0, %s251
      %s269 = sphi 0, %s269
      %s271 = sphi 0, %s269
      %s272 = sphi 0, %s271
      %s286 = sphi 0, %s272
      %s290 = sphi 0, %s290
      %s292 = sphi 0, %s290
      %s293 = sphi 0, %s292
      %s307 = sphi 0, %s293
      %s311 = sphi 0, %s311
      %s313 = sphi 0, %s311
      %s314 = sphi 0, %s313
      %s328 = sphi 0, %s314
      %s332 = sphi 0, %s332
      %s334 = sphi 0, %s332
      %s335 = sphi 0, %s334
      %s349 = sphi 0, %s335
      %s353 = sphi 0, %s353
      %s355 = sphi 0, %s353
      %s356 = sphi 0, %s355
      %s370 = sphi 0, %s356
      %s376 = sphi 0, %s378
      %s379 = sphi 0, %s376
      %s380 = sphi 0, %s379
      %s396 = sphi 0, %s380
    $region4: #{early_conv_vit_forward.11} parent=1 // loop_header_branch
      %28 = sbr.rel (%p26) target = $region8
    $region5: #{early_conv_vit_forward.11} parent=1 // loop_body
      %s30 = ssub.s32 %s25, 1
      %s31 = ssub.s32 %s25, 2
      %s32 = sadd.s32 %s25, 1
      %s33 = ssub.s32 %s25, %s32
      %p34 = scmp.eq.s32.totalorder %s33, 0
      %s36 = sadd.s32 %s35, 1
      %s37 = scalar_select %p34, %s35, %s36
      %p40 = pneg %p34
      %p41 = scmp.eq.s32.totalorder %s25, 1
      %p42 = por %p40, %p41
      %p43 = scmp.ne.s32.totalorder %s35, %s38
      %p44 = scmp.eq.s32.totalorder %s25, 0
      %p45 = por %p43, %p44
      %p46 = scmp.ne.s32.totalorder %s35, %s38
      %p47 = scmp.eq.s32.totalorder %s30, 1
      %p48 = por %p46, %p47
      %p49 = scmp.ne.s32.totalorder %s38, %s39
      %p50 = scmp.eq.s32.totalorder %s30, 0
      %p51 = por %p49, %p50
      %p52 = scmp.ne.s32.totalorder %s38, %s39
      %p53 = scmp.eq.s32.totalorder %s31, 1
      %p54 = por %p52, %p53
      %p56 = scmp.ne.s32.totalorder %s39, %s55
      %p57 = scmp.eq.s32.totalorder %s31, 0
      %p58 = por %p56, %p57
      %s60 = sadd.s32 %s59, 1
      %p63 = scmp.eq.s32.totalorder %s25, 1
      %p64 = scmp.ne.s32.totalorder %s59, %s61
      %p65 = scmp.eq.s32.totalorder %s25, 0
      %p66 = por %p64, %p65
      %p67 = scmp.ne.s32.totalorder %s59, %s61
      %p68 = scmp.eq.s32.totalorder %s30, 1
      %p69 = por %p67, %p68
      %p70 = scmp.ne.s32.totalorder %s61, %s62
      %p71 = scmp.eq.s32.totalorder %s30, 0
      %p72 = por %p70, %p71
      %p73 = scmp.ne.s32.totalorder %s61, %s62
      %p74 = scmp.eq.s32.totalorder %s31, 1
      %p75 = por %p73, %p74
      %p77 = scmp.ne.s32.totalorder %s62, %s76
      %p78 = scmp.eq.s32.totalorder %s31, 0
      %p79 = por %p77, %p78
      %s81 = sadd.s32 %s80, 1
      %p84 = scmp.eq.s32.totalorder %s25, 1
      %p85 = scmp.ne.s32.totalorder %s80, %s82
      %p86 = scmp.eq.s32.totalorder %s25, 0
      %p87 = por %p85, %p86
      %p88 = scmp.ne.s32.totalorder %s80, %s82
      %p89 = scmp.eq.s32.totalorder %s30, 1
      %p90 = por %p88, %p89
      %p91 = scmp.ne.s32.totalorder %s82, %s83
      %p92 = scmp.eq.s32.totalorder %s30, 0
      %p93 = por %p91, %p92
      %p94 = scmp.ne.s32.totalorder %s82, %s83
      %p95 = scmp.eq.s32.totalorder %s31, 1
      %p96 = por %p94, %p95
      %p98 = scmp.ne.s32.totalorder %s83, %s97
      %p99 = scmp.eq.s32.totalorder %s31, 0
      %p100 = por %p98, %p99
      %s102 = sadd.s32 %s101, 1
      %p105 = scmp.eq.s32.totalorder %s25, 1
      %p106 = scmp.ne.s32.totalorder %s101, %s103
      %p107 = scmp.eq.s32.totalorder %s25, 0
      %p108 = por %p106, %p107
      %p109 = scmp.ne.s32.totalorder %s101, %s103
      %p110 = scmp.eq.s32.totalorder %s30, 1
      %p111 = por %p109, %p110
      %p112 = scmp.ne.s32.totalorder %s103, %s104
      %p113 = scmp.eq.s32.totalorder %s30, 0
      %p114 = por %p112, %p113
      %p115 = scmp.ne.s32.totalorder %s103, %s104
      %p116 = scmp.eq.s32.totalorder %s31, 1
      %p117 = por %p115, %p116
      %p119 = scmp.ne.s32.totalorder %s104, %s118
      %p120 = scmp.eq.s32.totalorder %s31, 0
      %p121 = por %p119, %p120
      %s123 = sadd.s32 %s122, 1
      %p126 = scmp.eq.s32.totalorder %s25, 1
      %p127 = scmp.ne.s32.totalorder %s122, %s124
      %p128 = scmp.eq.s32.totalorder %s25, 0
      %p129 = por %p127, %p128
      %p130 = scmp.ne.s32.totalorder %s122, %s124
      %p131 = scmp.eq.s32.totalorder %s30, 1
      %p132 = por %p130, %p131
      %p133 = scmp.ne.s32.totalorder %s124, %s125
      %p134 = scmp.eq.s32.totalorder %s30, 0
      %p135 = por %p133, %p134
      %p136 = scmp.ne.s32.totalorder %s124, %s125
      %p137 = scmp.eq.s32.totalorder %s31, 1
      %p138 = por %p136, %p137
      %p140 = scmp.ne.s32.totalorder %s125, %s139
      %p141 = scmp.eq.s32.totalorder %s31, 0
      %p142 = por %p140, %p141
      %s144 = sadd.s32 %s143, 1
      %p147 = scmp.eq.s32.totalorder %s25, 1
      %p148 = scmp.ne.s32.totalorder %s143, %s145
      %p149 = scmp.eq.s32.totalorder %s25, 0
      %p150 = por %p148, %p149
      %p151 = scmp.ne.s32.totalorder %s143, %s145
      %p152 = scmp.eq.s32.totalorder %s30, 1
      %p153 = por %p151, %p152
      %p154 = scmp.ne.s32.totalorder %s145, %s146
      %p155 = scmp.eq.s32.totalorder %s30, 0
      %p156 = por %p154, %p155
      %p157 = scmp.ne.s32.totalorder %s145, %s146
      %p158 = scmp.eq.s32.totalorder %s31, 1
      %p159 = por %p157, %p158
      %p161 = scmp.ne.s32.totalorder %s146, %s160
      %p162 = scmp.eq.s32.totalorder %s31, 0
      %p163 = por %p161, %p162
      %s165 = sadd.s32 %s164, 1
      %p168 = scmp.eq.s32.totalorder %s25, 1
      %p169 = scmp.ne.s32.totalorder %s164, %s166
      %p170 = scmp.eq.s32.totalorder %s25, 0
      %p171 = por %p169, %p170
      %p172 = scmp.ne.s32.totalorder %s164, %s166
      %p173 = scmp.eq.s32.totalorder %s30, 1
      %p174 = por %p172, %p173
      %p175 = scmp.ne.s32.totalorder %s166, %s167
      %p176 = scmp.eq.s32.totalorder %s30, 0
      %p177 = por %p175, %p176
      %p178 = scmp.ne.s32.totalorder %s166, %s167
      %p179 = scmp.eq.s32.totalorder %s31, 1
      %p180 = por %p178, %p179
      %p182 = scmp.ne.s32.totalorder %s167, %s181
      %p183 = scmp.eq.s32.totalorder %s31, 0
      %p184 = por %p182, %p183
      %s186 = sadd.s32 %s185, 1
      %p189 = scmp.eq.s32.totalorder %s25, 1
      %p190 = scmp.ne.s32.totalorder %s185, %s187
      %p191 = scmp.eq.s32.totalorder %s25, 0
      %p192 = por %p190, %p191
      %p193 = scmp.ne.s32.totalorder %s185, %s187
      %p194 = scmp.eq.s32.totalorder %s30, 1
      %p195 = por %p193, %p194
      %p196 = scmp.ne.s32.totalorder %s187, %s188
      %p197 = scmp.eq.s32.totalorder %s30, 0
      %p198 = por %p196, %p197
      %p199 = scmp.ne.s32.totalorder %s187, %s188
      %p200 = scmp.eq.s32.totalorder %s31, 1
      %p201 = por %p199, %p200
      %p203 = scmp.ne.s32.totalorder %s188, %s202
      %p204 = scmp.eq.s32.totalorder %s31, 0
      %p205 = por %p203, %p204
      %s207 = sadd.s32 %s206, 1
      %p210 = scmp.eq.s32.totalorder %s25, 1
      %p211 = scmp.ne.s32.totalorder %s206, %s208
      %p212 = scmp.eq.s32.totalorder %s25, 0
      %p213 = por %p211, %p212
      %p214 = scmp.ne.s32.totalorder %s206, %s208
      %p215 = scmp.eq.s32.totalorder %s30, 1
      %p216 = por %p214, %p215
      %p217 = scmp.ne.s32.totalorder %s208, %s209
      %p218 = scmp.eq.s32.totalorder %s30, 0
      %p219 = por %p217, %p218
      %p220 = scmp.ne.s32.totalorder %s208, %s209
      %p221 = scmp.eq.s32.totalorder %s31, 1
      %p222 = por %p220, %p221
      %p224 = scmp.ne.s32.totalorder %s209, %s223
      %p225 = scmp.eq.s32.totalorder %s31, 0
      %p226 = por %p224, %p225
      %s228 = sadd.s32 %s227, 1
      %p231 = scmp.eq.s32.totalorder %s25, 1
      %p232 = scmp.ne.s32.totalorder %s227, %s229
      %p233 = scmp.eq.s32.totalorder %s25, 0
      %p234 = por %p232, %p233
      %p235 = scmp.ne.s32.totalorder %s227, %s229
      %p236 = scmp.eq.s32.totalorder %s30, 1
      %p237 = por %p235, %p236
      %p238 = scmp.ne.s32.totalorder %s229, %s230
      %p239 = scmp.eq.s32.totalorder %s30, 0
      %p240 = por %p238, %p239
      %p241 = scmp.ne.s32.totalorder %s229, %s230
      %p242 = scmp.eq.s32.totalorder %s31, 1
      %p243 = por %p241, %p242
      %p245 = scmp.ne.s32.totalorder %s230, %s244
      %p246 = scmp.eq.s32.totalorder %s31, 0
      %p247 = por %p245, %p246
      %s249 = sadd.s32 %s248, 1
      %p252 = scmp.eq.s32.totalorder %s25, 1
      %p253 = scmp.ne.s32.totalorder %s248, %s250
      %p254 = scmp.eq.s32.totalorder %s25, 0
      %p255 = por %p253, %p254
      %p256 = scmp.ne.s32.totalorder %s248, %s250
      %p257 = scmp.eq.s32.totalorder %s30, 1
      %p258 = por %p256, %p257
      %p259 = scmp.ne.s32.totalorder %s250, %s251
      %p260 = scmp.eq.s32.totalorder %s30, 0
      %p261 = por %p259, %p260
      %p262 = scmp.ne.s32.totalorder %s250, %s251
      %p263 = scmp.eq.s32.totalorder %s31, 1
      %p264 = por %p262, %p263
      %p266 = scmp.ne.s32.totalorder %s251, %s265
      %p267 = scmp.eq.s32.totalorder %s31, 0
      %p268 = por %p266, %p267
      %s270 = sadd.s32 %s269, 1
      %p273 = scmp.eq.s32.totalorder %s25, 1
      %p274 = scmp.ne.s32.totalorder %s269, %s271
      %p275 = scmp.eq.s32.totalorder %s25, 0
      %p276 = por %p274, %p275
      %p277 = scmp.ne.s32.totalorder %s269, %s271
      %p278 = scmp.eq.s32.totalorder %s30, 1
      %p279 = por %p277, %p278
      %p280 = scmp.ne.s32.totalorder %s271, %s272
      %p281 = scmp.eq.s32.totalorder %s30, 0
      %p282 = por %p280, %p281
      %p283 = scmp.ne.s32.totalorder %s271, %s272
      %p284 = scmp.eq.s32.totalorder %s31, 1
      %p285 = por %p283, %p284
      %p287 = scmp.ne.s32.totalorder %s272, %s286
      %p288 = scmp.eq.s32.totalorder %s31, 0
      %p289 = por %p287, %p288
      %s291 = sadd.s32 %s290, 1
      %p294 = scmp.eq.s32.totalorder %s25, 1
      %p295 = scmp.ne.s32.totalorder %s290, %s292
      %p296 = scmp.eq.s32.totalorder %s25, 0
      %p297 = por %p295, %p296
      %p298 = scmp.ne.s32.totalorder %s290, %s292
      %p299 = scmp.eq.s32.totalorder %s30, 1
      %p300 = por %p298, %p299
      %p301 = scmp.ne.s32.totalorder %s292, %s293
      %p302 = scmp.eq.s32.totalorder %s30, 0
      %p303 = por %p301, %p302
      %p304 = scmp.ne.s32.totalorder %s292, %s293
      %p305 = scmp.eq.s32.totalorder %s31, 1
      %p306 = por %p304, %p305
      %p308 = scmp.ne.s32.totalorder %s293, %s307
      %p309 = scmp.eq.s32.totalorder %s31, 0
      %p310 = por %p308, %p309
      %s312 = sadd.s32 %s311, 1
      %p315 = scmp.eq.s32.totalorder %s25, 1
      %p316 = scmp.ne.s32.totalorder %s311, %s313
      %p317 = scmp.eq.s32.totalorder %s25, 0
      %p318 = por %p316, %p317
      %p319 = scmp.ne.s32.totalorder %s311, %s313
      %p320 = scmp.eq.s32.totalorder %s30, 1
      %p321 = por %p319, %p320
      %p322 = scmp.ne.s32.totalorder %s313, %s314
      %p323 = scmp.eq.s32.totalorder %s30, 0
      %p324 = por %p322, %p323
      %p325 = scmp.ne.s32.totalorder %s313, %s314
      %p326 = scmp.eq.s32.totalorder %s31, 1
      %p327 = por %p325, %p326
      %p329 = scmp.ne.s32.totalorder %s314, %s328
      %p330 = scmp.eq.s32.totalorder %s31, 0
      %p331 = por %p329, %p330
      %s333 = sadd.s32 %s332, 1
      %p336 = scmp.eq.s32.totalorder %s25, 1
      %p337 = scmp.ne.s32.totalorder %s332, %s334
      %p338 = scmp.eq.s32.totalorder %s25, 0
      %p339 = por %p337, %p338
      %p340 = scmp.ne.s32.totalorder %s332, %s334
      %p341 = scmp.eq.s32.totalorder %s30, 1
      %p342 = por %p340, %p341
      %p343 = scmp.ne.s32.totalorder %s334, %s335
      %p344 = scmp.eq.s32.totalorder %s30, 0
      %p345 = por %p343, %p344
      %p346 = scmp.ne.s32.totalorder %s334, %s335
      %p347 = scmp.eq.s32.totalorder %s31, 1
      %p348 = por %p346, %p347
      %p350 = scmp.ne.s32.totalorder %s335, %s349
      %p351 = scmp.eq.s32.totalorder %s31, 0
      %p352 = por %p350, %p351
      %s354 = sadd.s32 %s353, 1
      %p357 = scmp.eq.s32.totalorder %s25, 1
      %p358 = scmp.ne.s32.totalorder %s353, %s355
      %p359 = scmp.eq.s32.totalorder %s25, 0
      %p360 = por %p358, %p359
      %p361 = scmp.ne.s32.totalorder %s353, %s355
      %p362 = scmp.eq.s32.totalorder %s30, 1
      %p363 = por %p361, %p362
      %p364 = scmp.ne.s32.totalorder %s355, %s356
      %p365 = scmp.eq.s32.totalorder %s30, 0
      %p366 = por %p364, %p365
      %p367 = scmp.ne.s32.totalorder %s355, %s356
      %p368 = scmp.eq.s32.totalorder %s31, 1
      %p369 = por %p367, %p368
      %p371 = scmp.ne.s32.totalorder %s356, %s370
      %p372 = scmp.eq.s32.totalorder %s31, 0
      %p373 = por %p371, %p372
      %s374 = ssub.s32 %s25, %s32
      %p375 = scmp.eq.s32.totalorder %s374, 0
      %s377 = sadd.s32 %s376, 1
      %s378 = scalar_select %p375, %s376, %s377
      %p381 = pneg %p375
      %p382 = scmp.eq.s32.totalorder %s25, 1
      %p383 = por %p381, %p382
      %p384 = scmp.ne.s32.totalorder %s376, %s379
      %p385 = scmp.eq.s32.totalorder %s25, 0
      %p386 = por %p384, %p385
      %p387 = scmp.ne.s32.totalorder %s376, %s379
      %p388 = scmp.eq.s32.totalorder %s30, 1
      %p389 = por %p387, %p388
      %p390 = scmp.ne.s32.totalorder %s379, %s380
      %p391 = scmp.eq.s32.totalorder %s30, 0
      %p392 = por %p390, %p391
      %p393 = scmp.ne.s32.totalorder %s379, %s380
      %p394 = scmp.eq.s32.totalorder %s31, 1
      %p395 = por %p393, %p394
      %p397 = scmp.ne.s32.totalorder %s380, %s396
      %p398 = scmp.eq.s32.totalorder %s31, 0
      %p399 = por %p397, %p398
      %p400 = scmp.le.s32.totalorder 1, %s25
      %p401 = scmp.lt.s32.totalorder %s25, 3
      %p402 = pnand %p400, %p401
      %p403 = pneg %p402
      // Predicated region
      $region9: #{early_conv_vit_forward.11} parent=5 // pred_check
        _
      $region10: #{early_conv_vit_forward.11} parent=5 // pred_check_branch
        %405 = sbr.rel (%p402) target = $region12
      $region11: #{early_conv_vit_forward.11} parent=5 // pred_region
        %s406 = ssub.s32 %s25, 1
        // Predicated region
        $region13: #{early_conv_vit_forward.11} parent=11 // pred_check
          %p407 = pneg %p72
        $region14: #{early_conv_vit_forward.11} parent=11 // pred_check_branch
          %409 = sbr.rel (%p407) target = $region16
        $region15: #{early_conv_vit_forward.11} parent=11 // pred_region
          _
        $region16: #{early_conv_vit_forward.11} parent=11 // pred_fallthru
          _
        // Predicated region
        $region17: #{early_conv_vit_forward.11} parent=11 // pred_check
          %p410 = pneg %p93
        $region18: #{early_conv_vit_forward.11} parent=11 // pred_check_branch
          %412 = sbr.rel (%p410) target = $region20
        $region19: #{early_conv_vit_forward.11} parent=11 // pred_region
          _
        $region20: #{early_conv_vit_forward.11} parent=11 // pred_fallthru
          _
        // Predicated region
        $region21: #{early_conv_vit_forward.11} parent=11 // pred_check
          %p413 = pneg %p114
        $region22: #{early_conv_vit_forward.11} parent=11 // pred_check_branch
          %415 = sbr.rel (%p413) target = $region24
        $region23: #{early_conv_vit_forward.11} parent=11 // pred_region
          _
        $region24: #{early_conv_vit_forward.11} parent=11 // pred_fallthru
          _
        // Predicated region
        $region25: #{early_conv_vit_forward.11} parent=11 // pred_check
          %p416 = pneg %p135
        $region26: #{early_conv_vit_forward.11} parent=11 // pred_check_branch
          %418 = sbr.rel (%p416) target = $region28
        $region27: #{early_conv_vit_forward.11} parent=11 // pred_region
          _
        $region28: #{early_conv_vit_forward.11} parent=11 // pred_fallthru
          _
        // Predicated region
        $region29: #{early_conv_vit_forward.11} parent=11 // pred_check
          %p419 = pneg %p156
        $region30: #{early_conv_vit_forward.11} parent=11 // pred_check_branch
          %421 = sbr.rel (%p419) target = $region32
        $region31: #{early_conv_vit_forward.11} parent=11 // pred_region
          _
        $region32: #{early_conv_vit_forward.11} parent=11 // pred_fallthru
          _
        // Predicated region
        $region33: #{early_conv_vit_forward.11} parent=11 // pred_check
          %p422 = pneg %p177
        $region34: #{early_conv_vit_forward.11} parent=11 // pred_check_branch
          %424 = sbr.rel (%p422) target = $region36
        $region35: #{early_conv_vit_forward.11} parent=11 // pred_region
          _
        $region36: #{early_conv_vit_forward.11} parent=11 // pred_fallthru
          _
        // Predicated region
        $region37: #{early_conv_vit_forward.11} parent=11 // pred_check
          %p425 = pneg %p198
        $region38: #{early_conv_vit_forward.11} parent=11 // pred_check_branch
          %427 = sbr.rel (%p425) target = $region40
        $region39: #{early_conv_vit_forward.11} parent=11 // pred_region
          _
        $region40: #{early_conv_vit_forward.11} parent=11 // pred_fallthru
          _
        // Predicated region
        $region41: #{early_conv_vit_forward.11} parent=11 // pred_check
          %p428 = pneg %p219
        $region42: #{early_conv_vit_forward.11} parent=11 // pred_check_branch
          %430 = sbr.rel (%p428) target = $region44
        $region43: #{early_conv_vit_forward.11} parent=11 // pred_region
          _
        $region44: #{early_conv_vit_forward.11} parent=11 // pred_fallthru
          _
        // Predicated region
        $region45: #{early_conv_vit_forward.11} parent=11 // pred_check
          %p431 = pneg %p240
        $region46: #{early_conv_vit_forward.11} parent=11 // pred_check_branch
          %433 = sbr.rel (%p431) target = $region48
        $region47: #{early_conv_vit_forward.11} parent=11 // pred_region
          _
        $region48: #{early_conv_vit_forward.11} parent=11 // pred_fallthru
          _
        // Predicated region
        $region49: #{early_conv_vit_forward.11} parent=11 // pred_check
          %p434 = pneg %p261
        $region50: #{early_conv_vit_forward.11} parent=11 // pred_check_branch
          %436 = sbr.rel (%p434) target = $region52
        $region51: #{early_conv_vit_forward.11} parent=11 // pred_region
          _
        $region52: #{early_conv_vit_forward.11} parent=11 // pred_fallthru
          _
        // Predicated region
        $region53: #{early_conv_vit_forward.11} parent=11 // pred_check
          %p437 = pneg %p282
        $region54: #{early_conv_vit_forward.11} parent=11 // pred_check_branch
          %439 = sbr.rel (%p437) target = $region56
        $region55: #{early_conv_vit_forward.11} parent=11 // pred_region
          _
        $region56: #{early_conv_vit_forward.11} parent=11 // pred_fallthru
          _
        // Predicated region
        $region57: #{early_conv_vit_forward.11} parent=11 // pred_check
          %p440 = pneg %p303
        $region58: #{early_conv_vit_forward.11} parent=11 // pred_check_branch
          %442 = sbr.rel (%p440) target = $region60
        $region59: #{early_conv_vit_forward.11} parent=11 // pred_region
          _
        $region60: #{early_conv_vit_forward.11} parent=11 // pred_fallthru
          _
        // Predicated region
        $region61: #{early_conv_vit_forward.11} parent=11 // pred_check
          %p443 = pneg %p324
        $region62: #{early_conv_vit_forward.11} parent=11 // pred_check_branch
          %445 = sbr.rel (%p443) target = $region64
        $region63: #{early_conv_vit_forward.11} parent=11 // pred_region
          _
        $region64: #{early_conv_vit_forward.11} parent=11 // pred_fallthru
          _
        // Predicated region
        $region65: #{early_conv_vit_forward.11} parent=11 // pred_check
          %p446 = pneg %p345
        $region66: #{early_conv_vit_forward.11} parent=11 // pred_check_branch
          %448 = sbr.rel (%p446) target = $region68
        $region67: #{early_conv_vit_forward.11} parent=11 // pred_region
          _
        $region68: #{early_conv_vit_forward.11} parent=11 // pred_fallthru
          _
        // Predicated region
        $region69: #{early_conv_vit_forward.11} parent=11 // pred_check
          %p449 = pneg %p366
        $region70: #{early_conv_vit_forward.11} parent=11 // pred_check_branch
          %451 = sbr.rel (%p449) target = $region72
        $region71: #{early_conv_vit_forward.11} parent=11 // pred_region
          _
        $region72: #{early_conv_vit_forward.11} parent=11 // pred_fallthru
          _
      $region12: #{early_conv_vit_forward.11} parent=5 // pred_fallthru
        _
      %p452 = scmp.lt.s32.totalorder %s25, 2
      // Predicated region
      $region73: #{early_conv_vit_forward.11} parent=5 // pred_check
        %p453 = pneg %p452
      $region74: #{early_conv_vit_forward.11} parent=5 // pred_check_branch
        %455 = sbr.rel (%p453) target = $region76
      $region75: #{early_conv_vit_forward.11} parent=5 // pred_region
        // Predicated region
        $region77: #{early_conv_vit_forward.11} parent=75 // pred_check
          %p456 = pneg %p45
        $region78: #{early_conv_vit_forward.11} parent=75 // pred_check_branch
          %458 = sbr.rel (%p456) target = $region80
        $region79: #{early_conv_vit_forward.11} parent=75 // pred_region
          %p459 = scmp.lt.s32.totalorder %s25, 1
          %s460 = scalar_select %p459, %s25, 1
          %s461 = smul.addr %s460, 8
          %s462 = scalar_lea.vmem %s0, %s461
        $region80: #{early_conv_vit_forward.11} parent=75 // pred_fallthru
          _
      $region76: #{early_conv_vit_forward.11} parent=5 // pred_fallthru
        _
      %p463 = scmp.le.s32.totalorder 1, %s25
      %p464 = scmp.lt.s32.totalorder %s25, 3
      %p465 = pnand %p463, %p464
      %p466 = pneg %p465
      // Predicated region
      $region81: #{early_conv_vit_forward.11} parent=5 // pred_check
        _
      $region82: #{early_conv_vit_forward.11} parent=5 // pred_check_branch
        %468 = sbr.rel (%p465) target = $region84
      $region83: #{early_conv_vit_forward.11} parent=5 // pred_region
        %s469 = ssub.s32 %s25, 1
        %p470 = scmp.lt.s32.totalorder %s30, 1
        %s471 = scalar_select %p470, %s30, 1
        %s472 = smul.addr %s471, 8
        %s473 = scalar_lea.vmem %s0, %s472
        %p474 = pneg %p51
        %p475 = pneg %p48
        %p476 = pneg %p72
        %p477 = pneg %p69
        %p478 = pneg %p93
        %p479 = pneg %p90
        %p480 = pneg %p114
        %p481 = pneg %p111
        %p482 = pneg %p135
        %p483 = pneg %p132
        %p484 = pneg %p156
        %p485 = pneg %p153
        %p486 = pneg %p177
        %p487 = pneg %p174
        %p488 = pneg %p198
        %p489 = pneg %p195
        %p490 = pneg %p219
        %p491 = pneg %p216
        %p492 = pneg %p240
        %p493 = pneg %p237
        %p494 = pneg %p261
        %p495 = pneg %p258
        %p496 = pneg %p282
        %p497 = pneg %p279
        %p498 = pneg %p303
        %p499 = pneg %p300
        %p500 = pneg %p324
        %p501 = pneg %p321
        %p502 = pneg %p345
        %p503 = pneg %p342
        %p504 = pneg %p366
        %p505 = pneg %p363
        %p506 = pneg %p392
        %p507 = pneg %p389
        %s508 = sand.u32 %s379, 1
        %s509 = scalar_lea.sflag [#allocation3], %s508
        %s510 = sand.u32 %s379, 1
        %s511 = scalar_lea.vmem [#allocation2], %s510
        %p512 = scmp.lt.s32.totalorder %s30, 1
        %s513 = scalar_select %p512, %s30, 1
        %s514 = smul.addr %s513, 8
        %s515 = scalar_lea.vmem %s0, %s514
        %v517 = vld [vmem:[%s515] sm:$0x1f]
        %v518 = vld [vmem:[%s1] sm:$0x1]
        %v519 = vld [vmem:[%s2] sm:$0x1]
        %vm520 = vcmask 1044480
        %v521 = vsel %vm520, %v517, 0.0
        %522 = vadd.xlane.f32.xlu0 %v521
        %v523 = vpop.xlane.xlu0 %522
        %v524 = vrcp.pop 128.0
        %v525 = vmul.f32 128.0, %v524
        %v526 = vsub.f32 1.0, %v525
        %v527 = vmul.f32 %v524, %v526
        %v528 = vadd.f32 %v524, %v527
        %vm529 = vweird.f32 %v524
        %v530 = vsel %vm529, %v524, %v528
        %v531 = vmul.f32 %v523, %v530
        %v532 = vsub.f32 %v517, %v531
        %v533 = vmul.f32 %v532, %v532
        %v534 = vsel %vm520, %v533, 0.0
        %535 = vadd.xlane.f32.xlu0 %v534
        %v536 = vpop.xlane.xlu0 %535
        %v537 = vmul.f32 %v536, %v530
        %v538 = vadd.f32 %v537, 1e-05
        %v539 = vrsqrt.pop %v538
        %v540 = vmul.f32 %v539, %v538
        %v541 = vmul.f32 %v540, %v539
        %v542 = vmul.f32 0.5, %v541
        %v543 = vsub.f32 1.5, %v542
        %v544 = vmul.f32 %v539, %v543
        %vm545 = vweird.f32 %v538
        %vm546 = vweird.f32 %v539
        %vm547 = vmor %vm545, %vm546
        %v548 = vsel %vm547, %v539, %v544
        %v549 = vmul.f32 %v532, %v548
        %v551 = vperm.slane %v518, 0
        %v553 = vmul.f32 %v549, %v551
        %v555 = vperm.slane %v519, 0
        %v557 = vadd.f32 %v553, %v555
        %v558 = vpack.c.bf16 %v557, %v557
        %v559 = vld [vmem:[%s3] sm:$0xff]
        %v560 = vld [vmem:[%s3 + $0x8] sm:$0xf]
        %v561 = vld [vmem:[%s3 + $0xc] sm:$0xff]
        %v562 = vld [vmem:[%s3 + $0x14] sm:$0xf]
        %v563 = vld [vmem:[%s3 + $0x18] sm:$0xff]
        %v564 = vld [vmem:[%s3 + $0x20] sm:$0xf]
        %v565 = vld [vmem:[%s3 + $0x24] sm:$0xff]
        %v566 = vld [vmem:[%s3 + $0x2c] sm:$0xf]
        %v567 = vld [vmem:[%s3 + $0x30] sm:$0xff]
        %v568 = vld [vmem:[%s3 + $0x38] sm:$0xf]
        %v569 = vld [vmem:[%s3 + $0x3c] sm:$0xff]
        %v570 = vld [vmem:[%s3 + $0x44] sm:$0xf]
        %v571 = vld [vmem:[%s3 + $0x48] sm:$0xff]
        %v572 = vld [vmem:[%s3 + $0x50] sm:$0xf]
        %v573 = vld [vmem:[%s3 + $0x54] sm:$0xff]
        %v574 = vld [vmem:[%s3 + $0x5c] sm:$0xf]
        %v575 = vld [vmem:[%s3 + $0x60] sm:$0xff]
        %v576 = vld [vmem:[%s3 + $0x68] sm:$0xf]
        %v577 = vld [vmem:[%s3 + $0x6c] sm:$0xff]
        %v578 = vld [vmem:[%s3 + $0x74] sm:$0xf]
        %v579 = vld [vmem:[%s3 + $0x78] sm:$0xff]
        %v580 = vld [vmem:[%s3 + $0x80] sm:$0xf]
        %v581 = vld [vmem:[%s3 + $0x84] sm:$0xff]
        %v582 = vld [vmem:[%s3 + $0x8c] sm:$0xf]
        %v583 = vld [vmem:[%s3 + $0x90] sm:$0xff]
        %v584 = vld [vmem:[%s3 + $0x98] sm:$0xf]
        %v585 = vld [vmem:[%s3 + $0x9c] sm:$0xff]
        %v586 = vld [vmem:[%s3 + $0xa4] sm:$0xf]
        %v587 = vld [vmem:[%s3 + $0xa8] sm:$0xff]
        %v588 = vld [vmem:[%s3 + $0xb0] sm:$0xf]
        %v589 = vld [vmem:[%s3 + $0xb4] sm:$0xff]
        %v590 = vld [vmem:[%s3 + $0xbc] sm:$0xf]
        %v623 = vunpack.c.l.b16 %v559
        %v624 = vunpack.c.h.b16 %v559
        %v625 = vunpack.c.l.b16 %v560
        %v626 = vunpack.c.l.b16 %v561
        %v627 = vunpack.c.h.b16 %v561
        %v628 = vunpack.c.l.b16 %v562
        %v629 = vunpack.c.l.b16 %v563
        %v630 = vunpack.c.h.b16 %v563
        %v631 = vunpack.c.l.b16 %v564
        %v632 = vunpack.c.l.b16 %v565
        %v633 = vunpack.c.h.b16 %v565
        %v634 = vunpack.c.l.b16 %v566
        %v635 = vunpack.c.l.b16 %v567
        %v636 = vunpack.c.h.b16 %v567
        %v637 = vunpack.c.l.b16 %v568
        %v638 = vunpack.c.l.b16 %v569
        %v639 = vunpack.c.h.b16 %v569
        %v640 = vunpack.c.l.b16 %v570
        %v641 = vunpack.c.l.b16 %v571
        %v642 = vunpack.c.h.b16 %v571
        %v643 = vunpack.c.l.b16 %v572
        %v644 = vunpack.c.l.b16 %v573
        %v645 = vunpack.c.h.b16 %v573
        %v646 = vunpack.c.l.b16 %v574
        %v647 = vunpack.c.l.b16 %v575
        %v648 = vunpack.c.h.b16 %v575
        %v649 = vunpack.c.l.b16 %v576
        %v650 = vunpack.c.l.b16 %v577
        %v651 = vunpack.c.h.b16 %v577
        %v652 = vunpack.c.l.b16 %v578
        %v653 = vunpack.c.l.b16 %v579
        %v654 = vunpack.c.h.b16 %v579
        %v655 = vunpack.c.l.b16 %v580
        %v656 = vunpack.c.l.b16 %v581
        %v657 = vunpack.c.h.b16 %v581
        %v658 = vunpack.c.l.b16 %v582
        %v659 = vunpack.c.l.b16 %v583
        %v660 = vunpack.c.h.b16 %v583
        %v661 = vunpack.c.l.b16 %v584
        %v662 = vunpack.c.l.b16 %v585
        %v663 = vunpack.c.h.b16 %v585
        %v664 = vunpack.c.l.b16 %v586
        %v665 = vunpack.c.l.b16 %v587
        %v666 = vunpack.c.h.b16 %v587
        %v667 = vunpack.c.l.b16 %v588
        %v668 = vunpack.c.l.b16 %v589
        %v669 = vunpack.c.h.b16 %v589
        %v670 = vunpack.c.l.b16 %v590
        %v671 = vpack.c.b16 %v626, %v623
        %v672 = vpack.c.b16 %v627, %v624
        %v673 = vpack.c.b16 %v628, %v625
        %v674 = vpack.c.b16 %v632, %v629
        %v675 = vpack.c.b16 %v633, %v630
        %v676 = vpack.c.b16 %v634, %v631
        %v677 = vpack.c.b16 %v638, %v635
        %v678 = vpack.c.b16 %v639, %v636
        %v679 = vpack.c.b16 %v640, %v637
        %v680 = vpack.c.b16 %v644, %v641
        %v681 = vpack.c.b16 %v645, %v642
        %v682 = vpack.c.b16 %v646, %v643
        %v683 = vpack.c.b16 %v650, %v647
        %v684 = vpack.c.b16 %v651, %v648
        %v685 = vpack.c.b16 %v652, %v649
        %v686 = vpack.c.b16 %v656, %v653
        %v687 = vpack.c.b16 %v657, %v654
        %v688 = vpack.c.b16 %v658, %v655
        %v689 = vpack.c.b16 %v662, %v659
        %v690 = vpack.c.b16 %v663, %v660
        %v691 = vpack.c.b16 %v664, %v661
        %v692 = vpack.c.b16 %v668, %v665
        %v693 = vpack.c.b16 %v669, %v666
        %v694 = vpack.c.b16 %v670, %v667
        %719 = vmatpush.bf16.msra.mxu0 %v692
        %720 = vmatpush.bf16.msra.mxu0 %v689
        %721 = vmatpush.bf16.msra.mxu0 %v686
        %722 = vmatpush.bf16.msra.mxu0 %v683
        %723 = vmatpush.bf16.msra.mxu0 %v680
        %724 = vmatpush.bf16.msra.mxu0 %v677
        %725 = vmatpush.bf16.msra.mxu0 %v674
        %726 = vmatpush.bf16.msra.mxu0 %v671
        %727 = vmatmul.bf16.gmra.mxu0 %v558
        %v728 = vpop.f32.mrf.mxu0
        %v729 = vadd.f32 0.0, %v728
        %v730 = vpop.f32.mrf.mxu0
        %731 = vdwg.mxu0
        %732 = vmatpush.bf16.msra.mxu0 %v693
        %733 = vmatpush.bf16.msra.mxu0 %v690
        %734 = vmatpush.bf16.msra.mxu0 %v687
        %735 = vmatpush.bf16.msra.mxu0 %v684
        %736 = vmatpush.bf16.msra.mxu0 %v681
        %737 = vmatpush.bf16.msra.mxu0 %v678
        %738 = vmatpush.bf16.msra.mxu0 %v675
        %739 = vmatpush.bf16.msra.mxu0 %v672
        %740 = vmatmul.bf16.gmra.mxu0 %v558
        %v741 = vpop.f32.mrf.mxu0
        %v742 = vadd.f32 0.0, %v741
        %v743 = vpop.f32.mrf.mxu0
        %744 = vdwg.mxu0
        %745 = vmatpush.bf16.msra.mxu0 %v694
        %746 = vmatpush.bf16.msra.mxu0 %v691
        %747 = vmatpush.bf16.msra.mxu0 %v688
        %748 = vmatpush.bf16.msra.mxu0 %v685
        %749 = vmatpush.bf16.msra.mxu0 %v682
        %750 = vmatpush.bf16.msra.mxu0 %v679
        %751 = vmatpush.bf16.msra.mxu0 %v676
        %752 = vmatpush.bf16.msra.mxu0 %v673
        %753 = vmatmul.bf16.gmra.mxu0 %v558
        %v754 = vpop.f32.mrf.mxu0
        %v755 = vadd.f32 0.0, %v754
        %v756 = vpop.f32.mrf.mxu0
        %757 = vdwg.mxu0
        %v758 = vpack.c.bf16 %v729, %v729
        %v759 = vpack.c.bf16 %v742, %v742
        %v760 = vpack.c.bf16 %v755, %v755
        %vm761 = vcmask 523264
        %v763 = vsel %vm761, %v758, 0
        %v766 = vsel %vm761, %v759, 0
        %768 = vmatpush.bf16.xpose.msra.mxu0 0
        %769 = vmatpush.bf16.xpose.msra.mxu0 0
        %770 = vmatpush.bf16.xpose.msra.mxu0 0
        %771 = vmatpush.bf16.xpose.msra.mxu0 0
        %772 = vmatpush.bf16.xpose.msra.mxu0 0
        %773 = vmatpush.bf16.xpose.msra.mxu0 0
        %774 = vmatpush.bf16.xpose.msra.mxu0 0
        %775 = vmatpush.bf16.xpose.msra.mxu0 %v766
        %776 = vmatmul.bf16.gmra.mxu0 %v763
        %v777 = vpop.f32.mrf.mxu0
        %v778 = vadd.f32 0.0, %v777
        %v779 = vpop.f32.mrf.mxu0
        %780 = vdwg.mxu0
        %vm781 = vcmask 36864
        %v782 = vsel %vm781, %v778, -inf
        %783 = vmax.xlane.f32.xlu0 %v782
        %v784 = vpop.xlane.xlu0 %783
        %v785 = vsub.f32 %v778, %v784
        %v786 = vmul.f32 %v785, 1.442695
        %v787 = vpow.pop %v786
        %v788 = vsel %vm781, %v787, 0.0
        %789 = vadd.xlane.f32.xlu0 %v788
        %v790 = vpop.xlane.xlu0 %789
        %v791 = vrcp.pop %v790
        %v792 = vmul.f32 %v787, %v791
        %v793 = vpack.c.bf16 %v792, %v792
        %vm794 = vcmask 39936
        %v796 = vsel %vm794, %v793, 0
        %vm798 = vcmask 1041408
        %vm799 = vcmask 1042432
        %v800 = vsel %vm798, 4294967295, 65535
        %v801 = vsel %vm799, %v800, 0
        %v803 = vand.u32 %v760, %v801
        %805 = vmatpush.bf16.msra.mxu0 0
        %806 = vmatpush.bf16.msra.mxu0 0
        %807 = vmatpush.bf16.msra.mxu0 0
        %808 = vmatpush.bf16.msra.mxu0 0
        %809 = vmatpush.bf16.msra.mxu0 0
        %810 = vmatpush.bf16.msra.mxu0 0
        %811 = vmatpush.bf16.msra.mxu0 0
        %812 = vmatpush.bf16.msra.mxu0 %v803
        %813 = vmatmul.bf16.gmra.mxu0 %v796
        %v814 = vpop.f32.mrf.mxu0
        %v815 = vadd.f32 0.0, %v814
        %v816 = vpop.f32.mrf.mxu0
        %817 = vdwg.mxu0
        %819 = vrot.lane.b32.xlu0 %v758, 64
        %v820 = vpop.permute.xlu0 %819
        %822 = vrot.lane.b32.xlu0 %v759, 64
        %v823 = vpop.permute.xlu0 %822
        %v825 = vsel %vm761, %v820, 0
        %v828 = vsel %vm761, %v823, 0
        %830 = vmatpush.bf16.xpose.msra.mxu0 0
        %831 = vmatpush.bf16.xpose.msra.mxu0 0
        %832 = vmatpush.bf16.xpose.msra.mxu0 0
        %833 = vmatpush.bf16.xpose.msra.mxu0 0
        %834 = vmatpush.bf16.xpose.msra.mxu0 0
        %835 = vmatpush.bf16.xpose.msra.mxu0 0
        %836 = vmatpush.bf16.xpose.msra.mxu0 0
        %837 = vmatpush.bf16.xpose.msra.mxu0 %v828
        %838 = vmatmul.bf16.gmra.mxu0 %v825
        %v839 = vpop.f32.mrf.mxu0
        %v840 = vadd.f32 0.0, %v839
        %v841 = vpop.f32.mrf.mxu0
        %842 = vdwg.mxu0
        %v843 = vsel %vm781, %v840, -inf
        %844 = vmax.xlane.f32.xlu0 %v843
        %v845 = vpop.xlane.xlu0 %844
        %v846 = vsub.f32 %v840, %v845
        %v847 = vmul.f32 %v846, 1.442695
        %v848 = vpow.pop %v847
        %v849 = vsel %vm781, %v848, 0.0
        %850 = vadd.xlane.f32.xlu0 %v849
        %v851 = vpop.xlane.xlu0 %850
        %v852 = vrcp.pop %v851
        %v853 = vmul.f32 %v848, %v852
        %v854 = vpack.c.bf16 %v853, %v853
        %856 = vrot.lane.b32.xlu0 %v760, 64
        %v857 = vpop.permute.xlu0 %856
        %v859 = vsel %vm794, %v854, 0
        %v862 = vand.u32 %v857, %v801
        %864 = vmatpush.bf16.msra.mxu0 0
        %865 = vmatpush.bf16.msra.mxu0 0
        %866 = vmatpush.bf16.msra.mxu0 0
        %867 = vmatpush.bf16.msra.mxu0 0
        %868 = vmatpush.bf16.msra.mxu0 0
        %869 = vmatpush.bf16.msra.mxu0 0
        %870 = vmatpush.bf16.msra.mxu0 0
        %871 = vmatpush.bf16.msra.mxu0 %v862
        %872 = vmatmul.bf16.gmra.mxu0 %v859
        %v873 = vpop.f32.mrf.mxu0
        %v874 = vadd.f32 0.0, %v873
        %v875 = vpop.f32.mrf.mxu0
        %876 = vdwg.mxu0
        %878 = vrot.lane.b32.xlu0 %v874, 64
        %v879 = vpop.permute.xlu0 %878
        %v881 = vsel %vm761, %v815, %v879
        %v882 = vpack.c.bf16 %v881, %v881
        %v883 = vld [vmem:[%s4] sm:$0xf]
        %v884 = vld [vmem:[%s4 + $0x4] sm:$0xf]
        %v885 = vld [vmem:[%s4 + $0x8] sm:$0xf]
        %v886 = vld [vmem:[%s4 + $0xc] sm:$0xf]
        %v887 = vld [vmem:[%s4 + $0x10] sm:$0xf]
        %v888 = vld [vmem:[%s4 + $0x14] sm:$0xf]
        %v889 = vld [vmem:[%s4 + $0x18] sm:$0xf]
        %v890 = vld [vmem:[%s4 + $0x1c] sm:$0xf]
        %v891 = vld [vmem:[%s4 + $0x20] sm:$0xf]
        %v892 = vld [vmem:[%s4 + $0x24] sm:$0xf]
        %v893 = vld [vmem:[%s4 + $0x28] sm:$0xf]
        %v894 = vld [vmem:[%s4 + $0x2c] sm:$0xf]
        %v895 = vld [vmem:[%s4 + $0x30] sm:$0xf]
        %v896 = vld [vmem:[%s4 + $0x34] sm:$0xf]
        %v897 = vld [vmem:[%s4 + $0x38] sm:$0xf]
        %v898 = vld [vmem:[%s4 + $0x3c] sm:$0xf]
        %v915 = vunpack.c.l.b16 %v883
        %v916 = vunpack.c.l.b16 %v884
        %v917 = vunpack.c.l.b16 %v885
        %v918 = vunpack.c.l.b16 %v886
        %v919 = vunpack.c.l.b16 %v887
        %v920 = vunpack.c.l.b16 %v888
        %v921 = vunpack.c.l.b16 %v889
        %v922 = vunpack.c.l.b16 %v890
        %v923 = vunpack.c.l.b16 %v891
        %v924 = vunpack.c.l.b16 %v892
        %v925 = vunpack.c.l.b16 %v893
        %v926 = vunpack.c.l.b16 %v894
        %v927 = vunpack.c.l.b16 %v895
        %v928 = vunpack.c.l.b16 %v896
        %v929 = vunpack.c.l.b16 %v897
        %v930 = vunpack.c.l.b16 %v898
        %v931 = vpack.c.b16 %v916, %v915
        %v932 = vpack.c.b16 %v918, %v917
        %v933 = vpack.c.b16 %v920, %v919
        %v934 = vpack.c.b16 %v922, %v921
        %v935 = vpack.c.b16 %v924, %v923
        %v936 = vpack.c.b16 %v926, %v925
        %v937 = vpack.c.b16 %v928, %v927
        %v938 = vpack.c.b16 %v930, %v929
        %947 = vmatpush.bf16.msra.mxu0 %v938
        %948 = vmatpush.bf16.msra.mxu0 %v937
        %949 = vmatpush.bf16.msra.mxu0 %v936
        %950 = vmatpush.bf16.msra.mxu0 %v935
        %951 = vmatpush.bf16.msra.mxu0 %v934
        %952 = vmatpush.bf16.msra.mxu0 %v933
        %953 = vmatpush.bf16.msra.mxu0 %v932
        %954 = vmatpush.bf16.msra.mxu0 %v931
        %955 = vmatmul.bf16.gmra.mxu0 %v882
        %v956 = vpop.f32.mrf.mxu0
        %v957 = vadd.f32 0.0, %v956
        %v958 = vpop.f32.mrf.mxu0
        %959 = vdwg.mxu0
        %v960 = vadd.f32 %v517, %v957
        %v961 = vld [vmem:[%s5] sm:$0x1]
        %v963 = vperm.slane %v961, 0
        %v965 = vadd.f32 %v960, %v963
        %v966 = vld [vmem:[%s6] sm:$0x1]
        %v967 = vld [vmem:[%s7] sm:$0x1]
        %v968 = vsel %vm520, %v965, 0.0
        %969 = vadd.xlane.f32.xlu0 %v968
        %v970 = vpop.xlane.xlu0 %969
        %v971 = vmul.f32 %v970, %v530
        %v972 = vsub.f32 %v965, %v971
        %v973 = vmul.f32 %v972, %v972
        %v974 = vsel %vm520, %v973, 0.0
        %975 = vadd.xlane.f32.xlu0 %v974
        %v976 = vpop.xlane.xlu0 %975
        %v977 = vmul.f32 %v976, %v530
        %v978 = vadd.f32 %v977, 1e-05
        %v979 = vrsqrt.pop %v978
        %v980 = vmul.f32 %v979, %v978
        %v981 = vmul.f32 %v980, %v979
        %v982 = vmul.f32 0.5, %v981
        %v983 = vsub.f32 1.5, %v982
        %v984 = vmul.f32 %v979, %v983
        %vm985 = vweird.f32 %v978
        %vm986 = vweird.f32 %v979
        %vm987 = vmor %vm985, %vm986
        %v988 = vsel %vm987, %v979, %v984
        %v989 = vmul.f32 %v972, %v988
        %v991 = vperm.slane %v966, 0
        %v993 = vmul.f32 %v989, %v991
        %v995 = vperm.slane %v967, 0
        %v997 = vadd.f32 %v993, %v995
        %v998 = vpack.c.bf16 %v997, %v997
        %v999 = vld [vmem:[%s8] sm:$0xff]
        %v1000 = vld [vmem:[%s8 + $0x8] sm:$0xff]
        %v1001 = vld [vmem:[%s8 + $0x10] sm:$0xff]
        %v1002 = vld [vmem:[%s8 + $0x18] sm:$0xff]
        %v1003 = vld [vmem:[%s8 + $0x20] sm:$0xff]
        %v1004 = vld [vmem:[%s8 + $0x28] sm:$0xff]
        %v1005 = vld [vmem:[%s8 + $0x30] sm:$0xff]
        %v1006 = vld [vmem:[%s8 + $0x38] sm:$0xff]
        %v1007 = vld [vmem:[%s8 + $0x40] sm:$0xff]
        %v1008 = vld [vmem:[%s8 + $0x48] sm:$0xff]
        %v1009 = vld [vmem:[%s8 + $0x50] sm:$0xff]
        %v1010 = vld [vmem:[%s8 + $0x58] sm:$0xff]
        %v1011 = vld [vmem:[%s8 + $0x60] sm:$0xff]
        %v1012 = vld [vmem:[%s8 + $0x68] sm:$0xff]
        %v1013 = vld [vmem:[%s8 + $0x70] sm:$0xff]
        %v1014 = vld [vmem:[%s8 + $0x78] sm:$0xff]
        %v1015 = vld [vmem:[%s9] sm:$0x3]
        %v1017 = vperm.slane %v1015, 0
        %v1018 = vperm.slane %v1015, 1
        %v1037 = vunpack.c.l.b16 %v999
        %v1038 = vunpack.c.h.b16 %v999
        %v1039 = vunpack.c.l.b16 %v1000
        %v1040 = vunpack.c.h.b16 %v1000
        %v1041 = vunpack.c.l.b16 %v1001
        %v1042 = vunpack.c.h.b16 %v1001
        %v1043 = vunpack.c.l.b16 %v1002
        %v1044 = vunpack.c.h.b16 %v1002
        %v1045 = vunpack.c.l.b16 %v1003
        %v1046 = vunpack.c.h.b16 %v1003
        %v1047 = vunpack.c.l.b16 %v1004
        %v1048 = vunpack.c.h.b16 %v1004
        %v1049 = vunpack.c.l.b16 %v1005
        %v1050 = vunpack.c.h.b16 %v1005
        %v1051 = vunpack.c.l.b16 %v1006
        %v1052 = vunpack.c.h.b16 %v1006
        %v1053 = vunpack.c.l.b16 %v1007
        %v1054 = vunpack.c.h.b16 %v1007
        %v1055 = vunpack.c.l.b16 %v1008
        %v1056 = vunpack.c.h.b16 %v1008
        %v1057 = vunpack.c.l.b16 %v1009
        %v1058 = vunpack.c.h.b16 %v1009
        %v1059 = vunpack.c.l.b16 %v1010
        %v1060 = vunpack.c.h.b16 %v1010
        %v1061 = vunpack.c.l.b16 %v1011
        %v1062 = vunpack.c.h.b16 %v1011
        %v1063 = vunpack.c.l.b16 %v1012
        %v1064 = vunpack.c.h.b16 %v1012
        %v1065 = vunpack.c.l.b16 %v1013
        %v1066 = vunpack.c.h.b16 %v1013
        %v1067 = vunpack.c.l.b16 %v1014
        %v1068 = vunpack.c.h.b16 %v1014
        %v1069 = vpack.c.b16 %v1039, %v1037
        %v1070 = vpack.c.b16 %v1040, %v1038
        %v1071 = vpack.c.b16 %v1043, %v1041
        %v1072 = vpack.c.b16 %v1044, %v1042
        %v1073 = vpack.c.b16 %v1047, %v1045
        %v1074 = vpack.c.b16 %v1048, %v1046
        %v1075 = vpack.c.b16 %v1051, %v1049
        %v1076 = vpack.c.b16 %v1052, %v1050
        %v1077 = vpack.c.b16 %v1055, %v1053
        %v1078 = vpack.c.b16 %v1056, %v1054
        %v1079 = vpack.c.b16 %v1059, %v1057
        %v1080 = vpack.c.b16 %v1060, %v1058
        %v1081 = vpack.c.b16 %v1063, %v1061
        %v1082 = vpack.c.b16 %v1064, %v1062
        %v1083 = vpack.c.b16 %v1067, %v1065
        %v1084 = vpack.c.b16 %v1068, %v1066
        %1101 = vmatpush.bf16.msra.mxu0 %v1083
        %1102 = vmatpush.bf16.msra.mxu0 %v1081
        %1103 = vmatpush.bf16.msra.mxu0 %v1079
        %1104 = vmatpush.bf16.msra.mxu0 %v1077
        %1105 = vmatpush.bf16.msra.mxu0 %v1075
        %1106 = vmatpush.bf16.msra.mxu0 %v1073
        %1107 = vmatpush.bf16.msra.mxu0 %v1071
        %1108 = vmatpush.bf16.msra.mxu0 %v1069
        %1109 = vmatmul.bf16.gmra.mxu0 %v998
        %v1110 = vpop.f32.mrf.mxu0
        %v1111 = vadd.f32 %v1017, %v1110
        %v1112 = vpop.f32.mrf.mxu0
        %1113 = vdwg.mxu0
        %1114 = vmatpush.bf16.msra.mxu0 %v1084
        %1115 = vmatpush.bf16.msra.mxu0 %v1082
        %1116 = vmatpush.bf16.msra.mxu0 %v1080
        %1117 = vmatpush.bf16.msra.mxu0 %v1078
        %1118 = vmatpush.bf16.msra.mxu0 %v1076
        %1119 = vmatpush.bf16.msra.mxu0 %v1074
        %1120 = vmatpush.bf16.msra.mxu0 %v1072
        %1121 = vmatpush.bf16.msra.mxu0 %v1070
        %1122 = vmatmul.bf16.gmra.mxu0 %v998
        %v1123 = vpop.f32.mrf.mxu0
        %v1124 = vadd.f32 %v1018, %v1123
        %v1125 = vpop.f32.mrf.mxu0
        %1126 = vdwg.mxu0
        %v1127 = vmul.f32 %v1111, 0.5
        %v1128 = vmul.f32 %v1124, 0.5
        %v1129 = vmul.f32 %v1111, 0.044715
        %v1130 = vmul.f32 %v1124, 0.044715
        %v1131 = vmul.f32 %v1129, %v1111
        %v1132 = vmul.f32 %v1130, %v1124
        %v1133 = vmul.f32 %v1131, %v1111
        %v1134 = vmul.f32 %v1132, %v1124
        %v1135 = vadd.f32 %v1111, %v1133
        %v1136 = vadd.f32 %v1124, %v1134
        %v1137 = vmul.f32 %v1135, 0.7978846
        %v1138 = vmul.f32 %v1136, 0.7978846
        %v1139 = vtanh.pop %v1137
        %v1140 = vtanh.pop %v1138
        %v1141 = vadd.f32 %v1139, 1.0
        %v1142 = vadd.f32 %v1140, 1.0
        %v1143 = vmul.f32 %v1127, %v1141
        %v1144 = vmul.f32 %v1128, %v1142
        %v1145 = vpack.c.bf16 %v1143, %v1143
        %v1146 = vpack.c.bf16 %v1144, %v1144
        %v1147 = vld [vmem:[%s10] sm:$0xf]
        %v1148 = vld [vmem:[%s10 + $0x4] sm:$0xf]
        %v1149 = vld [vmem:[%s10 + $0x8] sm:$0xf]
        %v1150 = vld [vmem:[%s10 + $0xc] sm:$0xf]
        %v1151 = vld [vmem:[%s10 + $0x10] sm:$0xf]
        %v1152 = vld [vmem:[%s10 + $0x14] sm:$0xf]
        %v1153 = vld [vmem:[%s10 + $0x18] sm:$0xf]
        %v1154 = vld [vmem:[%s10 + $0x1c] sm:$0xf]
        %v1155 = vld [vmem:[%s10 + $0x20] sm:$0xf]
        %v1156 = vld [vmem:[%s10 + $0x24] sm:$0xf]
        %v1157 = vld [vmem:[%s10 + $0x28] sm:$0xf]
        %v1158 = vld [vmem:[%s10 + $0x2c] sm:$0xf]
        %v1159 = vld [vmem:[%s10 + $0x30] sm:$0xf]
        %v1160 = vld [vmem:[%s10 + $0x34] sm:$0xf]
        %v1161 = vld [vmem:[%s10 + $0x38] sm:$0xf]
        %v1162 = vld [vmem:[%s10 + $0x3c] sm:$0xf]
        %v1163 = vld [vmem:[%s10 + $0x40] sm:$0xf]
        %v1164 = vld [vmem:[%s10 + $0x44] sm:$0xf]
        %v1165 = vld [vmem:[%s10 + $0x48] sm:$0xf]
        %v1166 = vld [vmem:[%s10 + $0x4c] sm:$0xf]
        %v1167 = vld [vmem:[%s10 + $0x50] sm:$0xf]
        %v1168 = vld [vmem:[%s10 + $0x54] sm:$0xf]
        %v1169 = vld [vmem:[%s10 + $0x58] sm:$0xf]
        %v1170 = vld [vmem:[%s10 + $0x5c] sm:$0xf]
        %v1171 = vld [vmem:[%s10 + $0x60] sm:$0xf]
        %v1172 = vld [vmem:[%s10 + $0x64] sm:$0xf]
        %v1173 = vld [vmem:[%s10 + $0x68] sm:$0xf]
        %v1174 = vld [vmem:[%s10 + $0x6c] sm:$0xf]
        %v1175 = vld [vmem:[%s10 + $0x70] sm:$0xf]
        %v1176 = vld [vmem:[%s10 + $0x74] sm:$0xf]
        %v1177 = vld [vmem:[%s10 + $0x78] sm:$0xf]
        %v1178 = vld [vmem:[%s10 + $0x7c] sm:$0xf]
        %v1211 = vunpack.c.l.b16 %v1147
        %v1212 = vunpack.c.l.b16 %v1148
        %v1213 = vunpack.c.l.b16 %v1149
        %v1214 = vunpack.c.l.b16 %v1150
        %v1215 = vunpack.c.l.b16 %v1151
        %v1216 = vunpack.c.l.b16 %v1152
        %v1217 = vunpack.c.l.b16 %v1153
        %v1218 = vunpack.c.l.b16 %v1154
        %v1219 = vunpack.c.l.b16 %v1155
        %v1220 = vunpack.c.l.b16 %v1156
        %v1221 = vunpack.c.l.b16 %v1157
        %v1222 = vunpack.c.l.b16 %v1158
        %v1223 = vunpack.c.l.b16 %v1159
        %v1224 = vunpack.c.l.b16 %v1160
        %v1225 = vunpack.c.l.b16 %v1161
        %v1226 = vunpack.c.l.b16 %v1162
        %v1227 = vunpack.c.l.b16 %v1163
        %v1228 = vunpack.c.l.b16 %v1164
        %v1229 = vunpack.c.l.b16 %v1165
        %v1230 = vunpack.c.l.b16 %v1166
        %v1231 = vunpack.c.l.b16 %v1167
        %v1232 = vunpack.c.l.b16 %v1168
        %v1233 = vunpack.c.l.b16 %v1169
        %v1234 = vunpack.c.l.b16 %v1170
        %v1235 = vunpack.c.l.b16 %v1171
        %v1236 = vunpack.c.l.b16 %v1172
        %v1237 = vunpack.c.l.b16 %v1173
        %v1238 = vunpack.c.l.b16 %v1174
        %v1239 = vunpack.c.l.b16 %v1175
        %v1240 = vunpack.c.l.b16 %v1176
        %v1241 = vunpack.c.l.b16 %v1177
        %v1242 = vunpack.c.l.b16 %v1178
        %v1243 = vpack.c.b16 %v1212, %v1211
        %v1244 = vpack.c.b16 %v1214, %v1213
        %v1245 = vpack.c.b16 %v1216, %v1215
        %v1246 = vpack.c.b16 %v1218, %v1217
        %v1247 = vpack.c.b16 %v1220, %v1219
        %v1248 = vpack.c.b16 %v1222, %v1221
        %v1249 = vpack.c.b16 %v1224, %v1223
        %v1250 = vpack.c.b16 %v1226, %v1225
        %v1251 = vpack.c.b16 %v1228, %v1227
        %v1252 = vpack.c.b16 %v1230, %v1229
        %v1253 = vpack.c.b16 %v1232, %v1231
        %v1254 = vpack.c.b16 %v1234, %v1233
        %v1255 = vpack.c.b16 %v1236, %v1235
        %v1256 = vpack.c.b16 %v1238, %v1237
        %v1257 = vpack.c.b16 %v1240, %v1239
        %v1258 = vpack.c.b16 %v1242, %v1241
        %1275 = vmatpush.bf16.msra.mxu0 %v1250
        %1276 = vmatpush.bf16.msra.mxu0 %v1249
        %1277 = vmatpush.bf16.msra.mxu0 %v1248
        %1278 = vmatpush.bf16.msra.mxu0 %v1247
        %1279 = vmatpush.bf16.msra.mxu0 %v1246
        %1280 = vmatpush.bf16.msra.mxu0 %v1245
        %1281 = vmatpush.bf16.msra.mxu0 %v1244
        %1282 = vmatpush.bf16.msra.mxu0 %v1243
        %1283 = vmatmul.bf16.gmra.mxu0 %v1145
        %v1284 = vpop.f32.mrf.mxu0
        %v1285 = vadd.f32 0.0, %v1284
        %v1286 = vpop.f32.mrf.mxu0
        %1287 = vdwg.mxu0
        %1288 = vmatpush.bf16.msra.mxu0 %v1258
        %1289 = vmatpush.bf16.msra.mxu0 %v1257
        %1290 = vmatpush.bf16.msra.mxu0 %v1256
        %1291 = vmatpush.bf16.msra.mxu0 %v1255
        %1292 = vmatpush.bf16.msra.mxu0 %v1254
        %1293 = vmatpush.bf16.msra.mxu0 %v1253
        %1294 = vmatpush.bf16.msra.mxu0 %v1252
        %1295 = vmatpush.bf16.msra.mxu0 %v1251
        %1296 = vmatmul.bf16.gmra.mxu0 %v1146
        %v1297 = vpop.f32.mrf.mxu0
        %v1298 = vadd.f32 %v1285, %v1297
        %v1299 = vpop.f32.mrf.mxu0
        %1300 = vdwg.mxu0
        %v1301 = vadd.f32 %v965, %v1298
        %v1302 = vld [vmem:[%s11] sm:$0x1]
        %v1304 = vperm.slane %v1302, 0
        %v1306 = vadd.f32 %v1301, %v1304
        %s1307 = scalar_lea.vmem %s1, 1
        %v1308 = vld [vmem:[%s1307] sm:$0x1]
        %s1309 = scalar_lea.vmem %s2, 1
        %v1310 = vld [vmem:[%s1309] sm:$0x1]
        %v1311 = vsel %vm520, %v1306, 0.0
        %1312 = vadd.xlane.f32.xlu0 %v1311
        %v1313 = vpop.xlane.xlu0 %1312
        %v1314 = vmul.f32 %v1313, %v530
        %v1315 = vsub.f32 %v1306, %v1314
        %v1316 = vmul.f32 %v1315, %v1315
        %v1317 = vsel %vm520, %v1316, 0.0
        %1318 = vadd.xlane.f32.xlu0 %v1317
        %v1319 = vpop.xlane.xlu0 %1318
        %v1320 = vmul.f32 %v1319, %v530
        %v1321 = vadd.f32 %v1320, 1e-05
        %v1322 = vrsqrt.pop %v1321
        %v1323 = vmul.f32 %v1322, %v1321
        %v1324 = vmul.f32 %v1323, %v1322
        %v1325 = vmul.f32 0.5, %v1324
        %v1326 = vsub.f32 1.5, %v1325
        %v1327 = vmul.f32 %v1322, %v1326
        %vm1328 = vweird.f32 %v1321
        %vm1329 = vweird.f32 %v1322
        %vm1330 = vmor %vm1328, %vm1329
        %v1331 = vsel %vm1330, %v1322, %v1327
        %v1332 = vmul.f32 %v1315, %v1331
        %v1334 = vperm.slane %v1308, 0
        %v1336 = vmul.f32 %v1332, %v1334
        %v1338 = vperm.slane %v1310, 0
        %v1340 = vadd.f32 %v1336, %v1338
        %v1341 = vpack.c.bf16 %v1340, %v1340
        %s1342 = scalar_lea.vmem %s3, 192
        %v1343 = vld [vmem:[%s1342] sm:$0xff]
        %v1344 = vld [vmem:[%s1342 + $0x8] sm:$0xf]
        %v1345 = vld [vmem:[%s1342 + $0xc] sm:$0xff]
        %v1346 = vld [vmem:[%s1342 + $0x14] sm:$0xf]
        %v1347 = vld [vmem:[%s1342 + $0x18] sm:$0xff]
        %v1348 = vld [vmem:[%s1342 + $0x20] sm:$0xf]
        %v1349 = vld [vmem:[%s1342 + $0x24] sm:$0xff]
        %v1350 = vld [vmem:[%s1342 + $0x2c] sm:$0xf]
        %v1351 = vld [vmem:[%s1342 + $0x30] sm:$0xff]
        %v1352 = vld [vmem:[%s1342 + $0x38] sm:$0xf]
        %v1353 = vld [vmem:[%s1342 + $0x3c] sm:$0xff]
        %v1354 = vld [vmem:[%s1342 + $0x44] sm:$0xf]
        %v1355 = vld [vmem:[%s1342 + $0x48] sm:$0xff]
        %v1356 = vld [vmem:[%s1342 + $0x50] sm:$0xf]
        %v1357 = vld [vmem:[%s1342 + $0x54] sm:$0xff]
        %v1358 = vld [vmem:[%s1342 + $0x5c] sm:$0xf]
        %v1359 = vld [vmem:[%s1342 + $0x60] sm:$0xff]
        %v1360 = vld [vmem:[%s1342 + $0x68] sm:$0xf]
        %v1361 = vld [vmem:[%s1342 + $0x6c] sm:$0xff]
        %v1362 = vld [vmem:[%s1342 + $0x74] sm:$0xf]
        %v1363 = vld [vmem:[%s1342 + $0x78] sm:$0xff]
        %v1364 = vld [vmem:[%s1342 + $0x80] sm:$0xf]
        %v1365 = vld [vmem:[%s1342 + $0x84] sm:$0xff]
        %v1366 = vld [vmem:[%s1342 + $0x8c] sm:$0xf]
        %v1367 = vld [vmem:[%s1342 + $0x90] sm:$0xff]
        %v1368 = vld [vmem:[%s1342 + $0x98] sm:$0xf]
        %v1369 = vld [vmem:[%s1342 + $0x9c] sm:$0xff]
        %v1370 = vld [vmem:[%s1342 + $0xa4] sm:$0xf]
        %v1371 = vld [vmem:[%s1342 + $0xa8] sm:$0xff]
        %v1372 = vld [vmem:[%s1342 + $0xb0] sm:$0xf]
        %v1373 = vld [vmem:[%s1342 + $0xb4] sm:$0xff]
        %v1374 = vld [vmem:[%s1342 + $0xbc] sm:$0xf]
        %v1407 = vunpack.c.l.b16 %v1343
        %v1408 = vunpack.c.h.b16 %v1343
        %v1409 = vunpack.c.l.b16 %v1344
        %v1410 = vunpack.c.l.b16 %v1345
        %v1411 = vunpack.c.h.b16 %v1345
        %v1412 = vunpack.c.l.b16 %v1346
        %v1413 = vunpack.c.l.b16 %v1347
        %v1414 = vunpack.c.h.b16 %v1347
        %v1415 = vunpack.c.l.b16 %v1348
        %v1416 = vunpack.c.l.b16 %v1349
        %v1417 = vunpack.c.h.b16 %v1349
        %v1418 = vunpack.c.l.b16 %v1350
        %v1419 = vunpack.c.l.b16 %v1351
        %v1420 = vunpack.c.h.b16 %v1351
        %v1421 = vunpack.c.l.b16 %v1352
        %v1422 = vunpack.c.l.b16 %v1353
        %v1423 = vunpack.c.h.b16 %v1353
        %v1424 = vunpack.c.l.b16 %v1354
        %v1425 = vunpack.c.l.b16 %v1355
        %v1426 = vunpack.c.h.b16 %v1355
        %v1427 = vunpack.c.l.b16 %v1356
        %v1428 = vunpack.c.l.b16 %v1357
        %v1429 = vunpack.c.h.b16 %v1357
        %v1430 = vunpack.c.l.b16 %v1358
        %v1431 = vunpack.c.l.b16 %v1359
        %v1432 = vunpack.c.h.b16 %v1359
        %v1433 = vunpack.c.l.b16 %v1360
        %v1434 = vunpack.c.l.b16 %v1361
        %v1435 = vunpack.c.h.b16 %v1361
        %v1436 = vunpack.c.l.b16 %v1362
        %v1437 = vunpack.c.l.b16 %v1363
        %v1438 = vunpack.c.h.b16 %v1363
        %v1439 = vunpack.c.l.b16 %v1364
        %v1440 = vunpack.c.l.b16 %v1365
        %v1441 = vunpack.c.h.b16 %v1365
        %v1442 = vunpack.c.l.b16 %v1366
        %v1443 = vunpack.c.l.b16 %v1367
        %v1444 = vunpack.c.h.b16 %v1367
        %v1445 = vunpack.c.l.b16 %v1368
        %v1446 = vunpack.c.l.b16 %v1369
        %v1447 = vunpack.c.h.b16 %v1369
        %v1448 = vunpack.c.l.b16 %v1370
        %v1449 = vunpack.c.l.b16 %v1371
        %v1450 = vunpack.c.h.b16 %v1371
        %v1451 = vunpack.c.l.b16 %v1372
        %v1452 = vunpack.c.l.b16 %v1373
        %v1453 = vunpack.c.h.b16 %v1373
        %v1454 = vunpack.c.l.b16 %v1374
        %v1455 = vpack.c.b16 %v1410, %v1407
        %v1456 = vpack.c.b16 %v1411, %v1408
        %v1457 = vpack.c.b16 %v1412, %v1409
        %v1458 = vpack.c.b16 %v1416, %v1413
        %v1459 = vpack.c.b16 %v1417, %v1414
        %v1460 = vpack.c.b16 %v1418, %v1415
        %v1461 = vpack.c.b16 %v1422, %v1419
        %v1462 = vpack.c.b16 %v1423, %v1420
        %v1463 = vpack.c.b16 %v1424, %v1421
        %v1464 = vpack.c.b16 %v1428, %v1425
        %v1465 = vpack.c.b16 %v1429, %v1426
        %v1466 = vpack.c.b16 %v1430, %v1427
        %v1467 = vpack.c.b16 %v1434, %v1431
        %v1468 = vpack.c.b16 %v1435, %v1432
        %v1469 = vpack.c.b16 %v1436, %v1433
        %v1470 = vpack.c.b16 %v1440, %v1437
        %v1471 = vpack.c.b16 %v1441, %v1438
        %v1472 = vpack.c.b16 %v1442, %v1439
        %v1473 = vpack.c.b16 %v1446, %v1443
        %v1474 = vpack.c.b16 %v1447, %v1444
        %v1475 = vpack.c.b16 %v1448, %v1445
        %v1476 = vpack.c.b16 %v1452, %v1449
        %v1477 = vpack.c.b16 %v1453, %v1450
        %v1478 = vpack.c.b16 %v1454, %v1451
        %1503 = vmatpush.bf16.msra.mxu0 %v1476
        %1504 = vmatpush.bf16.msra.mxu0 %v1473
        %1505 = vmatpush.bf16.msra.mxu0 %v1470
        %1506 = vmatpush.bf16.msra.mxu0 %v1467
        %1507 = vmatpush.bf16.msra.mxu0 %v1464
        %1508 = vmatpush.bf16.msra.mxu0 %v1461
        %1509 = vmatpush.bf16.msra.mxu0 %v1458
        %1510 = vmatpush.bf16.msra.mxu0 %v1455
        %1511 = vmatmul.bf16.gmra.mxu0 %v1341
        %v1512 = vpop.f32.mrf.mxu0
        %v1513 = vadd.f32 0.0, %v1512
        %v1514 = vpop.f32.mrf.mxu0
        %1515 = vdwg.mxu0
        %1516 = vmatpush.bf16.msra.mxu0 %v1477
        %1517 = vmatpush.bf16.msra.mxu0 %v1474
        %1518 = vmatpush.bf16.msra.mxu0 %v1471
        %1519 = vmatpush.bf16.msra.mxu0 %v1468
        %1520 = vmatpush.bf16.msra.mxu0 %v1465
        %1521 = vmatpush.bf16.msra.mxu0 %v1462
        %1522 = vmatpush.bf16.msra.mxu0 %v1459
        %1523 = vmatpush.bf16.msra.mxu0 %v1456
        %1524 = vmatmul.bf16.gmra.mxu0 %v1341
        %v1525 = vpop.f32.mrf.mxu0
        %v1526 = vadd.f32 0.0, %v1525
        %v1527 = vpop.f32.mrf.mxu0
        %1528 = vdwg.mxu0
        %1529 = vmatpush.bf16.msra.mxu0 %v1478
        %1530 = vmatpush.bf16.msra.mxu0 %v1475
        %1531 = vmatpush.bf16.msra.mxu0 %v1472
        %1532 = vmatpush.bf16.msra.mxu0 %v1469
        %1533 = vmatpush.bf16.msra.mxu0 %v1466
        %1534 = vmatpush.bf16.msra.mxu0 %v1463
        %1535 = vmatpush.bf16.msra.mxu0 %v1460
        %1536 = vmatpush.bf16.msra.mxu0 %v1457
        %1537 = vmatmul.bf16.gmra.mxu0 %v1341
        %v1538 = vpop.f32.mrf.mxu0
        %v1539 = vadd.f32 0.0, %v1538
        %v1540 = vpop.f32.mrf.mxu0
        %1541 = vdwg.mxu0
        %v1542 = vpack.c.bf16 %v1513, %v1513
        %v1543 = vpack.c.bf16 %v1526, %v1526
        %v1544 = vpack.c.bf16 %v1539, %v1539
        %v1546 = vsel %vm761, %v1542, 0
        %v1549 = vsel %vm761, %v1543, 0
        %1551 = vmatpush.bf16.xpose.msra.mxu0 0
        %1552 = vmatpush.bf16.xpose.msra.mxu0 0
        %1553 = vmatpush.bf16.xpose.msra.mxu0 0
        %1554 = vmatpush.bf16.xpose.msra.mxu0 0
        %1555 = vmatpush.bf16.xpose.msra.mxu0 0
        %1556 = vmatpush.bf16.xpose.msra.mxu0 0
        %1557 = vmatpush.bf16.xpose.msra.mxu0 0
        %1558 = vmatpush.bf16.xpose.msra.mxu0 %v1549
        %1559 = vmatmul.bf16.gmra.mxu0 %v1546
        %v1560 = vpop.f32.mrf.mxu0
        %v1561 = vadd.f32 0.0, %v1560
        %v1562 = vpop.f32.mrf.mxu0
        %1563 = vdwg.mxu0
        %v1564 = vsel %vm781, %v1561, -inf
        %1565 = vmax.xlane.f32.xlu0 %v1564
        %v1566 = vpop.xlane.xlu0 %1565
        %v1567 = vsub.f32 %v1561, %v1566
        %v1568 = vmul.f32 %v1567, 1.442695
        %v1569 = vpow.pop %v1568
        %v1570 = vsel %vm781, %v1569, 0.0
        %1571 = vadd.xlane.f32.xlu0 %v1570
        %v1572 = vpop.xlane.xlu0 %1571
        %v1573 = vrcp.pop %v1572
        %v1574 = vmul.f32 %v1569, %v1573
        %v1575 = vpack.c.bf16 %v1574, %v1574
        %v1577 = vsel %vm794, %v1575, 0
        %v1580 = vand.u32 %v1544, %v801
        %1582 = vmatpush.bf16.msra.mxu0 0
        %1583 = vmatpush.bf16.msra.mxu0 0
        %1584 = vmatpush.bf16.msra.mxu0 0
        %1585 = vmatpush.bf16.msra.mxu0 0
        %1586 = vmatpush.bf16.msra.mxu0 0
        %1587 = vmatpush.bf16.msra.mxu0 0
        %1588 = vmatpush.bf16.msra.mxu0 0
        %1589 = vmatpush.bf16.msra.mxu0 %v1580
        %1590 = vmatmul.bf16.gmra.mxu0 %v1577
        %v1591 = vpop.f32.mrf.mxu0
        %v1592 = vadd.f32 0.0, %v1591
        %v1593 = vpop.f32.mrf.mxu0
        %1594 = vdwg.mxu0
        %1596 = vrot.lane.b32.xlu0 %v1542, 64
        %v1597 = vpop.permute.xlu0 %1596
        %1599 = vrot.lane.b32.xlu0 %v1543, 64
        %v1600 = vpop.permute.xlu0 %1599
        %v1602 = vsel %vm761, %v1597, 0
        %v1605 = vsel %vm761, %v1600, 0
        %1607 = vmatpush.bf16.xpose.msra.mxu0 0
        %1608 = vmatpush.bf16.xpose.msra.mxu0 0
        %1609 = vmatpush.bf16.xpose.msra.mxu0 0
        %1610 = vmatpush.bf16.xpose.msra.mxu0 0
        %1611 = vmatpush.bf16.xpose.msra.mxu0 0
        %1612 = vmatpush.bf16.xpose.msra.mxu0 0
        %1613 = vmatpush.bf16.xpose.msra.mxu0 0
        %1614 = vmatpush.bf16.xpose.msra.mxu0 %v1605
        %1615 = vmatmul.bf16.gmra.mxu0 %v1602
        %v1616 = vpop.f32.mrf.mxu0
        %v1617 = vadd.f32 0.0, %v1616
        %v1618 = vpop.f32.mrf.mxu0
        %1619 = vdwg.mxu0
        %v1620 = vsel %vm781, %v1617, -inf
        %1621 = vmax.xlane.f32.xlu0 %v1620
        %v1622 = vpop.xlane.xlu0 %1621
        %v1623 = vsub.f32 %v1617, %v1622
        %v1624 = vmul.f32 %v1623, 1.442695
        %v1625 = vpow.pop %v1624
        %v1626 = vsel %vm781, %v1625, 0.0
        %1627 = vadd.xlane.f32.xlu0 %v1626
        %v1628 = vpop.xlane.xlu0 %1627
        %v1629 = vrcp.pop %v1628
        %v1630 = vmul.f32 %v1625, %v1629
        %v1631 = vpack.c.bf16 %v1630, %v1630
        %1633 = vrot.lane.b32.xlu0 %v1544, 64
        %v1634 = vpop.permute.xlu0 %1633
        %v1636 = vsel %vm794, %v1631, 0
        %v1639 = vand.u32 %v1634, %v801
        %1641 = vmatpush.bf16.msra.mxu0 0
        %1642 = vmatpush.bf16.msra.mxu0 0
        %1643 = vmatpush.bf16.msra.mxu0 0
        %1644 = vmatpush.bf16.msra.mxu0 0
        %1645 = vmatpush.bf16.msra.mxu0 0
        %1646 = vmatpush.bf16.msra.mxu0 0
        %1647 = vmatpush.bf16.msra.mxu0 0
        %1648 = vmatpush.bf16.msra.mxu0 %v1639
        %1649 = vmatmul.bf16.gmra.mxu0 %v1636
        %v1650 = vpop.f32.mrf.mxu0
        %v1651 = vadd.f32 0.0, %v1650
        %v1652 = vpop.f32.mrf.mxu0
        %1653 = vdwg.mxu0
        %1655 = vrot.lane.b32.xlu0 %v1651, 64
        %v1656 = vpop.permute.xlu0 %1655
        %v1658 = vsel %vm761, %v1592, %v1656
        %v1659 = vpack.c.bf16 %v1658, %v1658
        %s1660 = scalar_lea.vmem %s4, 64
        %v1661 = vld [vmem:[%s1660] sm:$0xf]
        %v1662 = vld [vmem:[%s1660 + $0x4] sm:$0xf]
        %v1663 = vld [vmem:[%s1660 + $0x8] sm:$0xf]
        %v1664 = vld [vmem:[%s1660 + $0xc] sm:$0xf]
        %v1665 = vld [vmem:[%s1660 + $0x10] sm:$0xf]
        %v1666 = vld [vmem:[%s1660 + $0x14] sm:$0xf]
        %v1667 = vld [vmem:[%s1660 + $0x18] sm:$0xf]
        %v1668 = vld [vmem:[%s1660 + $0x1c] sm:$0xf]
        %v1669 = vld [vmem:[%s1660 + $0x20] sm:$0xf]
        %v1670 = vld [vmem:[%s1660 + $0x24] sm:$0xf]
        %v1671 = vld [vmem:[%s1660 + $0x28] sm:$0xf]
        %v1672 = vld [vmem:[%s1660 + $0x2c] sm:$0xf]
        %v1673 = vld [vmem:[%s1660 + $0x30] sm:$0xf]
        %v1674 = vld [vmem:[%s1660 + $0x34] sm:$0xf]
        %v1675 = vld [vmem:[%s1660 + $0x38] sm:$0xf]
        %v1676 = vld [vmem:[%s1660 + $0x3c] sm:$0xf]
        %v1693 = vunpack.c.l.b16 %v1661
        %v1694 = vunpack.c.l.b16 %v1662
        %v1695 = vunpack.c.l.b16 %v1663
        %v1696 = vunpack.c.l.b16 %v1664
        %v1697 = vunpack.c.l.b16 %v1665
        %v1698 = vunpack.c.l.b16 %v1666
        %v1699 = vunpack.c.l.b16 %v1667
        %v1700 = vunpack.c.l.b16 %v1668
        %v1701 = vunpack.c.l.b16 %v1669
        %v1702 = vunpack.c.l.b16 %v1670
        %v1703 = vunpack.c.l.b16 %v1671
        %v1704 = vunpack.c.l.b16 %v1672
        %v1705 = vunpack.c.l.b16 %v1673
        %v1706 = vunpack.c.l.b16 %v1674
        %v1707 = vunpack.c.l.b16 %v1675
        %v1708 = vunpack.c.l.b16 %v1676
        %v1709 = vpack.c.b16 %v1694, %v1693
        %v1710 = vpack.c.b16 %v1696, %v1695
        %v1711 = vpack.c.b16 %v1698, %v1697
        %v1712 = vpack.c.b16 %v1700, %v1699
        %v1713 = vpack.c.b16 %v1702, %v1701
        %v1714 = vpack.c.b16 %v1704, %v1703
        %v1715 = vpack.c.b16 %v1706, %v1705
        %v1716 = vpack.c.b16 %v1708, %v1707
        %1725 = vmatpush.bf16.msra.mxu0 %v1716
        %1726 = vmatpush.bf16.msra.mxu0 %v1715
        %1727 = vmatpush.bf16.msra.mxu0 %v1714
        %1728 = vmatpush.bf16.msra.mxu0 %v1713
        %1729 = vmatpush.bf16.msra.mxu0 %v1712
        %1730 = vmatpush.bf16.msra.mxu0 %v1711
        %1731 = vmatpush.bf16.msra.mxu0 %v1710
        %1732 = vmatpush.bf16.msra.mxu0 %v1709
        %1733 = vmatmul.bf16.gmra.mxu0 %v1659
        %v1734 = vpop.f32.mrf.mxu0
        %v1735 = vadd.f32 0.0, %v1734
        %v1736 = vpop.f32.mrf.mxu0
        %1737 = vdwg.mxu0
        %v1738 = vadd.f32 %v1306, %v1735
        %s1739 = scalar_lea.vmem %s5, 1
        %v1740 = vld [vmem:[%s1739] sm:$0x1]
        %v1742 = vperm.slane %v1740, 0
        %v1744 = vadd.f32 %v1738, %v1742
        %s1745 = scalar_lea.vmem %s6, 1
        %v1746 = vld [vmem:[%s1745] sm:$0x1]
        %s1747 = scalar_lea.vmem %s7, 1
        %v1748 = vld [vmem:[%s1747] sm:$0x1]
        %v1749 = vsel %vm520, %v1744, 0.0
        %1750 = vadd.xlane.f32.xlu0 %v1749
        %v1751 = vpop.xlane.xlu0 %1750
        %v1752 = vmul.f32 %v1751, %v530
        %v1753 = vsub.f32 %v1744, %v1752
        %v1754 = vmul.f32 %v1753, %v1753
        %v1755 = vsel %vm520, %v1754, 0.0
        %1756 = vadd.xlane.f32.xlu0 %v1755
        %v1757 = vpop.xlane.xlu0 %1756
        %v1758 = vmul.f32 %v1757, %v530
        %v1759 = vadd.f32 %v1758, 1e-05
        %v1760 = vrsqrt.pop %v1759
        %v1761 = vmul.f32 %v1760, %v1759
        %v1762 = vmul.f32 %v1761, %v1760
        %v1763 = vmul.f32 0.5, %v1762
        %v1764 = vsub.f32 1.5, %v1763
        %v1765 = vmul.f32 %v1760, %v1764
        %vm1766 = vweird.f32 %v1759
        %vm1767 = vweird.f32 %v1760
        %vm1768 = vmor %vm1766, %vm1767
        %v1769 = vsel %vm1768, %v1760, %v1765
        %v1770 = vmul.f32 %v1753, %v1769
        %v1772 = vperm.slane %v1746, 0
        %v1774 = vmul.f32 %v1770, %v1772
        %v1776 = vperm.slane %v1748, 0
        %v1778 = vadd.f32 %v1774, %v1776
        %v1779 = vpack.c.bf16 %v1778, %v1778
        %s1780 = scalar_lea.vmem %s8, 128
        %v1781 = vld [vmem:[%s1780] sm:$0xff]
        %v1782 = vld [vmem:[%s1780 + $0x8] sm:$0xff]
        %v1783 = vld [vmem:[%s1780 + $0x10] sm:$0xff]
        %v1784 = vld [vmem:[%s1780 + $0x18] sm:$0xff]
        %v1785 = vld [vmem:[%s1780 + $0x20] sm:$0xff]
        %v1786 = vld [vmem:[%s1780 + $0x28] sm:$0xff]
        %v1787 = vld [vmem:[%s1780 + $0x30] sm:$0xff]
        %v1788 = vld [vmem:[%s1780 + $0x38] sm:$0xff]
        %v1789 = vld [vmem:[%s1780 + $0x40] sm:$0xff]
        %v1790 = vld [vmem:[%s1780 + $0x48] sm:$0xff]
        %v1791 = vld [vmem:[%s1780 + $0x50] sm:$0xff]
        %v1792 = vld [vmem:[%s1780 + $0x58] sm:$0xff]
        %v1793 = vld [vmem:[%s1780 + $0x60] sm:$0xff]
        %v1794 = vld [vmem:[%s1780 + $0x68] sm:$0xff]
        %v1795 = vld [vmem:[%s1780 + $0x70] sm:$0xff]
        %v1796 = vld [vmem:[%s1780 + $0x78] sm:$0xff]
        %s1797 = scalar_lea.vmem %s9, 2
        %v1798 = vld [vmem:[%s1797] sm:$0x3]
        %v1800 = vperm.slane %v1798, 0
        %v1801 = vperm.slane %v1798, 1
        %v1820 = vunpack.c.l.b16 %v1781
        %v1821 = vunpack.c.h.b16 %v1781
        %v1822 = vunpack.c.l.b16 %v1782
        %v1823 = vunpack.c.h.b16 %v1782
        %v1824 = vunpack.c.l.b16 %v1783
        %v1825 = vunpack.c.h.b16 %v1783
        %v1826 = vunpack.c.l.b16 %v1784
        %v1827 = vunpack.c.h.b16 %v1784
        %v1828 = vunpack.c.l.b16 %v1785
        %v1829 = vunpack.c.h.b16 %v1785
        %v1830 = vunpack.c.l.b16 %v1786
        %v1831 = vunpack.c.h.b16 %v1786
        %v1832 = vunpack.c.l.b16 %v1787
        %v1833 = vunpack.c.h.b16 %v1787
        %v1834 = vunpack.c.l.b16 %v1788
        %v1835 = vunpack.c.h.b16 %v1788
        %v1836 = vunpack.c.l.b16 %v1789
        %v1837 = vunpack.c.h.b16 %v1789
        %v1838 = vunpack.c.l.b16 %v1790
        %v1839 = vunpack.c.h.b16 %v1790
        %v1840 = vunpack.c.l.b16 %v1791
        %v1841 = vunpack.c.h.b16 %v1791
        %v1842 = vunpack.c.l.b16 %v1792
        %v1843 = vunpack.c.h.b16 %v1792
        %v1844 = vunpack.c.l.b16 %v1793
        %v1845 = vunpack.c.h.b16 %v1793
        %v1846 = vunpack.c.l.b16 %v1794
        %v1847 = vunpack.c.h.b16 %v1794
        %v1848 = vunpack.c.l.b16 %v1795
        %v1849 = vunpack.c.h.b16 %v1795
        %v1850 = vunpack.c.l.b16 %v1796
        %v1851 = vunpack.c.h.b16 %v1796
        %v1852 = vpack.c.b16 %v1822, %v1820
        %v1853 = vpack.c.b16 %v1823, %v1821
        %v1854 = vpack.c.b16 %v1826, %v1824
        %v1855 = vpack.c.b16 %v1827, %v1825
        %v1856 = vpack.c.b16 %v1830, %v1828
        %v1857 = vpack.c.b16 %v1831, %v1829
        %v1858 = vpack.c.b16 %v1834, %v1832
        %v1859 = vpack.c.b16 %v1835, %v1833
        %v1860 = vpack.c.b16 %v1838, %v1836
        %v1861 = vpack.c.b16 %v1839, %v1837
        %v1862 = vpack.c.b16 %v1842, %v1840
        %v1863 = vpack.c.b16 %v1843, %v1841
        %v1864 = vpack.c.b16 %v1846, %v1844
        %v1865 = vpack.c.b16 %v1847, %v1845
        %v1866 = vpack.c.b16 %v1850, %v1848
        %v1867 = vpack.c.b16 %v1851, %v1849
        %1884 = vmatpush.bf16.msra.mxu0 %v1866
        %1885 = vmatpush.bf16.msra.mxu0 %v1864
        %1886 = vmatpush.bf16.msra.mxu0 %v1862
        %1887 = vmatpush.bf16.msra.mxu0 %v1860
        %1888 = vmatpush.bf16.msra.mxu0 %v1858
        %1889 = vmatpush.bf16.msra.mxu0 %v1856
        %1890 = vmatpush.bf16.msra.mxu0 %v1854
        %1891 = vmatpush.bf16.msra.mxu0 %v1852
        %1892 = vmatmul.bf16.gmra.mxu0 %v1779
        %v1893 = vpop.f32.mrf.mxu0
        %v1894 = vadd.f32 %v1800, %v1893
        %v1895 = vpop.f32.mrf.mxu0
        %1896 = vdwg.mxu0
        %1897 = vmatpush.bf16.msra.mxu0 %v1867
        %1898 = vmatpush.bf16.msra.mxu0 %v1865
        %1899 = vmatpush.bf16.msra.mxu0 %v1863
        %1900 = vmatpush.bf16.msra.mxu0 %v1861
        %1901 = vmatpush.bf16.msra.mxu0 %v1859
        %1902 = vmatpush.bf16.msra.mxu0 %v1857
        %1903 = vmatpush.bf16.msra.mxu0 %v1855
        %1904 = vmatpush.bf16.msra.mxu0 %v1853
        %1905 = vmatmul.bf16.gmra.mxu0 %v1779
        %v1906 = vpop.f32.mrf.mxu0
        %v1907 = vadd.f32 %v1801, %v1906
        %v1908 = vpop.f32.mrf.mxu0
        %1909 = vdwg.mxu0
        %v1910 = vmul.f32 %v1894, 0.5
        %v1911 = vmul.f32 %v1907, 0.5
        %v1912 = vmul.f32 %v1894, 0.044715
        %v1913 = vmul.f32 %v1907, 0.044715
        %v1914 = vmul.f32 %v1912, %v1894
        %v1915 = vmul.f32 %v1913, %v1907
        %v1916 = vmul.f32 %v1914, %v1894
        %v1917 = vmul.f32 %v1915, %v1907
        %v1918 = vadd.f32 %v1894, %v1916
        %v1919 = vadd.f32 %v1907, %v1917
        %v1920 = vmul.f32 %v1918, 0.7978846
        %v1921 = vmul.f32 %v1919, 0.7978846
        %v1922 = vtanh.pop %v1920
        %v1923 = vtanh.pop %v1921
        %v1924 = vadd.f32 %v1922, 1.0
        %v1925 = vadd.f32 %v1923, 1.0
        %v1926 = vmul.f32 %v1910, %v1924
        %v1927 = vmul.f32 %v1911, %v1925
        %v1928 = vpack.c.bf16 %v1926, %v1926
        %v1929 = vpack.c.bf16 %v1927, %v1927
        %s1930 = scalar_lea.vmem %s10, 128
        %v1931 = vld [vmem:[%s1930] sm:$0xf]
        %v1932 = vld [vmem:[%s1930 + $0x4] sm:$0xf]
        %v1933 = vld [vmem:[%s1930 + $0x8] sm:$0xf]
        %v1934 = vld [vmem:[%s1930 + $0xc] sm:$0xf]
        %v1935 = vld [vmem:[%s1930 + $0x10] sm:$0xf]
        %v1936 = vld [vmem:[%s1930 + $0x14] sm:$0xf]
        %v1937 = vld [vmem:[%s1930 + $0x18] sm:$0xf]
        %v1938 = vld [vmem:[%s1930 + $0x1c] sm:$0xf]
        %v1939 = vld [vmem:[%s1930 + $0x20] sm:$0xf]
        %v1940 = vld [vmem:[%s1930 + $0x24] sm:$0xf]
        %v1941 = vld [vmem:[%s1930 + $0x28] sm:$0xf]
        %v1942 = vld [vmem:[%s1930 + $0x2c] sm:$0xf]
        %v1943 = vld [vmem:[%s1930 + $0x30] sm:$0xf]
        %v1944 = vld [vmem:[%s1930 + $0x34] sm:$0xf]
        %v1945 = vld [vmem:[%s1930 + $0x38] sm:$0xf]
        %v1946 = vld [vmem:[%s1930 + $0x3c] sm:$0xf]
        %v1947 = vld [vmem:[%s1930 + $0x40] sm:$0xf]
        %v1948 = vld [vmem:[%s1930 + $0x44] sm:$0xf]
        %v1949 = vld [vmem:[%s1930 + $0x48] sm:$0xf]
        %v1950 = vld [vmem:[%s1930 + $0x4c] sm:$0xf]
        %v1951 = vld [vmem:[%s1930 + $0x50] sm:$0xf]
        %v1952 = vld [vmem:[%s1930 + $0x54] sm:$0xf]
        %v1953 = vld [vmem:[%s1930 + $0x58] sm:$0xf]
        %v1954 = vld [vmem:[%s1930 + $0x5c] sm:$0xf]
        %v1955 = vld [vmem:[%s1930 + $0x60] sm:$0xf]
        %v1956 = vld [vmem:[%s1930 + $0x64] sm:$0xf]
        %v1957 = vld [vmem:[%s1930 + $0x68] sm:$0xf]
        %v1958 = vld [vmem:[%s1930 + $0x6c] sm:$0xf]
        %v1959 = vld [vmem:[%s1930 + $0x70] sm:$0xf]
        %v1960 = vld [vmem:[%s1930 + $0x74] sm:$0xf]
        %v1961 = vld [vmem:[%s1930 + $0x78] sm:$0xf]
        %v1962 = vld [vmem:[%s1930 + $0x7c] sm:$0xf]
        %v1995 = vunpack.c.l.b16 %v1931
        %v1996 = vunpack.c.l.b16 %v1932
        %v1997 = vunpack.c.l.b16 %v1933
        %v1998 = vunpack.c.l.b16 %v1934
        %v1999 = vunpack.c.l.b16 %v1935
        %v2000 = vunpack.c.l.b16 %v1936
        %v2001 = vunpack.c.l.b16 %v1937
        %v2002 = vunpack.c.l.b16 %v1938
        %v2003 = vunpack.c.l.b16 %v1939
        %v2004 = vunpack.c.l.b16 %v1940
        %v2005 = vunpack.c.l.b16 %v1941
        %v2006 = vunpack.c.l.b16 %v1942
        %v2007 = vunpack.c.l.b16 %v1943
        %v2008 = vunpack.c.l.b16 %v1944
        %v2009 = vunpack.c.l.b16 %v1945
        %v2010 = vunpack.c.l.b16 %v1946
        %v2011 = vunpack.c.l.b16 %v1947
        %v2012 = vunpack.c.l.b16 %v1948
        %v2013 = vunpack.c.l.b16 %v1949
        %v2014 = vunpack.c.l.b16 %v1950
        %v2015 = vunpack.c.l.b16 %v1951
        %v2016 = vunpack.c.l.b16 %v1952
        %v2017 = vunpack.c.l.b16 %v1953
        %v2018 = vunpack.c.l.b16 %v1954
        %v2019 = vunpack.c.l.b16 %v1955
        %v2020 = vunpack.c.l.b16 %v1956
        %v2021 = vunpack.c.l.b16 %v1957
        %v2022 = vunpack.c.l.b16 %v1958
        %v2023 = vunpack.c.l.b16 %v1959
        %v2024 = vunpack.c.l.b16 %v1960
        %v2025 = vunpack.c.l.b16 %v1961
        %v2026 = vunpack.c.l.b16 %v1962
        %v2027 = vpack.c.b16 %v1996, %v1995
        %v2028 = vpack.c.b16 %v1998, %v1997
        %v2029 = vpack.c.b16 %v2000, %v1999
        %v2030 = vpack.c.b16 %v2002, %v2001
        %v2031 = vpack.c.b16 %v2004, %v2003
        %v2032 = vpack.c.b16 %v2006, %v2005
        %v2033 = vpack.c.b16 %v2008, %v2007
        %v2034 = vpack.c.b16 %v2010, %v2009
        %v2035 = vpack.c.b16 %v2012, %v2011
        %v2036 = vpack.c.b16 %v2014, %v2013
        %v2037 = vpack.c.b16 %v2016, %v2015
        %v2038 = vpack.c.b16 %v2018, %v2017
        %v2039 = vpack.c.b16 %v2020, %v2019
        %v2040 = vpack.c.b16 %v2022, %v2021
        %v2041 = vpack.c.b16 %v2024, %v2023
        %v2042 = vpack.c.b16 %v2026, %v2025
        %2059 = vmatpush.bf16.msra.mxu0 %v2034
        %2060 = vmatpush.bf16.msra.mxu0 %v2033
        %2061 = vmatpush.bf16.msra.mxu0 %v2032
        %2062 = vmatpush.bf16.msra.mxu0 %v2031
        %2063 = vmatpush.bf16.msra.mxu0 %v2030
        %2064 = vmatpush.bf16.msra.mxu0 %v2029
        %2065 = vmatpush.bf16.msra.mxu0 %v2028
        %2066 = vmatpush.bf16.msra.mxu0 %v2027
        %2067 = vmatmul.bf16.gmra.mxu0 %v1928
        %v2068 = vpop.f32.mrf.mxu0
        %v2069 = vadd.f32 0.0, %v2068
        %v2070 = vpop.f32.mrf.mxu0
        %2071 = vdwg.mxu0
        %2072 = vmatpush.bf16.msra.mxu0 %v2042
        %2073 = vmatpush.bf16.msra.mxu0 %v2041
        %2074 = vmatpush.bf16.msra.mxu0 %v2040
        %2075 = vmatpush.bf16.msra.mxu0 %v2039
        %2076 = vmatpush.bf16.msra.mxu0 %v2038
        %2077 = vmatpush.bf16.msra.mxu0 %v2037
        %2078 = vmatpush.bf16.msra.mxu0 %v2036
        %2079 = vmatpush.bf16.msra.mxu0 %v2035
        %2080 = vmatmul.bf16.gmra.mxu0 %v1929
        %v2081 = vpop.f32.mrf.mxu0
        %v2082 = vadd.f32 %v2069, %v2081
        %v2083 = vpop.f32.mrf.mxu0
        %2084 = vdwg.mxu0
        %v2085 = vadd.f32 %v1744, %v2082
        %s2086 = scalar_lea.vmem %s11, 1
        %v2087 = vld [vmem:[%s2086] sm:$0x1]
        %v2089 = vperm.slane %v2087, 0
        %v2091 = vadd.f32 %v2085, %v2089
        %v2092 = vld [vmem:[%s12] sm:$0x1]
        %v2093 = vld [vmem:[%s13] sm:$0x1]
        %vm2094 = vcmask 1040384
        %v2095 = vsel %vm2094, %v2091, 0.0
        %2096 = vadd.xlane.f32.xlu0 %v2095
        %v2097 = vpop.xlane.xlu0 %2096
        %v2098 = vmul.f32 %v2097, %v530
        %v2099 = vsub.f32 %v2091, %v2098
        %v2100 = vmul.f32 %v2099, %v2099
        %v2101 = vsel %vm2094, %v2100, 0.0
        %2102 = vadd.xlane.f32.xlu0 %v2101
        %v2103 = vpop.xlane.xlu0 %2102
        %v2104 = vmul.f32 %v2103, %v530
        %v2105 = vadd.f32 %v2104, 1e-05
        %v2106 = vrsqrt.pop %v2105
        %v2107 = vmul.f32 %v2106, %v2105
        %v2108 = vmul.f32 %v2107, %v2106
        %v2109 = vmul.f32 0.5, %v2108
        %v2110 = vsub.f32 1.5, %v2109
        %v2111 = vmul.f32 %v2106, %v2110
        %vm2112 = vweird.f32 %v2105
        %vm2113 = vweird.f32 %v2106
        %vm2114 = vmor %vm2112, %vm2113
        %v2115 = vsel %vm2114, %v2106, %v2111
        %v2116 = vmul.f32 %v2099, %v2115
        %v2117 = vmul.f32 %v2116, %v2092
        %v2118 = vadd.f32 %v2117, %v2093
        %v2119 = vpack.c.bf16 %v2118, %v2118
        %v2120 = vld [vmem:[%s14] sm:$0xf]
        %v2121 = vld [vmem:[%s14 + $0x4] sm:$0xf]
        %v2122 = vld [vmem:[%s14 + $0x8] sm:$0xf]
        %v2123 = vld [vmem:[%s14 + $0xc] sm:$0xf]
        %v2124 = vld [vmem:[%s14 + $0x10] sm:$0xf]
        %v2125 = vld [vmem:[%s14 + $0x14] sm:$0xf]
        %v2126 = vld [vmem:[%s14 + $0x18] sm:$0xf]
        %v2127 = vld [vmem:[%s14 + $0x1c] sm:$0xf]
        %v2128 = vld [vmem:[%s14 + $0x20] sm:$0xf]
        %v2129 = vld [vmem:[%s14 + $0x24] sm:$0xf]
        %v2130 = vld [vmem:[%s14 + $0x28] sm:$0xf]
        %v2131 = vld [vmem:[%s14 + $0x2c] sm:$0xf]
        %v2132 = vld [vmem:[%s14 + $0x30] sm:$0xf]
        %v2133 = vld [vmem:[%s14 + $0x34] sm:$0xf]
        %v2134 = vld [vmem:[%s14 + $0x38] sm:$0xf]
        %v2135 = vld [vmem:[%s14 + $0x3c] sm:$0xf]
        %v2136 = vld [vmem:[%s15] sm:$0x1]
        %v2153 = vunpack.c.l.b16 %v2120
        %v2154 = vunpack.c.l.b16 %v2121
        %v2155 = vunpack.c.l.b16 %v2122
        %v2156 = vunpack.c.l.b16 %v2123
        %v2157 = vunpack.c.l.b16 %v2124
        %v2158 = vunpack.c.l.b16 %v2125
        %v2159 = vunpack.c.l.b16 %v2126
        %v2160 = vunpack.c.l.b16 %v2127
        %v2161 = vunpack.c.l.b16 %v2128
        %v2162 = vunpack.c.l.b16 %v2129
        %v2163 = vunpack.c.l.b16 %v2130
        %v2164 = vunpack.c.l.b16 %v2131
        %v2165 = vunpack.c.l.b16 %v2132
        %v2166 = vunpack.c.l.b16 %v2133
        %v2167 = vunpack.c.l.b16 %v2134
        %v2168 = vunpack.c.l.b16 %v2135
        %v2169 = vpack.c.b16 %v2154, %v2153
        %v2170 = vpack.c.b16 %v2156, %v2155
        %v2171 = vpack.c.b16 %v2158, %v2157
        %v2172 = vpack.c.b16 %v2160, %v2159
        %v2173 = vpack.c.b16 %v2162, %v2161
        %v2174 = vpack.c.b16 %v2164, %v2163
        %v2175 = vpack.c.b16 %v2166, %v2165
        %v2176 = vpack.c.b16 %v2168, %v2167
        %2185 = vmatpush.bf16.msra.mxu0 %v2176
        %2186 = vmatpush.bf16.msra.mxu0 %v2175
        %2187 = vmatpush.bf16.msra.mxu0 %v2174
        %2188 = vmatpush.bf16.msra.mxu0 %v2173
        %2189 = vmatpush.bf16.msra.mxu0 %v2172
        %2190 = vmatpush.bf16.msra.mxu0 %v2171
        %2191 = vmatpush.bf16.msra.mxu0 %v2170
        %2192 = vmatpush.bf16.msra.mxu0 %v2169
        %2193 = vmatmul.bf16.gmra.mxu0 %v2119
        %v2194 = vpop.f32.mrf.mxu0
        %v2195 = vadd.f32 %v2136, %v2194
        %v2196 = vpop.f32.mrf.mxu0
        %2197 = vdwg.mxu0
        %vm2198 = vcmask 73728
        %2199 = vst.msk [vmem:[%s511] sm:$0x1] %vm2198, %v2195
        %s2200 = sand.u32 %s379, 1
        %s2201 = scalar_lea.sflag [#allocation3], %s2200
        %s2202 = sand.u32 %s379, 1
        %s2203 = scalar_lea.vmem [#allocation2], %s2202
        // Predicated region
        $region85: #{early_conv_vit_forward.11} parent=83 // pred_check
          %p2204 = pneg %p389
        $region86: #{early_conv_vit_forward.11} parent=83 // pred_check_branch
          %2206 = sbr.rel (%p2204) target = $region88
        $region87: #{early_conv_vit_forward.11} parent=83 // pred_region
          %2208 = vsyncadd %s2201, 0
          %s2209 = scalar_lea.hbm %s16, %s30
          %s2211 = sshll.u32 %s2203, 4
          %s2212 = int_to_ptr.vmem [resolvable:$true] %s2211
          %s2213 = sshll.u32 %s2209, 4
          %s2214 = int_to_ptr.hbm [resolvable:$true] %s2213
          %2216 = dma.vmem_to_hbm [thread:$0]  %s2212, 16, %s2214, %s2201
        $region88: #{early_conv_vit_forward.11} parent=83 // pred_fallthru
          _
      $region84: #{early_conv_vit_forward.11} parent=5 // pred_fallthru
        _
      %p2217 = scmp.le.s32.totalorder 2, %s25
      // Predicated region
      $region89: #{early_conv_vit_forward.11} parent=5 // pred_check
        %p2218 = pneg %p2217
      $region90: #{early_conv_vit_forward.11} parent=5 // pred_check_branch
        %2220 = sbr.rel (%p2218) target = $region92
      $region91: #{early_conv_vit_forward.11} parent=5 // pred_region
        %s2221 = ssub.s32 %s25, 2
        // Predicated region
        $region93: #{early_conv_vit_forward.11} parent=91 // pred_check
          %p2222 = pneg %p395
        $region94: #{early_conv_vit_forward.11} parent=91 // pred_check_branch
          %2224 = sbr.rel (%p2222) target = $region96
        $region95: #{early_conv_vit_forward.11} parent=91 // pred_region
          %s2225 = sand.u32 %s380, 1
          %s2226 = scalar_lea.sflag [#allocation3], %s2225
          %s2227 = sand.u32 %s380, 1
          %s2228 = scalar_lea.vmem [#allocation2], %s2227
          %2230 = dma.done %s2226, 16
        $region96: #{early_conv_vit_forward.11} parent=91 // pred_fallthru
          _
      $region92: #{early_conv_vit_forward.11} parent=5 // pred_fallthru
        _
    $region6: #{early_conv_vit_forward.11} parent=1 // loop_footer
      %s29 = sadd.s32 1, %s25
    $region7: #{early_conv_vit_forward.11} parent=1 // loop_footer_branch
      %24 = sbr.rel target = $region3
    $region8: #{early_conv_vit_forward.11} parent=1 // loop_exit
      _
    %2231 = vsyncpa [#allocation3], 1
    %s2232 = scalar_lea.sflag [#allocation3], 1
    %2233 = vsyncpa %s2232, 1

</llo_original>
